<compile_context>
chip_gen: v7x
topology: tpu7x:2x2x1
jax: 0.10.0
libtpu: 0.0.40
codegen_flags: <defaults>
</compile_context>

<pallas_src>
import functools

import jax
import jax.numpy as jnp
from jax.experimental import pallas as pl
from jax.experimental.pallas import tpu as pltpu


EPS = 1e-7
_LANE = 128
_SMALL_INPUT_BYTES = 1 << 20   # below this, fused XLA elementwise wins.


def _blu_kernel(alpha_ref, beta_ref, x_ref, o_ref):
    # alpha/beta live in SMEM as (1, 1) f32 scalars.
    alpha = alpha_ref[0, 0]
    beta = beta_ref[0, 0]
    x = x_ref[...].astype(jnp.float32)            # compute in f32
    y = beta * (jnp.sqrt(x * x + alpha * alpha + EPS) - alpha) + x
    o_ref[...] = y.astype(o_ref.dtype)            # cast back to input dtype


def _blu_jnp(x, alpha, beta):
    """Pure-jnp path (reference math), used for tiny inputs and ragged tails."""
    a = jnp.float32(alpha)
    b = jnp.float32(beta)
    xf = x.astype(jnp.float32)
    y = b * (jnp.sqrt(xf * xf + a * a + EPS) - a) + xf
    return y.astype(x.dtype)


def _sublane_packing(dtype):
    # f32 -> 8, bf16/f16 -> 16, int8/fp8 -> 32 sublanes per packed vreg tile.
    return 8 * max(1, 4 // jnp.dtype(dtype).itemsize)


@functools.lru_cache(maxsize=1)
def _device_config():
    """Per-generation block-byte target / VMEM limit / min grid steps."""
    kind = ""
    try:
        kind = jax.devices()[0].device_kind.lower()
    except Exception:
        pass
    if "v7" in kind or "tpu7" in kind:
        # v7x: ~3.2 TB/s per TC, 2 TCs, 32 MiB scoped / 64 MiB physical VMEM.
        # 4 MiB blocks double-buffered for in+out = 16 MiB, under 24 MiB limit.
        return {"block_bytes": 4 << 20, "vmem_limit": 24 << 20, "min_grid": 2}
    if "v6" in kind or "6e" in kind:
        # v6e: 32 MiB scoped default; 4 MiB blocks are a free small win.
        return {"block_bytes": 4 << 20, "vmem_limit": 24 << 20, "min_grid": 1}
    # v5e (16 MiB scoped default) and unknown/older chips: stay at ~2 MiB.
    return {"block_bytes": 2 << 20, "vmem_limit": None, "min_grid": 1}


def _run_blu_2d(x2d, alpha, beta):
    rows, lanes = x2d.shape
    dtype = x2d.dtype
    itemsize = jnp.dtype(dtype).itemsize
    packing = _sublane_packing(dtype)
    cfg = _device_config()

    # Row tile sized by BYTES so bf16/int8 keep the f32-equivalent DMA burst.
    tr = cfg["block_bytes"] // (lanes * itemsize)
    tr = max(packing, (tr // packing) * packing)
    if cfg["min_grid"] >= 2 and rows > packing:
        # Guarantee >=2 grid steps so both v7x TensorCores stream.
        half = pl.cdiv(rows, 2)
        half = pl.cdiv(half, packing) * packing
        tr = min(tr, max(packing, half))
    tr = min(tr, rows)                 # block dim == full dim is always legal
    grid = (pl.cdiv(rows, tr),)        # ragged last block is masked by Pallas

    n = rows * lanes
    cost = pl.CostEstimate(flops=6 * n, transcendentals=n,
                           bytes_accessed=2 * n * itemsize)

    alpha_arr = jnp.asarray(alpha, dtype=jnp.float32).reshape(1, 1)
    beta_arr = jnp.asarray(beta, dtype=jnp.float32).reshape(1, 1)

    return pl.pallas_call(
        _blu_kernel,
        out_shape=jax.ShapeDtypeStruct((rows, lanes), dtype),
        grid_spec=pltpu.PrefetchScalarGridSpec(
            num_scalar_prefetch=0,
            grid=grid,
            in_specs=[
                pl.BlockSpec((1, 1), lambda i: (0, 0),
                             memory_space=pltpu.MemorySpace.SMEM),
                pl.BlockSpec((1, 1), lambda i: (0, 0),
                             memory_space=pltpu.MemorySpace.SMEM),
                pl.BlockSpec((tr, lanes), lambda i: (i, 0)),
            ],
            out_specs=pl.BlockSpec((tr, lanes), lambda i: (i, 0)),
        ),
        compiler_params=pltpu.CompilerParams(
            dimension_semantics=("parallel",),
            vmem_limit_bytes=cfg["vmem_limit"]),
        cost_estimate=cost,
    )(alpha_arr, beta_arr, x2d)


def blu(x, alpha, beta):
    """Apply BLU elementwise. x: any shape; alpha, beta: scalars."""
    orig_shape = x.shape
    if x.size == 0:
        return x

    # Tiny activations: launch/pipeline overhead dominates; let XLA fuse it.
    if x.size * jnp.dtype(x.dtype).itemsize < _SMALL_INPUT_BYTES:
        return _blu_jnp(x, alpha, beta)

    flat = x.reshape(-1)               # contiguous flatten: no extra HBM pass
    n = flat.shape[0]

    # Widest lane count that divides n exactly -> copy-free lane-dense reshape.
    lanes = None
    for cand in (4096, 2048, 1024, 512, 256, 128):
        if n % cand == 0:
            lanes = cand
            break

    if lanes is not None:
        out2d = _run_blu_2d(flat.reshape(n // lanes, lanes), alpha, beta)
        return out2d.reshape(orig_shape)

    # Ragged element count: stream the 128-aligned prefix through the kernel,
    # handle the (<128-element) remainder with plain jnp.  Avoids the old
    # pad/compute/slice fallback's extra full-array HBM passes.
    n_main = (n // _LANE) * _LANE
    main = _run_blu_2d(flat[:n_main].reshape(-1, _LANE), alpha, beta).reshape(-1)
    tail = _blu_jnp(flat[n_main:], alpha, beta)
    return jnp.concatenate([main, tail]).reshape(orig_shape)


class BLUParams:
    """Deterministic parameter init mirroring the PyTorch module __init__."""

    def __init__(self, tune_alpha=False, tune_beta=True):
        self.alpha = jnp.float32(1.0)   # nn.Parameter(torch.tensor(1.0))
        self.beta = jnp.float32(0.0)    # nn.Parameter(torch.tensor(0.0))
        # epsilon parameter exists in the module but is unused in forward.
        self.epsilon = jnp.float32(1e-7 if tune_alpha else 0.0)

    def __call__(self, x):
        return blu(x, self.alpha, self.beta)


def _blu_ref(x, alpha, beta):
    xf = x.astype(jnp.float32)
    y = beta * (jnp.sqrt(xf * xf + alpha * alpha + EPS) - alpha) + xf
    return y.astype(x.dtype)


if __name__ == "__main__":
    key = jax.random.PRNGKey(0)

    # Small NCHW activation (module-consistent shape): tiny-input jnp path.
    x = jax.random.normal(key, (2, 4, 16, 16), dtype=jnp.float32)
    module = BLUParams(tune_alpha=False, tune_beta=True)
    y = jax.block_until_ready(module(x))
    y_ref = _blu_ref(x, module.alpha, module.beta)
    assert y.shape == x.shape and y.dtype == x.dtype
    assert jnp.allclose(y, y_ref, atol=1e-6, rtol=1e-6), "mismatch (beta=0)"

    y2 = jax.block_until_ready(blu(x, 1.0, 0.5))
    y2_ref = _blu_ref(x, jnp.float32(1.0), jnp.float32(0.5))
    assert jnp.allclose(y2, y2_ref, atol=1e-6, rtol=1e-6), "mismatch (beta=0.5)"

    # Larger f32 slab: exercises the Pallas path with multiple byte-sized blocks.
    xl = jax.random.normal(jax.random.PRNGKey(2), (4, 32, 128, 128),
                           dtype=jnp.float32)
    yl = jax.block_until_ready(blu(xl, 1.0, 0.5))
    yl_ref = _blu_ref(xl, jnp.float32(1.0), jnp.float32(0.5))
    assert jnp.allclose(yl, yl_ref, atol=1e-6, rtol=1e-6), "mismatch (large f32)"

    # bf16 input through the kernel: byte-sized tiles + f32 compute + cast back.
    xb = jax.random.normal(jax.random.PRNGKey(3), (4, 32, 128, 128),
                           dtype=jnp.bfloat16)
    yb = jax.block_until_ready(blu(xb, 1.0, 0.5))
    yb_ref = _blu_ref(xb, jnp.float32(1.0), jnp.float32(0.5))
    assert yb.dtype == jnp.bfloat16
    assert jnp.allclose(yb.astype(jnp.float32), yb_ref.astype(jnp.float32),
                        atol=3e-2, rtol=3e-2), "mismatch (bf16)"

    # Ragged element count above the small-input threshold:
    # 257*129*33 = 1,094,049 (odd) -> Pallas prefix + jnp tail path.
    xr = jax.random.normal(jax.random.PRNGKey(1), (257, 129, 33),
                           dtype=jnp.float32)
    yr = jax.block_until_ready(blu(xr, 1.0, 0.25))
    yr_ref = _blu_ref(xr, jnp.float32(1.0), jnp.float32(0.25))
    assert jnp.allclose(yr, yr_ref, atol=1e-6, rtol=1e-6), "mismatch (ragged)"

    print("KERNEL_OK")
</pallas_src>

<mosaic_0001>
module attributes {stable_mosaic.version = 11 : i64} {
  func.func @_blu_kernel(%arg0: i32, %arg1: memref<1x1xf32, #tpu.memory_space<smem>>, %arg2: memref<1x1xf32, #tpu.memory_space<smem>>, %arg3: memref<128x4096xf32, #tpu.memory_space<vmem>>, %arg4: memref<128x4096xf32, #tpu.memory_space<vmem>>) attributes {dimension_semantics = [#tpu.dimension_semantics<parallel>], iteration_bounds = array<i64: 4>, scalar_prefetch = 0 : i64, scratch_operands = 0 : i64, tpu.core_type = #tpu.core_type<tc>, window_params = [{transform_indices = @transform_0, window_bounds = array<i64: 1, 1>}, {transform_indices = @transform_1, window_bounds = array<i64: 1, 1>}, {transform_indices = @transform_2, window_bounds = array<i64: 128, 4096>}, {transform_indices = @transform_3, window_bounds = array<i64: 128, 4096>}]} {
    %c0 = arith.constant 0 : index
    %c0_0 = arith.constant 0 : index
    %0 = memref.load %arg1[%c0, %c0_0] : memref<1x1xf32, #tpu.memory_space<smem>>
    %c0_1 = arith.constant 0 : index
    %c0_2 = arith.constant 0 : index
    %1 = memref.load %arg2[%c0_1, %c0_2] : memref<1x1xf32, #tpu.memory_space<smem>>
    %c0_3 = arith.constant 0 : index
    %c0_4 = arith.constant 0 : index
    %2 = vector.load %arg3[%c0_3, %c0_4] : memref<128x4096xf32, #tpu.memory_space<vmem>>, vector<128x4096xf32>
    %3 = arith.mulf %2, %2 : vector<128x4096xf32>
    %4 = arith.mulf %0, %0 : f32
    %5 = vector.broadcast %4 : f32 to vector<128x4096xf32>
    %6 = arith.addf %3, %5 : vector<128x4096xf32>
    %cst = arith.constant 1.000000e-07 : f32
    %7 = vector.broadcast %cst : f32 to vector<128x4096xf32>
    %8 = arith.addf %6, %7 : vector<128x4096xf32>
    %9 = math.sqrt %8 : vector<128x4096xf32>
    %10 = vector.broadcast %0 : f32 to vector<128x4096xf32>
    %11 = arith.subf %9, %10 : vector<128x4096xf32>
    %12 = vector.broadcast %1 : f32 to vector<128x4096xf32>
    %13 = arith.mulf %12, %11 : vector<128x4096xf32>
    %14 = arith.addf %13, %2 : vector<128x4096xf32>
    %c0_5 = arith.constant 0 : index
    %c0_6 = arith.constant 0 : index
    %15 = vector.load %arg4[%c0_5, %c0_6] : memref<128x4096xf32, #tpu.memory_space<vmem>>, vector<128x4096xf32>
    tpu.vector_store %arg4[%c0_5, %c0_6], %14 {strides = array<i32>} : memref<128x4096xf32, #tpu.memory_space<vmem>>, vector<128x4096xf32>,
    return
  }
  func.func @transform_0(%arg0: i32) -> (i32, i32) {
    %c0_i32 = arith.constant 0 : i32
    %c0_i32_0 = arith.constant 0 : i32
    %c0_i32_1 = arith.constant 0 : i32
    return %c0_i32, %c0_i32_0 : i32, i32
  }
  func.func @transform_1(%arg0: i32) -> (i32, i32) {
    %c0_i32 = arith.constant 0 : i32
    %c0_i32_0 = arith.constant 0 : i32
    %c0_i32_1 = arith.constant 0 : i32
    return %c0_i32, %c0_i32_0 : i32, i32
  }
  func.func @transform_2(%arg0: i32) -> (i32, i32) {
    %c0_i32 = arith.constant 0 : i32
    %c0_i32_0 = arith.constant 0 : i32
    return %arg0, %c0_i32 : i32, i32
  }
  func.func @transform_3(%arg0: i32) -> (i32, i32) {
    %c0_i32 = arith.constant 0 : i32
    %c0_i32_0 = arith.constant 0 : i32
    return %arg0, %c0_i32 : i32, i32
  }
}

</mosaic_0001>

<llo_original>
// kernel: tpu_custom_call.1
$region0: #{tpu_custom_call.1}
  #allocation0 [shape = 'u32[]', space=smem, size = 0x4, offset = 0x4, fixed_abs, tag = 'smem constant byte address 0x4 - core index']
  #allocation1 [shape = 'u32[144,128]{1,0:T(1,128)}', space=vmem, size = 0x12000, scoped, tag = 'internal scratch']
  #allocation2 [shape = 'f32[1,1]{1,0:T(1,128)S(6)}', space=smem, size = 0x200, scoped, tag = 'scoped memory for tpu_custom_call.1']
  #allocation3 [shape = 'f32[1,1]{1,0:T(1,128)S(6)}', space=smem, size = 0x200, scoped, tag = 'scoped memory for tpu_custom_call.1']
  %s0 = inlined_call_operand.<no memory space> [shape: f32[1,1], index: 0, kind: input, shape index: {}]
  %s1 = inlined_call_operand.<no memory space> [shape: f32[1,1], index: 1, kind: input, shape index: {}]
  %s2 = inlined_call_operand.hbm [shape: f32[512,4096], index: 2, kind: input, shape index: {}]
  %s3 = inlined_call_operand.hbm [shape: f32[512,4096], index: 3, kind: output, shape index: {}]
  %s4 = sld [smem:[#allocation0]]
  $region49: #{tpu_custom_call.1} parent=0
    _
  %s6 = ssub.s32 1, %s4
  %s7 = scalar_select 0, %s6, %s4
  %8 = sst [smem:[#allocation2]] %s0
  %9 = sst [smem:[#allocation3]] %s1
  $region1: #{tpu_custom_call.1} parent=0
    #allocation4 [shape = 'u8[4194304]{0}', space=vmem, size = 0x400000, scoped, tag = 'input window, operand 2']
    #allocation5 [shape = 's32[2]{0}', space=sflag, size = 0x8, scoped, tag = 'scoped memory for tpu_custom_call.1']
    #allocation6 [shape = 's32[2]{0}', space=sflag, size = 0x8, scoped, tag = 'scoped memory for tpu_custom_call.1']
    #allocation7 [shape = 'u8[4194304]{0}', space=vmem, size = 0x400000, scoped, tag = 'output window, operand 0']
    %10 = vsyncpa [#allocation5], 0
    %s11 = scalar_lea.sflag [#allocation5], 1
    %12 = vsyncpa %s11, 0
    %13 = vsyncpa [#allocation6], 0
    %s14 = scalar_lea.sflag [#allocation6], 1
    %15 = vsyncpa %s14, 0
    loop: start=0, step=1, limit=6
    $region2: #{tpu_custom_call.1} parent=1 // loop_pre_header
      _
    $region3: #{tpu_custom_call.1} parent=1 // loop_header
      %s17 = sphi 0, %s21
      %p18 = scmp.ge.s32.totalorder %s17, 6
      %s25 = sphi 0, %s25
      %s27 = sphi 0, %s25
      %s28 = sphi 0, %s27
      %s42 = sphi 0, %s28
      %s46 = sphi 0, %s46
      %s48 = sphi 0, %s46
      %s49 = sphi 0, %s48
      %s63 = sphi 0, %s49
      %s69 = sphi 0, %s71
      %s72 = sphi 0, %s69
      %s73 = sphi 0, %s72
      %s89 = sphi 0, %s73
      %s95 = sphi 0, %s97
      %s98 = sphi 0, %s95
      %s99 = sphi 0, %s98
      %s115 = sphi 0, %s99
    $region4: #{tpu_custom_call.1} parent=1 // loop_header_branch
      %20 = sbr.rel (%p18) target = $region8
    $region5: #{tpu_custom_call.1} parent=1 // loop_body
      %s22 = ssub.s32 %s17, 1
      %s23 = ssub.s32 %s17, 2
      %s24 = sadd.s32 %s17, 1
      %s26 = sadd.s32 %s25, 1
      %p29 = scmp.eq.s32.totalorder %s17, 3
      %p30 = scmp.ne.s32.totalorder %s25, %s27
      %p31 = scmp.eq.s32.totalorder %s17, 0
      %p32 = por %p30, %p31
      %p33 = scmp.ne.s32.totalorder %s25, %s27
      %p34 = scmp.eq.s32.totalorder %s22, 3
      %p35 = por %p33, %p34
      %p36 = scmp.ne.s32.totalorder %s27, %s28
      %p37 = scmp.eq.s32.totalorder %s22, 0
      %p38 = por %p36, %p37
      %p39 = scmp.ne.s32.totalorder %s27, %s28
      %p40 = scmp.eq.s32.totalorder %s23, 3
      %p41 = por %p39, %p40
      %p43 = scmp.ne.s32.totalorder %s28, %s42
      %p44 = scmp.eq.s32.totalorder %s23, 0
      %p45 = por %p43, %p44
      %s47 = sadd.s32 %s46, 1
      %p50 = scmp.eq.s32.totalorder %s17, 3
      %p51 = scmp.ne.s32.totalorder %s46, %s48
      %p52 = scmp.eq.s32.totalorder %s17, 0
      %p53 = por %p51, %p52
      %p54 = scmp.ne.s32.totalorder %s46, %s48
      %p55 = scmp.eq.s32.totalorder %s22, 3
      %p56 = por %p54, %p55
      %p57 = scmp.ne.s32.totalorder %s48, %s49
      %p58 = scmp.eq.s32.totalorder %s22, 0
      %p59 = por %p57, %p58
      %p60 = scmp.ne.s32.totalorder %s48, %s49
      %p61 = scmp.eq.s32.totalorder %s23, 3
      %p62 = por %p60, %p61
      %p64 = scmp.ne.s32.totalorder %s49, %s63
      %p65 = scmp.eq.s32.totalorder %s23, 0
      %p66 = por %p64, %p65
      %s67 = ssub.s32 %s17, %s24
      %p68 = scmp.eq.s32.totalorder %s67, 0
      %s70 = sadd.s32 %s69, 1
      %s71 = scalar_select %p68, %s69, %s70
      %p74 = pneg %p68
      %p75 = scmp.eq.s32.totalorder %s17, 3
      %p76 = por %p74, %p75
      %p77 = scmp.ne.s32.totalorder %s69, %s72
      %p78 = scmp.eq.s32.totalorder %s17, 0
      %p79 = por %p77, %p78
      %p80 = scmp.ne.s32.totalorder %s69, %s72
      %p81 = scmp.eq.s32.totalorder %s22, 3
      %p82 = por %p80, %p81
      %p83 = scmp.ne.s32.totalorder %s72, %s73
      %p84 = scmp.eq.s32.totalorder %s22, 0
      %p85 = por %p83, %p84
      %p86 = scmp.ne.s32.totalorder %s72, %s73
      %p87 = scmp.eq.s32.totalorder %s23, 3
      %p88 = por %p86, %p87
      %p90 = scmp.ne.s32.totalorder %s73, %s89
      %p91 = scmp.eq.s32.totalorder %s23, 0
      %p92 = por %p90, %p91
      %s93 = ssub.s32 %s17, %s24
      %p94 = scmp.eq.s32.totalorder %s93, 0
      %s96 = sadd.s32 %s95, 1
      %s97 = scalar_select %p94, %s95, %s96
      %p100 = pneg %p94
      %p101 = scmp.eq.s32.totalorder %s17, 3
      %p102 = por %p100, %p101
      %p103 = scmp.ne.s32.totalorder %s95, %s98
      %p104 = scmp.eq.s32.totalorder %s17, 0
      %p105 = por %p103, %p104
      %p106 = scmp.ne.s32.totalorder %s95, %s98
      %p107 = scmp.eq.s32.totalorder %s22, 3
      %p108 = por %p106, %p107
      %p109 = scmp.ne.s32.totalorder %s98, %s99
      %p110 = scmp.eq.s32.totalorder %s22, 0
      %p111 = por %p109, %p110
      %p112 = scmp.ne.s32.totalorder %s98, %s99
      %p113 = scmp.eq.s32.totalorder %s23, 3
      %p114 = por %p112, %p113
      %p116 = scmp.ne.s32.totalorder %s99, %s115
      %p117 = scmp.eq.s32.totalorder %s23, 0
      %p118 = por %p116, %p117
      %p119 = scmp.le.s32.totalorder 1, %s17
      %p120 = scmp.lt.s32.totalorder %s17, 5
      %p121 = pnand %p119, %p120
      %p122 = pneg %p121
      // Predicated region
      $region9: #{tpu_custom_call.1} parent=5 // pred_check
        _
      $region10: #{tpu_custom_call.1} parent=5 // pred_check_branch
        %124 = sbr.rel (%p121) target = $region12
      $region11: #{tpu_custom_call.1} parent=5 // pred_region
        %s125 = ssub.s32 %s17, 1
        // Predicated region
        $region13: #{tpu_custom_call.1} parent=11 // pred_check
          %p126 = pneg %p38
        $region14: #{tpu_custom_call.1} parent=11 // pred_check_branch
          %128 = sbr.rel (%p126) target = $region16
        $region15: #{tpu_custom_call.1} parent=11 // pred_region
          _
        $region16: #{tpu_custom_call.1} parent=11 // pred_fallthru
          _
        // Predicated region
        $region17: #{tpu_custom_call.1} parent=11 // pred_check
          %p129 = pneg %p59
        $region18: #{tpu_custom_call.1} parent=11 // pred_check_branch
          %131 = sbr.rel (%p129) target = $region20
        $region19: #{tpu_custom_call.1} parent=11 // pred_region
          _
        $region20: #{tpu_custom_call.1} parent=11 // pred_fallthru
          _
      $region12: #{tpu_custom_call.1} parent=5 // pred_fallthru
        _
      %p132 = scmp.lt.s32.totalorder %s17, 4
      // Predicated region
      $region21: #{tpu_custom_call.1} parent=5 // pred_check
        %p133 = pneg %p132
      $region22: #{tpu_custom_call.1} parent=5 // pred_check_branch
        %135 = sbr.rel (%p133) target = $region24
      $region23: #{tpu_custom_call.1} parent=5 // pred_region
        // Predicated region
        $region25: #{tpu_custom_call.1} parent=23 // pred_check
          %p136 = pneg %p79
        $region26: #{tpu_custom_call.1} parent=23 // pred_check_branch
          %138 = sbr.rel (%p136) target = $region28
        $region27: #{tpu_custom_call.1} parent=23 // pred_region
          %s139 = sand.u32 %s69, 1
          %s140 = scalar_lea.sflag [#allocation5], %s139
          %s141 = sand.u32 %s69, 1
          %s142 = smul.addr %s141, 4096
          %s143 = scalar_lea.vmem [#allocation4], %s142
          %s144 = smul.u32 16, %s17
          %s146 = ssub.s32 65536, 65536
          %147 = vsyncadd %s140, %s146
          %s148 = smul.addr %s144, 32
          %s149 = smul.addr %s148, 128
          %s150 = scalar_lea.hbm %s2, %s149
          %s151 = sshll.u32 %s143, 4
          %s152 = int_to_ptr.vmem [resolvable:$true] %s151
          %157 = dma.hbm_to_vmem [thread:$0]  %s150, 65536, %s152, %s140, 4096, 4096, 256
        $region28: #{tpu_custom_call.1} parent=23 // pred_fallthru
          _
      $region24: #{tpu_custom_call.1} parent=5 // pred_fallthru
        _
      %p158 = scmp.le.s32.totalorder 1, %s17
      %p159 = scmp.lt.s32.totalorder %s17, 5
      %p160 = pnand %p158, %p159
      %p161 = pneg %p160
      // Predicated region
      $region29: #{tpu_custom_call.1} parent=5 // pred_check
        _
      $region30: #{tpu_custom_call.1} parent=5 // pred_check_branch
        %163 = sbr.rel (%p160) target = $region32
      $region31: #{tpu_custom_call.1} parent=5 // pred_region
        %s164 = ssub.s32 %s17, 1
        %s165 = sand.u32 %s72, 1
        %s166 = scalar_lea.sflag [#allocation5], %s165
        %s167 = sand.u32 %s72, 1
        %s168 = smul.addr %s167, 4096
        %s169 = scalar_lea.vmem [#allocation4], %s168
        // Predicated region
        $region33: #{tpu_custom_call.1} parent=31 // pred_check
          %p170 = pneg %p85
        $region34: #{tpu_custom_call.1} parent=31 // pred_check_branch
          %172 = sbr.rel (%p170) target = $region36
        $region35: #{tpu_custom_call.1} parent=31 // pred_region
          %173 = dma.done %s166, 65536
        $region36: #{tpu_custom_call.1} parent=31 // pred_fallthru
          _
        %p174 = pneg %p38
        %p175 = pneg %p35
        %p176 = pneg %p59
        %p177 = pneg %p56
        %s178 = sand.u32 %s72, 1
        %s179 = scalar_lea.sflag [#allocation5], %s178
        %s180 = sand.u32 %s72, 1
        %s181 = smul.addr %s180, 4096
        %s182 = scalar_lea.vmem [#allocation4], %s181
        %p183 = pneg %p85
        %p184 = pneg %p82
        %p185 = pneg %p111
        %p186 = pneg %p108
        %s187 = sand.u32 %s98, 1
        %s188 = scalar_lea.sflag [#allocation6], %s187
        %s189 = sand.u32 %s98, 1
        %s190 = smul.addr %s189, 4096
        %s191 = scalar_lea.vmem [#allocation7], %s190
        %s192 = smul.u32 16, %s22
        %s193 = smul.u32 16, %s22
        %s194 = sld [smem:[#allocation2]]
        %s195 = sld [smem:[#allocation3]]
        %v196 = vld [vmem:[%s169] sm:$0xff]
        %v197 = vld [vmem:[%s169 + $0x8] sm:$0xff]
        %v198 = vld [vmem:[%s169 + $0x10] sm:$0xff]
        %v199 = vld [vmem:[%s169 + $0x18] sm:$0xff]
        %v200 = vld [vmem:[%s169 + $0x20] sm:$0xff]
        %v201 = vld [vmem:[%s169 + $0x28] sm:$0xff]
        %v202 = vld [vmem:[%s169 + $0x30] sm:$0xff]
        %v203 = vld [vmem:[%s169 + $0x38] sm:$0xff]
        %v204 = vld [vmem:[%s169 + $0x40] sm:$0xff]
        %v205 = vld [vmem:[%s169 + $0x48] sm:$0xff]
        %v206 = vld [vmem:[%s169 + $0x50] sm:$0xff]
        %v207 = vld [vmem:[%s169 + $0x58] sm:$0xff]
        %v208 = vld [vmem:[%s169 + $0x60] sm:$0xff]
        %v209 = vld [vmem:[%s169 + $0x68] sm:$0xff]
        %v210 = vld [vmem:[%s169 + $0x70] sm:$0xff]
        %v211 = vld [vmem:[%s169 + $0x78] sm:$0xff]
        %v212 = vld [vmem:[%s169 + $0x80] sm:$0xff]
        %v213 = vld [vmem:[%s169 + $0x88] sm:$0xff]
        %v214 = vld [vmem:[%s169 + $0x90] sm:$0xff]
        %v215 = vld [vmem:[%s169 + $0x98] sm:$0xff]
        %v216 = vld [vmem:[%s169 + $0xa0] sm:$0xff]
        %v217 = vld [vmem:[%s169 + $0xa8] sm:$0xff]
        %v218 = vld [vmem:[%s169 + $0xb0] sm:$0xff]
        %v219 = vld [vmem:[%s169 + $0xb8] sm:$0xff]
        %v220 = vld [vmem:[%s169 + $0xc0] sm:$0xff]
        %v221 = vld [vmem:[%s169 + $0xc8] sm:$0xff]
        %v222 = vld [vmem:[%s169 + $0xd0] sm:$0xff]
        %v223 = vld [vmem:[%s169 + $0xd8] sm:$0xff]
        %v224 = vld [vmem:[%s169 + $0xe0] sm:$0xff]
        %v225 = vld [vmem:[%s169 + $0xe8] sm:$0xff]
        %v226 = vld [vmem:[%s169 + $0xf0] sm:$0xff]
        %v227 = vld [vmem:[%s169 + $0xf8] sm:$0xff]
        %v228 = vld [vmem:[%s169 + $0x100] sm:$0xff]
        %v229 = vld [vmem:[%s169 + $0x108] sm:$0xff]
        %v230 = vld [vmem:[%s169 + $0x110] sm:$0xff]
        %v231 = vld [vmem:[%s169 + $0x118] sm:$0xff]
        %v232 = vld [vmem:[%s169 + $0x120] sm:$0xff]
        %v233 = vld [vmem:[%s169 + $0x128] sm:$0xff]
        %v234 = vld [vmem:[%s169 + $0x130] sm:$0xff]
        %v235 = vld [vmem:[%s169 + $0x138] sm:$0xff]
        %v236 = vld [vmem:[%s169 + $0x140] sm:$0xff]
        %v237 = vld [vmem:[%s169 + $0x148] sm:$0xff]
        %v238 = vld [vmem:[%s169 + $0x150] sm:$0xff]
        %v239 = vld [vmem:[%s169 + $0x158] sm:$0xff]
        %v240 = vld [vmem:[%s169 + $0x160] sm:$0xff]
        %v241 = vld [vmem:[%s169 + $0x168] sm:$0xff]
        %v242 = vld [vmem:[%s169 + $0x170] sm:$0xff]
        %v243 = vld [vmem:[%s169 + $0x178] sm:$0xff]
        %v244 = vld [vmem:[%s169 + $0x180] sm:$0xff]
        %v245 = vld [vmem:[%s169 + $0x188] sm:$0xff]
        %v246 = vld [vmem:[%s169 + $0x190] sm:$0xff]
        %v247 = vld [vmem:[%s169 + $0x198] sm:$0xff]
        %v248 = vld [vmem:[%s169 + $0x1a0] sm:$0xff]
        %v249 = vld [vmem:[%s169 + $0x1a8] sm:$0xff]
        %v250 = vld [vmem:[%s169 + $0x1b0] sm:$0xff]
        %v251 = vld [vmem:[%s169 + $0x1b8] sm:$0xff]
        %v252 = vld [vmem:[%s169 + $0x1c0] sm:$0xff]
        %v253 = vld [vmem:[%s169 + $0x1c8] sm:$0xff]
        %v254 = vld [vmem:[%s169 + $0x1d0] sm:$0xff]
        %v255 = vld [vmem:[%s169 + $0x1d8] sm:$0xff]
        %v256 = vld [vmem:[%s169 + $0x1e0] sm:$0xff]
        %v257 = vld [vmem:[%s169 + $0x1e8] sm:$0xff]
        %v258 = vld [vmem:[%s169 + $0x1f0] sm:$0xff]
        %v259 = vld [vmem:[%s169 + $0x1f8] sm:$0xff]
        %v260 = vld [vmem:[%s169 + $0x200] sm:$0xff]
        %v261 = vld [vmem:[%s169 + $0x208] sm:$0xff]
        %v262 = vld [vmem:[%s169 + $0x210] sm:$0xff]
        %v263 = vld [vmem:[%s169 + $0x218] sm:$0xff]
        %v264 = vld [vmem:[%s169 + $0x220] sm:$0xff]
        %v265 = vld [vmem:[%s169 + $0x228] sm:$0xff]
        %v266 = vld [vmem:[%s169 + $0x230] sm:$0xff]
        %v267 = vld [vmem:[%s169 + $0x238] sm:$0xff]
        %v268 = vld [vmem:[%s169 + $0x240] sm:$0xff]
        %v269 = vld [vmem:[%s169 + $0x248] sm:$0xff]
        %v270 = vld [vmem:[%s169 + $0x250] sm:$0xff]
        %v271 = vld [vmem:[%s169 + $0x258] sm:$0xff]
        %v272 = vld [vmem:[%s169 + $0x260] sm:$0xff]
        %v273 = vld [vmem:[%s169 + $0x268] sm:$0xff]
        %v274 = vld [vmem:[%s169 + $0x270] sm:$0xff]
        %v275 = vld [vmem:[%s169 + $0x278] sm:$0xff]
        %v276 = vld [vmem:[%s169 + $0x280] sm:$0xff]
        %v277 = vld [vmem:[%s169 + $0x288] sm:$0xff]
        %v278 = vld [vmem:[%s169 + $0x290] sm:$0xff]
        %v279 = vld [vmem:[%s169 + $0x298] sm:$0xff]
        %v280 = vld [vmem:[%s169 + $0x2a0] sm:$0xff]
        %v281 = vld [vmem:[%s169 + $0x2a8] sm:$0xff]
        %v282 = vld [vmem:[%s169 + $0x2b0] sm:$0xff]
        %v283 = vld [vmem:[%s169 + $0x2b8] sm:$0xff]
        %v284 = vld [vmem:[%s169 + $0x2c0] sm:$0xff]
        %v285 = vld [vmem:[%s169 + $0x2c8] sm:$0xff]
        %v286 = vld [vmem:[%s169 + $0x2d0] sm:$0xff]
        %v287 = vld [vmem:[%s169 + $0x2d8] sm:$0xff]
        %v288 = vld [vmem:[%s169 + $0x2e0] sm:$0xff]
        %v289 = vld [vmem:[%s169 + $0x2e8] sm:$0xff]
        %v290 = vld [vmem:[%s169 + $0x2f0] sm:$0xff]
        %v291 = vld [vmem:[%s169 + $0x2f8] sm:$0xff]
        %v292 = vld [vmem:[%s169 + $0x300] sm:$0xff]
        %v293 = vld [vmem:[%s169 + $0x308] sm:$0xff]
        %v294 = vld [vmem:[%s169 + $0x310] sm:$0xff]
        %v295 = vld [vmem:[%s169 + $0x318] sm:$0xff]
        %v296 = vld [vmem:[%s169 + $0x320] sm:$0xff]
        %v297 = vld [vmem:[%s169 + $0x328] sm:$0xff]
        %v298 = vld [vmem:[%s169 + $0x330] sm:$0xff]
        %v299 = vld [vmem:[%s169 + $0x338] sm:$0xff]
        %v300 = vld [vmem:[%s169 + $0x340] sm:$0xff]
        %v301 = vld [vmem:[%s169 + $0x348] sm:$0xff]
        %v302 = vld [vmem:[%s169 + $0x350] sm:$0xff]
        %v303 = vld [vmem:[%s169 + $0x358] sm:$0xff]
        %v304 = vld [vmem:[%s169 + $0x360] sm:$0xff]
        %v305 = vld [vmem:[%s169 + $0x368] sm:$0xff]
        %v306 = vld [vmem:[%s169 + $0x370] sm:$0xff]
        %v307 = vld [vmem:[%s169 + $0x378] sm:$0xff]
        %v308 = vld [vmem:[%s169 + $0x380] sm:$0xff]
        %v309 = vld [vmem:[%s169 + $0x388] sm:$0xff]
        %v310 = vld [vmem:[%s169 + $0x390] sm:$0xff]
        %v311 = vld [vmem:[%s169 + $0x398] sm:$0xff]
        %v312 = vld [vmem:[%s169 + $0x3a0] sm:$0xff]
        %v313 = vld [vmem:[%s169 + $0x3a8] sm:$0xff]
        %v314 = vld [vmem:[%s169 + $0x3b0] sm:$0xff]
        %v315 = vld [vmem:[%s169 + $0x3b8] sm:$0xff]
        %v316 = vld [vmem:[%s169 + $0x3c0] sm:$0xff]
        %v317 = vld [vmem:[%s169 + $0x3c8] sm:$0xff]
        %v318 = vld [vmem:[%s169 + $0x3d0] sm:$0xff]
        %v319 = vld [vmem:[%s169 + $0x3d8] sm:$0xff]
        %v320 = vld [vmem:[%s169 + $0x3e0] sm:$0xff]
        %v321 = vld [vmem:[%s169 + $0x3e8] sm:$0xff]
        %v322 = vld [vmem:[%s169 + $0x3f0] sm:$0xff]
        %v323 = vld [vmem:[%s169 + $0x3f8] sm:$0xff]
        %v324 = vld [vmem:[%s169 + $0x400] sm:$0xff]
        %v325 = vld [vmem:[%s169 + $0x408] sm:$0xff]
        %v326 = vld [vmem:[%s169 + $0x410] sm:$0xff]
        %v327 = vld [vmem:[%s169 + $0x418] sm:$0xff]
        %v328 = vld [vmem:[%s169 + $0x420] sm:$0xff]
        %v329 = vld [vmem:[%s169 + $0x428] sm:$0xff]
        %v330 = vld [vmem:[%s169 + $0x430] sm:$0xff]
        %v331 = vld [vmem:[%s169 + $0x438] sm:$0xff]
        %v332 = vld [vmem:[%s169 + $0x440] sm:$0xff]
        %v333 = vld [vmem:[%s169 + $0x448] sm:$0xff]
        %v334 = vld [vmem:[%s169 + $0x450] sm:$0xff]
        %v335 = vld [vmem:[%s169 + $0x458] sm:$0xff]
        %v336 = vld [vmem:[%s169 + $0x460] sm:$0xff]
        %v337 = vld [vmem:[%s169 + $0x468] sm:$0xff]
        %v338 = vld [vmem:[%s169 + $0x470] sm:$0xff]
        %v339 = vld [vmem:[%s169 + $0x478] sm:$0xff]
        %v340 = vld [vmem:[%s169 + $0x480] sm:$0xff]
        %v341 = vld [vmem:[%s169 + $0x488] sm:$0xff]
        %v342 = vld [vmem:[%s169 + $0x490] sm:$0xff]
        %v343 = vld [vmem:[%s169 + $0x498] sm:$0xff]
        %v344 = vld [vmem:[%s169 + $0x4a0] sm:$0xff]
        %v345 = vld [vmem:[%s169 + $0x4a8] sm:$0xff]
        %v346 = vld [vmem:[%s169 + $0x4b0] sm:$0xff]
        %v347 = vld [vmem:[%s169 + $0x4b8] sm:$0xff]
        %v348 = vld [vmem:[%s169 + $0x4c0] sm:$0xff]
        %v349 = vld [vmem:[%s169 + $0x4c8] sm:$0xff]
        %v350 = vld [vmem:[%s169 + $0x4d0] sm:$0xff]
        %v351 = vld [vmem:[%s169 + $0x4d8] sm:$0xff]
        %v352 = vld [vmem:[%s169 + $0x4e0] sm:$0xff]
        %v353 = vld [vmem:[%s169 + $0x4e8] sm:$0xff]
        %v354 = vld [vmem:[%s169 + $0x4f0] sm:$0xff]
        %v355 = vld [vmem:[%s169 + $0x4f8] sm:$0xff]
        %v356 = vld [vmem:[%s169 + $0x500] sm:$0xff]
        %v357 = vld [vmem:[%s169 + $0x508] sm:$0xff]
        %v358 = vld [vmem:[%s169 + $0x510] sm:$0xff]
        %v359 = vld [vmem:[%s169 + $0x518] sm:$0xff]
        %v360 = vld [vmem:[%s169 + $0x520] sm:$0xff]
        %v361 = vld [vmem:[%s169 + $0x528] sm:$0xff]
        %v362 = vld [vmem:[%s169 + $0x530] sm:$0xff]
        %v363 = vld [vmem:[%s169 + $0x538] sm:$0xff]
        %v364 = vld [vmem:[%s169 + $0x540] sm:$0xff]
        %v365 = vld [vmem:[%s169 + $0x548] sm:$0xff]
        %v366 = vld [vmem:[%s169 + $0x550] sm:$0xff]
        %v367 = vld [vmem:[%s169 + $0x558] sm:$0xff]
        %v368 = vld [vmem:[%s169 + $0x560] sm:$0xff]
        %v369 = vld [vmem:[%s169 + $0x568] sm:$0xff]
        %v370 = vld [vmem:[%s169 + $0x570] sm:$0xff]
        %v371 = vld [vmem:[%s169 + $0x578] sm:$0xff]
        %v372 = vld [vmem:[%s169 + $0x580] sm:$0xff]
        %v373 = vld [vmem:[%s169 + $0x588] sm:$0xff]
        %v374 = vld [vmem:[%s169 + $0x590] sm:$0xff]
        %v375 = vld [vmem:[%s169 + $0x598] sm:$0xff]
        %v376 = vld [vmem:[%s169 + $0x5a0] sm:$0xff]
        %v377 = vld [vmem:[%s169 + $0x5a8] sm:$0xff]
        %v378 = vld [vmem:[%s169 + $0x5b0] sm:$0xff]
        %v379 = vld [vmem:[%s169 + $0x5b8] sm:$0xff]
        %v380 = vld [vmem:[%s169 + $0x5c0] sm:$0xff]
        %v381 = vld [vmem:[%s169 + $0x5c8] sm:$0xff]
        %v382 = vld [vmem:[%s169 + $0x5d0] sm:$0xff]
        %v383 = vld [vmem:[%s169 + $0x5d8] sm:$0xff]
        %v384 = vld [vmem:[%s169 + $0x5e0] sm:$0xff]
        %v385 = vld [vmem:[%s169 + $0x5e8] sm:$0xff]
        %v386 = vld [vmem:[%s169 + $0x5f0] sm:$0xff]
        %v387 = vld [vmem:[%s169 + $0x5f8] sm:$0xff]
        %v388 = vld [vmem:[%s169 + $0x600] sm:$0xff]
        %v389 = vld [vmem:[%s169 + $0x608] sm:$0xff]
        %v390 = vld [vmem:[%s169 + $0x610] sm:$0xff]
        %v391 = vld [vmem:[%s169 + $0x618] sm:$0xff]
        %v392 = vld [vmem:[%s169 + $0x620] sm:$0xff]
        %v393 = vld [vmem:[%s169 + $0x628] sm:$0xff]
        %v394 = vld [vmem:[%s169 + $0x630] sm:$0xff]
        %v395 = vld [vmem:[%s169 + $0x638] sm:$0xff]
        %v396 = vld [vmem:[%s169 + $0x640] sm:$0xff]
        %v397 = vld [vmem:[%s169 + $0x648] sm:$0xff]
        %v398 = vld [vmem:[%s169 + $0x650] sm:$0xff]
        %v399 = vld [vmem:[%s169 + $0x658] sm:$0xff]
        %v400 = vld [vmem:[%s169 + $0x660] sm:$0xff]
        %v401 = vld [vmem:[%s169 + $0x668] sm:$0xff]
        %v402 = vld [vmem:[%s169 + $0x670] sm:$0xff]
        %v403 = vld [vmem:[%s169 + $0x678] sm:$0xff]
        %v404 = vld [vmem:[%s169 + $0x680] sm:$0xff]
        %v405 = vld [vmem:[%s169 + $0x688] sm:$0xff]
        %v406 = vld [vmem:[%s169 + $0x690] sm:$0xff]
        %v407 = vld [vmem:[%s169 + $0x698] sm:$0xff]
        %v408 = vld [vmem:[%s169 + $0x6a0] sm:$0xff]
        %v409 = vld [vmem:[%s169 + $0x6a8] sm:$0xff]
        %v410 = vld [vmem:[%s169 + $0x6b0] sm:$0xff]
        %v411 = vld [vmem:[%s169 + $0x6b8] sm:$0xff]
        %v412 = vld [vmem:[%s169 + $0x6c0] sm:$0xff]
        %v413 = vld [vmem:[%s169 + $0x6c8] sm:$0xff]
        %v414 = vld [vmem:[%s169 + $0x6d0] sm:$0xff]
        %v415 = vld [vmem:[%s169 + $0x6d8] sm:$0xff]
        %v416 = vld [vmem:[%s169 + $0x6e0] sm:$0xff]
        %v417 = vld [vmem:[%s169 + $0x6e8] sm:$0xff]
        %v418 = vld [vmem:[%s169 + $0x6f0] sm:$0xff]
        %v419 = vld [vmem:[%s169 + $0x6f8] sm:$0xff]
        %v420 = vld [vmem:[%s169 + $0x700] sm:$0xff]
        %v421 = vld [vmem:[%s169 + $0x708] sm:$0xff]
        %v422 = vld [vmem:[%s169 + $0x710] sm:$0xff]
        %v423 = vld [vmem:[%s169 + $0x718] sm:$0xff]
        %v424 = vld [vmem:[%s169 + $0x720] sm:$0xff]
        %v425 = vld [vmem:[%s169 + $0x728] sm:$0xff]
        %v426 = vld [vmem:[%s169 + $0x730] sm:$0xff]
        %v427 = vld [vmem:[%s169 + $0x738] sm:$0xff]
        %v428 = vld [vmem:[%s169 + $0x740] sm:$0xff]
        %v429 = vld [vmem:[%s169 + $0x748] sm:$0xff]
        %v430 = vld [vmem:[%s169 + $0x750] sm:$0xff]
        %v431 = vld [vmem:[%s169 + $0x758] sm:$0xff]
        %v432 = vld [vmem:[%s169 + $0x760] sm:$0xff]
        %v433 = vld [vmem:[%s169 + $0x768] sm:$0xff]
        %v434 = vld [vmem:[%s169 + $0x770] sm:$0xff]
        %v435 = vld [vmem:[%s169 + $0x778] sm:$0xff]
        %v436 = vld [vmem:[%s169 + $0x780] sm:$0xff]
        %v437 = vld [vmem:[%s169 + $0x788] sm:$0xff]
        %v438 = vld [vmem:[%s169 + $0x790] sm:$0xff]
        %v439 = vld [vmem:[%s169 + $0x798] sm:$0xff]
        %v440 = vld [vmem:[%s169 + $0x7a0] sm:$0xff]
        %v441 = vld [vmem:[%s169 + $0x7a8] sm:$0xff]
        %v442 = vld [vmem:[%s169 + $0x7b0] sm:$0xff]
        %v443 = vld [vmem:[%s169 + $0x7b8] sm:$0xff]
        %v444 = vld [vmem:[%s169 + $0x7c0] sm:$0xff]
        %v445 = vld [vmem:[%s169 + $0x7c8] sm:$0xff]
        %v446 = vld [vmem:[%s169 + $0x7d0] sm:$0xff]
        %v447 = vld [vmem:[%s169 + $0x7d8] sm:$0xff]
        %v448 = vld [vmem:[%s169 + $0x7e0] sm:$0xff]
        %v449 = vld [vmem:[%s169 + $0x7e8] sm:$0xff]
        %v450 = vld [vmem:[%s169 + $0x7f0] sm:$0xff]
        %v451 = vld [vmem:[%s169 + $0x7f8] sm:$0xff]
        %v452 = vld [vmem:[%s169 + $0x800] sm:$0xff]
        %v453 = vld [vmem:[%s169 + $0x808] sm:$0xff]
        %v454 = vld [vmem:[%s169 + $0x810] sm:$0xff]
        %v455 = vld [vmem:[%s169 + $0x818] sm:$0xff]
        %v456 = vld [vmem:[%s169 + $0x820] sm:$0xff]
        %v457 = vld [vmem:[%s169 + $0x828] sm:$0xff]
        %v458 = vld [vmem:[%s169 + $0x830] sm:$0xff]
        %v459 = vld [vmem:[%s169 + $0x838] sm:$0xff]
        %v460 = vld [vmem:[%s169 + $0x840] sm:$0xff]
        %v461 = vld [vmem:[%s169 + $0x848] sm:$0xff]
        %v462 = vld [vmem:[%s169 + $0x850] sm:$0xff]
        %v463 = vld [vmem:[%s169 + $0x858] sm:$0xff]
        %v464 = vld [vmem:[%s169 + $0x860] sm:$0xff]
        %v465 = vld [vmem:[%s169 + $0x868] sm:$0xff]
        %v466 = vld [vmem:[%s169 + $0x870] sm:$0xff]
        %v467 = vld [vmem:[%s169 + $0x878] sm:$0xff]
        %v468 = vld [vmem:[%s169 + $0x880] sm:$0xff]
        %v469 = vld [vmem:[%s169 + $0x888] sm:$0xff]
        %v470 = vld [vmem:[%s169 + $0x890] sm:$0xff]
        %v471 = vld [vmem:[%s169 + $0x898] sm:$0xff]
        %v472 = vld [vmem:[%s169 + $0x8a0] sm:$0xff]
        %v473 = vld [vmem:[%s169 + $0x8a8] sm:$0xff]
        %v474 = vld [vmem:[%s169 + $0x8b0] sm:$0xff]
        %v475 = vld [vmem:[%s169 + $0x8b8] sm:$0xff]
        %v476 = vld [vmem:[%s169 + $0x8c0] sm:$0xff]
        %v477 = vld [vmem:[%s169 + $0x8c8] sm:$0xff]
        %v478 = vld [vmem:[%s169 + $0x8d0] sm:$0xff]
        %v479 = vld [vmem:[%s169 + $0x8d8] sm:$0xff]
        %v480 = vld [vmem:[%s169 + $0x8e0] sm:$0xff]
        %v481 = vld [vmem:[%s169 + $0x8e8] sm:$0xff]
        %v482 = vld [vmem:[%s169 + $0x8f0] sm:$0xff]
        %v483 = vld [vmem:[%s169 + $0x8f8] sm:$0xff]
        %v484 = vld [vmem:[%s169 + $0x900] sm:$0xff]
        %v485 = vld [vmem:[%s169 + $0x908] sm:$0xff]
        %v486 = vld [vmem:[%s169 + $0x910] sm:$0xff]
        %v487 = vld [vmem:[%s169 + $0x918] sm:$0xff]
        %v488 = vld [vmem:[%s169 + $0x920] sm:$0xff]
        %v489 = vld [vmem:[%s169 + $0x928] sm:$0xff]
        %v490 = vld [vmem:[%s169 + $0x930] sm:$0xff]
        %v491 = vld [vmem:[%s169 + $0x938] sm:$0xff]
        %v492 = vld [vmem:[%s169 + $0x940] sm:$0xff]
        %v493 = vld [vmem:[%s169 + $0x948] sm:$0xff]
        %v494 = vld [vmem:[%s169 + $0x950] sm:$0xff]
        %v495 = vld [vmem:[%s169 + $0x958] sm:$0xff]
        %v496 = vld [vmem:[%s169 + $0x960] sm:$0xff]
        %v497 = vld [vmem:[%s169 + $0x968] sm:$0xff]
        %v498 = vld [vmem:[%s169 + $0x970] sm:$0xff]
        %v499 = vld [vmem:[%s169 + $0x978] sm:$0xff]
        %v500 = vld [vmem:[%s169 + $0x980] sm:$0xff]
        %v501 = vld [vmem:[%s169 + $0x988] sm:$0xff]
        %v502 = vld [vmem:[%s169 + $0x990] sm:$0xff]
        %v503 = vld [vmem:[%s169 + $0x998] sm:$0xff]
        %v504 = vld [vmem:[%s169 + $0x9a0] sm:$0xff]
        %v505 = vld [vmem:[%s169 + $0x9a8] sm:$0xff]
        %v506 = vld [vmem:[%s169 + $0x9b0] sm:$0xff]
        %v507 = vld [vmem:[%s169 + $0x9b8] sm:$0xff]
        %v508 = vld [vmem:[%s169 + $0x9c0] sm:$0xff]
        %v509 = vld [vmem:[%s169 + $0x9c8] sm:$0xff]
        %v510 = vld [vmem:[%s169 + $0x9d0] sm:$0xff]
        %v511 = vld [vmem:[%s169 + $0x9d8] sm:$0xff]
        %v512 = vld [vmem:[%s169 + $0x9e0] sm:$0xff]
        %v513 = vld [vmem:[%s169 + $0x9e8] sm:$0xff]
        %v514 = vld [vmem:[%s169 + $0x9f0] sm:$0xff]
        %v515 = vld [vmem:[%s169 + $0x9f8] sm:$0xff]
        %v516 = vld [vmem:[%s169 + $0xa00] sm:$0xff]
        %v517 = vld [vmem:[%s169 + $0xa08] sm:$0xff]
        %v518 = vld [vmem:[%s169 + $0xa10] sm:$0xff]
        %v519 = vld [vmem:[%s169 + $0xa18] sm:$0xff]
        %v520 = vld [vmem:[%s169 + $0xa20] sm:$0xff]
        %v521 = vld [vmem:[%s169 + $0xa28] sm:$0xff]
        %v522 = vld [vmem:[%s169 + $0xa30] sm:$0xff]
        %v523 = vld [vmem:[%s169 + $0xa38] sm:$0xff]
        %v524 = vld [vmem:[%s169 + $0xa40] sm:$0xff]
        %v525 = vld [vmem:[%s169 + $0xa48] sm:$0xff]
        %v526 = vld [vmem:[%s169 + $0xa50] sm:$0xff]
        %v527 = vld [vmem:[%s169 + $0xa58] sm:$0xff]
        %v528 = vld [vmem:[%s169 + $0xa60] sm:$0xff]
        %v529 = vld [vmem:[%s169 + $0xa68] sm:$0xff]
        %v530 = vld [vmem:[%s169 + $0xa70] sm:$0xff]
        %v531 = vld [vmem:[%s169 + $0xa78] sm:$0xff]
        %v532 = vld [vmem:[%s169 + $0xa80] sm:$0xff]
        %v533 = vld [vmem:[%s169 + $0xa88] sm:$0xff]
        %v534 = vld [vmem:[%s169 + $0xa90] sm:$0xff]
        %v535 = vld [vmem:[%s169 + $0xa98] sm:$0xff]
        %v536 = vld [vmem:[%s169 + $0xaa0] sm:$0xff]
        %v537 = vld [vmem:[%s169 + $0xaa8] sm:$0xff]
        %v538 = vld [vmem:[%s169 + $0xab0] sm:$0xff]
        %v539 = vld [vmem:[%s169 + $0xab8] sm:$0xff]
        %v540 = vld [vmem:[%s169 + $0xac0] sm:$0xff]
        %v541 = vld [vmem:[%s169 + $0xac8] sm:$0xff]
        %v542 = vld [vmem:[%s169 + $0xad0] sm:$0xff]
        %v543 = vld [vmem:[%s169 + $0xad8] sm:$0xff]
        %v544 = vld [vmem:[%s169 + $0xae0] sm:$0xff]
        %v545 = vld [vmem:[%s169 + $0xae8] sm:$0xff]
        %v546 = vld [vmem:[%s169 + $0xaf0] sm:$0xff]
        %v547 = vld [vmem:[%s169 + $0xaf8] sm:$0xff]
        %v548 = vld [vmem:[%s169 + $0xb00] sm:$0xff]
        %v549 = vld [vmem:[%s169 + $0xb08] sm:$0xff]
        %v550 = vld [vmem:[%s169 + $0xb10] sm:$0xff]
        %v551 = vld [vmem:[%s169 + $0xb18] sm:$0xff]
        %v552 = vld [vmem:[%s169 + $0xb20] sm:$0xff]
        %v553 = vld [vmem:[%s169 + $0xb28] sm:$0xff]
        %v554 = vld [vmem:[%s169 + $0xb30] sm:$0xff]
        %v555 = vld [vmem:[%s169 + $0xb38] sm:$0xff]
        %v556 = vld [vmem:[%s169 + $0xb40] sm:$0xff]
        %v557 = vld [vmem:[%s169 + $0xb48] sm:$0xff]
        %v558 = vld [vmem:[%s169 + $0xb50] sm:$0xff]
        %v559 = vld [vmem:[%s169 + $0xb58] sm:$0xff]
        %v560 = vld [vmem:[%s169 + $0xb60] sm:$0xff]
        %v561 = vld [vmem:[%s169 + $0xb68] sm:$0xff]
        %v562 = vld [vmem:[%s169 + $0xb70] sm:$0xff]
        %v563 = vld [vmem:[%s169 + $0xb78] sm:$0xff]
        %v564 = vld [vmem:[%s169 + $0xb80] sm:$0xff]
        %v565 = vld [vmem:[%s169 + $0xb88] sm:$0xff]
        %v566 = vld [vmem:[%s169 + $0xb90] sm:$0xff]
        %v567 = vld [vmem:[%s169 + $0xb98] sm:$0xff]
        %v568 = vld [vmem:[%s169 + $0xba0] sm:$0xff]
        %v569 = vld [vmem:[%s169 + $0xba8] sm:$0xff]
        %v570 = vld [vmem:[%s169 + $0xbb0] sm:$0xff]
        %v571 = vld [vmem:[%s169 + $0xbb8] sm:$0xff]
        %v572 = vld [vmem:[%s169 + $0xbc0] sm:$0xff]
        %v573 = vld [vmem:[%s169 + $0xbc8] sm:$0xff]
        %v574 = vld [vmem:[%s169 + $0xbd0] sm:$0xff]
        %v575 = vld [vmem:[%s169 + $0xbd8] sm:$0xff]
        %v576 = vld [vmem:[%s169 + $0xbe0] sm:$0xff]
        %v577 = vld [vmem:[%s169 + $0xbe8] sm:$0xff]
        %v578 = vld [vmem:[%s169 + $0xbf0] sm:$0xff]
        %v579 = vld [vmem:[%s169 + $0xbf8] sm:$0xff]
        %v580 = vld [vmem:[%s169 + $0xc00] sm:$0xff]
        %v581 = vld [vmem:[%s169 + $0xc08] sm:$0xff]
        %v582 = vld [vmem:[%s169 + $0xc10] sm:$0xff]
        %v583 = vld [vmem:[%s169 + $0xc18] sm:$0xff]
        %v584 = vld [vmem:[%s169 + $0xc20] sm:$0xff]
        %v585 = vld [vmem:[%s169 + $0xc28] sm:$0xff]
        %v586 = vld [vmem:[%s169 + $0xc30] sm:$0xff]
        %v587 = vld [vmem:[%s169 + $0xc38] sm:$0xff]
        %v588 = vld [vmem:[%s169 + $0xc40] sm:$0xff]
        %v589 = vld [vmem:[%s169 + $0xc48] sm:$0xff]
        %v590 = vld [vmem:[%s169 + $0xc50] sm:$0xff]
        %v591 = vld [vmem:[%s169 + $0xc58] sm:$0xff]
        %v592 = vld [vmem:[%s169 + $0xc60] sm:$0xff]
        %v593 = vld [vmem:[%s169 + $0xc68] sm:$0xff]
        %v594 = vld [vmem:[%s169 + $0xc70] sm:$0xff]
        %v595 = vld [vmem:[%s169 + $0xc78] sm:$0xff]
        %v596 = vld [vmem:[%s169 + $0xc80] sm:$0xff]
        %v597 = vld [vmem:[%s169 + $0xc88] sm:$0xff]
        %v598 = vld [vmem:[%s169 + $0xc90] sm:$0xff]
        %v599 = vld [vmem:[%s169 + $0xc98] sm:$0xff]
        %v600 = vld [vmem:[%s169 + $0xca0] sm:$0xff]
        %v601 = vld [vmem:[%s169 + $0xca8] sm:$0xff]
        %v602 = vld [vmem:[%s169 + $0xcb0] sm:$0xff]
        %v603 = vld [vmem:[%s169 + $0xcb8] sm:$0xff]
        %v604 = vld [vmem:[%s169 + $0xcc0] sm:$0xff]
        %v605 = vld [vmem:[%s169 + $0xcc8] sm:$0xff]
        %v606 = vld [vmem:[%s169 + $0xcd0] sm:$0xff]
        %v607 = vld [vmem:[%s169 + $0xcd8] sm:$0xff]
        %v608 = vld [vmem:[%s169 + $0xce0] sm:$0xff]
        %v609 = vld [vmem:[%s169 + $0xce8] sm:$0xff]
        %v610 = vld [vmem:[%s169 + $0xcf0] sm:$0xff]
        %v611 = vld [vmem:[%s169 + $0xcf8] sm:$0xff]
        %v612 = vld [vmem:[%s169 + $0xd00] sm:$0xff]
        %v613 = vld [vmem:[%s169 + $0xd08] sm:$0xff]
        %v614 = vld [vmem:[%s169 + $0xd10] sm:$0xff]
        %v615 = vld [vmem:[%s169 + $0xd18] sm:$0xff]
        %v616 = vld [vmem:[%s169 + $0xd20] sm:$0xff]
        %v617 = vld [vmem:[%s169 + $0xd28] sm:$0xff]
        %v618 = vld [vmem:[%s169 + $0xd30] sm:$0xff]
        %v619 = vld [vmem:[%s169 + $0xd38] sm:$0xff]
        %v620 = vld [vmem:[%s169 + $0xd40] sm:$0xff]
        %v621 = vld [vmem:[%s169 + $0xd48] sm:$0xff]
        %v622 = vld [vmem:[%s169 + $0xd50] sm:$0xff]
        %v623 = vld [vmem:[%s169 + $0xd58] sm:$0xff]
        %v624 = vld [vmem:[%s169 + $0xd60] sm:$0xff]
        %v625 = vld [vmem:[%s169 + $0xd68] sm:$0xff]
        %v626 = vld [vmem:[%s169 + $0xd70] sm:$0xff]
        %v627 = vld [vmem:[%s169 + $0xd78] sm:$0xff]
        %v628 = vld [vmem:[%s169 + $0xd80] sm:$0xff]
        %v629 = vld [vmem:[%s169 + $0xd88] sm:$0xff]
        %v630 = vld [vmem:[%s169 + $0xd90] sm:$0xff]
        %v631 = vld [vmem:[%s169 + $0xd98] sm:$0xff]
        %v632 = vld [vmem:[%s169 + $0xda0] sm:$0xff]
        %v633 = vld [vmem:[%s169 + $0xda8] sm:$0xff]
        %v634 = vld [vmem:[%s169 + $0xdb0] sm:$0xff]
        %v635 = vld [vmem:[%s169 + $0xdb8] sm:$0xff]
        %v636 = vld [vmem:[%s169 + $0xdc0] sm:$0xff]
        %v637 = vld [vmem:[%s169 + $0xdc8] sm:$0xff]
        %v638 = vld [vmem:[%s169 + $0xdd0] sm:$0xff]
        %v639 = vld [vmem:[%s169 + $0xdd8] sm:$0xff]
        %v640 = vld [vmem:[%s169 + $0xde0] sm:$0xff]
        %v641 = vld [vmem:[%s169 + $0xde8] sm:$0xff]
        %v642 = vld [vmem:[%s169 + $0xdf0] sm:$0xff]
        %v643 = vld [vmem:[%s169 + $0xdf8] sm:$0xff]
        %v644 = vld [vmem:[%s169 + $0xe00] sm:$0xff]
        %v645 = vld [vmem:[%s169 + $0xe08] sm:$0xff]
        %v646 = vld [vmem:[%s169 + $0xe10] sm:$0xff]
        %v647 = vld [vmem:[%s169 + $0xe18] sm:$0xff]
        %v648 = vld [vmem:[%s169 + $0xe20] sm:$0xff]
        %v649 = vld [vmem:[%s169 + $0xe28] sm:$0xff]
        %v650 = vld [vmem:[%s169 + $0xe30] sm:$0xff]
        %v651 = vld [vmem:[%s169 + $0xe38] sm:$0xff]
        %v652 = vld [vmem:[%s169 + $0xe40] sm:$0xff]
        %v653 = vld [vmem:[%s169 + $0xe48] sm:$0xff]
        %v654 = vld [vmem:[%s169 + $0xe50] sm:$0xff]
        %v655 = vld [vmem:[%s169 + $0xe58] sm:$0xff]
        %v656 = vld [vmem:[%s169 + $0xe60] sm:$0xff]
        %v657 = vld [vmem:[%s169 + $0xe68] sm:$0xff]
        %v658 = vld [vmem:[%s169 + $0xe70] sm:$0xff]
        %v659 = vld [vmem:[%s169 + $0xe78] sm:$0xff]
        %v660 = vld [vmem:[%s169 + $0xe80] sm:$0xff]
        %v661 = vld [vmem:[%s169 + $0xe88] sm:$0xff]
        %v662 = vld [vmem:[%s169 + $0xe90] sm:$0xff]
        %v663 = vld [vmem:[%s169 + $0xe98] sm:$0xff]
        %v664 = vld [vmem:[%s169 + $0xea0] sm:$0xff]
        %v665 = vld [vmem:[%s169 + $0xea8] sm:$0xff]
        %v666 = vld [vmem:[%s169 + $0xeb0] sm:$0xff]
        %v667 = vld [vmem:[%s169 + $0xeb8] sm:$0xff]
        %v668 = vld [vmem:[%s169 + $0xec0] sm:$0xff]
        %v669 = vld [vmem:[%s169 + $0xec8] sm:$0xff]
        %v670 = vld [vmem:[%s169 + $0xed0] sm:$0xff]
        %v671 = vld [vmem:[%s169 + $0xed8] sm:$0xff]
        %v672 = vld [vmem:[%s169 + $0xee0] sm:$0xff]
        %v673 = vld [vmem:[%s169 + $0xee8] sm:$0xff]
        %v674 = vld [vmem:[%s169 + $0xef0] sm:$0xff]
        %v675 = vld [vmem:[%s169 + $0xef8] sm:$0xff]
        %v676 = vld [vmem:[%s169 + $0xf00] sm:$0xff]
        %v677 = vld [vmem:[%s169 + $0xf08] sm:$0xff]
        %v678 = vld [vmem:[%s169 + $0xf10] sm:$0xff]
        %v679 = vld [vmem:[%s169 + $0xf18] sm:$0xff]
        %v680 = vld [vmem:[%s169 + $0xf20] sm:$0xff]
        %v681 = vld [vmem:[%s169 + $0xf28] sm:$0xff]
        %v682 = vld [vmem:[%s169 + $0xf30] sm:$0xff]
        %v683 = vld [vmem:[%s169 + $0xf38] sm:$0xff]
        %v684 = vld [vmem:[%s169 + $0xf40] sm:$0xff]
        %v685 = vld [vmem:[%s169 + $0xf48] sm:$0xff]
        %v686 = vld [vmem:[%s169 + $0xf50] sm:$0xff]
        %v687 = vld [vmem:[%s169 + $0xf58] sm:$0xff]
        %v688 = vld [vmem:[%s169 + $0xf60] sm:$0xff]
        %v689 = vld [vmem:[%s169 + $0xf68] sm:$0xff]
        %v690 = vld [vmem:[%s169 + $0xf70] sm:$0xff]
        %v691 = vld [vmem:[%s169 + $0xf78] sm:$0xff]
        %v692 = vld [vmem:[%s169 + $0xf80] sm:$0xff]
        %v693 = vld [vmem:[%s169 + $0xf88] sm:$0xff]
        %v694 = vld [vmem:[%s169 + $0xf90] sm:$0xff]
        %v695 = vld [vmem:[%s169 + $0xf98] sm:$0xff]
        %v696 = vld [vmem:[%s169 + $0xfa0] sm:$0xff]
        %v697 = vld [vmem:[%s169 + $0xfa8] sm:$0xff]
        %v698 = vld [vmem:[%s169 + $0xfb0] sm:$0xff]
        %v699 = vld [vmem:[%s169 + $0xfb8] sm:$0xff]
        %v700 = vld [vmem:[%s169 + $0xfc0] sm:$0xff]
        %v701 = vld [vmem:[%s169 + $0xfc8] sm:$0xff]
        %v702 = vld [vmem:[%s169 + $0xfd0] sm:$0xff]
        %v703 = vld [vmem:[%s169 + $0xfd8] sm:$0xff]
        %v704 = vld [vmem:[%s169 + $0xfe0] sm:$0xff]
        %v705 = vld [vmem:[%s169 + $0xfe8] sm:$0xff]
        %v706 = vld [vmem:[%s169 + $0xff0] sm:$0xff]
        %v707 = vld [vmem:[%s169 + $0xff8] sm:$0xff]
        %v708 = vmul.f32 %v196, %v196
        %v709 = vmul.f32 %v197, %v197
        %v710 = vmul.f32 %v198, %v198
        %v711 = vmul.f32 %v199, %v199
        %v712 = vmul.f32 %v200, %v200
        %v713 = vmul.f32 %v201, %v201
        %v714 = vmul.f32 %v202, %v202
        %v715 = vmul.f32 %v203, %v203
        %v716 = vmul.f32 %v204, %v204
        %v717 = vmul.f32 %v205, %v205
        %v718 = vmul.f32 %v206, %v206
        %v719 = vmul.f32 %v207, %v207
        %v720 = vmul.f32 %v208, %v208
        %v721 = vmul.f32 %v209, %v209
        %v722 = vmul.f32 %v210, %v210
        %v723 = vmul.f32 %v211, %v211
        %v724 = vmul.f32 %v212, %v212
        %v725 = vmul.f32 %v213, %v213
        %v726 = vmul.f32 %v214, %v214
        %v727 = vmul.f32 %v215, %v215
        %v728 = vmul.f32 %v216, %v216
        %v729 = vmul.f32 %v217, %v217
        %v730 = vmul.f32 %v218, %v218
        %v731 = vmul.f32 %v219, %v219
        %v732 = vmul.f32 %v220, %v220
        %v733 = vmul.f32 %v221, %v221
        %v734 = vmul.f32 %v222, %v222
        %v735 = vmul.f32 %v223, %v223
        %v736 = vmul.f32 %v224, %v224
        %v737 = vmul.f32 %v225, %v225
        %v738 = vmul.f32 %v226, %v226
        %v739 = vmul.f32 %v227, %v227
        %v740 = vmul.f32 %v228, %v228
        %v741 = vmul.f32 %v229, %v229
        %v742 = vmul.f32 %v230, %v230
        %v743 = vmul.f32 %v231, %v231
        %v744 = vmul.f32 %v232, %v232
        %v745 = vmul.f32 %v233, %v233
        %v746 = vmul.f32 %v234, %v234
        %v747 = vmul.f32 %v235, %v235
        %v748 = vmul.f32 %v236, %v236
        %v749 = vmul.f32 %v237, %v237
        %v750 = vmul.f32 %v238, %v238
        %v751 = vmul.f32 %v239, %v239
        %v752 = vmul.f32 %v240, %v240
        %v753 = vmul.f32 %v241, %v241
        %v754 = vmul.f32 %v242, %v242
        %v755 = vmul.f32 %v243, %v243
        %v756 = vmul.f32 %v244, %v244
        %v757 = vmul.f32 %v245, %v245
        %v758 = vmul.f32 %v246, %v246
        %v759 = vmul.f32 %v247, %v247
        %v760 = vmul.f32 %v248, %v248
        %v761 = vmul.f32 %v249, %v249
        %v762 = vmul.f32 %v250, %v250
        %v763 = vmul.f32 %v251, %v251
        %v764 = vmul.f32 %v252, %v252
        %v765 = vmul.f32 %v253, %v253
        %v766 = vmul.f32 %v254, %v254
        %v767 = vmul.f32 %v255, %v255
        %v768 = vmul.f32 %v256, %v256
        %v769 = vmul.f32 %v257, %v257
        %v770 = vmul.f32 %v258, %v258
        %v771 = vmul.f32 %v259, %v259
        %v772 = vmul.f32 %v260, %v260
        %v773 = vmul.f32 %v261, %v261
        %v774 = vmul.f32 %v262, %v262
        %v775 = vmul.f32 %v263, %v263
        %v776 = vmul.f32 %v264, %v264
        %v777 = vmul.f32 %v265, %v265
        %v778 = vmul.f32 %v266, %v266
        %v779 = vmul.f32 %v267, %v267
        %v780 = vmul.f32 %v268, %v268
        %v781 = vmul.f32 %v269, %v269
        %v782 = vmul.f32 %v270, %v270
        %v783 = vmul.f32 %v271, %v271
        %v784 = vmul.f32 %v272, %v272
        %v785 = vmul.f32 %v273, %v273
        %v786 = vmul.f32 %v274, %v274
        %v787 = vmul.f32 %v275, %v275
        %v788 = vmul.f32 %v276, %v276
        %v789 = vmul.f32 %v277, %v277
        %v790 = vmul.f32 %v278, %v278
        %v791 = vmul.f32 %v279, %v279
        %v792 = vmul.f32 %v280, %v280
        %v793 = vmul.f32 %v281, %v281
        %v794 = vmul.f32 %v282, %v282
        %v795 = vmul.f32 %v283, %v283
        %v796 = vmul.f32 %v284, %v284
        %v797 = vmul.f32 %v285, %v285
        %v798 = vmul.f32 %v286, %v286
        %v799 = vmul.f32 %v287, %v287
        %v800 = vmul.f32 %v288, %v288
        %v801 = vmul.f32 %v289, %v289
        %v802 = vmul.f32 %v290, %v290
        %v803 = vmul.f32 %v291, %v291
        %v804 = vmul.f32 %v292, %v292
        %v805 = vmul.f32 %v293, %v293
        %v806 = vmul.f32 %v294, %v294
        %v807 = vmul.f32 %v295, %v295
        %v808 = vmul.f32 %v296, %v296
        %v809 = vmul.f32 %v297, %v297
        %v810 = vmul.f32 %v298, %v298
        %v811 = vmul.f32 %v299, %v299
        %v812 = vmul.f32 %v300, %v300
        %v813 = vmul.f32 %v301, %v301
        %v814 = vmul.f32 %v302, %v302
        %v815 = vmul.f32 %v303, %v303
        %v816 = vmul.f32 %v304, %v304
        %v817 = vmul.f32 %v305, %v305
        %v818 = vmul.f32 %v306, %v306
        %v819 = vmul.f32 %v307, %v307
        %v820 = vmul.f32 %v308, %v308
        %v821 = vmul.f32 %v309, %v309
        %v822 = vmul.f32 %v310, %v310
        %v823 = vmul.f32 %v311, %v311
        %v824 = vmul.f32 %v312, %v312
        %v825 = vmul.f32 %v313, %v313
        %v826 = vmul.f32 %v314, %v314
        %v827 = vmul.f32 %v315, %v315
        %v828 = vmul.f32 %v316, %v316
        %v829 = vmul.f32 %v317, %v317
        %v830 = vmul.f32 %v318, %v318
        %v831 = vmul.f32 %v319, %v319
        %v832 = vmul.f32 %v320, %v320
        %v833 = vmul.f32 %v321, %v321
        %v834 = vmul.f32 %v322, %v322
        %v835 = vmul.f32 %v323, %v323
        %v836 = vmul.f32 %v324, %v324
        %v837 = vmul.f32 %v325, %v325
        %v838 = vmul.f32 %v326, %v326
        %v839 = vmul.f32 %v327, %v327
        %v840 = vmul.f32 %v328, %v328
        %v841 = vmul.f32 %v329, %v329
        %v842 = vmul.f32 %v330, %v330
        %v843 = vmul.f32 %v331, %v331
        %v844 = vmul.f32 %v332, %v332
        %v845 = vmul.f32 %v333, %v333
        %v846 = vmul.f32 %v334, %v334
        %v847 = vmul.f32 %v335, %v335
        %v848 = vmul.f32 %v336, %v336
        %v849 = vmul.f32 %v337, %v337
        %v850 = vmul.f32 %v338, %v338
        %v851 = vmul.f32 %v339, %v339
        %v852 = vmul.f32 %v340, %v340
        %v853 = vmul.f32 %v341, %v341
        %v854 = vmul.f32 %v342, %v342
        %v855 = vmul.f32 %v343, %v343
        %v856 = vmul.f32 %v344, %v344
        %v857 = vmul.f32 %v345, %v345
        %v858 = vmul.f32 %v346, %v346
        %v859 = vmul.f32 %v347, %v347
        %v860 = vmul.f32 %v348, %v348
        %v861 = vmul.f32 %v349, %v349
        %v862 = vmul.f32 %v350, %v350
        %v863 = vmul.f32 %v351, %v351
        %v864 = vmul.f32 %v352, %v352
        %v865 = vmul.f32 %v353, %v353
        %v866 = vmul.f32 %v354, %v354
        %v867 = vmul.f32 %v355, %v355
        %v868 = vmul.f32 %v356, %v356
        %v869 = vmul.f32 %v357, %v357
        %v870 = vmul.f32 %v358, %v358
        %v871 = vmul.f32 %v359, %v359
        %v872 = vmul.f32 %v360, %v360
        %v873 = vmul.f32 %v361, %v361
        %v874 = vmul.f32 %v362, %v362
        %v875 = vmul.f32 %v363, %v363
        %v876 = vmul.f32 %v364, %v364
        %v877 = vmul.f32 %v365, %v365
        %v878 = vmul.f32 %v366, %v366
        %v879 = vmul.f32 %v367, %v367
        %v880 = vmul.f32 %v368, %v368
        %v881 = vmul.f32 %v369, %v369
        %v882 = vmul.f32 %v370, %v370
        %v883 = vmul.f32 %v371, %v371
        %v884 = vmul.f32 %v372, %v372
        %v885 = vmul.f32 %v373, %v373
        %v886 = vmul.f32 %v374, %v374
        %v887 = vmul.f32 %v375, %v375
        %v888 = vmul.f32 %v376, %v376
        %v889 = vmul.f32 %v377, %v377
        %v890 = vmul.f32 %v378, %v378
        %v891 = vmul.f32 %v379, %v379
        %v892 = vmul.f32 %v380, %v380
        %v893 = vmul.f32 %v381, %v381
        %v894 = vmul.f32 %v382, %v382
        %v895 = vmul.f32 %v383, %v383
        %v896 = vmul.f32 %v384, %v384
        %v897 = vmul.f32 %v385, %v385
        %v898 = vmul.f32 %v386, %v386
        %v899 = vmul.f32 %v387, %v387
        %v900 = vmul.f32 %v388, %v388
        %v901 = vmul.f32 %v389, %v389
        %v902 = vmul.f32 %v390, %v390
        %v903 = vmul.f32 %v391, %v391
        %v904 = vmul.f32 %v392, %v392
        %v905 = vmul.f32 %v393, %v393
        %v906 = vmul.f32 %v394, %v394
        %v907 = vmul.f32 %v395, %v395
        %v908 = vmul.f32 %v396, %v396
        %v909 = vmul.f32 %v397, %v397
        %v910 = vmul.f32 %v398, %v398
        %v911 = vmul.f32 %v399, %v399
        %v912 = vmul.f32 %v400, %v400
        %v913 = vmul.f32 %v401, %v401
        %v914 = vmul.f32 %v402, %v402
        %v915 = vmul.f32 %v403, %v403
        %v916 = vmul.f32 %v404, %v404
        %v917 = vmul.f32 %v405, %v405
        %v918 = vmul.f32 %v406, %v406
        %v919 = vmul.f32 %v407, %v407
        %v920 = vmul.f32 %v408, %v408
        %v921 = vmul.f32 %v409, %v409
        %v922 = vmul.f32 %v410, %v410
        %v923 = vmul.f32 %v411, %v411
        %v924 = vmul.f32 %v412, %v412
        %v925 = vmul.f32 %v413, %v413
        %v926 = vmul.f32 %v414, %v414
        %v927 = vmul.f32 %v415, %v415
        %v928 = vmul.f32 %v416, %v416
        %v929 = vmul.f32 %v417, %v417
        %v930 = vmul.f32 %v418, %v418
        %v931 = vmul.f32 %v419, %v419
        %v932 = vmul.f32 %v420, %v420
        %v933 = vmul.f32 %v421, %v421
        %v934 = vmul.f32 %v422, %v422
        %v935 = vmul.f32 %v423, %v423
        %v936 = vmul.f32 %v424, %v424
        %v937 = vmul.f32 %v425, %v425
        %v938 = vmul.f32 %v426, %v426
        %v939 = vmul.f32 %v427, %v427
        %v940 = vmul.f32 %v428, %v428
        %v941 = vmul.f32 %v429, %v429
        %v942 = vmul.f32 %v430, %v430
        %v943 = vmul.f32 %v431, %v431
        %v944 = vmul.f32 %v432, %v432
        %v945 = vmul.f32 %v433, %v433
        %v946 = vmul.f32 %v434, %v434
        %v947 = vmul.f32 %v435, %v435
        %v948 = vmul.f32 %v436, %v436
        %v949 = vmul.f32 %v437, %v437
        %v950 = vmul.f32 %v438, %v438
        %v951 = vmul.f32 %v439, %v439
        %v952 = vmul.f32 %v440, %v440
        %v953 = vmul.f32 %v441, %v441
        %v954 = vmul.f32 %v442, %v442
        %v955 = vmul.f32 %v443, %v443
        %v956 = vmul.f32 %v444, %v444
        %v957 = vmul.f32 %v445, %v445
        %v958 = vmul.f32 %v446, %v446
        %v959 = vmul.f32 %v447, %v447
        %v960 = vmul.f32 %v448, %v448
        %v961 = vmul.f32 %v449, %v449
        %v962 = vmul.f32 %v450, %v450
        %v963 = vmul.f32 %v451, %v451
        %v964 = vmul.f32 %v452, %v452
        %v965 = vmul.f32 %v453, %v453
        %v966 = vmul.f32 %v454, %v454
        %v967 = vmul.f32 %v455, %v455
        %v968 = vmul.f32 %v456, %v456
        %v969 = vmul.f32 %v457, %v457
        %v970 = vmul.f32 %v458, %v458
        %v971 = vmul.f32 %v459, %v459
        %v972 = vmul.f32 %v460, %v460
        %v973 = vmul.f32 %v461, %v461
        %v974 = vmul.f32 %v462, %v462
        %v975 = vmul.f32 %v463, %v463
        %v976 = vmul.f32 %v464, %v464
        %v977 = vmul.f32 %v465, %v465
        %v978 = vmul.f32 %v466, %v466
        %v979 = vmul.f32 %v467, %v467
        %v980 = vmul.f32 %v468, %v468
        %v981 = vmul.f32 %v469, %v469
        %v982 = vmul.f32 %v470, %v470
        %v983 = vmul.f32 %v471, %v471
        %v984 = vmul.f32 %v472, %v472
        %v985 = vmul.f32 %v473, %v473
        %v986 = vmul.f32 %v474, %v474
        %v987 = vmul.f32 %v475, %v475
        %v988 = vmul.f32 %v476, %v476
        %v989 = vmul.f32 %v477, %v477
        %v990 = vmul.f32 %v478, %v478
        %v991 = vmul.f32 %v479, %v479
        %v992 = vmul.f32 %v480, %v480
        %v993 = vmul.f32 %v481, %v481
        %v994 = vmul.f32 %v482, %v482
        %v995 = vmul.f32 %v483, %v483
        %v996 = vmul.f32 %v484, %v484
        %v997 = vmul.f32 %v485, %v485
        %v998 = vmul.f32 %v486, %v486
        %v999 = vmul.f32 %v487, %v487
        %v1000 = vmul.f32 %v488, %v488
        %v1001 = vmul.f32 %v489, %v489
        %v1002 = vmul.f32 %v490, %v490
        %v1003 = vmul.f32 %v491, %v491
        %v1004 = vmul.f32 %v492, %v492
        %v1005 = vmul.f32 %v493, %v493
        %v1006 = vmul.f32 %v494, %v494
        %v1007 = vmul.f32 %v495, %v495
        %v1008 = vmul.f32 %v496, %v496
        %v1009 = vmul.f32 %v497, %v497
        %v1010 = vmul.f32 %v498, %v498
        %v1011 = vmul.f32 %v499, %v499
        %v1012 = vmul.f32 %v500, %v500
        %v1013 = vmul.f32 %v501, %v501
        %v1014 = vmul.f32 %v502, %v502
        %v1015 = vmul.f32 %v503, %v503
        %v1016 = vmul.f32 %v504, %v504
        %v1017 = vmul.f32 %v505, %v505
        %v1018 = vmul.f32 %v506, %v506
        %v1019 = vmul.f32 %v507, %v507
        %v1020 = vmul.f32 %v508, %v508
        %v1021 = vmul.f32 %v509, %v509
        %v1022 = vmul.f32 %v510, %v510
        %v1023 = vmul.f32 %v511, %v511
        %v1024 = vmul.f32 %v512, %v512
        %v1025 = vmul.f32 %v513, %v513
        %v1026 = vmul.f32 %v514, %v514
        %v1027 = vmul.f32 %v515, %v515
        %v1028 = vmul.f32 %v516, %v516
        %v1029 = vmul.f32 %v517, %v517
        %v1030 = vmul.f32 %v518, %v518
        %v1031 = vmul.f32 %v519, %v519
        %v1032 = vmul.f32 %v520, %v520
        %v1033 = vmul.f32 %v521, %v521
        %v1034 = vmul.f32 %v522, %v522
        %v1035 = vmul.f32 %v523, %v523
        %v1036 = vmul.f32 %v524, %v524
        %v1037 = vmul.f32 %v525, %v525
        %v1038 = vmul.f32 %v526, %v526
        %v1039 = vmul.f32 %v527, %v527
        %v1040 = vmul.f32 %v528, %v528
        %v1041 = vmul.f32 %v529, %v529
        %v1042 = vmul.f32 %v530, %v530
        %v1043 = vmul.f32 %v531, %v531
        %v1044 = vmul.f32 %v532, %v532
        %v1045 = vmul.f32 %v533, %v533
        %v1046 = vmul.f32 %v534, %v534
        %v1047 = vmul.f32 %v535, %v535
        %v1048 = vmul.f32 %v536, %v536
        %v1049 = vmul.f32 %v537, %v537
        %v1050 = vmul.f32 %v538, %v538
        %v1051 = vmul.f32 %v539, %v539
        %v1052 = vmul.f32 %v540, %v540
        %v1053 = vmul.f32 %v541, %v541
        %v1054 = vmul.f32 %v542, %v542
        %v1055 = vmul.f32 %v543, %v543
        %v1056 = vmul.f32 %v544, %v544
        %v1057 = vmul.f32 %v545, %v545
        %v1058 = vmul.f32 %v546, %v546
        %v1059 = vmul.f32 %v547, %v547
        %v1060 = vmul.f32 %v548, %v548
        %v1061 = vmul.f32 %v549, %v549
        %v1062 = vmul.f32 %v550, %v550
        %v1063 = vmul.f32 %v551, %v551
        %v1064 = vmul.f32 %v552, %v552
        %v1065 = vmul.f32 %v553, %v553
        %v1066 = vmul.f32 %v554, %v554
        %v1067 = vmul.f32 %v555, %v555
        %v1068 = vmul.f32 %v556, %v556
        %v1069 = vmul.f32 %v557, %v557
        %v1070 = vmul.f32 %v558, %v558
        %v1071 = vmul.f32 %v559, %v559
        %v1072 = vmul.f32 %v560, %v560
        %v1073 = vmul.f32 %v561, %v561
        %v1074 = vmul.f32 %v562, %v562
        %v1075 = vmul.f32 %v563, %v563
        %v1076 = vmul.f32 %v564, %v564
        %v1077 = vmul.f32 %v565, %v565
        %v1078 = vmul.f32 %v566, %v566
        %v1079 = vmul.f32 %v567, %v567
        %v1080 = vmul.f32 %v568, %v568
        %v1081 = vmul.f32 %v569, %v569
        %v1082 = vmul.f32 %v570, %v570
        %v1083 = vmul.f32 %v571, %v571
        %v1084 = vmul.f32 %v572, %v572
        %v1085 = vmul.f32 %v573, %v573
        %v1086 = vmul.f32 %v574, %v574
        %v1087 = vmul.f32 %v575, %v575
        %v1088 = vmul.f32 %v576, %v576
        %v1089 = vmul.f32 %v577, %v577
        %v1090 = vmul.f32 %v578, %v578
        %v1091 = vmul.f32 %v579, %v579
        %v1092 = vmul.f32 %v580, %v580
        %v1093 = vmul.f32 %v581, %v581
        %v1094 = vmul.f32 %v582, %v582
        %v1095 = vmul.f32 %v583, %v583
        %v1096 = vmul.f32 %v584, %v584
        %v1097 = vmul.f32 %v585, %v585
        %v1098 = vmul.f32 %v586, %v586
        %v1099 = vmul.f32 %v587, %v587
        %v1100 = vmul.f32 %v588, %v588
        %v1101 = vmul.f32 %v589, %v589
        %v1102 = vmul.f32 %v590, %v590
        %v1103 = vmul.f32 %v591, %v591
        %v1104 = vmul.f32 %v592, %v592
        %v1105 = vmul.f32 %v593, %v593
        %v1106 = vmul.f32 %v594, %v594
        %v1107 = vmul.f32 %v595, %v595
        %v1108 = vmul.f32 %v596, %v596
        %v1109 = vmul.f32 %v597, %v597
        %v1110 = vmul.f32 %v598, %v598
        %v1111 = vmul.f32 %v599, %v599
        %v1112 = vmul.f32 %v600, %v600
        %v1113 = vmul.f32 %v601, %v601
        %v1114 = vmul.f32 %v602, %v602
        %v1115 = vmul.f32 %v603, %v603
        %v1116 = vmul.f32 %v604, %v604
        %v1117 = vmul.f32 %v605, %v605
        %v1118 = vmul.f32 %v606, %v606
        %v1119 = vmul.f32 %v607, %v607
        %v1120 = vmul.f32 %v608, %v608
        %v1121 = vmul.f32 %v609, %v609
        %v1122 = vmul.f32 %v610, %v610
        %v1123 = vmul.f32 %v611, %v611
        %v1124 = vmul.f32 %v612, %v612
        %v1125 = vmul.f32 %v613, %v613
        %v1126 = vmul.f32 %v614, %v614
        %v1127 = vmul.f32 %v615, %v615
        %v1128 = vmul.f32 %v616, %v616
        %v1129 = vmul.f32 %v617, %v617
        %v1130 = vmul.f32 %v618, %v618
        %v1131 = vmul.f32 %v619, %v619
        %v1132 = vmul.f32 %v620, %v620
        %v1133 = vmul.f32 %v621, %v621
        %v1134 = vmul.f32 %v622, %v622
        %v1135 = vmul.f32 %v623, %v623
        %v1136 = vmul.f32 %v624, %v624
        %v1137 = vmul.f32 %v625, %v625
        %v1138 = vmul.f32 %v626, %v626
        %v1139 = vmul.f32 %v627, %v627
        %v1140 = vmul.f32 %v628, %v628
        %v1141 = vmul.f32 %v629, %v629
        %v1142 = vmul.f32 %v630, %v630
        %v1143 = vmul.f32 %v631, %v631
        %v1144 = vmul.f32 %v632, %v632
        %v1145 = vmul.f32 %v633, %v633
        %v1146 = vmul.f32 %v634, %v634
        %v1147 = vmul.f32 %v635, %v635
        %v1148 = vmul.f32 %v636, %v636
        %v1149 = vmul.f32 %v637, %v637
        %v1150 = vmul.f32 %v638, %v638
        %v1151 = vmul.f32 %v639, %v639
        %v1152 = vmul.f32 %v640, %v640
        %v1153 = vmul.f32 %v641, %v641
        %v1154 = vmul.f32 %v642, %v642
        %v1155 = vmul.f32 %v643, %v643
        %v1156 = vmul.f32 %v644, %v644
        %v1157 = vmul.f32 %v645, %v645
        %v1158 = vmul.f32 %v646, %v646
        %v1159 = vmul.f32 %v647, %v647
        %v1160 = vmul.f32 %v648, %v648
        %v1161 = vmul.f32 %v649, %v649
        %v1162 = vmul.f32 %v650, %v650
        %v1163 = vmul.f32 %v651, %v651
        %v1164 = vmul.f32 %v652, %v652
        %v1165 = vmul.f32 %v653, %v653
        %v1166 = vmul.f32 %v654, %v654
        %v1167 = vmul.f32 %v655, %v655
        %v1168 = vmul.f32 %v656, %v656
        %v1169 = vmul.f32 %v657, %v657
        %v1170 = vmul.f32 %v658, %v658
        %v1171 = vmul.f32 %v659, %v659
        %v1172 = vmul.f32 %v660, %v660
        %v1173 = vmul.f32 %v661, %v661
        %v1174 = vmul.f32 %v662, %v662
        %v1175 = vmul.f32 %v663, %v663
        %v1176 = vmul.f32 %v664, %v664
        %v1177 = vmul.f32 %v665, %v665
        %v1178 = vmul.f32 %v666, %v666
        %v1179 = vmul.f32 %v667, %v667
        %v1180 = vmul.f32 %v668, %v668
        %v1181 = vmul.f32 %v669, %v669
        %v1182 = vmul.f32 %v670, %v670
        %v1183 = vmul.f32 %v671, %v671
        %v1184 = vmul.f32 %v672, %v672
        %v1185 = vmul.f32 %v673, %v673
        %v1186 = vmul.f32 %v674, %v674
        %v1187 = vmul.f32 %v675, %v675
        %v1188 = vmul.f32 %v676, %v676
        %v1189 = vmul.f32 %v677, %v677
        %v1190 = vmul.f32 %v678, %v678
        %v1191 = vmul.f32 %v679, %v679
        %v1192 = vmul.f32 %v680, %v680
        %v1193 = vmul.f32 %v681, %v681
        %v1194 = vmul.f32 %v682, %v682
        %v1195 = vmul.f32 %v683, %v683
        %v1196 = vmul.f32 %v684, %v684
        %v1197 = vmul.f32 %v685, %v685
        %v1198 = vmul.f32 %v686, %v686
        %v1199 = vmul.f32 %v687, %v687
        %v1200 = vmul.f32 %v688, %v688
        %v1201 = vmul.f32 %v689, %v689
        %v1202 = vmul.f32 %v690, %v690
        %v1203 = vmul.f32 %v691, %v691
        %v1204 = vmul.f32 %v692, %v692
        %v1205 = vmul.f32 %v693, %v693
        %v1206 = vmul.f32 %v694, %v694
        %v1207 = vmul.f32 %v695, %v695
        %v1208 = vmul.f32 %v696, %v696
        %v1209 = vmul.f32 %v697, %v697
        %v1210 = vmul.f32 %v698, %v698
        %v1211 = vmul.f32 %v699, %v699
        %v1212 = vmul.f32 %v700, %v700
        %v1213 = vmul.f32 %v701, %v701
        %v1214 = vmul.f32 %v702, %v702
        %v1215 = vmul.f32 %v703, %v703
        %v1216 = vmul.f32 %v704, %v704
        %v1217 = vmul.f32 %v705, %v705
        %v1218 = vmul.f32 %v706, %v706
        %v1219 = vmul.f32 %v707, %v707
        %s1220 = smul.f32 %s194, %s194
        %v1221 = vstv %s1220
        %v1222 = vadd.f32 %v708, %v1221
        %v1223 = vadd.f32 %v709, %v1221
        %v1224 = vadd.f32 %v710, %v1221
        %v1225 = vadd.f32 %v711, %v1221
        %v1226 = vadd.f32 %v712, %v1221
        %v1227 = vadd.f32 %v713, %v1221
        %v1228 = vadd.f32 %v714, %v1221
        %v1229 = vadd.f32 %v715, %v1221
        %v1230 = vadd.f32 %v716, %v1221
        %v1231 = vadd.f32 %v717, %v1221
        %v1232 = vadd.f32 %v718, %v1221
        %v1233 = vadd.f32 %v719, %v1221
        %v1234 = vadd.f32 %v720, %v1221
        %v1235 = vadd.f32 %v721, %v1221
        %v1236 = vadd.f32 %v722, %v1221
        %v1237 = vadd.f32 %v723, %v1221
        %v1238 = vadd.f32 %v724, %v1221
        %v1239 = vadd.f32 %v725, %v1221
        %v1240 = vadd.f32 %v726, %v1221
        %v1241 = vadd.f32 %v727, %v1221
        %v1242 = vadd.f32 %v728, %v1221
        %v1243 = vadd.f32 %v729, %v1221
        %v1244 = vadd.f32 %v730, %v1221
        %v1245 = vadd.f32 %v731, %v1221
        %v1246 = vadd.f32 %v732, %v1221
        %v1247 = vadd.f32 %v733, %v1221
        %v1248 = vadd.f32 %v734, %v1221
        %v1249 = vadd.f32 %v735, %v1221
        %v1250 = vadd.f32 %v736, %v1221
        %v1251 = vadd.f32 %v737, %v1221
        %v1252 = vadd.f32 %v738, %v1221
        %v1253 = vadd.f32 %v739, %v1221
        %v1254 = vadd.f32 %v740, %v1221
        %v1255 = vadd.f32 %v741, %v1221
        %v1256 = vadd.f32 %v742, %v1221
        %v1257 = vadd.f32 %v743, %v1221
        %v1258 = vadd.f32 %v744, %v1221
        %v1259 = vadd.f32 %v745, %v1221
        %v1260 = vadd.f32 %v746, %v1221
        %v1261 = vadd.f32 %v747, %v1221
        %v1262 = vadd.f32 %v748, %v1221
        %v1263 = vadd.f32 %v749, %v1221
        %v1264 = vadd.f32 %v750, %v1221
        %v1265 = vadd.f32 %v751, %v1221
        %v1266 = vadd.f32 %v752, %v1221
        %v1267 = vadd.f32 %v753, %v1221
        %v1268 = vadd.f32 %v754, %v1221
        %v1269 = vadd.f32 %v755, %v1221
        %v1270 = vadd.f32 %v756, %v1221
        %v1271 = vadd.f32 %v757, %v1221
        %v1272 = vadd.f32 %v758, %v1221
        %v1273 = vadd.f32 %v759, %v1221
        %v1274 = vadd.f32 %v760, %v1221
        %v1275 = vadd.f32 %v761, %v1221
        %v1276 = vadd.f32 %v762, %v1221
        %v1277 = vadd.f32 %v763, %v1221
        %v1278 = vadd.f32 %v764, %v1221
        %v1279 = vadd.f32 %v765, %v1221
        %v1280 = vadd.f32 %v766, %v1221
        %v1281 = vadd.f32 %v767, %v1221
        %v1282 = vadd.f32 %v768, %v1221
        %v1283 = vadd.f32 %v769, %v1221
        %v1284 = vadd.f32 %v770, %v1221
        %v1285 = vadd.f32 %v771, %v1221
        %v1286 = vadd.f32 %v772, %v1221
        %v1287 = vadd.f32 %v773, %v1221
        %v1288 = vadd.f32 %v774, %v1221
        %v1289 = vadd.f32 %v775, %v1221
        %v1290 = vadd.f32 %v776, %v1221
        %v1291 = vadd.f32 %v777, %v1221
        %v1292 = vadd.f32 %v778, %v1221
        %v1293 = vadd.f32 %v779, %v1221
        %v1294 = vadd.f32 %v780, %v1221
        %v1295 = vadd.f32 %v781, %v1221
        %v1296 = vadd.f32 %v782, %v1221
        %v1297 = vadd.f32 %v783, %v1221
        %v1298 = vadd.f32 %v784, %v1221
        %v1299 = vadd.f32 %v785, %v1221
        %v1300 = vadd.f32 %v786, %v1221
        %v1301 = vadd.f32 %v787, %v1221
        %v1302 = vadd.f32 %v788, %v1221
        %v1303 = vadd.f32 %v789, %v1221
        %v1304 = vadd.f32 %v790, %v1221
        %v1305 = vadd.f32 %v791, %v1221
        %v1306 = vadd.f32 %v792, %v1221
        %v1307 = vadd.f32 %v793, %v1221
        %v1308 = vadd.f32 %v794, %v1221
        %v1309 = vadd.f32 %v795, %v1221
        %v1310 = vadd.f32 %v796, %v1221
        %v1311 = vadd.f32 %v797, %v1221
        %v1312 = vadd.f32 %v798, %v1221
        %v1313 = vadd.f32 %v799, %v1221
        %v1314 = vadd.f32 %v800, %v1221
        %v1315 = vadd.f32 %v801, %v1221
        %v1316 = vadd.f32 %v802, %v1221
        %v1317 = vadd.f32 %v803, %v1221
        %v1318 = vadd.f32 %v804, %v1221
        %v1319 = vadd.f32 %v805, %v1221
        %v1320 = vadd.f32 %v806, %v1221
        %v1321 = vadd.f32 %v807, %v1221
        %v1322 = vadd.f32 %v808, %v1221
        %v1323 = vadd.f32 %v809, %v1221
        %v1324 = vadd.f32 %v810, %v1221
        %v1325 = vadd.f32 %v811, %v1221
        %v1326 = vadd.f32 %v812, %v1221
        %v1327 = vadd.f32 %v813, %v1221
        %v1328 = vadd.f32 %v814, %v1221
        %v1329 = vadd.f32 %v815, %v1221
        %v1330 = vadd.f32 %v816, %v1221
        %v1331 = vadd.f32 %v817, %v1221
        %v1332 = vadd.f32 %v818, %v1221
        %v1333 = vadd.f32 %v819, %v1221
        %v1334 = vadd.f32 %v820, %v1221
        %v1335 = vadd.f32 %v821, %v1221
        %v1336 = vadd.f32 %v822, %v1221
        %v1337 = vadd.f32 %v823, %v1221
        %v1338 = vadd.f32 %v824, %v1221
        %v1339 = vadd.f32 %v825, %v1221
        %v1340 = vadd.f32 %v826, %v1221
        %v1341 = vadd.f32 %v827, %v1221
        %v1342 = vadd.f32 %v828, %v1221
        %v1343 = vadd.f32 %v829, %v1221
        %v1344 = vadd.f32 %v830, %v1221
        %v1345 = vadd.f32 %v831, %v1221
        %v1346 = vadd.f32 %v832, %v1221
        %v1347 = vadd.f32 %v833, %v1221
        %v1348 = vadd.f32 %v834, %v1221
        %v1349 = vadd.f32 %v835, %v1221
        %v1350 = vadd.f32 %v836, %v1221
        %v1351 = vadd.f32 %v837, %v1221
        %v1352 = vadd.f32 %v838, %v1221
        %v1353 = vadd.f32 %v839, %v1221
        %v1354 = vadd.f32 %v840, %v1221
        %v1355 = vadd.f32 %v841, %v1221
        %v1356 = vadd.f32 %v842, %v1221
        %v1357 = vadd.f32 %v843, %v1221
        %v1358 = vadd.f32 %v844, %v1221
        %v1359 = vadd.f32 %v845, %v1221
        %v1360 = vadd.f32 %v846, %v1221
        %v1361 = vadd.f32 %v847, %v1221
        %v1362 = vadd.f32 %v848, %v1221
        %v1363 = vadd.f32 %v849, %v1221
        %v1364 = vadd.f32 %v850, %v1221
        %v1365 = vadd.f32 %v851, %v1221
        %v1366 = vadd.f32 %v852, %v1221
        %v1367 = vadd.f32 %v853, %v1221
        %v1368 = vadd.f32 %v854, %v1221
        %v1369 = vadd.f32 %v855, %v1221
        %v1370 = vadd.f32 %v856, %v1221
        %v1371 = vadd.f32 %v857, %v1221
        %v1372 = vadd.f32 %v858, %v1221
        %v1373 = vadd.f32 %v859, %v1221
        %v1374 = vadd.f32 %v860, %v1221
        %v1375 = vadd.f32 %v861, %v1221
        %v1376 = vadd.f32 %v862, %v1221
        %v1377 = vadd.f32 %v863, %v1221
        %v1378 = vadd.f32 %v864, %v1221
        %v1379 = vadd.f32 %v865, %v1221
        %v1380 = vadd.f32 %v866, %v1221
        %v1381 = vadd.f32 %v867, %v1221
        %v1382 = vadd.f32 %v868, %v1221
        %v1383 = vadd.f32 %v869, %v1221
        %v1384 = vadd.f32 %v870, %v1221
        %v1385 = vadd.f32 %v871, %v1221
        %v1386 = vadd.f32 %v872, %v1221
        %v1387 = vadd.f32 %v873, %v1221
        %v1388 = vadd.f32 %v874, %v1221
        %v1389 = vadd.f32 %v875, %v1221
        %v1390 = vadd.f32 %v876, %v1221
        %v1391 = vadd.f32 %v877, %v1221
        %v1392 = vadd.f32 %v878, %v1221
        %v1393 = vadd.f32 %v879, %v1221
        %v1394 = vadd.f32 %v880, %v1221
        %v1395 = vadd.f32 %v881, %v1221
        %v1396 = vadd.f32 %v882, %v1221
        %v1397 = vadd.f32 %v883, %v1221
        %v1398 = vadd.f32 %v884, %v1221
        %v1399 = vadd.f32 %v885, %v1221
        %v1400 = vadd.f32 %v886, %v1221
        %v1401 = vadd.f32 %v887, %v1221
        %v1402 = vadd.f32 %v888, %v1221
        %v1403 = vadd.f32 %v889, %v1221
        %v1404 = vadd.f32 %v890, %v1221
        %v1405 = vadd.f32 %v891, %v1221
        %v1406 = vadd.f32 %v892, %v1221
        %v1407 = vadd.f32 %v893, %v1221
        %v1408 = vadd.f32 %v894, %v1221
        %v1409 = vadd.f32 %v895, %v1221
        %v1410 = vadd.f32 %v896, %v1221
        %v1411 = vadd.f32 %v897, %v1221
        %v1412 = vadd.f32 %v898, %v1221
        %v1413 = vadd.f32 %v899, %v1221
        %v1414 = vadd.f32 %v900, %v1221
        %v1415 = vadd.f32 %v901, %v1221
        %v1416 = vadd.f32 %v902, %v1221
        %v1417 = vadd.f32 %v903, %v1221
        %v1418 = vadd.f32 %v904, %v1221
        %v1419 = vadd.f32 %v905, %v1221
        %v1420 = vadd.f32 %v906, %v1221
        %v1421 = vadd.f32 %v907, %v1221
        %v1422 = vadd.f32 %v908, %v1221
        %v1423 = vadd.f32 %v909, %v1221
        %v1424 = vadd.f32 %v910, %v1221
        %v1425 = vadd.f32 %v911, %v1221
        %v1426 = vadd.f32 %v912, %v1221
        %v1427 = vadd.f32 %v913, %v1221
        %v1428 = vadd.f32 %v914, %v1221
        %v1429 = vadd.f32 %v915, %v1221
        %v1430 = vadd.f32 %v916, %v1221
        %v1431 = vadd.f32 %v917, %v1221
        %v1432 = vadd.f32 %v918, %v1221
        %v1433 = vadd.f32 %v919, %v1221
        %v1434 = vadd.f32 %v920, %v1221
        %v1435 = vadd.f32 %v921, %v1221
        %v1436 = vadd.f32 %v922, %v1221
        %v1437 = vadd.f32 %v923, %v1221
        %v1438 = vadd.f32 %v924, %v1221
        %v1439 = vadd.f32 %v925, %v1221
        %v1440 = vadd.f32 %v926, %v1221
        %v1441 = vadd.f32 %v927, %v1221
        %v1442 = vadd.f32 %v928, %v1221
        %v1443 = vadd.f32 %v929, %v1221
        %v1444 = vadd.f32 %v930, %v1221
        %v1445 = vadd.f32 %v931, %v1221
        %v1446 = vadd.f32 %v932, %v1221
        %v1447 = vadd.f32 %v933, %v1221
        %v1448 = vadd.f32 %v934, %v1221
        %v1449 = vadd.f32 %v935, %v1221
        %v1450 = vadd.f32 %v936, %v1221
        %v1451 = vadd.f32 %v937, %v1221
        %v1452 = vadd.f32 %v938, %v1221
        %v1453 = vadd.f32 %v939, %v1221
        %v1454 = vadd.f32 %v940, %v1221
        %v1455 = vadd.f32 %v941, %v1221
        %v1456 = vadd.f32 %v942, %v1221
        %v1457 = vadd.f32 %v943, %v1221
        %v1458 = vadd.f32 %v944, %v1221
        %v1459 = vadd.f32 %v945, %v1221
        %v1460 = vadd.f32 %v946, %v1221
        %v1461 = vadd.f32 %v947, %v1221
        %v1462 = vadd.f32 %v948, %v1221
        %v1463 = vadd.f32 %v949, %v1221
        %v1464 = vadd.f32 %v950, %v1221
        %v1465 = vadd.f32 %v951, %v1221
        %v1466 = vadd.f32 %v952, %v1221
        %v1467 = vadd.f32 %v953, %v1221
        %v1468 = vadd.f32 %v954, %v1221
        %v1469 = vadd.f32 %v955, %v1221
        %v1470 = vadd.f32 %v956, %v1221
        %v1471 = vadd.f32 %v957, %v1221
        %v1472 = vadd.f32 %v958, %v1221
        %v1473 = vadd.f32 %v959, %v1221
        %v1474 = vadd.f32 %v960, %v1221
        %v1475 = vadd.f32 %v961, %v1221
        %v1476 = vadd.f32 %v962, %v1221
        %v1477 = vadd.f32 %v963, %v1221
        %v1478 = vadd.f32 %v964, %v1221
        %v1479 = vadd.f32 %v965, %v1221
        %v1480 = vadd.f32 %v966, %v1221
        %v1481 = vadd.f32 %v967, %v1221
        %v1482 = vadd.f32 %v968, %v1221
        %v1483 = vadd.f32 %v969, %v1221
        %v1484 = vadd.f32 %v970, %v1221
        %v1485 = vadd.f32 %v971, %v1221
        %v1486 = vadd.f32 %v972, %v1221
        %v1487 = vadd.f32 %v973, %v1221
        %v1488 = vadd.f32 %v974, %v1221
        %v1489 = vadd.f32 %v975, %v1221
        %v1490 = vadd.f32 %v976, %v1221
        %v1491 = vadd.f32 %v977, %v1221
        %v1492 = vadd.f32 %v978, %v1221
        %v1493 = vadd.f32 %v979, %v1221
        %v1494 = vadd.f32 %v980, %v1221
        %v1495 = vadd.f32 %v981, %v1221
        %v1496 = vadd.f32 %v982, %v1221
        %v1497 = vadd.f32 %v983, %v1221
        %v1498 = vadd.f32 %v984, %v1221
        %v1499 = vadd.f32 %v985, %v1221
        %v1500 = vadd.f32 %v986, %v1221
        %v1501 = vadd.f32 %v987, %v1221
        %v1502 = vadd.f32 %v988, %v1221
        %v1503 = vadd.f32 %v989, %v1221
        %v1504 = vadd.f32 %v990, %v1221
        %v1505 = vadd.f32 %v991, %v1221
        %v1506 = vadd.f32 %v992, %v1221
        %v1507 = vadd.f32 %v993, %v1221
        %v1508 = vadd.f32 %v994, %v1221
        %v1509 = vadd.f32 %v995, %v1221
        %v1510 = vadd.f32 %v996, %v1221
        %v1511 = vadd.f32 %v997, %v1221
        %v1512 = vadd.f32 %v998, %v1221
        %v1513 = vadd.f32 %v999, %v1221
        %v1514 = vadd.f32 %v1000, %v1221
        %v1515 = vadd.f32 %v1001, %v1221
        %v1516 = vadd.f32 %v1002, %v1221
        %v1517 = vadd.f32 %v1003, %v1221
        %v1518 = vadd.f32 %v1004, %v1221
        %v1519 = vadd.f32 %v1005, %v1221
        %v1520 = vadd.f32 %v1006, %v1221
        %v1521 = vadd.f32 %v1007, %v1221
        %v1522 = vadd.f32 %v1008, %v1221
        %v1523 = vadd.f32 %v1009, %v1221
        %v1524 = vadd.f32 %v1010, %v1221
        %v1525 = vadd.f32 %v1011, %v1221
        %v1526 = vadd.f32 %v1012, %v1221
        %v1527 = vadd.f32 %v1013, %v1221
        %v1528 = vadd.f32 %v1014, %v1221
        %v1529 = vadd.f32 %v1015, %v1221
        %v1530 = vadd.f32 %v1016, %v1221
        %v1531 = vadd.f32 %v1017, %v1221
        %v1532 = vadd.f32 %v1018, %v1221
        %v1533 = vadd.f32 %v1019, %v1221
        %v1534 = vadd.f32 %v1020, %v1221
        %v1535 = vadd.f32 %v1021, %v1221
        %v1536 = vadd.f32 %v1022, %v1221
        %v1537 = vadd.f32 %v1023, %v1221
        %v1538 = vadd.f32 %v1024, %v1221
        %v1539 = vadd.f32 %v1025, %v1221
        %v1540 = vadd.f32 %v1026, %v1221
        %v1541 = vadd.f32 %v1027, %v1221
        %v1542 = vadd.f32 %v1028, %v1221
        %v1543 = vadd.f32 %v1029, %v1221
        %v1544 = vadd.f32 %v1030, %v1221
        %v1545 = vadd.f32 %v1031, %v1221
        %v1546 = vadd.f32 %v1032, %v1221
        %v1547 = vadd.f32 %v1033, %v1221
        %v1548 = vadd.f32 %v1034, %v1221
        %v1549 = vadd.f32 %v1035, %v1221
        %v1550 = vadd.f32 %v1036, %v1221
        %v1551 = vadd.f32 %v1037, %v1221
        %v1552 = vadd.f32 %v1038, %v1221
        %v1553 = vadd.f32 %v1039, %v1221
        %v1554 = vadd.f32 %v1040, %v1221
        %v1555 = vadd.f32 %v1041, %v1221
        %v1556 = vadd.f32 %v1042, %v1221
        %v1557 = vadd.f32 %v1043, %v1221
        %v1558 = vadd.f32 %v1044, %v1221
        %v1559 = vadd.f32 %v1045, %v1221
        %v1560 = vadd.f32 %v1046, %v1221
        %v1561 = vadd.f32 %v1047, %v1221
        %v1562 = vadd.f32 %v1048, %v1221
        %v1563 = vadd.f32 %v1049, %v1221
        %v1564 = vadd.f32 %v1050, %v1221
        %v1565 = vadd.f32 %v1051, %v1221
        %v1566 = vadd.f32 %v1052, %v1221
        %v1567 = vadd.f32 %v1053, %v1221
        %v1568 = vadd.f32 %v1054, %v1221
        %v1569 = vadd.f32 %v1055, %v1221
        %v1570 = vadd.f32 %v1056, %v1221
        %v1571 = vadd.f32 %v1057, %v1221
        %v1572 = vadd.f32 %v1058, %v1221
        %v1573 = vadd.f32 %v1059, %v1221
        %v1574 = vadd.f32 %v1060, %v1221
        %v1575 = vadd.f32 %v1061, %v1221
        %v1576 = vadd.f32 %v1062, %v1221
        %v1577 = vadd.f32 %v1063, %v1221
        %v1578 = vadd.f32 %v1064, %v1221
        %v1579 = vadd.f32 %v1065, %v1221
        %v1580 = vadd.f32 %v1066, %v1221
        %v1581 = vadd.f32 %v1067, %v1221
        %v1582 = vadd.f32 %v1068, %v1221
        %v1583 = vadd.f32 %v1069, %v1221
        %v1584 = vadd.f32 %v1070, %v1221
        %v1585 = vadd.f32 %v1071, %v1221
        %v1586 = vadd.f32 %v1072, %v1221
        %v1587 = vadd.f32 %v1073, %v1221
        %v1588 = vadd.f32 %v1074, %v1221
        %v1589 = vadd.f32 %v1075, %v1221
        %v1590 = vadd.f32 %v1076, %v1221
        %v1591 = vadd.f32 %v1077, %v1221
        %v1592 = vadd.f32 %v1078, %v1221
        %v1593 = vadd.f32 %v1079, %v1221
        %v1594 = vadd.f32 %v1080, %v1221
        %v1595 = vadd.f32 %v1081, %v1221
        %v1596 = vadd.f32 %v1082, %v1221
        %v1597 = vadd.f32 %v1083, %v1221
        %v1598 = vadd.f32 %v1084, %v1221
        %v1599 = vadd.f32 %v1085, %v1221
        %v1600 = vadd.f32 %v1086, %v1221
        %v1601 = vadd.f32 %v1087, %v1221
        %v1602 = vadd.f32 %v1088, %v1221
        %v1603 = vadd.f32 %v1089, %v1221
        %v1604 = vadd.f32 %v1090, %v1221
        %v1605 = vadd.f32 %v1091, %v1221
        %v1606 = vadd.f32 %v1092, %v1221
        %v1607 = vadd.f32 %v1093, %v1221
        %v1608 = vadd.f32 %v1094, %v1221
        %v1609 = vadd.f32 %v1095, %v1221
        %v1610 = vadd.f32 %v1096, %v1221
        %v1611 = vadd.f32 %v1097, %v1221
        %v1612 = vadd.f32 %v1098, %v1221
        %v1613 = vadd.f32 %v1099, %v1221
        %v1614 = vadd.f32 %v1100, %v1221
        %v1615 = vadd.f32 %v1101, %v1221
        %v1616 = vadd.f32 %v1102, %v1221
        %v1617 = vadd.f32 %v1103, %v1221
        %v1618 = vadd.f32 %v1104, %v1221
        %v1619 = vadd.f32 %v1105, %v1221
        %v1620 = vadd.f32 %v1106, %v1221
        %v1621 = vadd.f32 %v1107, %v1221
        %v1622 = vadd.f32 %v1108, %v1221
        %v1623 = vadd.f32 %v1109, %v1221
        %v1624 = vadd.f32 %v1110, %v1221
        %v1625 = vadd.f32 %v1111, %v1221
        %v1626 = vadd.f32 %v1112, %v1221
        %v1627 = vadd.f32 %v1113, %v1221
        %v1628 = vadd.f32 %v1114, %v1221
        %v1629 = vadd.f32 %v1115, %v1221
        %v1630 = vadd.f32 %v1116, %v1221
        %v1631 = vadd.f32 %v1117, %v1221
        %v1632 = vadd.f32 %v1118, %v1221
        %v1633 = vadd.f32 %v1119, %v1221
        %v1634 = vadd.f32 %v1120, %v1221
        %v1635 = vadd.f32 %v1121, %v1221
        %v1636 = vadd.f32 %v1122, %v1221
        %v1637 = vadd.f32 %v1123, %v1221
        %v1638 = vadd.f32 %v1124, %v1221
        %v1639 = vadd.f32 %v1125, %v1221
        %v1640 = vadd.f32 %v1126, %v1221
        %v1641 = vadd.f32 %v1127, %v1221
        %v1642 = vadd.f32 %v1128, %v1221
        %v1643 = vadd.f32 %v1129, %v1221
        %v1644 = vadd.f32 %v1130, %v1221
        %v1645 = vadd.f32 %v1131, %v1221
        %v1646 = vadd.f32 %v1132, %v1221
        %v1647 = vadd.f32 %v1133, %v1221
        %v1648 = vadd.f32 %v1134, %v1221
        %v1649 = vadd.f32 %v1135, %v1221
        %v1650 = vadd.f32 %v1136, %v1221
        %v1651 = vadd.f32 %v1137, %v1221
        %v1652 = vadd.f32 %v1138, %v1221
        %v1653 = vadd.f32 %v1139, %v1221
        %v1654 = vadd.f32 %v1140, %v1221
        %v1655 = vadd.f32 %v1141, %v1221
        %v1656 = vadd.f32 %v1142, %v1221
        %v1657 = vadd.f32 %v1143, %v1221
        %v1658 = vadd.f32 %v1144, %v1221
        %v1659 = vadd.f32 %v1145, %v1221
        %v1660 = vadd.f32 %v1146, %v1221
        %v1661 = vadd.f32 %v1147, %v1221
        %v1662 = vadd.f32 %v1148, %v1221
        %v1663 = vadd.f32 %v1149, %v1221
        %v1664 = vadd.f32 %v1150, %v1221
        %v1665 = vadd.f32 %v1151, %v1221
        %v1666 = vadd.f32 %v1152, %v1221
        %v1667 = vadd.f32 %v1153, %v1221
        %v1668 = vadd.f32 %v1154, %v1221
        %v1669 = vadd.f32 %v1155, %v1221
        %v1670 = vadd.f32 %v1156, %v1221
        %v1671 = vadd.f32 %v1157, %v1221
        %v1672 = vadd.f32 %v1158, %v1221
        %v1673 = vadd.f32 %v1159, %v1221
        %v1674 = vadd.f32 %v1160, %v1221
        %v1675 = vadd.f32 %v1161, %v1221
        %v1676 = vadd.f32 %v1162, %v1221
        %v1677 = vadd.f32 %v1163, %v1221
        %v1678 = vadd.f32 %v1164, %v1221
        %v1679 = vadd.f32 %v1165, %v1221
        %v1680 = vadd.f32 %v1166, %v1221
        %v1681 = vadd.f32 %v1167, %v1221
        %v1682 = vadd.f32 %v1168, %v1221
        %v1683 = vadd.f32 %v1169, %v1221
        %v1684 = vadd.f32 %v1170, %v1221
        %v1685 = vadd.f32 %v1171, %v1221
        %v1686 = vadd.f32 %v1172, %v1221
        %v1687 = vadd.f32 %v1173, %v1221
        %v1688 = vadd.f32 %v1174, %v1221
        %v1689 = vadd.f32 %v1175, %v1221
        %v1690 = vadd.f32 %v1176, %v1221
        %v1691 = vadd.f32 %v1177, %v1221
        %v1692 = vadd.f32 %v1178, %v1221
        %v1693 = vadd.f32 %v1179, %v1221
        %v1694 = vadd.f32 %v1180, %v1221
        %v1695 = vadd.f32 %v1181, %v1221
        %v1696 = vadd.f32 %v1182, %v1221
        %v1697 = vadd.f32 %v1183, %v1221
        %v1698 = vadd.f32 %v1184, %v1221
        %v1699 = vadd.f32 %v1185, %v1221
        %v1700 = vadd.f32 %v1186, %v1221
        %v1701 = vadd.f32 %v1187, %v1221
        %v1702 = vadd.f32 %v1188, %v1221
        %v1703 = vadd.f32 %v1189, %v1221
        %v1704 = vadd.f32 %v1190, %v1221
        %v1705 = vadd.f32 %v1191, %v1221
        %v1706 = vadd.f32 %v1192, %v1221
        %v1707 = vadd.f32 %v1193, %v1221
        %v1708 = vadd.f32 %v1194, %v1221
        %v1709 = vadd.f32 %v1195, %v1221
        %v1710 = vadd.f32 %v1196, %v1221
        %v1711 = vadd.f32 %v1197, %v1221
        %v1712 = vadd.f32 %v1198, %v1221
        %v1713 = vadd.f32 %v1199, %v1221
        %v1714 = vadd.f32 %v1200, %v1221
        %v1715 = vadd.f32 %v1201, %v1221
        %v1716 = vadd.f32 %v1202, %v1221
        %v1717 = vadd.f32 %v1203, %v1221
        %v1718 = vadd.f32 %v1204, %v1221
        %v1719 = vadd.f32 %v1205, %v1221
        %v1720 = vadd.f32 %v1206, %v1221
        %v1721 = vadd.f32 %v1207, %v1221
        %v1722 = vadd.f32 %v1208, %v1221
        %v1723 = vadd.f32 %v1209, %v1221
        %v1724 = vadd.f32 %v1210, %v1221
        %v1725 = vadd.f32 %v1211, %v1221
        %v1726 = vadd.f32 %v1212, %v1221
        %v1727 = vadd.f32 %v1213, %v1221
        %v1728 = vadd.f32 %v1214, %v1221
        %v1729 = vadd.f32 %v1215, %v1221
        %v1730 = vadd.f32 %v1216, %v1221
        %v1731 = vadd.f32 %v1217, %v1221
        %v1732 = vadd.f32 %v1218, %v1221
        %v1733 = vadd.f32 %v1219, %v1221
        %v1734 = vadd.f32 %v1222, 1e-07
        %v1735 = vadd.f32 %v1223, 1e-07
        %v1736 = vadd.f32 %v1224, 1e-07
        %v1737 = vadd.f32 %v1225, 1e-07
        %v1738 = vadd.f32 %v1226, 1e-07
        %v1739 = vadd.f32 %v1227, 1e-07
        %v1740 = vadd.f32 %v1228, 1e-07
        %v1741 = vadd.f32 %v1229, 1e-07
        %v1742 = vadd.f32 %v1230, 1e-07
        %v1743 = vadd.f32 %v1231, 1e-07
        %v1744 = vadd.f32 %v1232, 1e-07
        %v1745 = vadd.f32 %v1233, 1e-07
        %v1746 = vadd.f32 %v1234, 1e-07
        %v1747 = vadd.f32 %v1235, 1e-07
        %v1748 = vadd.f32 %v1236, 1e-07
        %v1749 = vadd.f32 %v1237, 1e-07
        %v1750 = vadd.f32 %v1238, 1e-07
        %v1751 = vadd.f32 %v1239, 1e-07
        %v1752 = vadd.f32 %v1240, 1e-07
        %v1753 = vadd.f32 %v1241, 1e-07
        %v1754 = vadd.f32 %v1242, 1e-07
        %v1755 = vadd.f32 %v1243, 1e-07
        %v1756 = vadd.f32 %v1244, 1e-07
        %v1757 = vadd.f32 %v1245, 1e-07
        %v1758 = vadd.f32 %v1246, 1e-07
        %v1759 = vadd.f32 %v1247, 1e-07
        %v1760 = vadd.f32 %v1248, 1e-07
        %v1761 = vadd.f32 %v1249, 1e-07
        %v1762 = vadd.f32 %v1250, 1e-07
        %v1763 = vadd.f32 %v1251, 1e-07
        %v1764 = vadd.f32 %v1252, 1e-07
        %v1765 = vadd.f32 %v1253, 1e-07
        %v1766 = vadd.f32 %v1254, 1e-07
        %v1767 = vadd.f32 %v1255, 1e-07
        %v1768 = vadd.f32 %v1256, 1e-07
        %v1769 = vadd.f32 %v1257, 1e-07
        %v1770 = vadd.f32 %v1258, 1e-07
        %v1771 = vadd.f32 %v1259, 1e-07
        %v1772 = vadd.f32 %v1260, 1e-07
        %v1773 = vadd.f32 %v1261, 1e-07
        %v1774 = vadd.f32 %v1262, 1e-07
        %v1775 = vadd.f32 %v1263, 1e-07
        %v1776 = vadd.f32 %v1264, 1e-07
        %v1777 = vadd.f32 %v1265, 1e-07
        %v1778 = vadd.f32 %v1266, 1e-07
        %v1779 = vadd.f32 %v1267, 1e-07
        %v1780 = vadd.f32 %v1268, 1e-07
        %v1781 = vadd.f32 %v1269, 1e-07
        %v1782 = vadd.f32 %v1270, 1e-07
        %v1783 = vadd.f32 %v1271, 1e-07
        %v1784 = vadd.f32 %v1272, 1e-07
        %v1785 = vadd.f32 %v1273, 1e-07
        %v1786 = vadd.f32 %v1274, 1e-07
        %v1787 = vadd.f32 %v1275, 1e-07
        %v1788 = vadd.f32 %v1276, 1e-07
        %v1789 = vadd.f32 %v1277, 1e-07
        %v1790 = vadd.f32 %v1278, 1e-07
        %v1791 = vadd.f32 %v1279, 1e-07
        %v1792 = vadd.f32 %v1280, 1e-07
        %v1793 = vadd.f32 %v1281, 1e-07
        %v1794 = vadd.f32 %v1282, 1e-07
        %v1795 = vadd.f32 %v1283, 1e-07
        %v1796 = vadd.f32 %v1284, 1e-07
        %v1797 = vadd.f32 %v1285, 1e-07
        %v1798 = vadd.f32 %v1286, 1e-07
        %v1799 = vadd.f32 %v1287, 1e-07
        %v1800 = vadd.f32 %v1288, 1e-07
        %v1801 = vadd.f32 %v1289, 1e-07
        %v1802 = vadd.f32 %v1290, 1e-07
        %v1803 = vadd.f32 %v1291, 1e-07
        %v1804 = vadd.f32 %v1292, 1e-07
        %v1805 = vadd.f32 %v1293, 1e-07
        %v1806 = vadd.f32 %v1294, 1e-07
        %v1807 = vadd.f32 %v1295, 1e-07
        %v1808 = vadd.f32 %v1296, 1e-07
        %v1809 = vadd.f32 %v1297, 1e-07
        %v1810 = vadd.f32 %v1298, 1e-07
        %v1811 = vadd.f32 %v1299, 1e-07
        %v1812 = vadd.f32 %v1300, 1e-07
        %v1813 = vadd.f32 %v1301, 1e-07
        %v1814 = vadd.f32 %v1302, 1e-07
        %v1815 = vadd.f32 %v1303, 1e-07
        %v1816 = vadd.f32 %v1304, 1e-07
        %v1817 = vadd.f32 %v1305, 1e-07
        %v1818 = vadd.f32 %v1306, 1e-07
        %v1819 = vadd.f32 %v1307, 1e-07
        %v1820 = vadd.f32 %v1308, 1e-07
        %v1821 = vadd.f32 %v1309, 1e-07
        %v1822 = vadd.f32 %v1310, 1e-07
        %v1823 = vadd.f32 %v1311, 1e-07
        %v1824 = vadd.f32 %v1312, 1e-07
        %v1825 = vadd.f32 %v1313, 1e-07
        %v1826 = vadd.f32 %v1314, 1e-07
        %v1827 = vadd.f32 %v1315, 1e-07
        %v1828 = vadd.f32 %v1316, 1e-07
        %v1829 = vadd.f32 %v1317, 1e-07
        %v1830 = vadd.f32 %v1318, 1e-07
        %v1831 = vadd.f32 %v1319, 1e-07
        %v1832 = vadd.f32 %v1320, 1e-07
        %v1833 = vadd.f32 %v1321, 1e-07
        %v1834 = vadd.f32 %v1322, 1e-07
        %v1835 = vadd.f32 %v1323, 1e-07
        %v1836 = vadd.f32 %v1324, 1e-07
        %v1837 = vadd.f32 %v1325, 1e-07
        %v1838 = vadd.f32 %v1326, 1e-07
        %v1839 = vadd.f32 %v1327, 1e-07
        %v1840 = vadd.f32 %v1328, 1e-07
        %v1841 = vadd.f32 %v1329, 1e-07
        %v1842 = vadd.f32 %v1330, 1e-07
        %v1843 = vadd.f32 %v1331, 1e-07
        %v1844 = vadd.f32 %v1332, 1e-07
        %v1845 = vadd.f32 %v1333, 1e-07
        %v1846 = vadd.f32 %v1334, 1e-07
        %v1847 = vadd.f32 %v1335, 1e-07
        %v1848 = vadd.f32 %v1336, 1e-07
        %v1849 = vadd.f32 %v1337, 1e-07
        %v1850 = vadd.f32 %v1338, 1e-07
        %v1851 = vadd.f32 %v1339, 1e-07
        %v1852 = vadd.f32 %v1340, 1e-07
        %v1853 = vadd.f32 %v1341, 1e-07
        %v1854 = vadd.f32 %v1342, 1e-07
        %v1855 = vadd.f32 %v1343, 1e-07
        %v1856 = vadd.f32 %v1344, 1e-07
        %v1857 = vadd.f32 %v1345, 1e-07
        %v1858 = vadd.f32 %v1346, 1e-07
        %v1859 = vadd.f32 %v1347, 1e-07
        %v1860 = vadd.f32 %v1348, 1e-07
        %v1861 = vadd.f32 %v1349, 1e-07
        %v1862 = vadd.f32 %v1350, 1e-07
        %v1863 = vadd.f32 %v1351, 1e-07
        %v1864 = vadd.f32 %v1352, 1e-07
        %v1865 = vadd.f32 %v1353, 1e-07
        %v1866 = vadd.f32 %v1354, 1e-07
        %v1867 = vadd.f32 %v1355, 1e-07
        %v1868 = vadd.f32 %v1356, 1e-07
        %v1869 = vadd.f32 %v1357, 1e-07
        %v1870 = vadd.f32 %v1358, 1e-07
        %v1871 = vadd.f32 %v1359, 1e-07
        %v1872 = vadd.f32 %v1360, 1e-07
        %v1873 = vadd.f32 %v1361, 1e-07
        %v1874 = vadd.f32 %v1362, 1e-07
        %v1875 = vadd.f32 %v1363, 1e-07
        %v1876 = vadd.f32 %v1364, 1e-07
        %v1877 = vadd.f32 %v1365, 1e-07
        %v1878 = vadd.f32 %v1366, 1e-07
        %v1879 = vadd.f32 %v1367, 1e-07
        %v1880 = vadd.f32 %v1368, 1e-07
        %v1881 = vadd.f32 %v1369, 1e-07
        %v1882 = vadd.f32 %v1370, 1e-07
        %v1883 = vadd.f32 %v1371, 1e-07
        %v1884 = vadd.f32 %v1372, 1e-07
        %v1885 = vadd.f32 %v1373, 1e-07
        %v1886 = vadd.f32 %v1374, 1e-07
        %v1887 = vadd.f32 %v1375, 1e-07
        %v1888 = vadd.f32 %v1376, 1e-07
        %v1889 = vadd.f32 %v1377, 1e-07
        %v1890 = vadd.f32 %v1378, 1e-07
        %v1891 = vadd.f32 %v1379, 1e-07
        %v1892 = vadd.f32 %v1380, 1e-07
        %v1893 = vadd.f32 %v1381, 1e-07
        %v1894 = vadd.f32 %v1382, 1e-07
        %v1895 = vadd.f32 %v1383, 1e-07
        %v1896 = vadd.f32 %v1384, 1e-07
        %v1897 = vadd.f32 %v1385, 1e-07
        %v1898 = vadd.f32 %v1386, 1e-07
        %v1899 = vadd.f32 %v1387, 1e-07
        %v1900 = vadd.f32 %v1388, 1e-07
        %v1901 = vadd.f32 %v1389, 1e-07
        %v1902 = vadd.f32 %v1390, 1e-07
        %v1903 = vadd.f32 %v1391, 1e-07
        %v1904 = vadd.f32 %v1392, 1e-07
        %v1905 = vadd.f32 %v1393, 1e-07
        %v1906 = vadd.f32 %v1394, 1e-07
        %v1907 = vadd.f32 %v1395, 1e-07
        %v1908 = vadd.f32 %v1396, 1e-07
        %v1909 = vadd.f32 %v1397, 1e-07
        %v1910 = vadd.f32 %v1398, 1e-07
        %v1911 = vadd.f32 %v1399, 1e-07
        %v1912 = vadd.f32 %v1400, 1e-07
        %v1913 = vadd.f32 %v1401, 1e-07
        %v1914 = vadd.f32 %v1402, 1e-07
        %v1915 = vadd.f32 %v1403, 1e-07
        %v1916 = vadd.f32 %v1404, 1e-07
        %v1917 = vadd.f32 %v1405, 1e-07
        %v1918 = vadd.f32 %v1406, 1e-07
        %v1919 = vadd.f32 %v1407, 1e-07
        %v1920 = vadd.f32 %v1408, 1e-07
        %v1921 = vadd.f32 %v1409, 1e-07
        %v1922 = vadd.f32 %v1410, 1e-07
        %v1923 = vadd.f32 %v1411, 1e-07
        %v1924 = vadd.f32 %v1412, 1e-07
        %v1925 = vadd.f32 %v1413, 1e-07
        %v1926 = vadd.f32 %v1414, 1e-07
        %v1927 = vadd.f32 %v1415, 1e-07
        %v1928 = vadd.f32 %v1416, 1e-07
        %v1929 = vadd.f32 %v1417, 1e-07
        %v1930 = vadd.f32 %v1418, 1e-07
        %v1931 = vadd.f32 %v1419, 1e-07
        %v1932 = vadd.f32 %v1420, 1e-07
        %v1933 = vadd.f32 %v1421, 1e-07
        %v1934 = vadd.f32 %v1422, 1e-07
        %v1935 = vadd.f32 %v1423, 1e-07
        %v1936 = vadd.f32 %v1424, 1e-07
        %v1937 = vadd.f32 %v1425, 1e-07
        %v1938 = vadd.f32 %v1426, 1e-07
        %v1939 = vadd.f32 %v1427, 1e-07
        %v1940 = vadd.f32 %v1428, 1e-07
        %v1941 = vadd.f32 %v1429, 1e-07
        %v1942 = vadd.f32 %v1430, 1e-07
        %v1943 = vadd.f32 %v1431, 1e-07
        %v1944 = vadd.f32 %v1432, 1e-07
        %v1945 = vadd.f32 %v1433, 1e-07
        %v1946 = vadd.f32 %v1434, 1e-07
        %v1947 = vadd.f32 %v1435, 1e-07
        %v1948 = vadd.f32 %v1436, 1e-07
        %v1949 = vadd.f32 %v1437, 1e-07
        %v1950 = vadd.f32 %v1438, 1e-07
        %v1951 = vadd.f32 %v1439, 1e-07
        %v1952 = vadd.f32 %v1440, 1e-07
        %v1953 = vadd.f32 %v1441, 1e-07
        %v1954 = vadd.f32 %v1442, 1e-07
        %v1955 = vadd.f32 %v1443, 1e-07
        %v1956 = vadd.f32 %v1444, 1e-07
        %v1957 = vadd.f32 %v1445, 1e-07
        %v1958 = vadd.f32 %v1446, 1e-07
        %v1959 = vadd.f32 %v1447, 1e-07
        %v1960 = vadd.f32 %v1448, 1e-07
        %v1961 = vadd.f32 %v1449, 1e-07
        %v1962 = vadd.f32 %v1450, 1e-07
        %v1963 = vadd.f32 %v1451, 1e-07
        %v1964 = vadd.f32 %v1452, 1e-07
        %v1965 = vadd.f32 %v1453, 1e-07
        %v1966 = vadd.f32 %v1454, 1e-07
        %v1967 = vadd.f32 %v1455, 1e-07
        %v1968 = vadd.f32 %v1456, 1e-07
        %v1969 = vadd.f32 %v1457, 1e-07
        %v1970 = vadd.f32 %v1458, 1e-07
        %v1971 = vadd.f32 %v1459, 1e-07
        %v1972 = vadd.f32 %v1460, 1e-07
        %v1973 = vadd.f32 %v1461, 1e-07
        %v1974 = vadd.f32 %v1462, 1e-07
        %v1975 = vadd.f32 %v1463, 1e-07
        %v1976 = vadd.f32 %v1464, 1e-07
        %v1977 = vadd.f32 %v1465, 1e-07
        %v1978 = vadd.f32 %v1466, 1e-07
        %v1979 = vadd.f32 %v1467, 1e-07
        %v1980 = vadd.f32 %v1468, 1e-07
        %v1981 = vadd.f32 %v1469, 1e-07
        %v1982 = vadd.f32 %v1470, 1e-07
        %v1983 = vadd.f32 %v1471, 1e-07
        %v1984 = vadd.f32 %v1472, 1e-07
        %v1985 = vadd.f32 %v1473, 1e-07
        %v1986 = vadd.f32 %v1474, 1e-07
        %v1987 = vadd.f32 %v1475, 1e-07
        %v1988 = vadd.f32 %v1476, 1e-07
        %v1989 = vadd.f32 %v1477, 1e-07
        %v1990 = vadd.f32 %v1478, 1e-07
        %v1991 = vadd.f32 %v1479, 1e-07
        %v1992 = vadd.f32 %v1480, 1e-07
        %v1993 = vadd.f32 %v1481, 1e-07
        %v1994 = vadd.f32 %v1482, 1e-07
        %v1995 = vadd.f32 %v1483, 1e-07
        %v1996 = vadd.f32 %v1484, 1e-07
        %v1997 = vadd.f32 %v1485, 1e-07
        %v1998 = vadd.f32 %v1486, 1e-07
        %v1999 = vadd.f32 %v1487, 1e-07
        %v2000 = vadd.f32 %v1488, 1e-07
        %v2001 = vadd.f32 %v1489, 1e-07
        %v2002 = vadd.f32 %v1490, 1e-07
        %v2003 = vadd.f32 %v1491, 1e-07
        %v2004 = vadd.f32 %v1492, 1e-07
        %v2005 = vadd.f32 %v1493, 1e-07
        %v2006 = vadd.f32 %v1494, 1e-07
        %v2007 = vadd.f32 %v1495, 1e-07
        %v2008 = vadd.f32 %v1496, 1e-07
        %v2009 = vadd.f32 %v1497, 1e-07
        %v2010 = vadd.f32 %v1498, 1e-07
        %v2011 = vadd.f32 %v1499, 1e-07
        %v2012 = vadd.f32 %v1500, 1e-07
        %v2013 = vadd.f32 %v1501, 1e-07
        %v2014 = vadd.f32 %v1502, 1e-07
        %v2015 = vadd.f32 %v1503, 1e-07
        %v2016 = vadd.f32 %v1504, 1e-07
        %v2017 = vadd.f32 %v1505, 1e-07
        %v2018 = vadd.f32 %v1506, 1e-07
        %v2019 = vadd.f32 %v1507, 1e-07
        %v2020 = vadd.f32 %v1508, 1e-07
        %v2021 = vadd.f32 %v1509, 1e-07
        %v2022 = vadd.f32 %v1510, 1e-07
        %v2023 = vadd.f32 %v1511, 1e-07
        %v2024 = vadd.f32 %v1512, 1e-07
        %v2025 = vadd.f32 %v1513, 1e-07
        %v2026 = vadd.f32 %v1514, 1e-07
        %v2027 = vadd.f32 %v1515, 1e-07
        %v2028 = vadd.f32 %v1516, 1e-07
        %v2029 = vadd.f32 %v1517, 1e-07
        %v2030 = vadd.f32 %v1518, 1e-07
        %v2031 = vadd.f32 %v1519, 1e-07
        %v2032 = vadd.f32 %v1520, 1e-07
        %v2033 = vadd.f32 %v1521, 1e-07
        %v2034 = vadd.f32 %v1522, 1e-07
        %v2035 = vadd.f32 %v1523, 1e-07
        %v2036 = vadd.f32 %v1524, 1e-07
        %v2037 = vadd.f32 %v1525, 1e-07
        %v2038 = vadd.f32 %v1526, 1e-07
        %v2039 = vadd.f32 %v1527, 1e-07
        %v2040 = vadd.f32 %v1528, 1e-07
        %v2041 = vadd.f32 %v1529, 1e-07
        %v2042 = vadd.f32 %v1530, 1e-07
        %v2043 = vadd.f32 %v1531, 1e-07
        %v2044 = vadd.f32 %v1532, 1e-07
        %v2045 = vadd.f32 %v1533, 1e-07
        %v2046 = vadd.f32 %v1534, 1e-07
        %v2047 = vadd.f32 %v1535, 1e-07
        %v2048 = vadd.f32 %v1536, 1e-07
        %v2049 = vadd.f32 %v1537, 1e-07
        %v2050 = vadd.f32 %v1538, 1e-07
        %v2051 = vadd.f32 %v1539, 1e-07
        %v2052 = vadd.f32 %v1540, 1e-07
        %v2053 = vadd.f32 %v1541, 1e-07
        %v2054 = vadd.f32 %v1542, 1e-07
        %v2055 = vadd.f32 %v1543, 1e-07
        %v2056 = vadd.f32 %v1544, 1e-07
        %v2057 = vadd.f32 %v1545, 1e-07
        %v2058 = vadd.f32 %v1546, 1e-07
        %v2059 = vadd.f32 %v1547, 1e-07
        %v2060 = vadd.f32 %v1548, 1e-07
        %v2061 = vadd.f32 %v1549, 1e-07
        %v2062 = vadd.f32 %v1550, 1e-07
        %v2063 = vadd.f32 %v1551, 1e-07
        %v2064 = vadd.f32 %v1552, 1e-07
        %v2065 = vadd.f32 %v1553, 1e-07
        %v2066 = vadd.f32 %v1554, 1e-07
        %v2067 = vadd.f32 %v1555, 1e-07
        %v2068 = vadd.f32 %v1556, 1e-07
        %v2069 = vadd.f32 %v1557, 1e-07
        %v2070 = vadd.f32 %v1558, 1e-07
        %v2071 = vadd.f32 %v1559, 1e-07
        %v2072 = vadd.f32 %v1560, 1e-07
        %v2073 = vadd.f32 %v1561, 1e-07
        %v2074 = vadd.f32 %v1562, 1e-07
        %v2075 = vadd.f32 %v1563, 1e-07
        %v2076 = vadd.f32 %v1564, 1e-07
        %v2077 = vadd.f32 %v1565, 1e-07
        %v2078 = vadd.f32 %v1566, 1e-07
        %v2079 = vadd.f32 %v1567, 1e-07
        %v2080 = vadd.f32 %v1568, 1e-07
        %v2081 = vadd.f32 %v1569, 1e-07
        %v2082 = vadd.f32 %v1570, 1e-07
        %v2083 = vadd.f32 %v1571, 1e-07
        %v2084 = vadd.f32 %v1572, 1e-07
        %v2085 = vadd.f32 %v1573, 1e-07
        %v2086 = vadd.f32 %v1574, 1e-07
        %v2087 = vadd.f32 %v1575, 1e-07
        %v2088 = vadd.f32 %v1576, 1e-07
        %v2089 = vadd.f32 %v1577, 1e-07
        %v2090 = vadd.f32 %v1578, 1e-07
        %v2091 = vadd.f32 %v1579, 1e-07
        %v2092 = vadd.f32 %v1580, 1e-07
        %v2093 = vadd.f32 %v1581, 1e-07
        %v2094 = vadd.f32 %v1582, 1e-07
        %v2095 = vadd.f32 %v1583, 1e-07
        %v2096 = vadd.f32 %v1584, 1e-07
        %v2097 = vadd.f32 %v1585, 1e-07
        %v2098 = vadd.f32 %v1586, 1e-07
        %v2099 = vadd.f32 %v1587, 1e-07
        %v2100 = vadd.f32 %v1588, 1e-07
        %v2101 = vadd.f32 %v1589, 1e-07
        %v2102 = vadd.f32 %v1590, 1e-07
        %v2103 = vadd.f32 %v1591, 1e-07
        %v2104 = vadd.f32 %v1592, 1e-07
        %v2105 = vadd.f32 %v1593, 1e-07
        %v2106 = vadd.f32 %v1594, 1e-07
        %v2107 = vadd.f32 %v1595, 1e-07
        %v2108 = vadd.f32 %v1596, 1e-07
        %v2109 = vadd.f32 %v1597, 1e-07
        %v2110 = vadd.f32 %v1598, 1e-07
        %v2111 = vadd.f32 %v1599, 1e-07
        %v2112 = vadd.f32 %v1600, 1e-07
        %v2113 = vadd.f32 %v1601, 1e-07
        %v2114 = vadd.f32 %v1602, 1e-07
        %v2115 = vadd.f32 %v1603, 1e-07
        %v2116 = vadd.f32 %v1604, 1e-07
        %v2117 = vadd.f32 %v1605, 1e-07
        %v2118 = vadd.f32 %v1606, 1e-07
        %v2119 = vadd.f32 %v1607, 1e-07
        %v2120 = vadd.f32 %v1608, 1e-07
        %v2121 = vadd.f32 %v1609, 1e-07
        %v2122 = vadd.f32 %v1610, 1e-07
        %v2123 = vadd.f32 %v1611, 1e-07
        %v2124 = vadd.f32 %v1612, 1e-07
        %v2125 = vadd.f32 %v1613, 1e-07
        %v2126 = vadd.f32 %v1614, 1e-07
        %v2127 = vadd.f32 %v1615, 1e-07
        %v2128 = vadd.f32 %v1616, 1e-07
        %v2129 = vadd.f32 %v1617, 1e-07
        %v2130 = vadd.f32 %v1618, 1e-07
        %v2131 = vadd.f32 %v1619, 1e-07
        %v2132 = vadd.f32 %v1620, 1e-07
        %v2133 = vadd.f32 %v1621, 1e-07
        %v2134 = vadd.f32 %v1622, 1e-07
        %v2135 = vadd.f32 %v1623, 1e-07
        %v2136 = vadd.f32 %v1624, 1e-07
        %v2137 = vadd.f32 %v1625, 1e-07
        %v2138 = vadd.f32 %v1626, 1e-07
        %v2139 = vadd.f32 %v1627, 1e-07
        %v2140 = vadd.f32 %v1628, 1e-07
        %v2141 = vadd.f32 %v1629, 1e-07
        %v2142 = vadd.f32 %v1630, 1e-07
        %v2143 = vadd.f32 %v1631, 1e-07
        %v2144 = vadd.f32 %v1632, 1e-07
        %v2145 = vadd.f32 %v1633, 1e-07
        %v2146 = vadd.f32 %v1634, 1e-07
        %v2147 = vadd.f32 %v1635, 1e-07
        %v2148 = vadd.f32 %v1636, 1e-07
        %v2149 = vadd.f32 %v1637, 1e-07
        %v2150 = vadd.f32 %v1638, 1e-07
        %v2151 = vadd.f32 %v1639, 1e-07
        %v2152 = vadd.f32 %v1640, 1e-07
        %v2153 = vadd.f32 %v1641, 1e-07
        %v2154 = vadd.f32 %v1642, 1e-07
        %v2155 = vadd.f32 %v1643, 1e-07
        %v2156 = vadd.f32 %v1644, 1e-07
        %v2157 = vadd.f32 %v1645, 1e-07
        %v2158 = vadd.f32 %v1646, 1e-07
        %v2159 = vadd.f32 %v1647, 1e-07
        %v2160 = vadd.f32 %v1648, 1e-07
        %v2161 = vadd.f32 %v1649, 1e-07
        %v2162 = vadd.f32 %v1650, 1e-07
        %v2163 = vadd.f32 %v1651, 1e-07
        %v2164 = vadd.f32 %v1652, 1e-07
        %v2165 = vadd.f32 %v1653, 1e-07
        %v2166 = vadd.f32 %v1654, 1e-07
        %v2167 = vadd.f32 %v1655, 1e-07
        %v2168 = vadd.f32 %v1656, 1e-07
        %v2169 = vadd.f32 %v1657, 1e-07
        %v2170 = vadd.f32 %v1658, 1e-07
        %v2171 = vadd.f32 %v1659, 1e-07
        %v2172 = vadd.f32 %v1660, 1e-07
        %v2173 = vadd.f32 %v1661, 1e-07
        %v2174 = vadd.f32 %v1662, 1e-07
        %v2175 = vadd.f32 %v1663, 1e-07
        %v2176 = vadd.f32 %v1664, 1e-07
        %v2177 = vadd.f32 %v1665, 1e-07
        %v2178 = vadd.f32 %v1666, 1e-07
        %v2179 = vadd.f32 %v1667, 1e-07
        %v2180 = vadd.f32 %v1668, 1e-07
        %v2181 = vadd.f32 %v1669, 1e-07
        %v2182 = vadd.f32 %v1670, 1e-07
        %v2183 = vadd.f32 %v1671, 1e-07
        %v2184 = vadd.f32 %v1672, 1e-07
        %v2185 = vadd.f32 %v1673, 1e-07
        %v2186 = vadd.f32 %v1674, 1e-07
        %v2187 = vadd.f32 %v1675, 1e-07
        %v2188 = vadd.f32 %v1676, 1e-07
        %v2189 = vadd.f32 %v1677, 1e-07
        %v2190 = vadd.f32 %v1678, 1e-07
        %v2191 = vadd.f32 %v1679, 1e-07
        %v2192 = vadd.f32 %v1680, 1e-07
        %v2193 = vadd.f32 %v1681, 1e-07
        %v2194 = vadd.f32 %v1682, 1e-07
        %v2195 = vadd.f32 %v1683, 1e-07
        %v2196 = vadd.f32 %v1684, 1e-07
        %v2197 = vadd.f32 %v1685, 1e-07
        %v2198 = vadd.f32 %v1686, 1e-07
        %v2199 = vadd.f32 %v1687, 1e-07
        %v2200 = vadd.f32 %v1688, 1e-07
        %v2201 = vadd.f32 %v1689, 1e-07
        %v2202 = vadd.f32 %v1690, 1e-07
        %v2203 = vadd.f32 %v1691, 1e-07
        %v2204 = vadd.f32 %v1692, 1e-07
        %v2205 = vadd.f32 %v1693, 1e-07
        %v2206 = vadd.f32 %v1694, 1e-07
        %v2207 = vadd.f32 %v1695, 1e-07
        %v2208 = vadd.f32 %v1696, 1e-07
        %v2209 = vadd.f32 %v1697, 1e-07
        %v2210 = vadd.f32 %v1698, 1e-07
        %v2211 = vadd.f32 %v1699, 1e-07
        %v2212 = vadd.f32 %v1700, 1e-07
        %v2213 = vadd.f32 %v1701, 1e-07
        %v2214 = vadd.f32 %v1702, 1e-07
        %v2215 = vadd.f32 %v1703, 1e-07
        %v2216 = vadd.f32 %v1704, 1e-07
        %v2217 = vadd.f32 %v1705, 1e-07
        %v2218 = vadd.f32 %v1706, 1e-07
        %v2219 = vadd.f32 %v1707, 1e-07
        %v2220 = vadd.f32 %v1708, 1e-07
        %v2221 = vadd.f32 %v1709, 1e-07
        %v2222 = vadd.f32 %v1710, 1e-07
        %v2223 = vadd.f32 %v1711, 1e-07
        %v2224 = vadd.f32 %v1712, 1e-07
        %v2225 = vadd.f32 %v1713, 1e-07
        %v2226 = vadd.f32 %v1714, 1e-07
        %v2227 = vadd.f32 %v1715, 1e-07
        %v2228 = vadd.f32 %v1716, 1e-07
        %v2229 = vadd.f32 %v1717, 1e-07
        %v2230 = vadd.f32 %v1718, 1e-07
        %v2231 = vadd.f32 %v1719, 1e-07
        %v2232 = vadd.f32 %v1720, 1e-07
        %v2233 = vadd.f32 %v1721, 1e-07
        %v2234 = vadd.f32 %v1722, 1e-07
        %v2235 = vadd.f32 %v1723, 1e-07
        %v2236 = vadd.f32 %v1724, 1e-07
        %v2237 = vadd.f32 %v1725, 1e-07
        %v2238 = vadd.f32 %v1726, 1e-07
        %v2239 = vadd.f32 %v1727, 1e-07
        %v2240 = vadd.f32 %v1728, 1e-07
        %v2241 = vadd.f32 %v1729, 1e-07
        %v2242 = vadd.f32 %v1730, 1e-07
        %v2243 = vadd.f32 %v1731, 1e-07
        %v2244 = vadd.f32 %v1732, 1e-07
        %v2245 = vadd.f32 %v1733, 1e-07
        %v2246 = vrsqrt.pop %v1734
        %v2247 = vmul.f32 %v1734, %v2246
        %vm2248 = vcmp.eq.f32.partialorder %v1734, inf
        %v2249 = vsel %vm2248, %v1734, %v2247
        %vm2250 = vcmp.eq.f32.partialorder %v1734, 0.0
        %v2251 = vand.u32 %v1734, 2147483648
        %v2252 = vsel %vm2250, %v2251, %v2249
        %v2253 = vrsqrt.pop %v1735
        %v2254 = vmul.f32 %v1735, %v2253
        %vm2255 = vcmp.eq.f32.partialorder %v1735, inf
        %v2256 = vsel %vm2255, %v1735, %v2254
        %vm2257 = vcmp.eq.f32.partialorder %v1735, 0.0
        %v2258 = vand.u32 %v1735, 2147483648
        %v2259 = vsel %vm2257, %v2258, %v2256
        %v2260 = vrsqrt.pop %v1736
        %v2261 = vmul.f32 %v1736, %v2260
        %vm2262 = vcmp.eq.f32.partialorder %v1736, inf
        %v2263 = vsel %vm2262, %v1736, %v2261
        %vm2264 = vcmp.eq.f32.partialorder %v1736, 0.0
        %v2265 = vand.u32 %v1736, 2147483648
        %v2266 = vsel %vm2264, %v2265, %v2263
        %v2267 = vrsqrt.pop %v1737
        %v2268 = vmul.f32 %v1737, %v2267
        %vm2269 = vcmp.eq.f32.partialorder %v1737, inf
        %v2270 = vsel %vm2269, %v1737, %v2268
        %vm2271 = vcmp.eq.f32.partialorder %v1737, 0.0
        %v2272 = vand.u32 %v1737, 2147483648
        %v2273 = vsel %vm2271, %v2272, %v2270
        %v2274 = vrsqrt.pop %v1738
        %v2275 = vmul.f32 %v1738, %v2274
        %vm2276 = vcmp.eq.f32.partialorder %v1738, inf
        %v2277 = vsel %vm2276, %v1738, %v2275
        %vm2278 = vcmp.eq.f32.partialorder %v1738, 0.0
        %v2279 = vand.u32 %v1738, 2147483648
        %v2280 = vsel %vm2278, %v2279, %v2277
        %v2281 = vrsqrt.pop %v1739
        %v2282 = vmul.f32 %v1739, %v2281
        %vm2283 = vcmp.eq.f32.partialorder %v1739, inf
        %v2284 = vsel %vm2283, %v1739, %v2282
        %vm2285 = vcmp.eq.f32.partialorder %v1739, 0.0
        %v2286 = vand.u32 %v1739, 2147483648
        %v2287 = vsel %vm2285, %v2286, %v2284
        %v2288 = vrsqrt.pop %v1740
        %v2289 = vmul.f32 %v1740, %v2288
        %vm2290 = vcmp.eq.f32.partialorder %v1740, inf
        %v2291 = vsel %vm2290, %v1740, %v2289
        %vm2292 = vcmp.eq.f32.partialorder %v1740, 0.0
        %v2293 = vand.u32 %v1740, 2147483648
        %v2294 = vsel %vm2292, %v2293, %v2291
        %v2295 = vrsqrt.pop %v1741
        %v2296 = vmul.f32 %v1741, %v2295
        %vm2297 = vcmp.eq.f32.partialorder %v1741, inf
        %v2298 = vsel %vm2297, %v1741, %v2296
        %vm2299 = vcmp.eq.f32.partialorder %v1741, 0.0
        %v2300 = vand.u32 %v1741, 2147483648
        %v2301 = vsel %vm2299, %v2300, %v2298
        %v2302 = vrsqrt.pop %v1742
        %v2303 = vmul.f32 %v1742, %v2302
        %vm2304 = vcmp.eq.f32.partialorder %v1742, inf
        %v2305 = vsel %vm2304, %v1742, %v2303
        %vm2306 = vcmp.eq.f32.partialorder %v1742, 0.0
        %v2307 = vand.u32 %v1742, 2147483648
        %v2308 = vsel %vm2306, %v2307, %v2305
        %v2309 = vrsqrt.pop %v1743
        %v2310 = vmul.f32 %v1743, %v2309
        %vm2311 = vcmp.eq.f32.partialorder %v1743, inf
        %v2312 = vsel %vm2311, %v1743, %v2310
        %vm2313 = vcmp.eq.f32.partialorder %v1743, 0.0
        %v2314 = vand.u32 %v1743, 2147483648
        %v2315 = vsel %vm2313, %v2314, %v2312
        %v2316 = vrsqrt.pop %v1744
        %v2317 = vmul.f32 %v1744, %v2316
        %vm2318 = vcmp.eq.f32.partialorder %v1744, inf
        %v2319 = vsel %vm2318, %v1744, %v2317
        %vm2320 = vcmp.eq.f32.partialorder %v1744, 0.0
        %v2321 = vand.u32 %v1744, 2147483648
        %v2322 = vsel %vm2320, %v2321, %v2319
        %v2323 = vrsqrt.pop %v1745
        %v2324 = vmul.f32 %v1745, %v2323
        %vm2325 = vcmp.eq.f32.partialorder %v1745, inf
        %v2326 = vsel %vm2325, %v1745, %v2324
        %vm2327 = vcmp.eq.f32.partialorder %v1745, 0.0
        %v2328 = vand.u32 %v1745, 2147483648
        %v2329 = vsel %vm2327, %v2328, %v2326
        %v2330 = vrsqrt.pop %v1746
        %v2331 = vmul.f32 %v1746, %v2330
        %vm2332 = vcmp.eq.f32.partialorder %v1746, inf
        %v2333 = vsel %vm2332, %v1746, %v2331
        %vm2334 = vcmp.eq.f32.partialorder %v1746, 0.0
        %v2335 = vand.u32 %v1746, 2147483648
        %v2336 = vsel %vm2334, %v2335, %v2333
        %v2337 = vrsqrt.pop %v1747
        %v2338 = vmul.f32 %v1747, %v2337
        %vm2339 = vcmp.eq.f32.partialorder %v1747, inf
        %v2340 = vsel %vm2339, %v1747, %v2338
        %vm2341 = vcmp.eq.f32.partialorder %v1747, 0.0
        %v2342 = vand.u32 %v1747, 2147483648
        %v2343 = vsel %vm2341, %v2342, %v2340
        %v2344 = vrsqrt.pop %v1748
        %v2345 = vmul.f32 %v1748, %v2344
        %vm2346 = vcmp.eq.f32.partialorder %v1748, inf
        %v2347 = vsel %vm2346, %v1748, %v2345
        %vm2348 = vcmp.eq.f32.partialorder %v1748, 0.0
        %v2349 = vand.u32 %v1748, 2147483648
        %v2350 = vsel %vm2348, %v2349, %v2347
        %v2351 = vrsqrt.pop %v1749
        %v2352 = vmul.f32 %v1749, %v2351
        %vm2353 = vcmp.eq.f32.partialorder %v1749, inf
        %v2354 = vsel %vm2353, %v1749, %v2352
        %vm2355 = vcmp.eq.f32.partialorder %v1749, 0.0
        %v2356 = vand.u32 %v1749, 2147483648
        %v2357 = vsel %vm2355, %v2356, %v2354
        %v2358 = vrsqrt.pop %v1750
        %v2359 = vmul.f32 %v1750, %v2358
        %vm2360 = vcmp.eq.f32.partialorder %v1750, inf
        %v2361 = vsel %vm2360, %v1750, %v2359
        %vm2362 = vcmp.eq.f32.partialorder %v1750, 0.0
        %v2363 = vand.u32 %v1750, 2147483648
        %v2364 = vsel %vm2362, %v2363, %v2361
        %v2365 = vrsqrt.pop %v1751
        %v2366 = vmul.f32 %v1751, %v2365
        %vm2367 = vcmp.eq.f32.partialorder %v1751, inf
        %v2368 = vsel %vm2367, %v1751, %v2366
        %vm2369 = vcmp.eq.f32.partialorder %v1751, 0.0
        %v2370 = vand.u32 %v1751, 2147483648
        %v2371 = vsel %vm2369, %v2370, %v2368
        %v2372 = vrsqrt.pop %v1752
        %v2373 = vmul.f32 %v1752, %v2372
        %vm2374 = vcmp.eq.f32.partialorder %v1752, inf
        %v2375 = vsel %vm2374, %v1752, %v2373
        %vm2376 = vcmp.eq.f32.partialorder %v1752, 0.0
        %v2377 = vand.u32 %v1752, 2147483648
        %v2378 = vsel %vm2376, %v2377, %v2375
        %v2379 = vrsqrt.pop %v1753
        %v2380 = vmul.f32 %v1753, %v2379
        %vm2381 = vcmp.eq.f32.partialorder %v1753, inf
        %v2382 = vsel %vm2381, %v1753, %v2380
        %vm2383 = vcmp.eq.f32.partialorder %v1753, 0.0
        %v2384 = vand.u32 %v1753, 2147483648
        %v2385 = vsel %vm2383, %v2384, %v2382
        %v2386 = vrsqrt.pop %v1754
        %v2387 = vmul.f32 %v1754, %v2386
        %vm2388 = vcmp.eq.f32.partialorder %v1754, inf
        %v2389 = vsel %vm2388, %v1754, %v2387
        %vm2390 = vcmp.eq.f32.partialorder %v1754, 0.0
        %v2391 = vand.u32 %v1754, 2147483648
        %v2392 = vsel %vm2390, %v2391, %v2389
        %v2393 = vrsqrt.pop %v1755
        %v2394 = vmul.f32 %v1755, %v2393
        %vm2395 = vcmp.eq.f32.partialorder %v1755, inf
        %v2396 = vsel %vm2395, %v1755, %v2394
        %vm2397 = vcmp.eq.f32.partialorder %v1755, 0.0
        %v2398 = vand.u32 %v1755, 2147483648
        %v2399 = vsel %vm2397, %v2398, %v2396
        %v2400 = vrsqrt.pop %v1756
        %v2401 = vmul.f32 %v1756, %v2400
        %vm2402 = vcmp.eq.f32.partialorder %v1756, inf
        %v2403 = vsel %vm2402, %v1756, %v2401
        %vm2404 = vcmp.eq.f32.partialorder %v1756, 0.0
        %v2405 = vand.u32 %v1756, 2147483648
        %v2406 = vsel %vm2404, %v2405, %v2403
        %v2407 = vrsqrt.pop %v1757
        %v2408 = vmul.f32 %v1757, %v2407
        %vm2409 = vcmp.eq.f32.partialorder %v1757, inf
        %v2410 = vsel %vm2409, %v1757, %v2408
        %vm2411 = vcmp.eq.f32.partialorder %v1757, 0.0
        %v2412 = vand.u32 %v1757, 2147483648
        %v2413 = vsel %vm2411, %v2412, %v2410
        %v2414 = vrsqrt.pop %v1758
        %v2415 = vmul.f32 %v1758, %v2414
        %vm2416 = vcmp.eq.f32.partialorder %v1758, inf
        %v2417 = vsel %vm2416, %v1758, %v2415
        %vm2418 = vcmp.eq.f32.partialorder %v1758, 0.0
        %v2419 = vand.u32 %v1758, 2147483648
        %v2420 = vsel %vm2418, %v2419, %v2417
        %v2421 = vrsqrt.pop %v1759
        %v2422 = vmul.f32 %v1759, %v2421
        %vm2423 = vcmp.eq.f32.partialorder %v1759, inf
        %v2424 = vsel %vm2423, %v1759, %v2422
        %vm2425 = vcmp.eq.f32.partialorder %v1759, 0.0
        %v2426 = vand.u32 %v1759, 2147483648
        %v2427 = vsel %vm2425, %v2426, %v2424
        %v2428 = vrsqrt.pop %v1760
        %v2429 = vmul.f32 %v1760, %v2428
        %vm2430 = vcmp.eq.f32.partialorder %v1760, inf
        %v2431 = vsel %vm2430, %v1760, %v2429
        %vm2432 = vcmp.eq.f32.partialorder %v1760, 0.0
        %v2433 = vand.u32 %v1760, 2147483648
        %v2434 = vsel %vm2432, %v2433, %v2431
        %v2435 = vrsqrt.pop %v1761
        %v2436 = vmul.f32 %v1761, %v2435
        %vm2437 = vcmp.eq.f32.partialorder %v1761, inf
        %v2438 = vsel %vm2437, %v1761, %v2436
        %vm2439 = vcmp.eq.f32.partialorder %v1761, 0.0
        %v2440 = vand.u32 %v1761, 2147483648
        %v2441 = vsel %vm2439, %v2440, %v2438
        %v2442 = vrsqrt.pop %v1762
        %v2443 = vmul.f32 %v1762, %v2442
        %vm2444 = vcmp.eq.f32.partialorder %v1762, inf
        %v2445 = vsel %vm2444, %v1762, %v2443
        %vm2446 = vcmp.eq.f32.partialorder %v1762, 0.0
        %v2447 = vand.u32 %v1762, 2147483648
        %v2448 = vsel %vm2446, %v2447, %v2445
        %v2449 = vrsqrt.pop %v1763
        %v2450 = vmul.f32 %v1763, %v2449
        %vm2451 = vcmp.eq.f32.partialorder %v1763, inf
        %v2452 = vsel %vm2451, %v1763, %v2450
        %vm2453 = vcmp.eq.f32.partialorder %v1763, 0.0
        %v2454 = vand.u32 %v1763, 2147483648
        %v2455 = vsel %vm2453, %v2454, %v2452
        %v2456 = vrsqrt.pop %v1764
        %v2457 = vmul.f32 %v1764, %v2456
        %vm2458 = vcmp.eq.f32.partialorder %v1764, inf
        %v2459 = vsel %vm2458, %v1764, %v2457
        %vm2460 = vcmp.eq.f32.partialorder %v1764, 0.0
        %v2461 = vand.u32 %v1764, 2147483648
        %v2462 = vsel %vm2460, %v2461, %v2459
        %v2463 = vrsqrt.pop %v1765
        %v2464 = vmul.f32 %v1765, %v2463
        %vm2465 = vcmp.eq.f32.partialorder %v1765, inf
        %v2466 = vsel %vm2465, %v1765, %v2464
        %vm2467 = vcmp.eq.f32.partialorder %v1765, 0.0
        %v2468 = vand.u32 %v1765, 2147483648
        %v2469 = vsel %vm2467, %v2468, %v2466
        %v2470 = vrsqrt.pop %v1766
        %v2471 = vmul.f32 %v1766, %v2470
        %vm2472 = vcmp.eq.f32.partialorder %v1766, inf
        %v2473 = vsel %vm2472, %v1766, %v2471
        %vm2474 = vcmp.eq.f32.partialorder %v1766, 0.0
        %v2475 = vand.u32 %v1766, 2147483648
        %v2476 = vsel %vm2474, %v2475, %v2473
        %v2477 = vrsqrt.pop %v1767
        %v2478 = vmul.f32 %v1767, %v2477
        %vm2479 = vcmp.eq.f32.partialorder %v1767, inf
        %v2480 = vsel %vm2479, %v1767, %v2478
        %vm2481 = vcmp.eq.f32.partialorder %v1767, 0.0
        %v2482 = vand.u32 %v1767, 2147483648
        %v2483 = vsel %vm2481, %v2482, %v2480
        %v2484 = vrsqrt.pop %v1768
        %v2485 = vmul.f32 %v1768, %v2484
        %vm2486 = vcmp.eq.f32.partialorder %v1768, inf
        %v2487 = vsel %vm2486, %v1768, %v2485
        %vm2488 = vcmp.eq.f32.partialorder %v1768, 0.0
        %v2489 = vand.u32 %v1768, 2147483648
        %v2490 = vsel %vm2488, %v2489, %v2487
        %v2491 = vrsqrt.pop %v1769
        %v2492 = vmul.f32 %v1769, %v2491
        %vm2493 = vcmp.eq.f32.partialorder %v1769, inf
        %v2494 = vsel %vm2493, %v1769, %v2492
        %vm2495 = vcmp.eq.f32.partialorder %v1769, 0.0
        %v2496 = vand.u32 %v1769, 2147483648
        %v2497 = vsel %vm2495, %v2496, %v2494
        %v2498 = vrsqrt.pop %v1770
        %v2499 = vmul.f32 %v1770, %v2498
        %vm2500 = vcmp.eq.f32.partialorder %v1770, inf
        %v2501 = vsel %vm2500, %v1770, %v2499
        %vm2502 = vcmp.eq.f32.partialorder %v1770, 0.0
        %v2503 = vand.u32 %v1770, 2147483648
        %v2504 = vsel %vm2502, %v2503, %v2501
        %v2505 = vrsqrt.pop %v1771
        %v2506 = vmul.f32 %v1771, %v2505
        %vm2507 = vcmp.eq.f32.partialorder %v1771, inf
        %v2508 = vsel %vm2507, %v1771, %v2506
        %vm2509 = vcmp.eq.f32.partialorder %v1771, 0.0
        %v2510 = vand.u32 %v1771, 2147483648
        %v2511 = vsel %vm2509, %v2510, %v2508
        %v2512 = vrsqrt.pop %v1772
        %v2513 = vmul.f32 %v1772, %v2512
        %vm2514 = vcmp.eq.f32.partialorder %v1772, inf
        %v2515 = vsel %vm2514, %v1772, %v2513
        %vm2516 = vcmp.eq.f32.partialorder %v1772, 0.0
        %v2517 = vand.u32 %v1772, 2147483648
        %v2518 = vsel %vm2516, %v2517, %v2515
        %v2519 = vrsqrt.pop %v1773
        %v2520 = vmul.f32 %v1773, %v2519
        %vm2521 = vcmp.eq.f32.partialorder %v1773, inf
        %v2522 = vsel %vm2521, %v1773, %v2520
        %vm2523 = vcmp.eq.f32.partialorder %v1773, 0.0
        %v2524 = vand.u32 %v1773, 2147483648
        %v2525 = vsel %vm2523, %v2524, %v2522
        %v2526 = vrsqrt.pop %v1774
        %v2527 = vmul.f32 %v1774, %v2526
        %vm2528 = vcmp.eq.f32.partialorder %v1774, inf
        %v2529 = vsel %vm2528, %v1774, %v2527
        %vm2530 = vcmp.eq.f32.partialorder %v1774, 0.0
        %v2531 = vand.u32 %v1774, 2147483648
        %v2532 = vsel %vm2530, %v2531, %v2529
        %v2533 = vrsqrt.pop %v1775
        %v2534 = vmul.f32 %v1775, %v2533
        %vm2535 = vcmp.eq.f32.partialorder %v1775, inf
        %v2536 = vsel %vm2535, %v1775, %v2534
        %vm2537 = vcmp.eq.f32.partialorder %v1775, 0.0
        %v2538 = vand.u32 %v1775, 2147483648
        %v2539 = vsel %vm2537, %v2538, %v2536
        %v2540 = vrsqrt.pop %v1776
        %v2541 = vmul.f32 %v1776, %v2540
        %vm2542 = vcmp.eq.f32.partialorder %v1776, inf
        %v2543 = vsel %vm2542, %v1776, %v2541
        %vm2544 = vcmp.eq.f32.partialorder %v1776, 0.0
        %v2545 = vand.u32 %v1776, 2147483648
        %v2546 = vsel %vm2544, %v2545, %v2543
        %v2547 = vrsqrt.pop %v1777
        %v2548 = vmul.f32 %v1777, %v2547
        %vm2549 = vcmp.eq.f32.partialorder %v1777, inf
        %v2550 = vsel %vm2549, %v1777, %v2548
        %vm2551 = vcmp.eq.f32.partialorder %v1777, 0.0
        %v2552 = vand.u32 %v1777, 2147483648
        %v2553 = vsel %vm2551, %v2552, %v2550
        %v2554 = vrsqrt.pop %v1778
        %v2555 = vmul.f32 %v1778, %v2554
        %vm2556 = vcmp.eq.f32.partialorder %v1778, inf
        %v2557 = vsel %vm2556, %v1778, %v2555
        %vm2558 = vcmp.eq.f32.partialorder %v1778, 0.0
        %v2559 = vand.u32 %v1778, 2147483648
        %v2560 = vsel %vm2558, %v2559, %v2557
        %v2561 = vrsqrt.pop %v1779
        %v2562 = vmul.f32 %v1779, %v2561
        %vm2563 = vcmp.eq.f32.partialorder %v1779, inf
        %v2564 = vsel %vm2563, %v1779, %v2562
        %vm2565 = vcmp.eq.f32.partialorder %v1779, 0.0
        %v2566 = vand.u32 %v1779, 2147483648
        %v2567 = vsel %vm2565, %v2566, %v2564
        %v2568 = vrsqrt.pop %v1780
        %v2569 = vmul.f32 %v1780, %v2568
        %vm2570 = vcmp.eq.f32.partialorder %v1780, inf
        %v2571 = vsel %vm2570, %v1780, %v2569
        %vm2572 = vcmp.eq.f32.partialorder %v1780, 0.0
        %v2573 = vand.u32 %v1780, 2147483648
        %v2574 = vsel %vm2572, %v2573, %v2571
        %v2575 = vrsqrt.pop %v1781
        %v2576 = vmul.f32 %v1781, %v2575
        %vm2577 = vcmp.eq.f32.partialorder %v1781, inf
        %v2578 = vsel %vm2577, %v1781, %v2576
        %vm2579 = vcmp.eq.f32.partialorder %v1781, 0.0
        %v2580 = vand.u32 %v1781, 2147483648
        %v2581 = vsel %vm2579, %v2580, %v2578
        %v2582 = vrsqrt.pop %v1782
        %v2583 = vmul.f32 %v1782, %v2582
        %vm2584 = vcmp.eq.f32.partialorder %v1782, inf
        %v2585 = vsel %vm2584, %v1782, %v2583
        %vm2586 = vcmp.eq.f32.partialorder %v1782, 0.0
        %v2587 = vand.u32 %v1782, 2147483648
        %v2588 = vsel %vm2586, %v2587, %v2585
        %v2589 = vrsqrt.pop %v1783
        %v2590 = vmul.f32 %v1783, %v2589
        %vm2591 = vcmp.eq.f32.partialorder %v1783, inf
        %v2592 = vsel %vm2591, %v1783, %v2590
        %vm2593 = vcmp.eq.f32.partialorder %v1783, 0.0
        %v2594 = vand.u32 %v1783, 2147483648
        %v2595 = vsel %vm2593, %v2594, %v2592
        %v2596 = vrsqrt.pop %v1784
        %v2597 = vmul.f32 %v1784, %v2596
        %vm2598 = vcmp.eq.f32.partialorder %v1784, inf
        %v2599 = vsel %vm2598, %v1784, %v2597
        %vm2600 = vcmp.eq.f32.partialorder %v1784, 0.0
        %v2601 = vand.u32 %v1784, 2147483648
        %v2602 = vsel %vm2600, %v2601, %v2599
        %v2603 = vrsqrt.pop %v1785
        %v2604 = vmul.f32 %v1785, %v2603
        %vm2605 = vcmp.eq.f32.partialorder %v1785, inf
        %v2606 = vsel %vm2605, %v1785, %v2604
        %vm2607 = vcmp.eq.f32.partialorder %v1785, 0.0
        %v2608 = vand.u32 %v1785, 2147483648
        %v2609 = vsel %vm2607, %v2608, %v2606
        %v2610 = vrsqrt.pop %v1786
        %v2611 = vmul.f32 %v1786, %v2610
        %vm2612 = vcmp.eq.f32.partialorder %v1786, inf
        %v2613 = vsel %vm2612, %v1786, %v2611
        %vm2614 = vcmp.eq.f32.partialorder %v1786, 0.0
        %v2615 = vand.u32 %v1786, 2147483648
        %v2616 = vsel %vm2614, %v2615, %v2613
        %v2617 = vrsqrt.pop %v1787
        %v2618 = vmul.f32 %v1787, %v2617
        %vm2619 = vcmp.eq.f32.partialorder %v1787, inf
        %v2620 = vsel %vm2619, %v1787, %v2618
        %vm2621 = vcmp.eq.f32.partialorder %v1787, 0.0
        %v2622 = vand.u32 %v1787, 2147483648
        %v2623 = vsel %vm2621, %v2622, %v2620
        %v2624 = vrsqrt.pop %v1788
        %v2625 = vmul.f32 %v1788, %v2624
        %vm2626 = vcmp.eq.f32.partialorder %v1788, inf
        %v2627 = vsel %vm2626, %v1788, %v2625
        %vm2628 = vcmp.eq.f32.partialorder %v1788, 0.0
        %v2629 = vand.u32 %v1788, 2147483648
        %v2630 = vsel %vm2628, %v2629, %v2627
        %v2631 = vrsqrt.pop %v1789
        %v2632 = vmul.f32 %v1789, %v2631
        %vm2633 = vcmp.eq.f32.partialorder %v1789, inf
        %v2634 = vsel %vm2633, %v1789, %v2632
        %vm2635 = vcmp.eq.f32.partialorder %v1789, 0.0
        %v2636 = vand.u32 %v1789, 2147483648
        %v2637 = vsel %vm2635, %v2636, %v2634
        %v2638 = vrsqrt.pop %v1790
        %v2639 = vmul.f32 %v1790, %v2638
        %vm2640 = vcmp.eq.f32.partialorder %v1790, inf
        %v2641 = vsel %vm2640, %v1790, %v2639
        %vm2642 = vcmp.eq.f32.partialorder %v1790, 0.0
        %v2643 = vand.u32 %v1790, 2147483648
        %v2644 = vsel %vm2642, %v2643, %v2641
        %v2645 = vrsqrt.pop %v1791
        %v2646 = vmul.f32 %v1791, %v2645
        %vm2647 = vcmp.eq.f32.partialorder %v1791, inf
        %v2648 = vsel %vm2647, %v1791, %v2646
        %vm2649 = vcmp.eq.f32.partialorder %v1791, 0.0
        %v2650 = vand.u32 %v1791, 2147483648
        %v2651 = vsel %vm2649, %v2650, %v2648
        %v2652 = vrsqrt.pop %v1792
        %v2653 = vmul.f32 %v1792, %v2652
        %vm2654 = vcmp.eq.f32.partialorder %v1792, inf
        %v2655 = vsel %vm2654, %v1792, %v2653
        %vm2656 = vcmp.eq.f32.partialorder %v1792, 0.0
        %v2657 = vand.u32 %v1792, 2147483648
        %v2658 = vsel %vm2656, %v2657, %v2655
        %v2659 = vrsqrt.pop %v1793
        %v2660 = vmul.f32 %v1793, %v2659
        %vm2661 = vcmp.eq.f32.partialorder %v1793, inf
        %v2662 = vsel %vm2661, %v1793, %v2660
        %vm2663 = vcmp.eq.f32.partialorder %v1793, 0.0
        %v2664 = vand.u32 %v1793, 2147483648
        %v2665 = vsel %vm2663, %v2664, %v2662
        %v2666 = vrsqrt.pop %v1794
        %v2667 = vmul.f32 %v1794, %v2666
        %vm2668 = vcmp.eq.f32.partialorder %v1794, inf
        %v2669 = vsel %vm2668, %v1794, %v2667
        %vm2670 = vcmp.eq.f32.partialorder %v1794, 0.0
        %v2671 = vand.u32 %v1794, 2147483648
        %v2672 = vsel %vm2670, %v2671, %v2669
        %v2673 = vrsqrt.pop %v1795
        %v2674 = vmul.f32 %v1795, %v2673
        %vm2675 = vcmp.eq.f32.partialorder %v1795, inf
        %v2676 = vsel %vm2675, %v1795, %v2674
        %vm2677 = vcmp.eq.f32.partialorder %v1795, 0.0
        %v2678 = vand.u32 %v1795, 2147483648
        %v2679 = vsel %vm2677, %v2678, %v2676
        %v2680 = vrsqrt.pop %v1796
        %v2681 = vmul.f32 %v1796, %v2680
        %vm2682 = vcmp.eq.f32.partialorder %v1796, inf
        %v2683 = vsel %vm2682, %v1796, %v2681
        %vm2684 = vcmp.eq.f32.partialorder %v1796, 0.0
        %v2685 = vand.u32 %v1796, 2147483648
        %v2686 = vsel %vm2684, %v2685, %v2683
        %v2687 = vrsqrt.pop %v1797
        %v2688 = vmul.f32 %v1797, %v2687
        %vm2689 = vcmp.eq.f32.partialorder %v1797, inf
        %v2690 = vsel %vm2689, %v1797, %v2688
        %vm2691 = vcmp.eq.f32.partialorder %v1797, 0.0
        %v2692 = vand.u32 %v1797, 2147483648
        %v2693 = vsel %vm2691, %v2692, %v2690
        %v2694 = vrsqrt.pop %v1798
        %v2695 = vmul.f32 %v1798, %v2694
        %vm2696 = vcmp.eq.f32.partialorder %v1798, inf
        %v2697 = vsel %vm2696, %v1798, %v2695
        %vm2698 = vcmp.eq.f32.partialorder %v1798, 0.0
        %v2699 = vand.u32 %v1798, 2147483648
        %v2700 = vsel %vm2698, %v2699, %v2697
        %v2701 = vrsqrt.pop %v1799
        %v2702 = vmul.f32 %v1799, %v2701
        %vm2703 = vcmp.eq.f32.partialorder %v1799, inf
        %v2704 = vsel %vm2703, %v1799, %v2702
        %vm2705 = vcmp.eq.f32.partialorder %v1799, 0.0
        %v2706 = vand.u32 %v1799, 2147483648
        %v2707 = vsel %vm2705, %v2706, %v2704
        %v2708 = vrsqrt.pop %v1800
        %v2709 = vmul.f32 %v1800, %v2708
        %vm2710 = vcmp.eq.f32.partialorder %v1800, inf
        %v2711 = vsel %vm2710, %v1800, %v2709
        %vm2712 = vcmp.eq.f32.partialorder %v1800, 0.0
        %v2713 = vand.u32 %v1800, 2147483648
        %v2714 = vsel %vm2712, %v2713, %v2711
        %v2715 = vrsqrt.pop %v1801
        %v2716 = vmul.f32 %v1801, %v2715
        %vm2717 = vcmp.eq.f32.partialorder %v1801, inf
        %v2718 = vsel %vm2717, %v1801, %v2716
        %vm2719 = vcmp.eq.f32.partialorder %v1801, 0.0
        %v2720 = vand.u32 %v1801, 2147483648
        %v2721 = vsel %vm2719, %v2720, %v2718
        %v2722 = vrsqrt.pop %v1802
        %v2723 = vmul.f32 %v1802, %v2722
        %vm2724 = vcmp.eq.f32.partialorder %v1802, inf
        %v2725 = vsel %vm2724, %v1802, %v2723
        %vm2726 = vcmp.eq.f32.partialorder %v1802, 0.0
        %v2727 = vand.u32 %v1802, 2147483648
        %v2728 = vsel %vm2726, %v2727, %v2725
        %v2729 = vrsqrt.pop %v1803
        %v2730 = vmul.f32 %v1803, %v2729
        %vm2731 = vcmp.eq.f32.partialorder %v1803, inf
        %v2732 = vsel %vm2731, %v1803, %v2730
        %vm2733 = vcmp.eq.f32.partialorder %v1803, 0.0
        %v2734 = vand.u32 %v1803, 2147483648
        %v2735 = vsel %vm2733, %v2734, %v2732
        %v2736 = vrsqrt.pop %v1804
        %v2737 = vmul.f32 %v1804, %v2736
        %vm2738 = vcmp.eq.f32.partialorder %v1804, inf
        %v2739 = vsel %vm2738, %v1804, %v2737
        %vm2740 = vcmp.eq.f32.partialorder %v1804, 0.0
        %v2741 = vand.u32 %v1804, 2147483648
        %v2742 = vsel %vm2740, %v2741, %v2739
        %v2743 = vrsqrt.pop %v1805
        %v2744 = vmul.f32 %v1805, %v2743
        %vm2745 = vcmp.eq.f32.partialorder %v1805, inf
        %v2746 = vsel %vm2745, %v1805, %v2744
        %vm2747 = vcmp.eq.f32.partialorder %v1805, 0.0
        %v2748 = vand.u32 %v1805, 2147483648
        %v2749 = vsel %vm2747, %v2748, %v2746
        %v2750 = vrsqrt.pop %v1806
        %v2751 = vmul.f32 %v1806, %v2750
        %vm2752 = vcmp.eq.f32.partialorder %v1806, inf
        %v2753 = vsel %vm2752, %v1806, %v2751
        %vm2754 = vcmp.eq.f32.partialorder %v1806, 0.0
        %v2755 = vand.u32 %v1806, 2147483648
        %v2756 = vsel %vm2754, %v2755, %v2753
        %v2757 = vrsqrt.pop %v1807
        %v2758 = vmul.f32 %v1807, %v2757
        %vm2759 = vcmp.eq.f32.partialorder %v1807, inf
        %v2760 = vsel %vm2759, %v1807, %v2758
        %vm2761 = vcmp.eq.f32.partialorder %v1807, 0.0
        %v2762 = vand.u32 %v1807, 2147483648
        %v2763 = vsel %vm2761, %v2762, %v2760
        %v2764 = vrsqrt.pop %v1808
        %v2765 = vmul.f32 %v1808, %v2764
        %vm2766 = vcmp.eq.f32.partialorder %v1808, inf
        %v2767 = vsel %vm2766, %v1808, %v2765
        %vm2768 = vcmp.eq.f32.partialorder %v1808, 0.0
        %v2769 = vand.u32 %v1808, 2147483648
        %v2770 = vsel %vm2768, %v2769, %v2767
        %v2771 = vrsqrt.pop %v1809
        %v2772 = vmul.f32 %v1809, %v2771
        %vm2773 = vcmp.eq.f32.partialorder %v1809, inf
        %v2774 = vsel %vm2773, %v1809, %v2772
        %vm2775 = vcmp.eq.f32.partialorder %v1809, 0.0
        %v2776 = vand.u32 %v1809, 2147483648
        %v2777 = vsel %vm2775, %v2776, %v2774
        %v2778 = vrsqrt.pop %v1810
        %v2779 = vmul.f32 %v1810, %v2778
        %vm2780 = vcmp.eq.f32.partialorder %v1810, inf
        %v2781 = vsel %vm2780, %v1810, %v2779
        %vm2782 = vcmp.eq.f32.partialorder %v1810, 0.0
        %v2783 = vand.u32 %v1810, 2147483648
        %v2784 = vsel %vm2782, %v2783, %v2781
        %v2785 = vrsqrt.pop %v1811
        %v2786 = vmul.f32 %v1811, %v2785
        %vm2787 = vcmp.eq.f32.partialorder %v1811, inf
        %v2788 = vsel %vm2787, %v1811, %v2786
        %vm2789 = vcmp.eq.f32.partialorder %v1811, 0.0
        %v2790 = vand.u32 %v1811, 2147483648
        %v2791 = vsel %vm2789, %v2790, %v2788
        %v2792 = vrsqrt.pop %v1812
        %v2793 = vmul.f32 %v1812, %v2792
        %vm2794 = vcmp.eq.f32.partialorder %v1812, inf
        %v2795 = vsel %vm2794, %v1812, %v2793
        %vm2796 = vcmp.eq.f32.partialorder %v1812, 0.0
        %v2797 = vand.u32 %v1812, 2147483648
        %v2798 = vsel %vm2796, %v2797, %v2795
        %v2799 = vrsqrt.pop %v1813
        %v2800 = vmul.f32 %v1813, %v2799
        %vm2801 = vcmp.eq.f32.partialorder %v1813, inf
        %v2802 = vsel %vm2801, %v1813, %v2800
        %vm2803 = vcmp.eq.f32.partialorder %v1813, 0.0
        %v2804 = vand.u32 %v1813, 2147483648
        %v2805 = vsel %vm2803, %v2804, %v2802
        %v2806 = vrsqrt.pop %v1814
        %v2807 = vmul.f32 %v1814, %v2806
        %vm2808 = vcmp.eq.f32.partialorder %v1814, inf
        %v2809 = vsel %vm2808, %v1814, %v2807
        %vm2810 = vcmp.eq.f32.partialorder %v1814, 0.0
        %v2811 = vand.u32 %v1814, 2147483648
        %v2812 = vsel %vm2810, %v2811, %v2809
        %v2813 = vrsqrt.pop %v1815
        %v2814 = vmul.f32 %v1815, %v2813
        %vm2815 = vcmp.eq.f32.partialorder %v1815, inf
        %v2816 = vsel %vm2815, %v1815, %v2814
        %vm2817 = vcmp.eq.f32.partialorder %v1815, 0.0
        %v2818 = vand.u32 %v1815, 2147483648
        %v2819 = vsel %vm2817, %v2818, %v2816
        %v2820 = vrsqrt.pop %v1816
        %v2821 = vmul.f32 %v1816, %v2820
        %vm2822 = vcmp.eq.f32.partialorder %v1816, inf
        %v2823 = vsel %vm2822, %v1816, %v2821
        %vm2824 = vcmp.eq.f32.partialorder %v1816, 0.0
        %v2825 = vand.u32 %v1816, 2147483648
        %v2826 = vsel %vm2824, %v2825, %v2823
        %v2827 = vrsqrt.pop %v1817
        %v2828 = vmul.f32 %v1817, %v2827
        %vm2829 = vcmp.eq.f32.partialorder %v1817, inf
        %v2830 = vsel %vm2829, %v1817, %v2828
        %vm2831 = vcmp.eq.f32.partialorder %v1817, 0.0
        %v2832 = vand.u32 %v1817, 2147483648
        %v2833 = vsel %vm2831, %v2832, %v2830
        %v2834 = vrsqrt.pop %v1818
        %v2835 = vmul.f32 %v1818, %v2834
        %vm2836 = vcmp.eq.f32.partialorder %v1818, inf
        %v2837 = vsel %vm2836, %v1818, %v2835
        %vm2838 = vcmp.eq.f32.partialorder %v1818, 0.0
        %v2839 = vand.u32 %v1818, 2147483648
        %v2840 = vsel %vm2838, %v2839, %v2837
        %v2841 = vrsqrt.pop %v1819
        %v2842 = vmul.f32 %v1819, %v2841
        %vm2843 = vcmp.eq.f32.partialorder %v1819, inf
        %v2844 = vsel %vm2843, %v1819, %v2842
        %vm2845 = vcmp.eq.f32.partialorder %v1819, 0.0
        %v2846 = vand.u32 %v1819, 2147483648
        %v2847 = vsel %vm2845, %v2846, %v2844
        %v2848 = vrsqrt.pop %v1820
        %v2849 = vmul.f32 %v1820, %v2848
        %vm2850 = vcmp.eq.f32.partialorder %v1820, inf
        %v2851 = vsel %vm2850, %v1820, %v2849
        %vm2852 = vcmp.eq.f32.partialorder %v1820, 0.0
        %v2853 = vand.u32 %v1820, 2147483648
        %v2854 = vsel %vm2852, %v2853, %v2851
        %v2855 = vrsqrt.pop %v1821
        %v2856 = vmul.f32 %v1821, %v2855
        %vm2857 = vcmp.eq.f32.partialorder %v1821, inf
        %v2858 = vsel %vm2857, %v1821, %v2856
        %vm2859 = vcmp.eq.f32.partialorder %v1821, 0.0
        %v2860 = vand.u32 %v1821, 2147483648
        %v2861 = vsel %vm2859, %v2860, %v2858
        %v2862 = vrsqrt.pop %v1822
        %v2863 = vmul.f32 %v1822, %v2862
        %vm2864 = vcmp.eq.f32.partialorder %v1822, inf
        %v2865 = vsel %vm2864, %v1822, %v2863
        %vm2866 = vcmp.eq.f32.partialorder %v1822, 0.0
        %v2867 = vand.u32 %v1822, 2147483648
        %v2868 = vsel %vm2866, %v2867, %v2865
        %v2869 = vrsqrt.pop %v1823
        %v2870 = vmul.f32 %v1823, %v2869
        %vm2871 = vcmp.eq.f32.partialorder %v1823, inf
        %v2872 = vsel %vm2871, %v1823, %v2870
        %vm2873 = vcmp.eq.f32.partialorder %v1823, 0.0
        %v2874 = vand.u32 %v1823, 2147483648
        %v2875 = vsel %vm2873, %v2874, %v2872
        %v2876 = vrsqrt.pop %v1824
        %v2877 = vmul.f32 %v1824, %v2876
        %vm2878 = vcmp.eq.f32.partialorder %v1824, inf
        %v2879 = vsel %vm2878, %v1824, %v2877
        %vm2880 = vcmp.eq.f32.partialorder %v1824, 0.0
        %v2881 = vand.u32 %v1824, 2147483648
        %v2882 = vsel %vm2880, %v2881, %v2879
        %v2883 = vrsqrt.pop %v1825
        %v2884 = vmul.f32 %v1825, %v2883
        %vm2885 = vcmp.eq.f32.partialorder %v1825, inf
        %v2886 = vsel %vm2885, %v1825, %v2884
        %vm2887 = vcmp.eq.f32.partialorder %v1825, 0.0
        %v2888 = vand.u32 %v1825, 2147483648
        %v2889 = vsel %vm2887, %v2888, %v2886
        %v2890 = vrsqrt.pop %v1826
        %v2891 = vmul.f32 %v1826, %v2890
        %vm2892 = vcmp.eq.f32.partialorder %v1826, inf
        %v2893 = vsel %vm2892, %v1826, %v2891
        %vm2894 = vcmp.eq.f32.partialorder %v1826, 0.0
        %v2895 = vand.u32 %v1826, 2147483648
        %v2896 = vsel %vm2894, %v2895, %v2893
        %v2897 = vrsqrt.pop %v1827
        %v2898 = vmul.f32 %v1827, %v2897
        %vm2899 = vcmp.eq.f32.partialorder %v1827, inf
        %v2900 = vsel %vm2899, %v1827, %v2898
        %vm2901 = vcmp.eq.f32.partialorder %v1827, 0.0
        %v2902 = vand.u32 %v1827, 2147483648
        %v2903 = vsel %vm2901, %v2902, %v2900
        %v2904 = vrsqrt.pop %v1828
        %v2905 = vmul.f32 %v1828, %v2904
        %vm2906 = vcmp.eq.f32.partialorder %v1828, inf
        %v2907 = vsel %vm2906, %v1828, %v2905
        %vm2908 = vcmp.eq.f32.partialorder %v1828, 0.0
        %v2909 = vand.u32 %v1828, 2147483648
        %v2910 = vsel %vm2908, %v2909, %v2907
        %v2911 = vrsqrt.pop %v1829
        %v2912 = vmul.f32 %v1829, %v2911
        %vm2913 = vcmp.eq.f32.partialorder %v1829, inf
        %v2914 = vsel %vm2913, %v1829, %v2912
        %vm2915 = vcmp.eq.f32.partialorder %v1829, 0.0
        %v2916 = vand.u32 %v1829, 2147483648
        %v2917 = vsel %vm2915, %v2916, %v2914
        %v2918 = vrsqrt.pop %v1830
        %v2919 = vmul.f32 %v1830, %v2918
        %vm2920 = vcmp.eq.f32.partialorder %v1830, inf
        %v2921 = vsel %vm2920, %v1830, %v2919
        %vm2922 = vcmp.eq.f32.partialorder %v1830, 0.0
        %v2923 = vand.u32 %v1830, 2147483648
        %v2924 = vsel %vm2922, %v2923, %v2921
        %v2925 = vrsqrt.pop %v1831
        %v2926 = vmul.f32 %v1831, %v2925
        %vm2927 = vcmp.eq.f32.partialorder %v1831, inf
        %v2928 = vsel %vm2927, %v1831, %v2926
        %vm2929 = vcmp.eq.f32.partialorder %v1831, 0.0
        %v2930 = vand.u32 %v1831, 2147483648
        %v2931 = vsel %vm2929, %v2930, %v2928
        %v2932 = vrsqrt.pop %v1832
        %v2933 = vmul.f32 %v1832, %v2932
        %vm2934 = vcmp.eq.f32.partialorder %v1832, inf
        %v2935 = vsel %vm2934, %v1832, %v2933
        %vm2936 = vcmp.eq.f32.partialorder %v1832, 0.0
        %v2937 = vand.u32 %v1832, 2147483648
        %v2938 = vsel %vm2936, %v2937, %v2935
        %v2939 = vrsqrt.pop %v1833
        %v2940 = vmul.f32 %v1833, %v2939
        %vm2941 = vcmp.eq.f32.partialorder %v1833, inf
        %v2942 = vsel %vm2941, %v1833, %v2940
        %vm2943 = vcmp.eq.f32.partialorder %v1833, 0.0
        %v2944 = vand.u32 %v1833, 2147483648
        %v2945 = vsel %vm2943, %v2944, %v2942
        %v2946 = vrsqrt.pop %v1834
        %v2947 = vmul.f32 %v1834, %v2946
        %vm2948 = vcmp.eq.f32.partialorder %v1834, inf
        %v2949 = vsel %vm2948, %v1834, %v2947
        %vm2950 = vcmp.eq.f32.partialorder %v1834, 0.0
        %v2951 = vand.u32 %v1834, 2147483648
        %v2952 = vsel %vm2950, %v2951, %v2949
        %v2953 = vrsqrt.pop %v1835
        %v2954 = vmul.f32 %v1835, %v2953
        %vm2955 = vcmp.eq.f32.partialorder %v1835, inf
        %v2956 = vsel %vm2955, %v1835, %v2954
        %vm2957 = vcmp.eq.f32.partialorder %v1835, 0.0
        %v2958 = vand.u32 %v1835, 2147483648
        %v2959 = vsel %vm2957, %v2958, %v2956
        %v2960 = vrsqrt.pop %v1836
        %v2961 = vmul.f32 %v1836, %v2960
        %vm2962 = vcmp.eq.f32.partialorder %v1836, inf
        %v2963 = vsel %vm2962, %v1836, %v2961
        %vm2964 = vcmp.eq.f32.partialorder %v1836, 0.0
        %v2965 = vand.u32 %v1836, 2147483648
        %v2966 = vsel %vm2964, %v2965, %v2963
        %v2967 = vrsqrt.pop %v1837
        %v2968 = vmul.f32 %v1837, %v2967
        %vm2969 = vcmp.eq.f32.partialorder %v1837, inf
        %v2970 = vsel %vm2969, %v1837, %v2968
        %vm2971 = vcmp.eq.f32.partialorder %v1837, 0.0
        %v2972 = vand.u32 %v1837, 2147483648
        %v2973 = vsel %vm2971, %v2972, %v2970
        %v2974 = vrsqrt.pop %v1838
        %v2975 = vmul.f32 %v1838, %v2974
        %vm2976 = vcmp.eq.f32.partialorder %v1838, inf
        %v2977 = vsel %vm2976, %v1838, %v2975
        %vm2978 = vcmp.eq.f32.partialorder %v1838, 0.0
        %v2979 = vand.u32 %v1838, 2147483648
        %v2980 = vsel %vm2978, %v2979, %v2977
        %v2981 = vrsqrt.pop %v1839
        %v2982 = vmul.f32 %v1839, %v2981
        %vm2983 = vcmp.eq.f32.partialorder %v1839, inf
        %v2984 = vsel %vm2983, %v1839, %v2982
        %vm2985 = vcmp.eq.f32.partialorder %v1839, 0.0
        %v2986 = vand.u32 %v1839, 2147483648
        %v2987 = vsel %vm2985, %v2986, %v2984
        %v2988 = vrsqrt.pop %v1840
        %v2989 = vmul.f32 %v1840, %v2988
        %vm2990 = vcmp.eq.f32.partialorder %v1840, inf
        %v2991 = vsel %vm2990, %v1840, %v2989
        %vm2992 = vcmp.eq.f32.partialorder %v1840, 0.0
        %v2993 = vand.u32 %v1840, 2147483648
        %v2994 = vsel %vm2992, %v2993, %v2991
        %v2995 = vrsqrt.pop %v1841
        %v2996 = vmul.f32 %v1841, %v2995
        %vm2997 = vcmp.eq.f32.partialorder %v1841, inf
        %v2998 = vsel %vm2997, %v1841, %v2996
        %vm2999 = vcmp.eq.f32.partialorder %v1841, 0.0
        %v3000 = vand.u32 %v1841, 2147483648
        %v3001 = vsel %vm2999, %v3000, %v2998
        %v3002 = vrsqrt.pop %v1842
        %v3003 = vmul.f32 %v1842, %v3002
        %vm3004 = vcmp.eq.f32.partialorder %v1842, inf
        %v3005 = vsel %vm3004, %v1842, %v3003
        %vm3006 = vcmp.eq.f32.partialorder %v1842, 0.0
        %v3007 = vand.u32 %v1842, 2147483648
        %v3008 = vsel %vm3006, %v3007, %v3005
        %v3009 = vrsqrt.pop %v1843
        %v3010 = vmul.f32 %v1843, %v3009
        %vm3011 = vcmp.eq.f32.partialorder %v1843, inf
        %v3012 = vsel %vm3011, %v1843, %v3010
        %vm3013 = vcmp.eq.f32.partialorder %v1843, 0.0
        %v3014 = vand.u32 %v1843, 2147483648
        %v3015 = vsel %vm3013, %v3014, %v3012
        %v3016 = vrsqrt.pop %v1844
        %v3017 = vmul.f32 %v1844, %v3016
        %vm3018 = vcmp.eq.f32.partialorder %v1844, inf
        %v3019 = vsel %vm3018, %v1844, %v3017
        %vm3020 = vcmp.eq.f32.partialorder %v1844, 0.0
        %v3021 = vand.u32 %v1844, 2147483648
        %v3022 = vsel %vm3020, %v3021, %v3019
        %v3023 = vrsqrt.pop %v1845
        %v3024 = vmul.f32 %v1845, %v3023
        %vm3025 = vcmp.eq.f32.partialorder %v1845, inf
        %v3026 = vsel %vm3025, %v1845, %v3024
        %vm3027 = vcmp.eq.f32.partialorder %v1845, 0.0
        %v3028 = vand.u32 %v1845, 2147483648
        %v3029 = vsel %vm3027, %v3028, %v3026
        %v3030 = vrsqrt.pop %v1846
        %v3031 = vmul.f32 %v1846, %v3030
        %vm3032 = vcmp.eq.f32.partialorder %v1846, inf
        %v3033 = vsel %vm3032, %v1846, %v3031
        %vm3034 = vcmp.eq.f32.partialorder %v1846, 0.0
        %v3035 = vand.u32 %v1846, 2147483648
        %v3036 = vsel %vm3034, %v3035, %v3033
        %v3037 = vrsqrt.pop %v1847
        %v3038 = vmul.f32 %v1847, %v3037
        %vm3039 = vcmp.eq.f32.partialorder %v1847, inf
        %v3040 = vsel %vm3039, %v1847, %v3038
        %vm3041 = vcmp.eq.f32.partialorder %v1847, 0.0
        %v3042 = vand.u32 %v1847, 2147483648
        %v3043 = vsel %vm3041, %v3042, %v3040
        %v3044 = vrsqrt.pop %v1848
        %v3045 = vmul.f32 %v1848, %v3044
        %vm3046 = vcmp.eq.f32.partialorder %v1848, inf
        %v3047 = vsel %vm3046, %v1848, %v3045
        %vm3048 = vcmp.eq.f32.partialorder %v1848, 0.0
        %v3049 = vand.u32 %v1848, 2147483648
        %v3050 = vsel %vm3048, %v3049, %v3047
        %v3051 = vrsqrt.pop %v1849
        %v3052 = vmul.f32 %v1849, %v3051
        %vm3053 = vcmp.eq.f32.partialorder %v1849, inf
        %v3054 = vsel %vm3053, %v1849, %v3052
        %vm3055 = vcmp.eq.f32.partialorder %v1849, 0.0
        %v3056 = vand.u32 %v1849, 2147483648
        %v3057 = vsel %vm3055, %v3056, %v3054
        %v3058 = vrsqrt.pop %v1850
        %v3059 = vmul.f32 %v1850, %v3058
        %vm3060 = vcmp.eq.f32.partialorder %v1850, inf
        %v3061 = vsel %vm3060, %v1850, %v3059
        %vm3062 = vcmp.eq.f32.partialorder %v1850, 0.0
        %v3063 = vand.u32 %v1850, 2147483648
        %v3064 = vsel %vm3062, %v3063, %v3061
        %v3065 = vrsqrt.pop %v1851
        %v3066 = vmul.f32 %v1851, %v3065
        %vm3067 = vcmp.eq.f32.partialorder %v1851, inf
        %v3068 = vsel %vm3067, %v1851, %v3066
        %vm3069 = vcmp.eq.f32.partialorder %v1851, 0.0
        %v3070 = vand.u32 %v1851, 2147483648
        %v3071 = vsel %vm3069, %v3070, %v3068
        %v3072 = vrsqrt.pop %v1852
        %v3073 = vmul.f32 %v1852, %v3072
        %vm3074 = vcmp.eq.f32.partialorder %v1852, inf
        %v3075 = vsel %vm3074, %v1852, %v3073
        %vm3076 = vcmp.eq.f32.partialorder %v1852, 0.0
        %v3077 = vand.u32 %v1852, 2147483648
        %v3078 = vsel %vm3076, %v3077, %v3075
        %v3079 = vrsqrt.pop %v1853
        %v3080 = vmul.f32 %v1853, %v3079
        %vm3081 = vcmp.eq.f32.partialorder %v1853, inf
        %v3082 = vsel %vm3081, %v1853, %v3080
        %vm3083 = vcmp.eq.f32.partialorder %v1853, 0.0
        %v3084 = vand.u32 %v1853, 2147483648
        %v3085 = vsel %vm3083, %v3084, %v3082
        %v3086 = vrsqrt.pop %v1854
        %v3087 = vmul.f32 %v1854, %v3086
        %vm3088 = vcmp.eq.f32.partialorder %v1854, inf
        %v3089 = vsel %vm3088, %v1854, %v3087
        %vm3090 = vcmp.eq.f32.partialorder %v1854, 0.0
        %v3091 = vand.u32 %v1854, 2147483648
        %v3092 = vsel %vm3090, %v3091, %v3089
        %v3093 = vrsqrt.pop %v1855
        %v3094 = vmul.f32 %v1855, %v3093
        %vm3095 = vcmp.eq.f32.partialorder %v1855, inf
        %v3096 = vsel %vm3095, %v1855, %v3094
        %vm3097 = vcmp.eq.f32.partialorder %v1855, 0.0
        %v3098 = vand.u32 %v1855, 2147483648
        %v3099 = vsel %vm3097, %v3098, %v3096
        %v3100 = vrsqrt.pop %v1856
        %v3101 = vmul.f32 %v1856, %v3100
        %vm3102 = vcmp.eq.f32.partialorder %v1856, inf
        %v3103 = vsel %vm3102, %v1856, %v3101
        %vm3104 = vcmp.eq.f32.partialorder %v1856, 0.0
        %v3105 = vand.u32 %v1856, 2147483648
        %v3106 = vsel %vm3104, %v3105, %v3103
        %v3107 = vrsqrt.pop %v1857
        %v3108 = vmul.f32 %v1857, %v3107
        %vm3109 = vcmp.eq.f32.partialorder %v1857, inf
        %v3110 = vsel %vm3109, %v1857, %v3108
        %vm3111 = vcmp.eq.f32.partialorder %v1857, 0.0
        %v3112 = vand.u32 %v1857, 2147483648
        %v3113 = vsel %vm3111, %v3112, %v3110
        %v3114 = vrsqrt.pop %v1858
        %v3115 = vmul.f32 %v1858, %v3114
        %vm3116 = vcmp.eq.f32.partialorder %v1858, inf
        %v3117 = vsel %vm3116, %v1858, %v3115
        %vm3118 = vcmp.eq.f32.partialorder %v1858, 0.0
        %v3119 = vand.u32 %v1858, 2147483648
        %v3120 = vsel %vm3118, %v3119, %v3117
        %v3121 = vrsqrt.pop %v1859
        %v3122 = vmul.f32 %v1859, %v3121
        %vm3123 = vcmp.eq.f32.partialorder %v1859, inf
        %v3124 = vsel %vm3123, %v1859, %v3122
        %vm3125 = vcmp.eq.f32.partialorder %v1859, 0.0
        %v3126 = vand.u32 %v1859, 2147483648
        %v3127 = vsel %vm3125, %v3126, %v3124
        %v3128 = vrsqrt.pop %v1860
        %v3129 = vmul.f32 %v1860, %v3128
        %vm3130 = vcmp.eq.f32.partialorder %v1860, inf
        %v3131 = vsel %vm3130, %v1860, %v3129
        %vm3132 = vcmp.eq.f32.partialorder %v1860, 0.0
        %v3133 = vand.u32 %v1860, 2147483648
        %v3134 = vsel %vm3132, %v3133, %v3131
        %v3135 = vrsqrt.pop %v1861
        %v3136 = vmul.f32 %v1861, %v3135
        %vm3137 = vcmp.eq.f32.partialorder %v1861, inf
        %v3138 = vsel %vm3137, %v1861, %v3136
        %vm3139 = vcmp.eq.f32.partialorder %v1861, 0.0
        %v3140 = vand.u32 %v1861, 2147483648
        %v3141 = vsel %vm3139, %v3140, %v3138
        %v3142 = vrsqrt.pop %v1862
        %v3143 = vmul.f32 %v1862, %v3142
        %vm3144 = vcmp.eq.f32.partialorder %v1862, inf
        %v3145 = vsel %vm3144, %v1862, %v3143
        %vm3146 = vcmp.eq.f32.partialorder %v1862, 0.0
        %v3147 = vand.u32 %v1862, 2147483648
        %v3148 = vsel %vm3146, %v3147, %v3145
        %v3149 = vrsqrt.pop %v1863
        %v3150 = vmul.f32 %v1863, %v3149
        %vm3151 = vcmp.eq.f32.partialorder %v1863, inf
        %v3152 = vsel %vm3151, %v1863, %v3150
        %vm3153 = vcmp.eq.f32.partialorder %v1863, 0.0
        %v3154 = vand.u32 %v1863, 2147483648
        %v3155 = vsel %vm3153, %v3154, %v3152
        %v3156 = vrsqrt.pop %v1864
        %v3157 = vmul.f32 %v1864, %v3156
        %vm3158 = vcmp.eq.f32.partialorder %v1864, inf
        %v3159 = vsel %vm3158, %v1864, %v3157
        %vm3160 = vcmp.eq.f32.partialorder %v1864, 0.0
        %v3161 = vand.u32 %v1864, 2147483648
        %v3162 = vsel %vm3160, %v3161, %v3159
        %v3163 = vrsqrt.pop %v1865
        %v3164 = vmul.f32 %v1865, %v3163
        %vm3165 = vcmp.eq.f32.partialorder %v1865, inf
        %v3166 = vsel %vm3165, %v1865, %v3164
        %vm3167 = vcmp.eq.f32.partialorder %v1865, 0.0
        %v3168 = vand.u32 %v1865, 2147483648
        %v3169 = vsel %vm3167, %v3168, %v3166
        %v3170 = vrsqrt.pop %v1866
        %v3171 = vmul.f32 %v1866, %v3170
        %vm3172 = vcmp.eq.f32.partialorder %v1866, inf
        %v3173 = vsel %vm3172, %v1866, %v3171
        %vm3174 = vcmp.eq.f32.partialorder %v1866, 0.0
        %v3175 = vand.u32 %v1866, 2147483648
        %v3176 = vsel %vm3174, %v3175, %v3173
        %v3177 = vrsqrt.pop %v1867
        %v3178 = vmul.f32 %v1867, %v3177
        %vm3179 = vcmp.eq.f32.partialorder %v1867, inf
        %v3180 = vsel %vm3179, %v1867, %v3178
        %vm3181 = vcmp.eq.f32.partialorder %v1867, 0.0
        %v3182 = vand.u32 %v1867, 2147483648
        %v3183 = vsel %vm3181, %v3182, %v3180
        %v3184 = vrsqrt.pop %v1868
        %v3185 = vmul.f32 %v1868, %v3184
        %vm3186 = vcmp.eq.f32.partialorder %v1868, inf
        %v3187 = vsel %vm3186, %v1868, %v3185
        %vm3188 = vcmp.eq.f32.partialorder %v1868, 0.0
        %v3189 = vand.u32 %v1868, 2147483648
        %v3190 = vsel %vm3188, %v3189, %v3187
        %v3191 = vrsqrt.pop %v1869
        %v3192 = vmul.f32 %v1869, %v3191
        %vm3193 = vcmp.eq.f32.partialorder %v1869, inf
        %v3194 = vsel %vm3193, %v1869, %v3192
        %vm3195 = vcmp.eq.f32.partialorder %v1869, 0.0
        %v3196 = vand.u32 %v1869, 2147483648
        %v3197 = vsel %vm3195, %v3196, %v3194
        %v3198 = vrsqrt.pop %v1870
        %v3199 = vmul.f32 %v1870, %v3198
        %vm3200 = vcmp.eq.f32.partialorder %v1870, inf
        %v3201 = vsel %vm3200, %v1870, %v3199
        %vm3202 = vcmp.eq.f32.partialorder %v1870, 0.0
        %v3203 = vand.u32 %v1870, 2147483648
        %v3204 = vsel %vm3202, %v3203, %v3201
        %v3205 = vrsqrt.pop %v1871
        %v3206 = vmul.f32 %v1871, %v3205
        %vm3207 = vcmp.eq.f32.partialorder %v1871, inf
        %v3208 = vsel %vm3207, %v1871, %v3206
        %vm3209 = vcmp.eq.f32.partialorder %v1871, 0.0
        %v3210 = vand.u32 %v1871, 2147483648
        %v3211 = vsel %vm3209, %v3210, %v3208
        %v3212 = vrsqrt.pop %v1872
        %v3213 = vmul.f32 %v1872, %v3212
        %vm3214 = vcmp.eq.f32.partialorder %v1872, inf
        %v3215 = vsel %vm3214, %v1872, %v3213
        %vm3216 = vcmp.eq.f32.partialorder %v1872, 0.0
        %v3217 = vand.u32 %v1872, 2147483648
        %v3218 = vsel %vm3216, %v3217, %v3215
        %v3219 = vrsqrt.pop %v1873
        %v3220 = vmul.f32 %v1873, %v3219
        %vm3221 = vcmp.eq.f32.partialorder %v1873, inf
        %v3222 = vsel %vm3221, %v1873, %v3220
        %vm3223 = vcmp.eq.f32.partialorder %v1873, 0.0
        %v3224 = vand.u32 %v1873, 2147483648
        %v3225 = vsel %vm3223, %v3224, %v3222
        %v3226 = vrsqrt.pop %v1874
        %v3227 = vmul.f32 %v1874, %v3226
        %vm3228 = vcmp.eq.f32.partialorder %v1874, inf
        %v3229 = vsel %vm3228, %v1874, %v3227
        %vm3230 = vcmp.eq.f32.partialorder %v1874, 0.0
        %v3231 = vand.u32 %v1874, 2147483648
        %v3232 = vsel %vm3230, %v3231, %v3229
        %v3233 = vrsqrt.pop %v1875
        %v3234 = vmul.f32 %v1875, %v3233
        %vm3235 = vcmp.eq.f32.partialorder %v1875, inf
        %v3236 = vsel %vm3235, %v1875, %v3234
        %vm3237 = vcmp.eq.f32.partialorder %v1875, 0.0
        %v3238 = vand.u32 %v1875, 2147483648
        %v3239 = vsel %vm3237, %v3238, %v3236
        %v3240 = vrsqrt.pop %v1876
        %v3241 = vmul.f32 %v1876, %v3240
        %vm3242 = vcmp.eq.f32.partialorder %v1876, inf
        %v3243 = vsel %vm3242, %v1876, %v3241
        %vm3244 = vcmp.eq.f32.partialorder %v1876, 0.0
        %v3245 = vand.u32 %v1876, 2147483648
        %v3246 = vsel %vm3244, %v3245, %v3243
        %v3247 = vrsqrt.pop %v1877
        %v3248 = vmul.f32 %v1877, %v3247
        %vm3249 = vcmp.eq.f32.partialorder %v1877, inf
        %v3250 = vsel %vm3249, %v1877, %v3248
        %vm3251 = vcmp.eq.f32.partialorder %v1877, 0.0
        %v3252 = vand.u32 %v1877, 2147483648
        %v3253 = vsel %vm3251, %v3252, %v3250
        %v3254 = vrsqrt.pop %v1878
        %v3255 = vmul.f32 %v1878, %v3254
        %vm3256 = vcmp.eq.f32.partialorder %v1878, inf
        %v3257 = vsel %vm3256, %v1878, %v3255
        %vm3258 = vcmp.eq.f32.partialorder %v1878, 0.0
        %v3259 = vand.u32 %v1878, 2147483648
        %v3260 = vsel %vm3258, %v3259, %v3257
        %v3261 = vrsqrt.pop %v1879
        %v3262 = vmul.f32 %v1879, %v3261
        %vm3263 = vcmp.eq.f32.partialorder %v1879, inf
        %v3264 = vsel %vm3263, %v1879, %v3262
        %vm3265 = vcmp.eq.f32.partialorder %v1879, 0.0
        %v3266 = vand.u32 %v1879, 2147483648
        %v3267 = vsel %vm3265, %v3266, %v3264
        %v3268 = vrsqrt.pop %v1880
        %v3269 = vmul.f32 %v1880, %v3268
        %vm3270 = vcmp.eq.f32.partialorder %v1880, inf
        %v3271 = vsel %vm3270, %v1880, %v3269
        %vm3272 = vcmp.eq.f32.partialorder %v1880, 0.0
        %v3273 = vand.u32 %v1880, 2147483648
        %v3274 = vsel %vm3272, %v3273, %v3271
        %v3275 = vrsqrt.pop %v1881
        %v3276 = vmul.f32 %v1881, %v3275
        %vm3277 = vcmp.eq.f32.partialorder %v1881, inf
        %v3278 = vsel %vm3277, %v1881, %v3276
        %vm3279 = vcmp.eq.f32.partialorder %v1881, 0.0
        %v3280 = vand.u32 %v1881, 2147483648
        %v3281 = vsel %vm3279, %v3280, %v3278
        %v3282 = vrsqrt.pop %v1882
        %v3283 = vmul.f32 %v1882, %v3282
        %vm3284 = vcmp.eq.f32.partialorder %v1882, inf
        %v3285 = vsel %vm3284, %v1882, %v3283
        %vm3286 = vcmp.eq.f32.partialorder %v1882, 0.0
        %v3287 = vand.u32 %v1882, 2147483648
        %v3288 = vsel %vm3286, %v3287, %v3285
        %v3289 = vrsqrt.pop %v1883
        %v3290 = vmul.f32 %v1883, %v3289
        %vm3291 = vcmp.eq.f32.partialorder %v1883, inf
        %v3292 = vsel %vm3291, %v1883, %v3290
        %vm3293 = vcmp.eq.f32.partialorder %v1883, 0.0
        %v3294 = vand.u32 %v1883, 2147483648
        %v3295 = vsel %vm3293, %v3294, %v3292
        %v3296 = vrsqrt.pop %v1884
        %v3297 = vmul.f32 %v1884, %v3296
        %vm3298 = vcmp.eq.f32.partialorder %v1884, inf
        %v3299 = vsel %vm3298, %v1884, %v3297
        %vm3300 = vcmp.eq.f32.partialorder %v1884, 0.0
        %v3301 = vand.u32 %v1884, 2147483648
        %v3302 = vsel %vm3300, %v3301, %v3299
        %v3303 = vrsqrt.pop %v1885
        %v3304 = vmul.f32 %v1885, %v3303
        %vm3305 = vcmp.eq.f32.partialorder %v1885, inf
        %v3306 = vsel %vm3305, %v1885, %v3304
        %vm3307 = vcmp.eq.f32.partialorder %v1885, 0.0
        %v3308 = vand.u32 %v1885, 2147483648
        %v3309 = vsel %vm3307, %v3308, %v3306
        %v3310 = vrsqrt.pop %v1886
        %v3311 = vmul.f32 %v1886, %v3310
        %vm3312 = vcmp.eq.f32.partialorder %v1886, inf
        %v3313 = vsel %vm3312, %v1886, %v3311
        %vm3314 = vcmp.eq.f32.partialorder %v1886, 0.0
        %v3315 = vand.u32 %v1886, 2147483648
        %v3316 = vsel %vm3314, %v3315, %v3313
        %v3317 = vrsqrt.pop %v1887
        %v3318 = vmul.f32 %v1887, %v3317
        %vm3319 = vcmp.eq.f32.partialorder %v1887, inf
        %v3320 = vsel %vm3319, %v1887, %v3318
        %vm3321 = vcmp.eq.f32.partialorder %v1887, 0.0
        %v3322 = vand.u32 %v1887, 2147483648
        %v3323 = vsel %vm3321, %v3322, %v3320
        %v3324 = vrsqrt.pop %v1888
        %v3325 = vmul.f32 %v1888, %v3324
        %vm3326 = vcmp.eq.f32.partialorder %v1888, inf
        %v3327 = vsel %vm3326, %v1888, %v3325
        %vm3328 = vcmp.eq.f32.partialorder %v1888, 0.0
        %v3329 = vand.u32 %v1888, 2147483648
        %v3330 = vsel %vm3328, %v3329, %v3327
        %v3331 = vrsqrt.pop %v1889
        %v3332 = vmul.f32 %v1889, %v3331
        %vm3333 = vcmp.eq.f32.partialorder %v1889, inf
        %v3334 = vsel %vm3333, %v1889, %v3332
        %vm3335 = vcmp.eq.f32.partialorder %v1889, 0.0
        %v3336 = vand.u32 %v1889, 2147483648
        %v3337 = vsel %vm3335, %v3336, %v3334
        %v3338 = vrsqrt.pop %v1890
        %v3339 = vmul.f32 %v1890, %v3338
        %vm3340 = vcmp.eq.f32.partialorder %v1890, inf
        %v3341 = vsel %vm3340, %v1890, %v3339
        %vm3342 = vcmp.eq.f32.partialorder %v1890, 0.0
        %v3343 = vand.u32 %v1890, 2147483648
        %v3344 = vsel %vm3342, %v3343, %v3341
        %v3345 = vrsqrt.pop %v1891
        %v3346 = vmul.f32 %v1891, %v3345
        %vm3347 = vcmp.eq.f32.partialorder %v1891, inf
        %v3348 = vsel %vm3347, %v1891, %v3346
        %vm3349 = vcmp.eq.f32.partialorder %v1891, 0.0
        %v3350 = vand.u32 %v1891, 2147483648
        %v3351 = vsel %vm3349, %v3350, %v3348
        %v3352 = vrsqrt.pop %v1892
        %v3353 = vmul.f32 %v1892, %v3352
        %vm3354 = vcmp.eq.f32.partialorder %v1892, inf
        %v3355 = vsel %vm3354, %v1892, %v3353
        %vm3356 = vcmp.eq.f32.partialorder %v1892, 0.0
        %v3357 = vand.u32 %v1892, 2147483648
        %v3358 = vsel %vm3356, %v3357, %v3355
        %v3359 = vrsqrt.pop %v1893
        %v3360 = vmul.f32 %v1893, %v3359
        %vm3361 = vcmp.eq.f32.partialorder %v1893, inf
        %v3362 = vsel %vm3361, %v1893, %v3360
        %vm3363 = vcmp.eq.f32.partialorder %v1893, 0.0
        %v3364 = vand.u32 %v1893, 2147483648
        %v3365 = vsel %vm3363, %v3364, %v3362
        %v3366 = vrsqrt.pop %v1894
        %v3367 = vmul.f32 %v1894, %v3366
        %vm3368 = vcmp.eq.f32.partialorder %v1894, inf
        %v3369 = vsel %vm3368, %v1894, %v3367
        %vm3370 = vcmp.eq.f32.partialorder %v1894, 0.0
        %v3371 = vand.u32 %v1894, 2147483648
        %v3372 = vsel %vm3370, %v3371, %v3369
        %v3373 = vrsqrt.pop %v1895
        %v3374 = vmul.f32 %v1895, %v3373
        %vm3375 = vcmp.eq.f32.partialorder %v1895, inf
        %v3376 = vsel %vm3375, %v1895, %v3374
        %vm3377 = vcmp.eq.f32.partialorder %v1895, 0.0
        %v3378 = vand.u32 %v1895, 2147483648
        %v3379 = vsel %vm3377, %v3378, %v3376
        %v3380 = vrsqrt.pop %v1896
        %v3381 = vmul.f32 %v1896, %v3380
        %vm3382 = vcmp.eq.f32.partialorder %v1896, inf
        %v3383 = vsel %vm3382, %v1896, %v3381
        %vm3384 = vcmp.eq.f32.partialorder %v1896, 0.0
        %v3385 = vand.u32 %v1896, 2147483648
        %v3386 = vsel %vm3384, %v3385, %v3383
        %v3387 = vrsqrt.pop %v1897
        %v3388 = vmul.f32 %v1897, %v3387
        %vm3389 = vcmp.eq.f32.partialorder %v1897, inf
        %v3390 = vsel %vm3389, %v1897, %v3388
        %vm3391 = vcmp.eq.f32.partialorder %v1897, 0.0
        %v3392 = vand.u32 %v1897, 2147483648
        %v3393 = vsel %vm3391, %v3392, %v3390
        %v3394 = vrsqrt.pop %v1898
        %v3395 = vmul.f32 %v1898, %v3394
        %vm3396 = vcmp.eq.f32.partialorder %v1898, inf
        %v3397 = vsel %vm3396, %v1898, %v3395
        %vm3398 = vcmp.eq.f32.partialorder %v1898, 0.0
        %v3399 = vand.u32 %v1898, 2147483648
        %v3400 = vsel %vm3398, %v3399, %v3397
        %v3401 = vrsqrt.pop %v1899
        %v3402 = vmul.f32 %v1899, %v3401
        %vm3403 = vcmp.eq.f32.partialorder %v1899, inf
        %v3404 = vsel %vm3403, %v1899, %v3402
        %vm3405 = vcmp.eq.f32.partialorder %v1899, 0.0
        %v3406 = vand.u32 %v1899, 2147483648
        %v3407 = vsel %vm3405, %v3406, %v3404
        %v3408 = vrsqrt.pop %v1900
        %v3409 = vmul.f32 %v1900, %v3408
        %vm3410 = vcmp.eq.f32.partialorder %v1900, inf
        %v3411 = vsel %vm3410, %v1900, %v3409
        %vm3412 = vcmp.eq.f32.partialorder %v1900, 0.0
        %v3413 = vand.u32 %v1900, 2147483648
        %v3414 = vsel %vm3412, %v3413, %v3411
        %v3415 = vrsqrt.pop %v1901
        %v3416 = vmul.f32 %v1901, %v3415
        %vm3417 = vcmp.eq.f32.partialorder %v1901, inf
        %v3418 = vsel %vm3417, %v1901, %v3416
        %vm3419 = vcmp.eq.f32.partialorder %v1901, 0.0
        %v3420 = vand.u32 %v1901, 2147483648
        %v3421 = vsel %vm3419, %v3420, %v3418
        %v3422 = vrsqrt.pop %v1902
        %v3423 = vmul.f32 %v1902, %v3422
        %vm3424 = vcmp.eq.f32.partialorder %v1902, inf
        %v3425 = vsel %vm3424, %v1902, %v3423
        %vm3426 = vcmp.eq.f32.partialorder %v1902, 0.0
        %v3427 = vand.u32 %v1902, 2147483648
        %v3428 = vsel %vm3426, %v3427, %v3425
        %v3429 = vrsqrt.pop %v1903
        %v3430 = vmul.f32 %v1903, %v3429
        %vm3431 = vcmp.eq.f32.partialorder %v1903, inf
        %v3432 = vsel %vm3431, %v1903, %v3430
        %vm3433 = vcmp.eq.f32.partialorder %v1903, 0.0
        %v3434 = vand.u32 %v1903, 2147483648
        %v3435 = vsel %vm3433, %v3434, %v3432
        %v3436 = vrsqrt.pop %v1904
        %v3437 = vmul.f32 %v1904, %v3436
        %vm3438 = vcmp.eq.f32.partialorder %v1904, inf
        %v3439 = vsel %vm3438, %v1904, %v3437
        %vm3440 = vcmp.eq.f32.partialorder %v1904, 0.0
        %v3441 = vand.u32 %v1904, 2147483648
        %v3442 = vsel %vm3440, %v3441, %v3439
        %v3443 = vrsqrt.pop %v1905
        %v3444 = vmul.f32 %v1905, %v3443
        %vm3445 = vcmp.eq.f32.partialorder %v1905, inf
        %v3446 = vsel %vm3445, %v1905, %v3444
        %vm3447 = vcmp.eq.f32.partialorder %v1905, 0.0
        %v3448 = vand.u32 %v1905, 2147483648
        %v3449 = vsel %vm3447, %v3448, %v3446
        %v3450 = vrsqrt.pop %v1906
        %v3451 = vmul.f32 %v1906, %v3450
        %vm3452 = vcmp.eq.f32.partialorder %v1906, inf
        %v3453 = vsel %vm3452, %v1906, %v3451
        %vm3454 = vcmp.eq.f32.partialorder %v1906, 0.0
        %v3455 = vand.u32 %v1906, 2147483648
        %v3456 = vsel %vm3454, %v3455, %v3453
        %v3457 = vrsqrt.pop %v1907
        %v3458 = vmul.f32 %v1907, %v3457
        %vm3459 = vcmp.eq.f32.partialorder %v1907, inf
        %v3460 = vsel %vm3459, %v1907, %v3458
        %vm3461 = vcmp.eq.f32.partialorder %v1907, 0.0
        %v3462 = vand.u32 %v1907, 2147483648
        %v3463 = vsel %vm3461, %v3462, %v3460
        %v3464 = vrsqrt.pop %v1908
        %v3465 = vmul.f32 %v1908, %v3464
        %vm3466 = vcmp.eq.f32.partialorder %v1908, inf
        %v3467 = vsel %vm3466, %v1908, %v3465
        %vm3468 = vcmp.eq.f32.partialorder %v1908, 0.0
        %v3469 = vand.u32 %v1908, 2147483648
        %v3470 = vsel %vm3468, %v3469, %v3467
        %v3471 = vrsqrt.pop %v1909
        %v3472 = vmul.f32 %v1909, %v3471
        %vm3473 = vcmp.eq.f32.partialorder %v1909, inf
        %v3474 = vsel %vm3473, %v1909, %v3472
        %vm3475 = vcmp.eq.f32.partialorder %v1909, 0.0
        %v3476 = vand.u32 %v1909, 2147483648
        %v3477 = vsel %vm3475, %v3476, %v3474
        %v3478 = vrsqrt.pop %v1910
        %v3479 = vmul.f32 %v1910, %v3478
        %vm3480 = vcmp.eq.f32.partialorder %v1910, inf
        %v3481 = vsel %vm3480, %v1910, %v3479
        %vm3482 = vcmp.eq.f32.partialorder %v1910, 0.0
        %v3483 = vand.u32 %v1910, 2147483648
        %v3484 = vsel %vm3482, %v3483, %v3481
        %v3485 = vrsqrt.pop %v1911
        %v3486 = vmul.f32 %v1911, %v3485
        %vm3487 = vcmp.eq.f32.partialorder %v1911, inf
        %v3488 = vsel %vm3487, %v1911, %v3486
        %vm3489 = vcmp.eq.f32.partialorder %v1911, 0.0
        %v3490 = vand.u32 %v1911, 2147483648
        %v3491 = vsel %vm3489, %v3490, %v3488
        %v3492 = vrsqrt.pop %v1912
        %v3493 = vmul.f32 %v1912, %v3492
        %vm3494 = vcmp.eq.f32.partialorder %v1912, inf
        %v3495 = vsel %vm3494, %v1912, %v3493
        %vm3496 = vcmp.eq.f32.partialorder %v1912, 0.0
        %v3497 = vand.u32 %v1912, 2147483648
        %v3498 = vsel %vm3496, %v3497, %v3495
        %v3499 = vrsqrt.pop %v1913
        %v3500 = vmul.f32 %v1913, %v3499
        %vm3501 = vcmp.eq.f32.partialorder %v1913, inf
        %v3502 = vsel %vm3501, %v1913, %v3500
        %vm3503 = vcmp.eq.f32.partialorder %v1913, 0.0
        %v3504 = vand.u32 %v1913, 2147483648
        %v3505 = vsel %vm3503, %v3504, %v3502
        %v3506 = vrsqrt.pop %v1914
        %v3507 = vmul.f32 %v1914, %v3506
        %vm3508 = vcmp.eq.f32.partialorder %v1914, inf
        %v3509 = vsel %vm3508, %v1914, %v3507
        %vm3510 = vcmp.eq.f32.partialorder %v1914, 0.0
        %v3511 = vand.u32 %v1914, 2147483648
        %v3512 = vsel %vm3510, %v3511, %v3509
        %v3513 = vrsqrt.pop %v1915
        %v3514 = vmul.f32 %v1915, %v3513
        %vm3515 = vcmp.eq.f32.partialorder %v1915, inf
        %v3516 = vsel %vm3515, %v1915, %v3514
        %vm3517 = vcmp.eq.f32.partialorder %v1915, 0.0
        %v3518 = vand.u32 %v1915, 2147483648
        %v3519 = vsel %vm3517, %v3518, %v3516
        %v3520 = vrsqrt.pop %v1916
        %v3521 = vmul.f32 %v1916, %v3520
        %vm3522 = vcmp.eq.f32.partialorder %v1916, inf
        %v3523 = vsel %vm3522, %v1916, %v3521
        %vm3524 = vcmp.eq.f32.partialorder %v1916, 0.0
        %v3525 = vand.u32 %v1916, 2147483648
        %v3526 = vsel %vm3524, %v3525, %v3523
        %v3527 = vrsqrt.pop %v1917
        %v3528 = vmul.f32 %v1917, %v3527
        %vm3529 = vcmp.eq.f32.partialorder %v1917, inf
        %v3530 = vsel %vm3529, %v1917, %v3528
        %vm3531 = vcmp.eq.f32.partialorder %v1917, 0.0
        %v3532 = vand.u32 %v1917, 2147483648
        %v3533 = vsel %vm3531, %v3532, %v3530
        %v3534 = vrsqrt.pop %v1918
        %v3535 = vmul.f32 %v1918, %v3534
        %vm3536 = vcmp.eq.f32.partialorder %v1918, inf
        %v3537 = vsel %vm3536, %v1918, %v3535
        %vm3538 = vcmp.eq.f32.partialorder %v1918, 0.0
        %v3539 = vand.u32 %v1918, 2147483648
        %v3540 = vsel %vm3538, %v3539, %v3537
        %v3541 = vrsqrt.pop %v1919
        %v3542 = vmul.f32 %v1919, %v3541
        %vm3543 = vcmp.eq.f32.partialorder %v1919, inf
        %v3544 = vsel %vm3543, %v1919, %v3542
        %vm3545 = vcmp.eq.f32.partialorder %v1919, 0.0
        %v3546 = vand.u32 %v1919, 2147483648
        %v3547 = vsel %vm3545, %v3546, %v3544
        %v3548 = vrsqrt.pop %v1920
        %v3549 = vmul.f32 %v1920, %v3548
        %vm3550 = vcmp.eq.f32.partialorder %v1920, inf
        %v3551 = vsel %vm3550, %v1920, %v3549
        %vm3552 = vcmp.eq.f32.partialorder %v1920, 0.0
        %v3553 = vand.u32 %v1920, 2147483648
        %v3554 = vsel %vm3552, %v3553, %v3551
        %v3555 = vrsqrt.pop %v1921
        %v3556 = vmul.f32 %v1921, %v3555
        %vm3557 = vcmp.eq.f32.partialorder %v1921, inf
        %v3558 = vsel %vm3557, %v1921, %v3556
        %vm3559 = vcmp.eq.f32.partialorder %v1921, 0.0
        %v3560 = vand.u32 %v1921, 2147483648
        %v3561 = vsel %vm3559, %v3560, %v3558
        %v3562 = vrsqrt.pop %v1922
        %v3563 = vmul.f32 %v1922, %v3562
        %vm3564 = vcmp.eq.f32.partialorder %v1922, inf
        %v3565 = vsel %vm3564, %v1922, %v3563
        %vm3566 = vcmp.eq.f32.partialorder %v1922, 0.0
        %v3567 = vand.u32 %v1922, 2147483648
        %v3568 = vsel %vm3566, %v3567, %v3565
        %v3569 = vrsqrt.pop %v1923
        %v3570 = vmul.f32 %v1923, %v3569
        %vm3571 = vcmp.eq.f32.partialorder %v1923, inf
        %v3572 = vsel %vm3571, %v1923, %v3570
        %vm3573 = vcmp.eq.f32.partialorder %v1923, 0.0
        %v3574 = vand.u32 %v1923, 2147483648
        %v3575 = vsel %vm3573, %v3574, %v3572
        %v3576 = vrsqrt.pop %v1924
        %v3577 = vmul.f32 %v1924, %v3576
        %vm3578 = vcmp.eq.f32.partialorder %v1924, inf
        %v3579 = vsel %vm3578, %v1924, %v3577
        %vm3580 = vcmp.eq.f32.partialorder %v1924, 0.0
        %v3581 = vand.u32 %v1924, 2147483648
        %v3582 = vsel %vm3580, %v3581, %v3579
        %v3583 = vrsqrt.pop %v1925
        %v3584 = vmul.f32 %v1925, %v3583
        %vm3585 = vcmp.eq.f32.partialorder %v1925, inf
        %v3586 = vsel %vm3585, %v1925, %v3584
        %vm3587 = vcmp.eq.f32.partialorder %v1925, 0.0
        %v3588 = vand.u32 %v1925, 2147483648
        %v3589 = vsel %vm3587, %v3588, %v3586
        %v3590 = vrsqrt.pop %v1926
        %v3591 = vmul.f32 %v1926, %v3590
        %vm3592 = vcmp.eq.f32.partialorder %v1926, inf
        %v3593 = vsel %vm3592, %v1926, %v3591
        %vm3594 = vcmp.eq.f32.partialorder %v1926, 0.0
        %v3595 = vand.u32 %v1926, 2147483648
        %v3596 = vsel %vm3594, %v3595, %v3593
        %v3597 = vrsqrt.pop %v1927
        %v3598 = vmul.f32 %v1927, %v3597
        %vm3599 = vcmp.eq.f32.partialorder %v1927, inf
        %v3600 = vsel %vm3599, %v1927, %v3598
        %vm3601 = vcmp.eq.f32.partialorder %v1927, 0.0
        %v3602 = vand.u32 %v1927, 2147483648
        %v3603 = vsel %vm3601, %v3602, %v3600
        %v3604 = vrsqrt.pop %v1928
        %v3605 = vmul.f32 %v1928, %v3604
        %vm3606 = vcmp.eq.f32.partialorder %v1928, inf
        %v3607 = vsel %vm3606, %v1928, %v3605
        %vm3608 = vcmp.eq.f32.partialorder %v1928, 0.0
        %v3609 = vand.u32 %v1928, 2147483648
        %v3610 = vsel %vm3608, %v3609, %v3607
        %v3611 = vrsqrt.pop %v1929
        %v3612 = vmul.f32 %v1929, %v3611
        %vm3613 = vcmp.eq.f32.partialorder %v1929, inf
        %v3614 = vsel %vm3613, %v1929, %v3612
        %vm3615 = vcmp.eq.f32.partialorder %v1929, 0.0
        %v3616 = vand.u32 %v1929, 2147483648
        %v3617 = vsel %vm3615, %v3616, %v3614
        %v3618 = vrsqrt.pop %v1930
        %v3619 = vmul.f32 %v1930, %v3618
        %vm3620 = vcmp.eq.f32.partialorder %v1930, inf
        %v3621 = vsel %vm3620, %v1930, %v3619
        %vm3622 = vcmp.eq.f32.partialorder %v1930, 0.0
        %v3623 = vand.u32 %v1930, 2147483648
        %v3624 = vsel %vm3622, %v3623, %v3621
        %v3625 = vrsqrt.pop %v1931
        %v3626 = vmul.f32 %v1931, %v3625
        %vm3627 = vcmp.eq.f32.partialorder %v1931, inf
        %v3628 = vsel %vm3627, %v1931, %v3626
        %vm3629 = vcmp.eq.f32.partialorder %v1931, 0.0
        %v3630 = vand.u32 %v1931, 2147483648
        %v3631 = vsel %vm3629, %v3630, %v3628
        %v3632 = vrsqrt.pop %v1932
        %v3633 = vmul.f32 %v1932, %v3632
        %vm3634 = vcmp.eq.f32.partialorder %v1932, inf
        %v3635 = vsel %vm3634, %v1932, %v3633
        %vm3636 = vcmp.eq.f32.partialorder %v1932, 0.0
        %v3637 = vand.u32 %v1932, 2147483648
        %v3638 = vsel %vm3636, %v3637, %v3635
        %v3639 = vrsqrt.pop %v1933
        %v3640 = vmul.f32 %v1933, %v3639
        %vm3641 = vcmp.eq.f32.partialorder %v1933, inf
        %v3642 = vsel %vm3641, %v1933, %v3640
        %vm3643 = vcmp.eq.f32.partialorder %v1933, 0.0
        %v3644 = vand.u32 %v1933, 2147483648
        %v3645 = vsel %vm3643, %v3644, %v3642
        %v3646 = vrsqrt.pop %v1934
        %v3647 = vmul.f32 %v1934, %v3646
        %vm3648 = vcmp.eq.f32.partialorder %v1934, inf
        %v3649 = vsel %vm3648, %v1934, %v3647
        %vm3650 = vcmp.eq.f32.partialorder %v1934, 0.0
        %v3651 = vand.u32 %v1934, 2147483648
        %v3652 = vsel %vm3650, %v3651, %v3649
        %v3653 = vrsqrt.pop %v1935
        %v3654 = vmul.f32 %v1935, %v3653
        %vm3655 = vcmp.eq.f32.partialorder %v1935, inf
        %v3656 = vsel %vm3655, %v1935, %v3654
        %vm3657 = vcmp.eq.f32.partialorder %v1935, 0.0
        %v3658 = vand.u32 %v1935, 2147483648
        %v3659 = vsel %vm3657, %v3658, %v3656
        %v3660 = vrsqrt.pop %v1936
        %v3661 = vmul.f32 %v1936, %v3660
        %vm3662 = vcmp.eq.f32.partialorder %v1936, inf
        %v3663 = vsel %vm3662, %v1936, %v3661
        %vm3664 = vcmp.eq.f32.partialorder %v1936, 0.0
        %v3665 = vand.u32 %v1936, 2147483648
        %v3666 = vsel %vm3664, %v3665, %v3663
        %v3667 = vrsqrt.pop %v1937
        %v3668 = vmul.f32 %v1937, %v3667
        %vm3669 = vcmp.eq.f32.partialorder %v1937, inf
        %v3670 = vsel %vm3669, %v1937, %v3668
        %vm3671 = vcmp.eq.f32.partialorder %v1937, 0.0
        %v3672 = vand.u32 %v1937, 2147483648
        %v3673 = vsel %vm3671, %v3672, %v3670
        %v3674 = vrsqrt.pop %v1938
        %v3675 = vmul.f32 %v1938, %v3674
        %vm3676 = vcmp.eq.f32.partialorder %v1938, inf
        %v3677 = vsel %vm3676, %v1938, %v3675
        %vm3678 = vcmp.eq.f32.partialorder %v1938, 0.0
        %v3679 = vand.u32 %v1938, 2147483648
        %v3680 = vsel %vm3678, %v3679, %v3677
        %v3681 = vrsqrt.pop %v1939
        %v3682 = vmul.f32 %v1939, %v3681
        %vm3683 = vcmp.eq.f32.partialorder %v1939, inf
        %v3684 = vsel %vm3683, %v1939, %v3682
        %vm3685 = vcmp.eq.f32.partialorder %v1939, 0.0
        %v3686 = vand.u32 %v1939, 2147483648
        %v3687 = vsel %vm3685, %v3686, %v3684
        %v3688 = vrsqrt.pop %v1940
        %v3689 = vmul.f32 %v1940, %v3688
        %vm3690 = vcmp.eq.f32.partialorder %v1940, inf
        %v3691 = vsel %vm3690, %v1940, %v3689
        %vm3692 = vcmp.eq.f32.partialorder %v1940, 0.0
        %v3693 = vand.u32 %v1940, 2147483648
        %v3694 = vsel %vm3692, %v3693, %v3691
        %v3695 = vrsqrt.pop %v1941
        %v3696 = vmul.f32 %v1941, %v3695
        %vm3697 = vcmp.eq.f32.partialorder %v1941, inf
        %v3698 = vsel %vm3697, %v1941, %v3696
        %vm3699 = vcmp.eq.f32.partialorder %v1941, 0.0
        %v3700 = vand.u32 %v1941, 2147483648
        %v3701 = vsel %vm3699, %v3700, %v3698
        %v3702 = vrsqrt.pop %v1942
        %v3703 = vmul.f32 %v1942, %v3702
        %vm3704 = vcmp.eq.f32.partialorder %v1942, inf
        %v3705 = vsel %vm3704, %v1942, %v3703
        %vm3706 = vcmp.eq.f32.partialorder %v1942, 0.0
        %v3707 = vand.u32 %v1942, 2147483648
        %v3708 = vsel %vm3706, %v3707, %v3705
        %v3709 = vrsqrt.pop %v1943
        %v3710 = vmul.f32 %v1943, %v3709
        %vm3711 = vcmp.eq.f32.partialorder %v1943, inf
        %v3712 = vsel %vm3711, %v1943, %v3710
        %vm3713 = vcmp.eq.f32.partialorder %v1943, 0.0
        %v3714 = vand.u32 %v1943, 2147483648
        %v3715 = vsel %vm3713, %v3714, %v3712
        %v3716 = vrsqrt.pop %v1944
        %v3717 = vmul.f32 %v1944, %v3716
        %vm3718 = vcmp.eq.f32.partialorder %v1944, inf
        %v3719 = vsel %vm3718, %v1944, %v3717
        %vm3720 = vcmp.eq.f32.partialorder %v1944, 0.0
        %v3721 = vand.u32 %v1944, 2147483648
        %v3722 = vsel %vm3720, %v3721, %v3719
        %v3723 = vrsqrt.pop %v1945
        %v3724 = vmul.f32 %v1945, %v3723
        %vm3725 = vcmp.eq.f32.partialorder %v1945, inf
        %v3726 = vsel %vm3725, %v1945, %v3724
        %vm3727 = vcmp.eq.f32.partialorder %v1945, 0.0
        %v3728 = vand.u32 %v1945, 2147483648
        %v3729 = vsel %vm3727, %v3728, %v3726
        %v3730 = vrsqrt.pop %v1946
        %v3731 = vmul.f32 %v1946, %v3730
        %vm3732 = vcmp.eq.f32.partialorder %v1946, inf
        %v3733 = vsel %vm3732, %v1946, %v3731
        %vm3734 = vcmp.eq.f32.partialorder %v1946, 0.0
        %v3735 = vand.u32 %v1946, 2147483648
        %v3736 = vsel %vm3734, %v3735, %v3733
        %v3737 = vrsqrt.pop %v1947
        %v3738 = vmul.f32 %v1947, %v3737
        %vm3739 = vcmp.eq.f32.partialorder %v1947, inf
        %v3740 = vsel %vm3739, %v1947, %v3738
        %vm3741 = vcmp.eq.f32.partialorder %v1947, 0.0
        %v3742 = vand.u32 %v1947, 2147483648
        %v3743 = vsel %vm3741, %v3742, %v3740
        %v3744 = vrsqrt.pop %v1948
        %v3745 = vmul.f32 %v1948, %v3744
        %vm3746 = vcmp.eq.f32.partialorder %v1948, inf
        %v3747 = vsel %vm3746, %v1948, %v3745
        %vm3748 = vcmp.eq.f32.partialorder %v1948, 0.0
        %v3749 = vand.u32 %v1948, 2147483648
        %v3750 = vsel %vm3748, %v3749, %v3747
        %v3751 = vrsqrt.pop %v1949
        %v3752 = vmul.f32 %v1949, %v3751
        %vm3753 = vcmp.eq.f32.partialorder %v1949, inf
        %v3754 = vsel %vm3753, %v1949, %v3752
        %vm3755 = vcmp.eq.f32.partialorder %v1949, 0.0
        %v3756 = vand.u32 %v1949, 2147483648
        %v3757 = vsel %vm3755, %v3756, %v3754
        %v3758 = vrsqrt.pop %v1950
        %v3759 = vmul.f32 %v1950, %v3758
        %vm3760 = vcmp.eq.f32.partialorder %v1950, inf
        %v3761 = vsel %vm3760, %v1950, %v3759
        %vm3762 = vcmp.eq.f32.partialorder %v1950, 0.0
        %v3763 = vand.u32 %v1950, 2147483648
        %v3764 = vsel %vm3762, %v3763, %v3761
        %v3765 = vrsqrt.pop %v1951
        %v3766 = vmul.f32 %v1951, %v3765
        %vm3767 = vcmp.eq.f32.partialorder %v1951, inf
        %v3768 = vsel %vm3767, %v1951, %v3766
        %vm3769 = vcmp.eq.f32.partialorder %v1951, 0.0
        %v3770 = vand.u32 %v1951, 2147483648
        %v3771 = vsel %vm3769, %v3770, %v3768
        %v3772 = vrsqrt.pop %v1952
        %v3773 = vmul.f32 %v1952, %v3772
        %vm3774 = vcmp.eq.f32.partialorder %v1952, inf
        %v3775 = vsel %vm3774, %v1952, %v3773
        %vm3776 = vcmp.eq.f32.partialorder %v1952, 0.0
        %v3777 = vand.u32 %v1952, 2147483648
        %v3778 = vsel %vm3776, %v3777, %v3775
        %v3779 = vrsqrt.pop %v1953
        %v3780 = vmul.f32 %v1953, %v3779
        %vm3781 = vcmp.eq.f32.partialorder %v1953, inf
        %v3782 = vsel %vm3781, %v1953, %v3780
        %vm3783 = vcmp.eq.f32.partialorder %v1953, 0.0
        %v3784 = vand.u32 %v1953, 2147483648
        %v3785 = vsel %vm3783, %v3784, %v3782
        %v3786 = vrsqrt.pop %v1954
        %v3787 = vmul.f32 %v1954, %v3786
        %vm3788 = vcmp.eq.f32.partialorder %v1954, inf
        %v3789 = vsel %vm3788, %v1954, %v3787
        %vm3790 = vcmp.eq.f32.partialorder %v1954, 0.0
        %v3791 = vand.u32 %v1954, 2147483648
        %v3792 = vsel %vm3790, %v3791, %v3789
        %v3793 = vrsqrt.pop %v1955
        %v3794 = vmul.f32 %v1955, %v3793
        %vm3795 = vcmp.eq.f32.partialorder %v1955, inf
        %v3796 = vsel %vm3795, %v1955, %v3794
        %vm3797 = vcmp.eq.f32.partialorder %v1955, 0.0
        %v3798 = vand.u32 %v1955, 2147483648
        %v3799 = vsel %vm3797, %v3798, %v3796
        %v3800 = vrsqrt.pop %v1956
        %v3801 = vmul.f32 %v1956, %v3800
        %vm3802 = vcmp.eq.f32.partialorder %v1956, inf
        %v3803 = vsel %vm3802, %v1956, %v3801
        %vm3804 = vcmp.eq.f32.partialorder %v1956, 0.0
        %v3805 = vand.u32 %v1956, 2147483648
        %v3806 = vsel %vm3804, %v3805, %v3803
        %v3807 = vrsqrt.pop %v1957
        %v3808 = vmul.f32 %v1957, %v3807
        %vm3809 = vcmp.eq.f32.partialorder %v1957, inf
        %v3810 = vsel %vm3809, %v1957, %v3808
        %vm3811 = vcmp.eq.f32.partialorder %v1957, 0.0
        %v3812 = vand.u32 %v1957, 2147483648
        %v3813 = vsel %vm3811, %v3812, %v3810
        %v3814 = vrsqrt.pop %v1958
        %v3815 = vmul.f32 %v1958, %v3814
        %vm3816 = vcmp.eq.f32.partialorder %v1958, inf
        %v3817 = vsel %vm3816, %v1958, %v3815
        %vm3818 = vcmp.eq.f32.partialorder %v1958, 0.0
        %v3819 = vand.u32 %v1958, 2147483648
        %v3820 = vsel %vm3818, %v3819, %v3817
        %v3821 = vrsqrt.pop %v1959
        %v3822 = vmul.f32 %v1959, %v3821
        %vm3823 = vcmp.eq.f32.partialorder %v1959, inf
        %v3824 = vsel %vm3823, %v1959, %v3822
        %vm3825 = vcmp.eq.f32.partialorder %v1959, 0.0
        %v3826 = vand.u32 %v1959, 2147483648
        %v3827 = vsel %vm3825, %v3826, %v3824
        %v3828 = vrsqrt.pop %v1960
        %v3829 = vmul.f32 %v1960, %v3828
        %vm3830 = vcmp.eq.f32.partialorder %v1960, inf
        %v3831 = vsel %vm3830, %v1960, %v3829
        %vm3832 = vcmp.eq.f32.partialorder %v1960, 0.0
        %v3833 = vand.u32 %v1960, 2147483648
        %v3834 = vsel %vm3832, %v3833, %v3831
        %v3835 = vrsqrt.pop %v1961
        %v3836 = vmul.f32 %v1961, %v3835
        %vm3837 = vcmp.eq.f32.partialorder %v1961, inf
        %v3838 = vsel %vm3837, %v1961, %v3836
        %vm3839 = vcmp.eq.f32.partialorder %v1961, 0.0
        %v3840 = vand.u32 %v1961, 2147483648
        %v3841 = vsel %vm3839, %v3840, %v3838
        %v3842 = vrsqrt.pop %v1962
        %v3843 = vmul.f32 %v1962, %v3842
        %vm3844 = vcmp.eq.f32.partialorder %v1962, inf
        %v3845 = vsel %vm3844, %v1962, %v3843
        %vm3846 = vcmp.eq.f32.partialorder %v1962, 0.0
        %v3847 = vand.u32 %v1962, 2147483648
        %v3848 = vsel %vm3846, %v3847, %v3845
        %v3849 = vrsqrt.pop %v1963
        %v3850 = vmul.f32 %v1963, %v3849
        %vm3851 = vcmp.eq.f32.partialorder %v1963, inf
        %v3852 = vsel %vm3851, %v1963, %v3850
        %vm3853 = vcmp.eq.f32.partialorder %v1963, 0.0
        %v3854 = vand.u32 %v1963, 2147483648
        %v3855 = vsel %vm3853, %v3854, %v3852
        %v3856 = vrsqrt.pop %v1964
        %v3857 = vmul.f32 %v1964, %v3856
        %vm3858 = vcmp.eq.f32.partialorder %v1964, inf
        %v3859 = vsel %vm3858, %v1964, %v3857
        %vm3860 = vcmp.eq.f32.partialorder %v1964, 0.0
        %v3861 = vand.u32 %v1964, 2147483648
        %v3862 = vsel %vm3860, %v3861, %v3859
        %v3863 = vrsqrt.pop %v1965
        %v3864 = vmul.f32 %v1965, %v3863
        %vm3865 = vcmp.eq.f32.partialorder %v1965, inf
        %v3866 = vsel %vm3865, %v1965, %v3864
        %vm3867 = vcmp.eq.f32.partialorder %v1965, 0.0
        %v3868 = vand.u32 %v1965, 2147483648
        %v3869 = vsel %vm3867, %v3868, %v3866
        %v3870 = vrsqrt.pop %v1966
        %v3871 = vmul.f32 %v1966, %v3870
        %vm3872 = vcmp.eq.f32.partialorder %v1966, inf
        %v3873 = vsel %vm3872, %v1966, %v3871
        %vm3874 = vcmp.eq.f32.partialorder %v1966, 0.0
        %v3875 = vand.u32 %v1966, 2147483648
        %v3876 = vsel %vm3874, %v3875, %v3873
        %v3877 = vrsqrt.pop %v1967
        %v3878 = vmul.f32 %v1967, %v3877
        %vm3879 = vcmp.eq.f32.partialorder %v1967, inf
        %v3880 = vsel %vm3879, %v1967, %v3878
        %vm3881 = vcmp.eq.f32.partialorder %v1967, 0.0
        %v3882 = vand.u32 %v1967, 2147483648
        %v3883 = vsel %vm3881, %v3882, %v3880
        %v3884 = vrsqrt.pop %v1968
        %v3885 = vmul.f32 %v1968, %v3884
        %vm3886 = vcmp.eq.f32.partialorder %v1968, inf
        %v3887 = vsel %vm3886, %v1968, %v3885
        %vm3888 = vcmp.eq.f32.partialorder %v1968, 0.0
        %v3889 = vand.u32 %v1968, 2147483648
        %v3890 = vsel %vm3888, %v3889, %v3887
        %v3891 = vrsqrt.pop %v1969
        %v3892 = vmul.f32 %v1969, %v3891
        %vm3893 = vcmp.eq.f32.partialorder %v1969, inf
        %v3894 = vsel %vm3893, %v1969, %v3892
        %vm3895 = vcmp.eq.f32.partialorder %v1969, 0.0
        %v3896 = vand.u32 %v1969, 2147483648
        %v3897 = vsel %vm3895, %v3896, %v3894
        %v3898 = vrsqrt.pop %v1970
        %v3899 = vmul.f32 %v1970, %v3898
        %vm3900 = vcmp.eq.f32.partialorder %v1970, inf
        %v3901 = vsel %vm3900, %v1970, %v3899
        %vm3902 = vcmp.eq.f32.partialorder %v1970, 0.0
        %v3903 = vand.u32 %v1970, 2147483648
        %v3904 = vsel %vm3902, %v3903, %v3901
        %v3905 = vrsqrt.pop %v1971
        %v3906 = vmul.f32 %v1971, %v3905
        %vm3907 = vcmp.eq.f32.partialorder %v1971, inf
        %v3908 = vsel %vm3907, %v1971, %v3906
        %vm3909 = vcmp.eq.f32.partialorder %v1971, 0.0
        %v3910 = vand.u32 %v1971, 2147483648
        %v3911 = vsel %vm3909, %v3910, %v3908
        %v3912 = vrsqrt.pop %v1972
        %v3913 = vmul.f32 %v1972, %v3912
        %vm3914 = vcmp.eq.f32.partialorder %v1972, inf
        %v3915 = vsel %vm3914, %v1972, %v3913
        %vm3916 = vcmp.eq.f32.partialorder %v1972, 0.0
        %v3917 = vand.u32 %v1972, 2147483648
        %v3918 = vsel %vm3916, %v3917, %v3915
        %v3919 = vrsqrt.pop %v1973
        %v3920 = vmul.f32 %v1973, %v3919
        %vm3921 = vcmp.eq.f32.partialorder %v1973, inf
        %v3922 = vsel %vm3921, %v1973, %v3920
        %vm3923 = vcmp.eq.f32.partialorder %v1973, 0.0
        %v3924 = vand.u32 %v1973, 2147483648
        %v3925 = vsel %vm3923, %v3924, %v3922
        %v3926 = vrsqrt.pop %v1974
        %v3927 = vmul.f32 %v1974, %v3926
        %vm3928 = vcmp.eq.f32.partialorder %v1974, inf
        %v3929 = vsel %vm3928, %v1974, %v3927
        %vm3930 = vcmp.eq.f32.partialorder %v1974, 0.0
        %v3931 = vand.u32 %v1974, 2147483648
        %v3932 = vsel %vm3930, %v3931, %v3929
        %v3933 = vrsqrt.pop %v1975
        %v3934 = vmul.f32 %v1975, %v3933
        %vm3935 = vcmp.eq.f32.partialorder %v1975, inf
        %v3936 = vsel %vm3935, %v1975, %v3934
        %vm3937 = vcmp.eq.f32.partialorder %v1975, 0.0
        %v3938 = vand.u32 %v1975, 2147483648
        %v3939 = vsel %vm3937, %v3938, %v3936
        %v3940 = vrsqrt.pop %v1976
        %v3941 = vmul.f32 %v1976, %v3940
        %vm3942 = vcmp.eq.f32.partialorder %v1976, inf
        %v3943 = vsel %vm3942, %v1976, %v3941
        %vm3944 = vcmp.eq.f32.partialorder %v1976, 0.0
        %v3945 = vand.u32 %v1976, 2147483648
        %v3946 = vsel %vm3944, %v3945, %v3943
        %v3947 = vrsqrt.pop %v1977
        %v3948 = vmul.f32 %v1977, %v3947
        %vm3949 = vcmp.eq.f32.partialorder %v1977, inf
        %v3950 = vsel %vm3949, %v1977, %v3948
        %vm3951 = vcmp.eq.f32.partialorder %v1977, 0.0
        %v3952 = vand.u32 %v1977, 2147483648
        %v3953 = vsel %vm3951, %v3952, %v3950
        %v3954 = vrsqrt.pop %v1978
        %v3955 = vmul.f32 %v1978, %v3954
        %vm3956 = vcmp.eq.f32.partialorder %v1978, inf
        %v3957 = vsel %vm3956, %v1978, %v3955
        %vm3958 = vcmp.eq.f32.partialorder %v1978, 0.0
        %v3959 = vand.u32 %v1978, 2147483648
        %v3960 = vsel %vm3958, %v3959, %v3957
        %v3961 = vrsqrt.pop %v1979
        %v3962 = vmul.f32 %v1979, %v3961
        %vm3963 = vcmp.eq.f32.partialorder %v1979, inf
        %v3964 = vsel %vm3963, %v1979, %v3962
        %vm3965 = vcmp.eq.f32.partialorder %v1979, 0.0
        %v3966 = vand.u32 %v1979, 2147483648
        %v3967 = vsel %vm3965, %v3966, %v3964
        %v3968 = vrsqrt.pop %v1980
        %v3969 = vmul.f32 %v1980, %v3968
        %vm3970 = vcmp.eq.f32.partialorder %v1980, inf
        %v3971 = vsel %vm3970, %v1980, %v3969
        %vm3972 = vcmp.eq.f32.partialorder %v1980, 0.0
        %v3973 = vand.u32 %v1980, 2147483648
        %v3974 = vsel %vm3972, %v3973, %v3971
        %v3975 = vrsqrt.pop %v1981
        %v3976 = vmul.f32 %v1981, %v3975
        %vm3977 = vcmp.eq.f32.partialorder %v1981, inf
        %v3978 = vsel %vm3977, %v1981, %v3976
        %vm3979 = vcmp.eq.f32.partialorder %v1981, 0.0
        %v3980 = vand.u32 %v1981, 2147483648
        %v3981 = vsel %vm3979, %v3980, %v3978
        %v3982 = vrsqrt.pop %v1982
        %v3983 = vmul.f32 %v1982, %v3982
        %vm3984 = vcmp.eq.f32.partialorder %v1982, inf
        %v3985 = vsel %vm3984, %v1982, %v3983
        %vm3986 = vcmp.eq.f32.partialorder %v1982, 0.0
        %v3987 = vand.u32 %v1982, 2147483648
        %v3988 = vsel %vm3986, %v3987, %v3985
        %v3989 = vrsqrt.pop %v1983
        %v3990 = vmul.f32 %v1983, %v3989
        %vm3991 = vcmp.eq.f32.partialorder %v1983, inf
        %v3992 = vsel %vm3991, %v1983, %v3990
        %vm3993 = vcmp.eq.f32.partialorder %v1983, 0.0
        %v3994 = vand.u32 %v1983, 2147483648
        %v3995 = vsel %vm3993, %v3994, %v3992
        %v3996 = vrsqrt.pop %v1984
        %v3997 = vmul.f32 %v1984, %v3996
        %vm3998 = vcmp.eq.f32.partialorder %v1984, inf
        %v3999 = vsel %vm3998, %v1984, %v3997
        %vm4000 = vcmp.eq.f32.partialorder %v1984, 0.0
        %v4001 = vand.u32 %v1984, 2147483648
        %v4002 = vsel %vm4000, %v4001, %v3999
        %v4003 = vrsqrt.pop %v1985
        %v4004 = vmul.f32 %v1985, %v4003
        %vm4005 = vcmp.eq.f32.partialorder %v1985, inf
        %v4006 = vsel %vm4005, %v1985, %v4004
        %vm4007 = vcmp.eq.f32.partialorder %v1985, 0.0
        %v4008 = vand.u32 %v1985, 2147483648
        %v4009 = vsel %vm4007, %v4008, %v4006
        %v4010 = vrsqrt.pop %v1986
        %v4011 = vmul.f32 %v1986, %v4010
        %vm4012 = vcmp.eq.f32.partialorder %v1986, inf
        %v4013 = vsel %vm4012, %v1986, %v4011
        %vm4014 = vcmp.eq.f32.partialorder %v1986, 0.0
        %v4015 = vand.u32 %v1986, 2147483648
        %v4016 = vsel %vm4014, %v4015, %v4013
        %v4017 = vrsqrt.pop %v1987
        %v4018 = vmul.f32 %v1987, %v4017
        %vm4019 = vcmp.eq.f32.partialorder %v1987, inf
        %v4020 = vsel %vm4019, %v1987, %v4018
        %vm4021 = vcmp.eq.f32.partialorder %v1987, 0.0
        %v4022 = vand.u32 %v1987, 2147483648
        %v4023 = vsel %vm4021, %v4022, %v4020
        %v4024 = vrsqrt.pop %v1988
        %v4025 = vmul.f32 %v1988, %v4024
        %vm4026 = vcmp.eq.f32.partialorder %v1988, inf
        %v4027 = vsel %vm4026, %v1988, %v4025
        %vm4028 = vcmp.eq.f32.partialorder %v1988, 0.0
        %v4029 = vand.u32 %v1988, 2147483648
        %v4030 = vsel %vm4028, %v4029, %v4027
        %v4031 = vrsqrt.pop %v1989
        %v4032 = vmul.f32 %v1989, %v4031
        %vm4033 = vcmp.eq.f32.partialorder %v1989, inf
        %v4034 = vsel %vm4033, %v1989, %v4032
        %vm4035 = vcmp.eq.f32.partialorder %v1989, 0.0
        %v4036 = vand.u32 %v1989, 2147483648
        %v4037 = vsel %vm4035, %v4036, %v4034
        %v4038 = vrsqrt.pop %v1990
        %v4039 = vmul.f32 %v1990, %v4038
        %vm4040 = vcmp.eq.f32.partialorder %v1990, inf
        %v4041 = vsel %vm4040, %v1990, %v4039
        %vm4042 = vcmp.eq.f32.partialorder %v1990, 0.0
        %v4043 = vand.u32 %v1990, 2147483648
        %v4044 = vsel %vm4042, %v4043, %v4041
        %v4045 = vrsqrt.pop %v1991
        %v4046 = vmul.f32 %v1991, %v4045
        %vm4047 = vcmp.eq.f32.partialorder %v1991, inf
        %v4048 = vsel %vm4047, %v1991, %v4046
        %vm4049 = vcmp.eq.f32.partialorder %v1991, 0.0
        %v4050 = vand.u32 %v1991, 2147483648
        %v4051 = vsel %vm4049, %v4050, %v4048
        %v4052 = vrsqrt.pop %v1992
        %v4053 = vmul.f32 %v1992, %v4052
        %vm4054 = vcmp.eq.f32.partialorder %v1992, inf
        %v4055 = vsel %vm4054, %v1992, %v4053
        %vm4056 = vcmp.eq.f32.partialorder %v1992, 0.0
        %v4057 = vand.u32 %v1992, 2147483648
        %v4058 = vsel %vm4056, %v4057, %v4055
        %v4059 = vrsqrt.pop %v1993
        %v4060 = vmul.f32 %v1993, %v4059
        %vm4061 = vcmp.eq.f32.partialorder %v1993, inf
        %v4062 = vsel %vm4061, %v1993, %v4060
        %vm4063 = vcmp.eq.f32.partialorder %v1993, 0.0
        %v4064 = vand.u32 %v1993, 2147483648
        %v4065 = vsel %vm4063, %v4064, %v4062
        %v4066 = vrsqrt.pop %v1994
        %v4067 = vmul.f32 %v1994, %v4066
        %vm4068 = vcmp.eq.f32.partialorder %v1994, inf
        %v4069 = vsel %vm4068, %v1994, %v4067
        %vm4070 = vcmp.eq.f32.partialorder %v1994, 0.0
        %v4071 = vand.u32 %v1994, 2147483648
        %v4072 = vsel %vm4070, %v4071, %v4069
        %v4073 = vrsqrt.pop %v1995
        %v4074 = vmul.f32 %v1995, %v4073
        %vm4075 = vcmp.eq.f32.partialorder %v1995, inf
        %v4076 = vsel %vm4075, %v1995, %v4074
        %vm4077 = vcmp.eq.f32.partialorder %v1995, 0.0
        %v4078 = vand.u32 %v1995, 2147483648
        %v4079 = vsel %vm4077, %v4078, %v4076
        %v4080 = vrsqrt.pop %v1996
        %v4081 = vmul.f32 %v1996, %v4080
        %vm4082 = vcmp.eq.f32.partialorder %v1996, inf
        %v4083 = vsel %vm4082, %v1996, %v4081
        %vm4084 = vcmp.eq.f32.partialorder %v1996, 0.0
        %v4085 = vand.u32 %v1996, 2147483648
        %v4086 = vsel %vm4084, %v4085, %v4083
        %v4087 = vrsqrt.pop %v1997
        %v4088 = vmul.f32 %v1997, %v4087
        %vm4089 = vcmp.eq.f32.partialorder %v1997, inf
        %v4090 = vsel %vm4089, %v1997, %v4088
        %vm4091 = vcmp.eq.f32.partialorder %v1997, 0.0
        %v4092 = vand.u32 %v1997, 2147483648
        %v4093 = vsel %vm4091, %v4092, %v4090
        %v4094 = vrsqrt.pop %v1998
        %v4095 = vmul.f32 %v1998, %v4094
        %vm4096 = vcmp.eq.f32.partialorder %v1998, inf
        %v4097 = vsel %vm4096, %v1998, %v4095
        %vm4098 = vcmp.eq.f32.partialorder %v1998, 0.0
        %v4099 = vand.u32 %v1998, 2147483648
        %v4100 = vsel %vm4098, %v4099, %v4097
        %v4101 = vrsqrt.pop %v1999
        %v4102 = vmul.f32 %v1999, %v4101
        %vm4103 = vcmp.eq.f32.partialorder %v1999, inf
        %v4104 = vsel %vm4103, %v1999, %v4102
        %vm4105 = vcmp.eq.f32.partialorder %v1999, 0.0
        %v4106 = vand.u32 %v1999, 2147483648
        %v4107 = vsel %vm4105, %v4106, %v4104
        %v4108 = vrsqrt.pop %v2000
        %v4109 = vmul.f32 %v2000, %v4108
        %vm4110 = vcmp.eq.f32.partialorder %v2000, inf
        %v4111 = vsel %vm4110, %v2000, %v4109
        %vm4112 = vcmp.eq.f32.partialorder %v2000, 0.0
        %v4113 = vand.u32 %v2000, 2147483648
        %v4114 = vsel %vm4112, %v4113, %v4111
        %v4115 = vrsqrt.pop %v2001
        %v4116 = vmul.f32 %v2001, %v4115
        %vm4117 = vcmp.eq.f32.partialorder %v2001, inf
        %v4118 = vsel %vm4117, %v2001, %v4116
        %vm4119 = vcmp.eq.f32.partialorder %v2001, 0.0
        %v4120 = vand.u32 %v2001, 2147483648
        %v4121 = vsel %vm4119, %v4120, %v4118
        %v4122 = vrsqrt.pop %v2002
        %v4123 = vmul.f32 %v2002, %v4122
        %vm4124 = vcmp.eq.f32.partialorder %v2002, inf
        %v4125 = vsel %vm4124, %v2002, %v4123
        %vm4126 = vcmp.eq.f32.partialorder %v2002, 0.0
        %v4127 = vand.u32 %v2002, 2147483648
        %v4128 = vsel %vm4126, %v4127, %v4125
        %v4129 = vrsqrt.pop %v2003
        %v4130 = vmul.f32 %v2003, %v4129
        %vm4131 = vcmp.eq.f32.partialorder %v2003, inf
        %v4132 = vsel %vm4131, %v2003, %v4130
        %vm4133 = vcmp.eq.f32.partialorder %v2003, 0.0
        %v4134 = vand.u32 %v2003, 2147483648
        %v4135 = vsel %vm4133, %v4134, %v4132
        %v4136 = vrsqrt.pop %v2004
        %v4137 = vmul.f32 %v2004, %v4136
        %vm4138 = vcmp.eq.f32.partialorder %v2004, inf
        %v4139 = vsel %vm4138, %v2004, %v4137
        %vm4140 = vcmp.eq.f32.partialorder %v2004, 0.0
        %v4141 = vand.u32 %v2004, 2147483648
        %v4142 = vsel %vm4140, %v4141, %v4139
        %v4143 = vrsqrt.pop %v2005
        %v4144 = vmul.f32 %v2005, %v4143
        %vm4145 = vcmp.eq.f32.partialorder %v2005, inf
        %v4146 = vsel %vm4145, %v2005, %v4144
        %vm4147 = vcmp.eq.f32.partialorder %v2005, 0.0
        %v4148 = vand.u32 %v2005, 2147483648
        %v4149 = vsel %vm4147, %v4148, %v4146
        %v4150 = vrsqrt.pop %v2006
        %v4151 = vmul.f32 %v2006, %v4150
        %vm4152 = vcmp.eq.f32.partialorder %v2006, inf
        %v4153 = vsel %vm4152, %v2006, %v4151
        %vm4154 = vcmp.eq.f32.partialorder %v2006, 0.0
        %v4155 = vand.u32 %v2006, 2147483648
        %v4156 = vsel %vm4154, %v4155, %v4153
        %v4157 = vrsqrt.pop %v2007
        %v4158 = vmul.f32 %v2007, %v4157
        %vm4159 = vcmp.eq.f32.partialorder %v2007, inf
        %v4160 = vsel %vm4159, %v2007, %v4158
        %vm4161 = vcmp.eq.f32.partialorder %v2007, 0.0
        %v4162 = vand.u32 %v2007, 2147483648
        %v4163 = vsel %vm4161, %v4162, %v4160
        %v4164 = vrsqrt.pop %v2008
        %v4165 = vmul.f32 %v2008, %v4164
        %vm4166 = vcmp.eq.f32.partialorder %v2008, inf
        %v4167 = vsel %vm4166, %v2008, %v4165
        %vm4168 = vcmp.eq.f32.partialorder %v2008, 0.0
        %v4169 = vand.u32 %v2008, 2147483648
        %v4170 = vsel %vm4168, %v4169, %v4167
        %v4171 = vrsqrt.pop %v2009
        %v4172 = vmul.f32 %v2009, %v4171
        %vm4173 = vcmp.eq.f32.partialorder %v2009, inf
        %v4174 = vsel %vm4173, %v2009, %v4172
        %vm4175 = vcmp.eq.f32.partialorder %v2009, 0.0
        %v4176 = vand.u32 %v2009, 2147483648
        %v4177 = vsel %vm4175, %v4176, %v4174
        %v4178 = vrsqrt.pop %v2010
        %v4179 = vmul.f32 %v2010, %v4178
        %vm4180 = vcmp.eq.f32.partialorder %v2010, inf
        %v4181 = vsel %vm4180, %v2010, %v4179
        %vm4182 = vcmp.eq.f32.partialorder %v2010, 0.0
        %v4183 = vand.u32 %v2010, 2147483648
        %v4184 = vsel %vm4182, %v4183, %v4181
        %v4185 = vrsqrt.pop %v2011
        %v4186 = vmul.f32 %v2011, %v4185
        %vm4187 = vcmp.eq.f32.partialorder %v2011, inf
        %v4188 = vsel %vm4187, %v2011, %v4186
        %vm4189 = vcmp.eq.f32.partialorder %v2011, 0.0
        %v4190 = vand.u32 %v2011, 2147483648
        %v4191 = vsel %vm4189, %v4190, %v4188
        %v4192 = vrsqrt.pop %v2012
        %v4193 = vmul.f32 %v2012, %v4192
        %vm4194 = vcmp.eq.f32.partialorder %v2012, inf
        %v4195 = vsel %vm4194, %v2012, %v4193
        %vm4196 = vcmp.eq.f32.partialorder %v2012, 0.0
        %v4197 = vand.u32 %v2012, 2147483648
        %v4198 = vsel %vm4196, %v4197, %v4195
        %v4199 = vrsqrt.pop %v2013
        %v4200 = vmul.f32 %v2013, %v4199
        %vm4201 = vcmp.eq.f32.partialorder %v2013, inf
        %v4202 = vsel %vm4201, %v2013, %v4200
        %vm4203 = vcmp.eq.f32.partialorder %v2013, 0.0
        %v4204 = vand.u32 %v2013, 2147483648
        %v4205 = vsel %vm4203, %v4204, %v4202
        %v4206 = vrsqrt.pop %v2014
        %v4207 = vmul.f32 %v2014, %v4206
        %vm4208 = vcmp.eq.f32.partialorder %v2014, inf
        %v4209 = vsel %vm4208, %v2014, %v4207
        %vm4210 = vcmp.eq.f32.partialorder %v2014, 0.0
        %v4211 = vand.u32 %v2014, 2147483648
        %v4212 = vsel %vm4210, %v4211, %v4209
        %v4213 = vrsqrt.pop %v2015
        %v4214 = vmul.f32 %v2015, %v4213
        %vm4215 = vcmp.eq.f32.partialorder %v2015, inf
        %v4216 = vsel %vm4215, %v2015, %v4214
        %vm4217 = vcmp.eq.f32.partialorder %v2015, 0.0
        %v4218 = vand.u32 %v2015, 2147483648
        %v4219 = vsel %vm4217, %v4218, %v4216
        %v4220 = vrsqrt.pop %v2016
        %v4221 = vmul.f32 %v2016, %v4220
        %vm4222 = vcmp.eq.f32.partialorder %v2016, inf
        %v4223 = vsel %vm4222, %v2016, %v4221
        %vm4224 = vcmp.eq.f32.partialorder %v2016, 0.0
        %v4225 = vand.u32 %v2016, 2147483648
        %v4226 = vsel %vm4224, %v4225, %v4223
        %v4227 = vrsqrt.pop %v2017
        %v4228 = vmul.f32 %v2017, %v4227
        %vm4229 = vcmp.eq.f32.partialorder %v2017, inf
        %v4230 = vsel %vm4229, %v2017, %v4228
        %vm4231 = vcmp.eq.f32.partialorder %v2017, 0.0
        %v4232 = vand.u32 %v2017, 2147483648
        %v4233 = vsel %vm4231, %v4232, %v4230
        %v4234 = vrsqrt.pop %v2018
        %v4235 = vmul.f32 %v2018, %v4234
        %vm4236 = vcmp.eq.f32.partialorder %v2018, inf
        %v4237 = vsel %vm4236, %v2018, %v4235
        %vm4238 = vcmp.eq.f32.partialorder %v2018, 0.0
        %v4239 = vand.u32 %v2018, 2147483648
        %v4240 = vsel %vm4238, %v4239, %v4237
        %v4241 = vrsqrt.pop %v2019
        %v4242 = vmul.f32 %v2019, %v4241
        %vm4243 = vcmp.eq.f32.partialorder %v2019, inf
        %v4244 = vsel %vm4243, %v2019, %v4242
        %vm4245 = vcmp.eq.f32.partialorder %v2019, 0.0
        %v4246 = vand.u32 %v2019, 2147483648
        %v4247 = vsel %vm4245, %v4246, %v4244
        %v4248 = vrsqrt.pop %v2020
        %v4249 = vmul.f32 %v2020, %v4248
        %vm4250 = vcmp.eq.f32.partialorder %v2020, inf
        %v4251 = vsel %vm4250, %v2020, %v4249
        %vm4252 = vcmp.eq.f32.partialorder %v2020, 0.0
        %v4253 = vand.u32 %v2020, 2147483648
        %v4254 = vsel %vm4252, %v4253, %v4251
        %v4255 = vrsqrt.pop %v2021
        %v4256 = vmul.f32 %v2021, %v4255
        %vm4257 = vcmp.eq.f32.partialorder %v2021, inf
        %v4258 = vsel %vm4257, %v2021, %v4256
        %vm4259 = vcmp.eq.f32.partialorder %v2021, 0.0
        %v4260 = vand.u32 %v2021, 2147483648
        %v4261 = vsel %vm4259, %v4260, %v4258
        %v4262 = vrsqrt.pop %v2022
        %v4263 = vmul.f32 %v2022, %v4262
        %vm4264 = vcmp.eq.f32.partialorder %v2022, inf
        %v4265 = vsel %vm4264, %v2022, %v4263
        %vm4266 = vcmp.eq.f32.partialorder %v2022, 0.0
        %v4267 = vand.u32 %v2022, 2147483648
        %v4268 = vsel %vm4266, %v4267, %v4265
        %v4269 = vrsqrt.pop %v2023
        %v4270 = vmul.f32 %v2023, %v4269
        %vm4271 = vcmp.eq.f32.partialorder %v2023, inf
        %v4272 = vsel %vm4271, %v2023, %v4270
        %vm4273 = vcmp.eq.f32.partialorder %v2023, 0.0
        %v4274 = vand.u32 %v2023, 2147483648
        %v4275 = vsel %vm4273, %v4274, %v4272
        %v4276 = vrsqrt.pop %v2024
        %v4277 = vmul.f32 %v2024, %v4276
        %vm4278 = vcmp.eq.f32.partialorder %v2024, inf
        %v4279 = vsel %vm4278, %v2024, %v4277
        %vm4280 = vcmp.eq.f32.partialorder %v2024, 0.0
        %v4281 = vand.u32 %v2024, 2147483648
        %v4282 = vsel %vm4280, %v4281, %v4279
        %v4283 = vrsqrt.pop %v2025
        %v4284 = vmul.f32 %v2025, %v4283
        %vm4285 = vcmp.eq.f32.partialorder %v2025, inf
        %v4286 = vsel %vm4285, %v2025, %v4284
        %vm4287 = vcmp.eq.f32.partialorder %v2025, 0.0
        %v4288 = vand.u32 %v2025, 2147483648
        %v4289 = vsel %vm4287, %v4288, %v4286
        %v4290 = vrsqrt.pop %v2026
        %v4291 = vmul.f32 %v2026, %v4290
        %vm4292 = vcmp.eq.f32.partialorder %v2026, inf
        %v4293 = vsel %vm4292, %v2026, %v4291
        %vm4294 = vcmp.eq.f32.partialorder %v2026, 0.0
        %v4295 = vand.u32 %v2026, 2147483648
        %v4296 = vsel %vm4294, %v4295, %v4293
        %v4297 = vrsqrt.pop %v2027
        %v4298 = vmul.f32 %v2027, %v4297
        %vm4299 = vcmp.eq.f32.partialorder %v2027, inf
        %v4300 = vsel %vm4299, %v2027, %v4298
        %vm4301 = vcmp.eq.f32.partialorder %v2027, 0.0
        %v4302 = vand.u32 %v2027, 2147483648
        %v4303 = vsel %vm4301, %v4302, %v4300
        %v4304 = vrsqrt.pop %v2028
        %v4305 = vmul.f32 %v2028, %v4304
        %vm4306 = vcmp.eq.f32.partialorder %v2028, inf
        %v4307 = vsel %vm4306, %v2028, %v4305
        %vm4308 = vcmp.eq.f32.partialorder %v2028, 0.0
        %v4309 = vand.u32 %v2028, 2147483648
        %v4310 = vsel %vm4308, %v4309, %v4307
        %v4311 = vrsqrt.pop %v2029
        %v4312 = vmul.f32 %v2029, %v4311
        %vm4313 = vcmp.eq.f32.partialorder %v2029, inf
        %v4314 = vsel %vm4313, %v2029, %v4312
        %vm4315 = vcmp.eq.f32.partialorder %v2029, 0.0
        %v4316 = vand.u32 %v2029, 2147483648
        %v4317 = vsel %vm4315, %v4316, %v4314
        %v4318 = vrsqrt.pop %v2030
        %v4319 = vmul.f32 %v2030, %v4318
        %vm4320 = vcmp.eq.f32.partialorder %v2030, inf
        %v4321 = vsel %vm4320, %v2030, %v4319
        %vm4322 = vcmp.eq.f32.partialorder %v2030, 0.0
        %v4323 = vand.u32 %v2030, 2147483648
        %v4324 = vsel %vm4322, %v4323, %v4321
        %v4325 = vrsqrt.pop %v2031
        %v4326 = vmul.f32 %v2031, %v4325
        %vm4327 = vcmp.eq.f32.partialorder %v2031, inf
        %v4328 = vsel %vm4327, %v2031, %v4326
        %vm4329 = vcmp.eq.f32.partialorder %v2031, 0.0
        %v4330 = vand.u32 %v2031, 2147483648
        %v4331 = vsel %vm4329, %v4330, %v4328
        %v4332 = vrsqrt.pop %v2032
        %v4333 = vmul.f32 %v2032, %v4332
        %vm4334 = vcmp.eq.f32.partialorder %v2032, inf
        %v4335 = vsel %vm4334, %v2032, %v4333
        %vm4336 = vcmp.eq.f32.partialorder %v2032, 0.0
        %v4337 = vand.u32 %v2032, 2147483648
        %v4338 = vsel %vm4336, %v4337, %v4335
        %v4339 = vrsqrt.pop %v2033
        %v4340 = vmul.f32 %v2033, %v4339
        %vm4341 = vcmp.eq.f32.partialorder %v2033, inf
        %v4342 = vsel %vm4341, %v2033, %v4340
        %vm4343 = vcmp.eq.f32.partialorder %v2033, 0.0
        %v4344 = vand.u32 %v2033, 2147483648
        %v4345 = vsel %vm4343, %v4344, %v4342
        %v4346 = vrsqrt.pop %v2034
        %v4347 = vmul.f32 %v2034, %v4346
        %vm4348 = vcmp.eq.f32.partialorder %v2034, inf
        %v4349 = vsel %vm4348, %v2034, %v4347
        %vm4350 = vcmp.eq.f32.partialorder %v2034, 0.0
        %v4351 = vand.u32 %v2034, 2147483648
        %v4352 = vsel %vm4350, %v4351, %v4349
        %v4353 = vrsqrt.pop %v2035
        %v4354 = vmul.f32 %v2035, %v4353
        %vm4355 = vcmp.eq.f32.partialorder %v2035, inf
        %v4356 = vsel %vm4355, %v2035, %v4354
        %vm4357 = vcmp.eq.f32.partialorder %v2035, 0.0
        %v4358 = vand.u32 %v2035, 2147483648
        %v4359 = vsel %vm4357, %v4358, %v4356
        %v4360 = vrsqrt.pop %v2036
        %v4361 = vmul.f32 %v2036, %v4360
        %vm4362 = vcmp.eq.f32.partialorder %v2036, inf
        %v4363 = vsel %vm4362, %v2036, %v4361
        %vm4364 = vcmp.eq.f32.partialorder %v2036, 0.0
        %v4365 = vand.u32 %v2036, 2147483648
        %v4366 = vsel %vm4364, %v4365, %v4363
        %v4367 = vrsqrt.pop %v2037
        %v4368 = vmul.f32 %v2037, %v4367
        %vm4369 = vcmp.eq.f32.partialorder %v2037, inf
        %v4370 = vsel %vm4369, %v2037, %v4368
        %vm4371 = vcmp.eq.f32.partialorder %v2037, 0.0
        %v4372 = vand.u32 %v2037, 2147483648
        %v4373 = vsel %vm4371, %v4372, %v4370
        %v4374 = vrsqrt.pop %v2038
        %v4375 = vmul.f32 %v2038, %v4374
        %vm4376 = vcmp.eq.f32.partialorder %v2038, inf
        %v4377 = vsel %vm4376, %v2038, %v4375
        %vm4378 = vcmp.eq.f32.partialorder %v2038, 0.0
        %v4379 = vand.u32 %v2038, 2147483648
        %v4380 = vsel %vm4378, %v4379, %v4377
        %v4381 = vrsqrt.pop %v2039
        %v4382 = vmul.f32 %v2039, %v4381
        %vm4383 = vcmp.eq.f32.partialorder %v2039, inf
        %v4384 = vsel %vm4383, %v2039, %v4382
        %vm4385 = vcmp.eq.f32.partialorder %v2039, 0.0
        %v4386 = vand.u32 %v2039, 2147483648
        %v4387 = vsel %vm4385, %v4386, %v4384
        %v4388 = vrsqrt.pop %v2040
        %v4389 = vmul.f32 %v2040, %v4388
        %vm4390 = vcmp.eq.f32.partialorder %v2040, inf
        %v4391 = vsel %vm4390, %v2040, %v4389
        %vm4392 = vcmp.eq.f32.partialorder %v2040, 0.0
        %v4393 = vand.u32 %v2040, 2147483648
        %v4394 = vsel %vm4392, %v4393, %v4391
        %v4395 = vrsqrt.pop %v2041
        %v4396 = vmul.f32 %v2041, %v4395
        %vm4397 = vcmp.eq.f32.partialorder %v2041, inf
        %v4398 = vsel %vm4397, %v2041, %v4396
        %vm4399 = vcmp.eq.f32.partialorder %v2041, 0.0
        %v4400 = vand.u32 %v2041, 2147483648
        %v4401 = vsel %vm4399, %v4400, %v4398
        %v4402 = vrsqrt.pop %v2042
        %v4403 = vmul.f32 %v2042, %v4402
        %vm4404 = vcmp.eq.f32.partialorder %v2042, inf
        %v4405 = vsel %vm4404, %v2042, %v4403
        %vm4406 = vcmp.eq.f32.partialorder %v2042, 0.0
        %v4407 = vand.u32 %v2042, 2147483648
        %v4408 = vsel %vm4406, %v4407, %v4405
        %v4409 = vrsqrt.pop %v2043
        %v4410 = vmul.f32 %v2043, %v4409
        %vm4411 = vcmp.eq.f32.partialorder %v2043, inf
        %v4412 = vsel %vm4411, %v2043, %v4410
        %vm4413 = vcmp.eq.f32.partialorder %v2043, 0.0
        %v4414 = vand.u32 %v2043, 2147483648
        %v4415 = vsel %vm4413, %v4414, %v4412
        %v4416 = vrsqrt.pop %v2044
        %v4417 = vmul.f32 %v2044, %v4416
        %vm4418 = vcmp.eq.f32.partialorder %v2044, inf
        %v4419 = vsel %vm4418, %v2044, %v4417
        %vm4420 = vcmp.eq.f32.partialorder %v2044, 0.0
        %v4421 = vand.u32 %v2044, 2147483648
        %v4422 = vsel %vm4420, %v4421, %v4419
        %v4423 = vrsqrt.pop %v2045
        %v4424 = vmul.f32 %v2045, %v4423
        %vm4425 = vcmp.eq.f32.partialorder %v2045, inf
        %v4426 = vsel %vm4425, %v2045, %v4424
        %vm4427 = vcmp.eq.f32.partialorder %v2045, 0.0
        %v4428 = vand.u32 %v2045, 2147483648
        %v4429 = vsel %vm4427, %v4428, %v4426
        %v4430 = vrsqrt.pop %v2046
        %v4431 = vmul.f32 %v2046, %v4430
        %vm4432 = vcmp.eq.f32.partialorder %v2046, inf
        %v4433 = vsel %vm4432, %v2046, %v4431
        %vm4434 = vcmp.eq.f32.partialorder %v2046, 0.0
        %v4435 = vand.u32 %v2046, 2147483648
        %v4436 = vsel %vm4434, %v4435, %v4433
        %v4437 = vrsqrt.pop %v2047
        %v4438 = vmul.f32 %v2047, %v4437
        %vm4439 = vcmp.eq.f32.partialorder %v2047, inf
        %v4440 = vsel %vm4439, %v2047, %v4438
        %vm4441 = vcmp.eq.f32.partialorder %v2047, 0.0
        %v4442 = vand.u32 %v2047, 2147483648
        %v4443 = vsel %vm4441, %v4442, %v4440
        %v4444 = vrsqrt.pop %v2048
        %v4445 = vmul.f32 %v2048, %v4444
        %vm4446 = vcmp.eq.f32.partialorder %v2048, inf
        %v4447 = vsel %vm4446, %v2048, %v4445
        %vm4448 = vcmp.eq.f32.partialorder %v2048, 0.0
        %v4449 = vand.u32 %v2048, 2147483648
        %v4450 = vsel %vm4448, %v4449, %v4447
        %v4451 = vrsqrt.pop %v2049
        %v4452 = vmul.f32 %v2049, %v4451
        %vm4453 = vcmp.eq.f32.partialorder %v2049, inf
        %v4454 = vsel %vm4453, %v2049, %v4452
        %vm4455 = vcmp.eq.f32.partialorder %v2049, 0.0
        %v4456 = vand.u32 %v2049, 2147483648
        %v4457 = vsel %vm4455, %v4456, %v4454
        %v4458 = vrsqrt.pop %v2050
        %v4459 = vmul.f32 %v2050, %v4458
        %vm4460 = vcmp.eq.f32.partialorder %v2050, inf
        %v4461 = vsel %vm4460, %v2050, %v4459
        %vm4462 = vcmp.eq.f32.partialorder %v2050, 0.0
        %v4463 = vand.u32 %v2050, 2147483648
        %v4464 = vsel %vm4462, %v4463, %v4461
        %v4465 = vrsqrt.pop %v2051
        %v4466 = vmul.f32 %v2051, %v4465
        %vm4467 = vcmp.eq.f32.partialorder %v2051, inf
        %v4468 = vsel %vm4467, %v2051, %v4466
        %vm4469 = vcmp.eq.f32.partialorder %v2051, 0.0
        %v4470 = vand.u32 %v2051, 2147483648
        %v4471 = vsel %vm4469, %v4470, %v4468
        %v4472 = vrsqrt.pop %v2052
        %v4473 = vmul.f32 %v2052, %v4472
        %vm4474 = vcmp.eq.f32.partialorder %v2052, inf
        %v4475 = vsel %vm4474, %v2052, %v4473
        %vm4476 = vcmp.eq.f32.partialorder %v2052, 0.0
        %v4477 = vand.u32 %v2052, 2147483648
        %v4478 = vsel %vm4476, %v4477, %v4475
        %v4479 = vrsqrt.pop %v2053
        %v4480 = vmul.f32 %v2053, %v4479
        %vm4481 = vcmp.eq.f32.partialorder %v2053, inf
        %v4482 = vsel %vm4481, %v2053, %v4480
        %vm4483 = vcmp.eq.f32.partialorder %v2053, 0.0
        %v4484 = vand.u32 %v2053, 2147483648
        %v4485 = vsel %vm4483, %v4484, %v4482
        %v4486 = vrsqrt.pop %v2054
        %v4487 = vmul.f32 %v2054, %v4486
        %vm4488 = vcmp.eq.f32.partialorder %v2054, inf
        %v4489 = vsel %vm4488, %v2054, %v4487
        %vm4490 = vcmp.eq.f32.partialorder %v2054, 0.0
        %v4491 = vand.u32 %v2054, 2147483648
        %v4492 = vsel %vm4490, %v4491, %v4489
        %v4493 = vrsqrt.pop %v2055
        %v4494 = vmul.f32 %v2055, %v4493
        %vm4495 = vcmp.eq.f32.partialorder %v2055, inf
        %v4496 = vsel %vm4495, %v2055, %v4494
        %vm4497 = vcmp.eq.f32.partialorder %v2055, 0.0
        %v4498 = vand.u32 %v2055, 2147483648
        %v4499 = vsel %vm4497, %v4498, %v4496
        %v4500 = vrsqrt.pop %v2056
        %v4501 = vmul.f32 %v2056, %v4500
        %vm4502 = vcmp.eq.f32.partialorder %v2056, inf
        %v4503 = vsel %vm4502, %v2056, %v4501
        %vm4504 = vcmp.eq.f32.partialorder %v2056, 0.0
        %v4505 = vand.u32 %v2056, 2147483648
        %v4506 = vsel %vm4504, %v4505, %v4503
        %v4507 = vrsqrt.pop %v2057
        %v4508 = vmul.f32 %v2057, %v4507
        %vm4509 = vcmp.eq.f32.partialorder %v2057, inf
        %v4510 = vsel %vm4509, %v2057, %v4508
        %vm4511 = vcmp.eq.f32.partialorder %v2057, 0.0
        %v4512 = vand.u32 %v2057, 2147483648
        %v4513 = vsel %vm4511, %v4512, %v4510
        %v4514 = vrsqrt.pop %v2058
        %v4515 = vmul.f32 %v2058, %v4514
        %vm4516 = vcmp.eq.f32.partialorder %v2058, inf
        %v4517 = vsel %vm4516, %v2058, %v4515
        %vm4518 = vcmp.eq.f32.partialorder %v2058, 0.0
        %v4519 = vand.u32 %v2058, 2147483648
        %v4520 = vsel %vm4518, %v4519, %v4517
        %v4521 = vrsqrt.pop %v2059
        %v4522 = vmul.f32 %v2059, %v4521
        %vm4523 = vcmp.eq.f32.partialorder %v2059, inf
        %v4524 = vsel %vm4523, %v2059, %v4522
        %vm4525 = vcmp.eq.f32.partialorder %v2059, 0.0
        %v4526 = vand.u32 %v2059, 2147483648
        %v4527 = vsel %vm4525, %v4526, %v4524
        %v4528 = vrsqrt.pop %v2060
        %v4529 = vmul.f32 %v2060, %v4528
        %vm4530 = vcmp.eq.f32.partialorder %v2060, inf
        %v4531 = vsel %vm4530, %v2060, %v4529
        %vm4532 = vcmp.eq.f32.partialorder %v2060, 0.0
        %v4533 = vand.u32 %v2060, 2147483648
        %v4534 = vsel %vm4532, %v4533, %v4531
        %v4535 = vrsqrt.pop %v2061
        %v4536 = vmul.f32 %v2061, %v4535
        %vm4537 = vcmp.eq.f32.partialorder %v2061, inf
        %v4538 = vsel %vm4537, %v2061, %v4536
        %vm4539 = vcmp.eq.f32.partialorder %v2061, 0.0
        %v4540 = vand.u32 %v2061, 2147483648
        %v4541 = vsel %vm4539, %v4540, %v4538
        %v4542 = vrsqrt.pop %v2062
        %v4543 = vmul.f32 %v2062, %v4542
        %vm4544 = vcmp.eq.f32.partialorder %v2062, inf
        %v4545 = vsel %vm4544, %v2062, %v4543
        %vm4546 = vcmp.eq.f32.partialorder %v2062, 0.0
        %v4547 = vand.u32 %v2062, 2147483648
        %v4548 = vsel %vm4546, %v4547, %v4545
        %v4549 = vrsqrt.pop %v2063
        %v4550 = vmul.f32 %v2063, %v4549
        %vm4551 = vcmp.eq.f32.partialorder %v2063, inf
        %v4552 = vsel %vm4551, %v2063, %v4550
        %vm4553 = vcmp.eq.f32.partialorder %v2063, 0.0
        %v4554 = vand.u32 %v2063, 2147483648
        %v4555 = vsel %vm4553, %v4554, %v4552
        %v4556 = vrsqrt.pop %v2064
        %v4557 = vmul.f32 %v2064, %v4556
        %vm4558 = vcmp.eq.f32.partialorder %v2064, inf
        %v4559 = vsel %vm4558, %v2064, %v4557
        %vm4560 = vcmp.eq.f32.partialorder %v2064, 0.0
        %v4561 = vand.u32 %v2064, 2147483648
        %v4562 = vsel %vm4560, %v4561, %v4559
        %v4563 = vrsqrt.pop %v2065
        %v4564 = vmul.f32 %v2065, %v4563
        %vm4565 = vcmp.eq.f32.partialorder %v2065, inf
        %v4566 = vsel %vm4565, %v2065, %v4564
        %vm4567 = vcmp.eq.f32.partialorder %v2065, 0.0
        %v4568 = vand.u32 %v2065, 2147483648
        %v4569 = vsel %vm4567, %v4568, %v4566
        %v4570 = vrsqrt.pop %v2066
        %v4571 = vmul.f32 %v2066, %v4570
        %vm4572 = vcmp.eq.f32.partialorder %v2066, inf
        %v4573 = vsel %vm4572, %v2066, %v4571
        %vm4574 = vcmp.eq.f32.partialorder %v2066, 0.0
        %v4575 = vand.u32 %v2066, 2147483648
        %v4576 = vsel %vm4574, %v4575, %v4573
        %v4577 = vrsqrt.pop %v2067
        %v4578 = vmul.f32 %v2067, %v4577
        %vm4579 = vcmp.eq.f32.partialorder %v2067, inf
        %v4580 = vsel %vm4579, %v2067, %v4578
        %vm4581 = vcmp.eq.f32.partialorder %v2067, 0.0
        %v4582 = vand.u32 %v2067, 2147483648
        %v4583 = vsel %vm4581, %v4582, %v4580
        %v4584 = vrsqrt.pop %v2068
        %v4585 = vmul.f32 %v2068, %v4584
        %vm4586 = vcmp.eq.f32.partialorder %v2068, inf
        %v4587 = vsel %vm4586, %v2068, %v4585
        %vm4588 = vcmp.eq.f32.partialorder %v2068, 0.0
        %v4589 = vand.u32 %v2068, 2147483648
        %v4590 = vsel %vm4588, %v4589, %v4587
        %v4591 = vrsqrt.pop %v2069
        %v4592 = vmul.f32 %v2069, %v4591
        %vm4593 = vcmp.eq.f32.partialorder %v2069, inf
        %v4594 = vsel %vm4593, %v2069, %v4592
        %vm4595 = vcmp.eq.f32.partialorder %v2069, 0.0
        %v4596 = vand.u32 %v2069, 2147483648
        %v4597 = vsel %vm4595, %v4596, %v4594
        %v4598 = vrsqrt.pop %v2070
        %v4599 = vmul.f32 %v2070, %v4598
        %vm4600 = vcmp.eq.f32.partialorder %v2070, inf
        %v4601 = vsel %vm4600, %v2070, %v4599
        %vm4602 = vcmp.eq.f32.partialorder %v2070, 0.0
        %v4603 = vand.u32 %v2070, 2147483648
        %v4604 = vsel %vm4602, %v4603, %v4601
        %v4605 = vrsqrt.pop %v2071
        %v4606 = vmul.f32 %v2071, %v4605
        %vm4607 = vcmp.eq.f32.partialorder %v2071, inf
        %v4608 = vsel %vm4607, %v2071, %v4606
        %vm4609 = vcmp.eq.f32.partialorder %v2071, 0.0
        %v4610 = vand.u32 %v2071, 2147483648
        %v4611 = vsel %vm4609, %v4610, %v4608
        %v4612 = vrsqrt.pop %v2072
        %v4613 = vmul.f32 %v2072, %v4612
        %vm4614 = vcmp.eq.f32.partialorder %v2072, inf
        %v4615 = vsel %vm4614, %v2072, %v4613
        %vm4616 = vcmp.eq.f32.partialorder %v2072, 0.0
        %v4617 = vand.u32 %v2072, 2147483648
        %v4618 = vsel %vm4616, %v4617, %v4615
        %v4619 = vrsqrt.pop %v2073
        %v4620 = vmul.f32 %v2073, %v4619
        %vm4621 = vcmp.eq.f32.partialorder %v2073, inf
        %v4622 = vsel %vm4621, %v2073, %v4620
        %vm4623 = vcmp.eq.f32.partialorder %v2073, 0.0
        %v4624 = vand.u32 %v2073, 2147483648
        %v4625 = vsel %vm4623, %v4624, %v4622
        %v4626 = vrsqrt.pop %v2074
        %v4627 = vmul.f32 %v2074, %v4626
        %vm4628 = vcmp.eq.f32.partialorder %v2074, inf
        %v4629 = vsel %vm4628, %v2074, %v4627
        %vm4630 = vcmp.eq.f32.partialorder %v2074, 0.0
        %v4631 = vand.u32 %v2074, 2147483648
        %v4632 = vsel %vm4630, %v4631, %v4629
        %v4633 = vrsqrt.pop %v2075
        %v4634 = vmul.f32 %v2075, %v4633
        %vm4635 = vcmp.eq.f32.partialorder %v2075, inf
        %v4636 = vsel %vm4635, %v2075, %v4634
        %vm4637 = vcmp.eq.f32.partialorder %v2075, 0.0
        %v4638 = vand.u32 %v2075, 2147483648
        %v4639 = vsel %vm4637, %v4638, %v4636
        %v4640 = vrsqrt.pop %v2076
        %v4641 = vmul.f32 %v2076, %v4640
        %vm4642 = vcmp.eq.f32.partialorder %v2076, inf
        %v4643 = vsel %vm4642, %v2076, %v4641
        %vm4644 = vcmp.eq.f32.partialorder %v2076, 0.0
        %v4645 = vand.u32 %v2076, 2147483648
        %v4646 = vsel %vm4644, %v4645, %v4643
        %v4647 = vrsqrt.pop %v2077
        %v4648 = vmul.f32 %v2077, %v4647
        %vm4649 = vcmp.eq.f32.partialorder %v2077, inf
        %v4650 = vsel %vm4649, %v2077, %v4648
        %vm4651 = vcmp.eq.f32.partialorder %v2077, 0.0
        %v4652 = vand.u32 %v2077, 2147483648
        %v4653 = vsel %vm4651, %v4652, %v4650
        %v4654 = vrsqrt.pop %v2078
        %v4655 = vmul.f32 %v2078, %v4654
        %vm4656 = vcmp.eq.f32.partialorder %v2078, inf
        %v4657 = vsel %vm4656, %v2078, %v4655
        %vm4658 = vcmp.eq.f32.partialorder %v2078, 0.0
        %v4659 = vand.u32 %v2078, 2147483648
        %v4660 = vsel %vm4658, %v4659, %v4657
        %v4661 = vrsqrt.pop %v2079
        %v4662 = vmul.f32 %v2079, %v4661
        %vm4663 = vcmp.eq.f32.partialorder %v2079, inf
        %v4664 = vsel %vm4663, %v2079, %v4662
        %vm4665 = vcmp.eq.f32.partialorder %v2079, 0.0
        %v4666 = vand.u32 %v2079, 2147483648
        %v4667 = vsel %vm4665, %v4666, %v4664
        %v4668 = vrsqrt.pop %v2080
        %v4669 = vmul.f32 %v2080, %v4668
        %vm4670 = vcmp.eq.f32.partialorder %v2080, inf
        %v4671 = vsel %vm4670, %v2080, %v4669
        %vm4672 = vcmp.eq.f32.partialorder %v2080, 0.0
        %v4673 = vand.u32 %v2080, 2147483648
        %v4674 = vsel %vm4672, %v4673, %v4671
        %v4675 = vrsqrt.pop %v2081
        %v4676 = vmul.f32 %v2081, %v4675
        %vm4677 = vcmp.eq.f32.partialorder %v2081, inf
        %v4678 = vsel %vm4677, %v2081, %v4676
        %vm4679 = vcmp.eq.f32.partialorder %v2081, 0.0
        %v4680 = vand.u32 %v2081, 2147483648
        %v4681 = vsel %vm4679, %v4680, %v4678
        %v4682 = vrsqrt.pop %v2082
        %v4683 = vmul.f32 %v2082, %v4682
        %vm4684 = vcmp.eq.f32.partialorder %v2082, inf
        %v4685 = vsel %vm4684, %v2082, %v4683
        %vm4686 = vcmp.eq.f32.partialorder %v2082, 0.0
        %v4687 = vand.u32 %v2082, 2147483648
        %v4688 = vsel %vm4686, %v4687, %v4685
        %v4689 = vrsqrt.pop %v2083
        %v4690 = vmul.f32 %v2083, %v4689
        %vm4691 = vcmp.eq.f32.partialorder %v2083, inf
        %v4692 = vsel %vm4691, %v2083, %v4690
        %vm4693 = vcmp.eq.f32.partialorder %v2083, 0.0
        %v4694 = vand.u32 %v2083, 2147483648
        %v4695 = vsel %vm4693, %v4694, %v4692
        %v4696 = vrsqrt.pop %v2084
        %v4697 = vmul.f32 %v2084, %v4696
        %vm4698 = vcmp.eq.f32.partialorder %v2084, inf
        %v4699 = vsel %vm4698, %v2084, %v4697
        %vm4700 = vcmp.eq.f32.partialorder %v2084, 0.0
        %v4701 = vand.u32 %v2084, 2147483648
        %v4702 = vsel %vm4700, %v4701, %v4699
        %v4703 = vrsqrt.pop %v2085
        %v4704 = vmul.f32 %v2085, %v4703
        %vm4705 = vcmp.eq.f32.partialorder %v2085, inf
        %v4706 = vsel %vm4705, %v2085, %v4704
        %vm4707 = vcmp.eq.f32.partialorder %v2085, 0.0
        %v4708 = vand.u32 %v2085, 2147483648
        %v4709 = vsel %vm4707, %v4708, %v4706
        %v4710 = vrsqrt.pop %v2086
        %v4711 = vmul.f32 %v2086, %v4710
        %vm4712 = vcmp.eq.f32.partialorder %v2086, inf
        %v4713 = vsel %vm4712, %v2086, %v4711
        %vm4714 = vcmp.eq.f32.partialorder %v2086, 0.0
        %v4715 = vand.u32 %v2086, 2147483648
        %v4716 = vsel %vm4714, %v4715, %v4713
        %v4717 = vrsqrt.pop %v2087
        %v4718 = vmul.f32 %v2087, %v4717
        %vm4719 = vcmp.eq.f32.partialorder %v2087, inf
        %v4720 = vsel %vm4719, %v2087, %v4718
        %vm4721 = vcmp.eq.f32.partialorder %v2087, 0.0
        %v4722 = vand.u32 %v2087, 2147483648
        %v4723 = vsel %vm4721, %v4722, %v4720
        %v4724 = vrsqrt.pop %v2088
        %v4725 = vmul.f32 %v2088, %v4724
        %vm4726 = vcmp.eq.f32.partialorder %v2088, inf
        %v4727 = vsel %vm4726, %v2088, %v4725
        %vm4728 = vcmp.eq.f32.partialorder %v2088, 0.0
        %v4729 = vand.u32 %v2088, 2147483648
        %v4730 = vsel %vm4728, %v4729, %v4727
        %v4731 = vrsqrt.pop %v2089
        %v4732 = vmul.f32 %v2089, %v4731
        %vm4733 = vcmp.eq.f32.partialorder %v2089, inf
        %v4734 = vsel %vm4733, %v2089, %v4732
        %vm4735 = vcmp.eq.f32.partialorder %v2089, 0.0
        %v4736 = vand.u32 %v2089, 2147483648
        %v4737 = vsel %vm4735, %v4736, %v4734
        %v4738 = vrsqrt.pop %v2090
        %v4739 = vmul.f32 %v2090, %v4738
        %vm4740 = vcmp.eq.f32.partialorder %v2090, inf
        %v4741 = vsel %vm4740, %v2090, %v4739
        %vm4742 = vcmp.eq.f32.partialorder %v2090, 0.0
        %v4743 = vand.u32 %v2090, 2147483648
        %v4744 = vsel %vm4742, %v4743, %v4741
        %v4745 = vrsqrt.pop %v2091
        %v4746 = vmul.f32 %v2091, %v4745
        %vm4747 = vcmp.eq.f32.partialorder %v2091, inf
        %v4748 = vsel %vm4747, %v2091, %v4746
        %vm4749 = vcmp.eq.f32.partialorder %v2091, 0.0
        %v4750 = vand.u32 %v2091, 2147483648
        %v4751 = vsel %vm4749, %v4750, %v4748
        %v4752 = vrsqrt.pop %v2092
        %v4753 = vmul.f32 %v2092, %v4752
        %vm4754 = vcmp.eq.f32.partialorder %v2092, inf
        %v4755 = vsel %vm4754, %v2092, %v4753
        %vm4756 = vcmp.eq.f32.partialorder %v2092, 0.0
        %v4757 = vand.u32 %v2092, 2147483648
        %v4758 = vsel %vm4756, %v4757, %v4755
        %v4759 = vrsqrt.pop %v2093
        %v4760 = vmul.f32 %v2093, %v4759
        %vm4761 = vcmp.eq.f32.partialorder %v2093, inf
        %v4762 = vsel %vm4761, %v2093, %v4760
        %vm4763 = vcmp.eq.f32.partialorder %v2093, 0.0
        %v4764 = vand.u32 %v2093, 2147483648
        %v4765 = vsel %vm4763, %v4764, %v4762
        %v4766 = vrsqrt.pop %v2094
        %v4767 = vmul.f32 %v2094, %v4766
        %vm4768 = vcmp.eq.f32.partialorder %v2094, inf
        %v4769 = vsel %vm4768, %v2094, %v4767
        %vm4770 = vcmp.eq.f32.partialorder %v2094, 0.0
        %v4771 = vand.u32 %v2094, 2147483648
        %v4772 = vsel %vm4770, %v4771, %v4769
        %v4773 = vrsqrt.pop %v2095
        %v4774 = vmul.f32 %v2095, %v4773
        %vm4775 = vcmp.eq.f32.partialorder %v2095, inf
        %v4776 = vsel %vm4775, %v2095, %v4774
        %vm4777 = vcmp.eq.f32.partialorder %v2095, 0.0
        %v4778 = vand.u32 %v2095, 2147483648
        %v4779 = vsel %vm4777, %v4778, %v4776
        %v4780 = vrsqrt.pop %v2096
        %v4781 = vmul.f32 %v2096, %v4780
        %vm4782 = vcmp.eq.f32.partialorder %v2096, inf
        %v4783 = vsel %vm4782, %v2096, %v4781
        %vm4784 = vcmp.eq.f32.partialorder %v2096, 0.0
        %v4785 = vand.u32 %v2096, 2147483648
        %v4786 = vsel %vm4784, %v4785, %v4783
        %v4787 = vrsqrt.pop %v2097
        %v4788 = vmul.f32 %v2097, %v4787
        %vm4789 = vcmp.eq.f32.partialorder %v2097, inf
        %v4790 = vsel %vm4789, %v2097, %v4788
        %vm4791 = vcmp.eq.f32.partialorder %v2097, 0.0
        %v4792 = vand.u32 %v2097, 2147483648
        %v4793 = vsel %vm4791, %v4792, %v4790
        %v4794 = vrsqrt.pop %v2098
        %v4795 = vmul.f32 %v2098, %v4794
        %vm4796 = vcmp.eq.f32.partialorder %v2098, inf
        %v4797 = vsel %vm4796, %v2098, %v4795
        %vm4798 = vcmp.eq.f32.partialorder %v2098, 0.0
        %v4799 = vand.u32 %v2098, 2147483648
        %v4800 = vsel %vm4798, %v4799, %v4797
        %v4801 = vrsqrt.pop %v2099
        %v4802 = vmul.f32 %v2099, %v4801
        %vm4803 = vcmp.eq.f32.partialorder %v2099, inf
        %v4804 = vsel %vm4803, %v2099, %v4802
        %vm4805 = vcmp.eq.f32.partialorder %v2099, 0.0
        %v4806 = vand.u32 %v2099, 2147483648
        %v4807 = vsel %vm4805, %v4806, %v4804
        %v4808 = vrsqrt.pop %v2100
        %v4809 = vmul.f32 %v2100, %v4808
        %vm4810 = vcmp.eq.f32.partialorder %v2100, inf
        %v4811 = vsel %vm4810, %v2100, %v4809
        %vm4812 = vcmp.eq.f32.partialorder %v2100, 0.0
        %v4813 = vand.u32 %v2100, 2147483648
        %v4814 = vsel %vm4812, %v4813, %v4811
        %v4815 = vrsqrt.pop %v2101
        %v4816 = vmul.f32 %v2101, %v4815
        %vm4817 = vcmp.eq.f32.partialorder %v2101, inf
        %v4818 = vsel %vm4817, %v2101, %v4816
        %vm4819 = vcmp.eq.f32.partialorder %v2101, 0.0
        %v4820 = vand.u32 %v2101, 2147483648
        %v4821 = vsel %vm4819, %v4820, %v4818
        %v4822 = vrsqrt.pop %v2102
        %v4823 = vmul.f32 %v2102, %v4822
        %vm4824 = vcmp.eq.f32.partialorder %v2102, inf
        %v4825 = vsel %vm4824, %v2102, %v4823
        %vm4826 = vcmp.eq.f32.partialorder %v2102, 0.0
        %v4827 = vand.u32 %v2102, 2147483648
        %v4828 = vsel %vm4826, %v4827, %v4825
        %v4829 = vrsqrt.pop %v2103
        %v4830 = vmul.f32 %v2103, %v4829
        %vm4831 = vcmp.eq.f32.partialorder %v2103, inf
        %v4832 = vsel %vm4831, %v2103, %v4830
        %vm4833 = vcmp.eq.f32.partialorder %v2103, 0.0
        %v4834 = vand.u32 %v2103, 2147483648
        %v4835 = vsel %vm4833, %v4834, %v4832
        %v4836 = vrsqrt.pop %v2104
        %v4837 = vmul.f32 %v2104, %v4836
        %vm4838 = vcmp.eq.f32.partialorder %v2104, inf
        %v4839 = vsel %vm4838, %v2104, %v4837
        %vm4840 = vcmp.eq.f32.partialorder %v2104, 0.0
        %v4841 = vand.u32 %v2104, 2147483648
        %v4842 = vsel %vm4840, %v4841, %v4839
        %v4843 = vrsqrt.pop %v2105
        %v4844 = vmul.f32 %v2105, %v4843
        %vm4845 = vcmp.eq.f32.partialorder %v2105, inf
        %v4846 = vsel %vm4845, %v2105, %v4844
        %vm4847 = vcmp.eq.f32.partialorder %v2105, 0.0
        %v4848 = vand.u32 %v2105, 2147483648
        %v4849 = vsel %vm4847, %v4848, %v4846
        %v4850 = vrsqrt.pop %v2106
        %v4851 = vmul.f32 %v2106, %v4850
        %vm4852 = vcmp.eq.f32.partialorder %v2106, inf
        %v4853 = vsel %vm4852, %v2106, %v4851
        %vm4854 = vcmp.eq.f32.partialorder %v2106, 0.0
        %v4855 = vand.u32 %v2106, 2147483648
        %v4856 = vsel %vm4854, %v4855, %v4853
        %v4857 = vrsqrt.pop %v2107
        %v4858 = vmul.f32 %v2107, %v4857
        %vm4859 = vcmp.eq.f32.partialorder %v2107, inf
        %v4860 = vsel %vm4859, %v2107, %v4858
        %vm4861 = vcmp.eq.f32.partialorder %v2107, 0.0
        %v4862 = vand.u32 %v2107, 2147483648
        %v4863 = vsel %vm4861, %v4862, %v4860
        %v4864 = vrsqrt.pop %v2108
        %v4865 = vmul.f32 %v2108, %v4864
        %vm4866 = vcmp.eq.f32.partialorder %v2108, inf
        %v4867 = vsel %vm4866, %v2108, %v4865
        %vm4868 = vcmp.eq.f32.partialorder %v2108, 0.0
        %v4869 = vand.u32 %v2108, 2147483648
        %v4870 = vsel %vm4868, %v4869, %v4867
        %v4871 = vrsqrt.pop %v2109
        %v4872 = vmul.f32 %v2109, %v4871
        %vm4873 = vcmp.eq.f32.partialorder %v2109, inf
        %v4874 = vsel %vm4873, %v2109, %v4872
        %vm4875 = vcmp.eq.f32.partialorder %v2109, 0.0
        %v4876 = vand.u32 %v2109, 2147483648
        %v4877 = vsel %vm4875, %v4876, %v4874
        %v4878 = vrsqrt.pop %v2110
        %v4879 = vmul.f32 %v2110, %v4878
        %vm4880 = vcmp.eq.f32.partialorder %v2110, inf
        %v4881 = vsel %vm4880, %v2110, %v4879
        %vm4882 = vcmp.eq.f32.partialorder %v2110, 0.0
        %v4883 = vand.u32 %v2110, 2147483648
        %v4884 = vsel %vm4882, %v4883, %v4881
        %v4885 = vrsqrt.pop %v2111
        %v4886 = vmul.f32 %v2111, %v4885
        %vm4887 = vcmp.eq.f32.partialorder %v2111, inf
        %v4888 = vsel %vm4887, %v2111, %v4886
        %vm4889 = vcmp.eq.f32.partialorder %v2111, 0.0
        %v4890 = vand.u32 %v2111, 2147483648
        %v4891 = vsel %vm4889, %v4890, %v4888
        %v4892 = vrsqrt.pop %v2112
        %v4893 = vmul.f32 %v2112, %v4892
        %vm4894 = vcmp.eq.f32.partialorder %v2112, inf
        %v4895 = vsel %vm4894, %v2112, %v4893
        %vm4896 = vcmp.eq.f32.partialorder %v2112, 0.0
        %v4897 = vand.u32 %v2112, 2147483648
        %v4898 = vsel %vm4896, %v4897, %v4895
        %v4899 = vrsqrt.pop %v2113
        %v4900 = vmul.f32 %v2113, %v4899
        %vm4901 = vcmp.eq.f32.partialorder %v2113, inf
        %v4902 = vsel %vm4901, %v2113, %v4900
        %vm4903 = vcmp.eq.f32.partialorder %v2113, 0.0
        %v4904 = vand.u32 %v2113, 2147483648
        %v4905 = vsel %vm4903, %v4904, %v4902
        %v4906 = vrsqrt.pop %v2114
        %v4907 = vmul.f32 %v2114, %v4906
        %vm4908 = vcmp.eq.f32.partialorder %v2114, inf
        %v4909 = vsel %vm4908, %v2114, %v4907
        %vm4910 = vcmp.eq.f32.partialorder %v2114, 0.0
        %v4911 = vand.u32 %v2114, 2147483648
        %v4912 = vsel %vm4910, %v4911, %v4909
        %v4913 = vrsqrt.pop %v2115
        %v4914 = vmul.f32 %v2115, %v4913
        %vm4915 = vcmp.eq.f32.partialorder %v2115, inf
        %v4916 = vsel %vm4915, %v2115, %v4914
        %vm4917 = vcmp.eq.f32.partialorder %v2115, 0.0
        %v4918 = vand.u32 %v2115, 2147483648
        %v4919 = vsel %vm4917, %v4918, %v4916
        %v4920 = vrsqrt.pop %v2116
        %v4921 = vmul.f32 %v2116, %v4920
        %vm4922 = vcmp.eq.f32.partialorder %v2116, inf
        %v4923 = vsel %vm4922, %v2116, %v4921
        %vm4924 = vcmp.eq.f32.partialorder %v2116, 0.0
        %v4925 = vand.u32 %v2116, 2147483648
        %v4926 = vsel %vm4924, %v4925, %v4923
        %v4927 = vrsqrt.pop %v2117
        %v4928 = vmul.f32 %v2117, %v4927
        %vm4929 = vcmp.eq.f32.partialorder %v2117, inf
        %v4930 = vsel %vm4929, %v2117, %v4928
        %vm4931 = vcmp.eq.f32.partialorder %v2117, 0.0
        %v4932 = vand.u32 %v2117, 2147483648
        %v4933 = vsel %vm4931, %v4932, %v4930
        %v4934 = vrsqrt.pop %v2118
        %v4935 = vmul.f32 %v2118, %v4934
        %vm4936 = vcmp.eq.f32.partialorder %v2118, inf
        %v4937 = vsel %vm4936, %v2118, %v4935
        %vm4938 = vcmp.eq.f32.partialorder %v2118, 0.0
        %v4939 = vand.u32 %v2118, 2147483648
        %v4940 = vsel %vm4938, %v4939, %v4937
        %v4941 = vrsqrt.pop %v2119
        %v4942 = vmul.f32 %v2119, %v4941
        %vm4943 = vcmp.eq.f32.partialorder %v2119, inf
        %v4944 = vsel %vm4943, %v2119, %v4942
        %vm4945 = vcmp.eq.f32.partialorder %v2119, 0.0
        %v4946 = vand.u32 %v2119, 2147483648
        %v4947 = vsel %vm4945, %v4946, %v4944
        %v4948 = vrsqrt.pop %v2120
        %v4949 = vmul.f32 %v2120, %v4948
        %vm4950 = vcmp.eq.f32.partialorder %v2120, inf
        %v4951 = vsel %vm4950, %v2120, %v4949
        %vm4952 = vcmp.eq.f32.partialorder %v2120, 0.0
        %v4953 = vand.u32 %v2120, 2147483648
        %v4954 = vsel %vm4952, %v4953, %v4951
        %v4955 = vrsqrt.pop %v2121
        %v4956 = vmul.f32 %v2121, %v4955
        %vm4957 = vcmp.eq.f32.partialorder %v2121, inf
        %v4958 = vsel %vm4957, %v2121, %v4956
        %vm4959 = vcmp.eq.f32.partialorder %v2121, 0.0
        %v4960 = vand.u32 %v2121, 2147483648
        %v4961 = vsel %vm4959, %v4960, %v4958
        %v4962 = vrsqrt.pop %v2122
        %v4963 = vmul.f32 %v2122, %v4962
        %vm4964 = vcmp.eq.f32.partialorder %v2122, inf
        %v4965 = vsel %vm4964, %v2122, %v4963
        %vm4966 = vcmp.eq.f32.partialorder %v2122, 0.0
        %v4967 = vand.u32 %v2122, 2147483648
        %v4968 = vsel %vm4966, %v4967, %v4965
        %v4969 = vrsqrt.pop %v2123
        %v4970 = vmul.f32 %v2123, %v4969
        %vm4971 = vcmp.eq.f32.partialorder %v2123, inf
        %v4972 = vsel %vm4971, %v2123, %v4970
        %vm4973 = vcmp.eq.f32.partialorder %v2123, 0.0
        %v4974 = vand.u32 %v2123, 2147483648
        %v4975 = vsel %vm4973, %v4974, %v4972
        %v4976 = vrsqrt.pop %v2124
        %v4977 = vmul.f32 %v2124, %v4976
        %vm4978 = vcmp.eq.f32.partialorder %v2124, inf
        %v4979 = vsel %vm4978, %v2124, %v4977
        %vm4980 = vcmp.eq.f32.partialorder %v2124, 0.0
        %v4981 = vand.u32 %v2124, 2147483648
        %v4982 = vsel %vm4980, %v4981, %v4979
        %v4983 = vrsqrt.pop %v2125
        %v4984 = vmul.f32 %v2125, %v4983
        %vm4985 = vcmp.eq.f32.partialorder %v2125, inf
        %v4986 = vsel %vm4985, %v2125, %v4984
        %vm4987 = vcmp.eq.f32.partialorder %v2125, 0.0
        %v4988 = vand.u32 %v2125, 2147483648
        %v4989 = vsel %vm4987, %v4988, %v4986
        %v4990 = vrsqrt.pop %v2126
        %v4991 = vmul.f32 %v2126, %v4990
        %vm4992 = vcmp.eq.f32.partialorder %v2126, inf
        %v4993 = vsel %vm4992, %v2126, %v4991
        %vm4994 = vcmp.eq.f32.partialorder %v2126, 0.0
        %v4995 = vand.u32 %v2126, 2147483648
        %v4996 = vsel %vm4994, %v4995, %v4993
        %v4997 = vrsqrt.pop %v2127
        %v4998 = vmul.f32 %v2127, %v4997
        %vm4999 = vcmp.eq.f32.partialorder %v2127, inf
        %v5000 = vsel %vm4999, %v2127, %v4998
        %vm5001 = vcmp.eq.f32.partialorder %v2127, 0.0
        %v5002 = vand.u32 %v2127, 2147483648
        %v5003 = vsel %vm5001, %v5002, %v5000
        %v5004 = vrsqrt.pop %v2128
        %v5005 = vmul.f32 %v2128, %v5004
        %vm5006 = vcmp.eq.f32.partialorder %v2128, inf
        %v5007 = vsel %vm5006, %v2128, %v5005
        %vm5008 = vcmp.eq.f32.partialorder %v2128, 0.0
        %v5009 = vand.u32 %v2128, 2147483648
        %v5010 = vsel %vm5008, %v5009, %v5007
        %v5011 = vrsqrt.pop %v2129
        %v5012 = vmul.f32 %v2129, %v5011
        %vm5013 = vcmp.eq.f32.partialorder %v2129, inf
        %v5014 = vsel %vm5013, %v2129, %v5012
        %vm5015 = vcmp.eq.f32.partialorder %v2129, 0.0
        %v5016 = vand.u32 %v2129, 2147483648
        %v5017 = vsel %vm5015, %v5016, %v5014
        %v5018 = vrsqrt.pop %v2130
        %v5019 = vmul.f32 %v2130, %v5018
        %vm5020 = vcmp.eq.f32.partialorder %v2130, inf
        %v5021 = vsel %vm5020, %v2130, %v5019
        %vm5022 = vcmp.eq.f32.partialorder %v2130, 0.0
        %v5023 = vand.u32 %v2130, 2147483648
        %v5024 = vsel %vm5022, %v5023, %v5021
        %v5025 = vrsqrt.pop %v2131
        %v5026 = vmul.f32 %v2131, %v5025
        %vm5027 = vcmp.eq.f32.partialorder %v2131, inf
        %v5028 = vsel %vm5027, %v2131, %v5026
        %vm5029 = vcmp.eq.f32.partialorder %v2131, 0.0
        %v5030 = vand.u32 %v2131, 2147483648
        %v5031 = vsel %vm5029, %v5030, %v5028
        %v5032 = vrsqrt.pop %v2132
        %v5033 = vmul.f32 %v2132, %v5032
        %vm5034 = vcmp.eq.f32.partialorder %v2132, inf
        %v5035 = vsel %vm5034, %v2132, %v5033
        %vm5036 = vcmp.eq.f32.partialorder %v2132, 0.0
        %v5037 = vand.u32 %v2132, 2147483648
        %v5038 = vsel %vm5036, %v5037, %v5035
        %v5039 = vrsqrt.pop %v2133
        %v5040 = vmul.f32 %v2133, %v5039
        %vm5041 = vcmp.eq.f32.partialorder %v2133, inf
        %v5042 = vsel %vm5041, %v2133, %v5040
        %vm5043 = vcmp.eq.f32.partialorder %v2133, 0.0
        %v5044 = vand.u32 %v2133, 2147483648
        %v5045 = vsel %vm5043, %v5044, %v5042
        %v5046 = vrsqrt.pop %v2134
        %v5047 = vmul.f32 %v2134, %v5046
        %vm5048 = vcmp.eq.f32.partialorder %v2134, inf
        %v5049 = vsel %vm5048, %v2134, %v5047
        %vm5050 = vcmp.eq.f32.partialorder %v2134, 0.0
        %v5051 = vand.u32 %v2134, 2147483648
        %v5052 = vsel %vm5050, %v5051, %v5049
        %v5053 = vrsqrt.pop %v2135
        %v5054 = vmul.f32 %v2135, %v5053
        %vm5055 = vcmp.eq.f32.partialorder %v2135, inf
        %v5056 = vsel %vm5055, %v2135, %v5054
        %vm5057 = vcmp.eq.f32.partialorder %v2135, 0.0
        %v5058 = vand.u32 %v2135, 2147483648
        %v5059 = vsel %vm5057, %v5058, %v5056
        %v5060 = vrsqrt.pop %v2136
        %v5061 = vmul.f32 %v2136, %v5060
        %vm5062 = vcmp.eq.f32.partialorder %v2136, inf
        %v5063 = vsel %vm5062, %v2136, %v5061
        %vm5064 = vcmp.eq.f32.partialorder %v2136, 0.0
        %v5065 = vand.u32 %v2136, 2147483648
        %v5066 = vsel %vm5064, %v5065, %v5063
        %v5067 = vrsqrt.pop %v2137
        %v5068 = vmul.f32 %v2137, %v5067
        %vm5069 = vcmp.eq.f32.partialorder %v2137, inf
        %v5070 = vsel %vm5069, %v2137, %v5068
        %vm5071 = vcmp.eq.f32.partialorder %v2137, 0.0
        %v5072 = vand.u32 %v2137, 2147483648
        %v5073 = vsel %vm5071, %v5072, %v5070
        %v5074 = vrsqrt.pop %v2138
        %v5075 = vmul.f32 %v2138, %v5074
        %vm5076 = vcmp.eq.f32.partialorder %v2138, inf
        %v5077 = vsel %vm5076, %v2138, %v5075
        %vm5078 = vcmp.eq.f32.partialorder %v2138, 0.0
        %v5079 = vand.u32 %v2138, 2147483648
        %v5080 = vsel %vm5078, %v5079, %v5077
        %v5081 = vrsqrt.pop %v2139
        %v5082 = vmul.f32 %v2139, %v5081
        %vm5083 = vcmp.eq.f32.partialorder %v2139, inf
        %v5084 = vsel %vm5083, %v2139, %v5082
        %vm5085 = vcmp.eq.f32.partialorder %v2139, 0.0
        %v5086 = vand.u32 %v2139, 2147483648
        %v5087 = vsel %vm5085, %v5086, %v5084
        %v5088 = vrsqrt.pop %v2140
        %v5089 = vmul.f32 %v2140, %v5088
        %vm5090 = vcmp.eq.f32.partialorder %v2140, inf
        %v5091 = vsel %vm5090, %v2140, %v5089
        %vm5092 = vcmp.eq.f32.partialorder %v2140, 0.0
        %v5093 = vand.u32 %v2140, 2147483648
        %v5094 = vsel %vm5092, %v5093, %v5091
        %v5095 = vrsqrt.pop %v2141
        %v5096 = vmul.f32 %v2141, %v5095
        %vm5097 = vcmp.eq.f32.partialorder %v2141, inf
        %v5098 = vsel %vm5097, %v2141, %v5096
        %vm5099 = vcmp.eq.f32.partialorder %v2141, 0.0
        %v5100 = vand.u32 %v2141, 2147483648
        %v5101 = vsel %vm5099, %v5100, %v5098
        %v5102 = vrsqrt.pop %v2142
        %v5103 = vmul.f32 %v2142, %v5102
        %vm5104 = vcmp.eq.f32.partialorder %v2142, inf
        %v5105 = vsel %vm5104, %v2142, %v5103
        %vm5106 = vcmp.eq.f32.partialorder %v2142, 0.0
        %v5107 = vand.u32 %v2142, 2147483648
        %v5108 = vsel %vm5106, %v5107, %v5105
        %v5109 = vrsqrt.pop %v2143
        %v5110 = vmul.f32 %v2143, %v5109
        %vm5111 = vcmp.eq.f32.partialorder %v2143, inf
        %v5112 = vsel %vm5111, %v2143, %v5110
        %vm5113 = vcmp.eq.f32.partialorder %v2143, 0.0
        %v5114 = vand.u32 %v2143, 2147483648
        %v5115 = vsel %vm5113, %v5114, %v5112
        %v5116 = vrsqrt.pop %v2144
        %v5117 = vmul.f32 %v2144, %v5116
        %vm5118 = vcmp.eq.f32.partialorder %v2144, inf
        %v5119 = vsel %vm5118, %v2144, %v5117
        %vm5120 = vcmp.eq.f32.partialorder %v2144, 0.0
        %v5121 = vand.u32 %v2144, 2147483648
        %v5122 = vsel %vm5120, %v5121, %v5119
        %v5123 = vrsqrt.pop %v2145
        %v5124 = vmul.f32 %v2145, %v5123
        %vm5125 = vcmp.eq.f32.partialorder %v2145, inf
        %v5126 = vsel %vm5125, %v2145, %v5124
        %vm5127 = vcmp.eq.f32.partialorder %v2145, 0.0
        %v5128 = vand.u32 %v2145, 2147483648
        %v5129 = vsel %vm5127, %v5128, %v5126
        %v5130 = vrsqrt.pop %v2146
        %v5131 = vmul.f32 %v2146, %v5130
        %vm5132 = vcmp.eq.f32.partialorder %v2146, inf
        %v5133 = vsel %vm5132, %v2146, %v5131
        %vm5134 = vcmp.eq.f32.partialorder %v2146, 0.0
        %v5135 = vand.u32 %v2146, 2147483648
        %v5136 = vsel %vm5134, %v5135, %v5133
        %v5137 = vrsqrt.pop %v2147
        %v5138 = vmul.f32 %v2147, %v5137
        %vm5139 = vcmp.eq.f32.partialorder %v2147, inf
        %v5140 = vsel %vm5139, %v2147, %v5138
        %vm5141 = vcmp.eq.f32.partialorder %v2147, 0.0
        %v5142 = vand.u32 %v2147, 2147483648
        %v5143 = vsel %vm5141, %v5142, %v5140
        %v5144 = vrsqrt.pop %v2148
        %v5145 = vmul.f32 %v2148, %v5144
        %vm5146 = vcmp.eq.f32.partialorder %v2148, inf
        %v5147 = vsel %vm5146, %v2148, %v5145
        %vm5148 = vcmp.eq.f32.partialorder %v2148, 0.0
        %v5149 = vand.u32 %v2148, 2147483648
        %v5150 = vsel %vm5148, %v5149, %v5147
        %v5151 = vrsqrt.pop %v2149
        %v5152 = vmul.f32 %v2149, %v5151
        %vm5153 = vcmp.eq.f32.partialorder %v2149, inf
        %v5154 = vsel %vm5153, %v2149, %v5152
        %vm5155 = vcmp.eq.f32.partialorder %v2149, 0.0
        %v5156 = vand.u32 %v2149, 2147483648
        %v5157 = vsel %vm5155, %v5156, %v5154
        %v5158 = vrsqrt.pop %v2150
        %v5159 = vmul.f32 %v2150, %v5158
        %vm5160 = vcmp.eq.f32.partialorder %v2150, inf
        %v5161 = vsel %vm5160, %v2150, %v5159
        %vm5162 = vcmp.eq.f32.partialorder %v2150, 0.0
        %v5163 = vand.u32 %v2150, 2147483648
        %v5164 = vsel %vm5162, %v5163, %v5161
        %v5165 = vrsqrt.pop %v2151
        %v5166 = vmul.f32 %v2151, %v5165
        %vm5167 = vcmp.eq.f32.partialorder %v2151, inf
        %v5168 = vsel %vm5167, %v2151, %v5166
        %vm5169 = vcmp.eq.f32.partialorder %v2151, 0.0
        %v5170 = vand.u32 %v2151, 2147483648
        %v5171 = vsel %vm5169, %v5170, %v5168
        %v5172 = vrsqrt.pop %v2152
        %v5173 = vmul.f32 %v2152, %v5172
        %vm5174 = vcmp.eq.f32.partialorder %v2152, inf
        %v5175 = vsel %vm5174, %v2152, %v5173
        %vm5176 = vcmp.eq.f32.partialorder %v2152, 0.0
        %v5177 = vand.u32 %v2152, 2147483648
        %v5178 = vsel %vm5176, %v5177, %v5175
        %v5179 = vrsqrt.pop %v2153
        %v5180 = vmul.f32 %v2153, %v5179
        %vm5181 = vcmp.eq.f32.partialorder %v2153, inf
        %v5182 = vsel %vm5181, %v2153, %v5180
        %vm5183 = vcmp.eq.f32.partialorder %v2153, 0.0
        %v5184 = vand.u32 %v2153, 2147483648
        %v5185 = vsel %vm5183, %v5184, %v5182
        %v5186 = vrsqrt.pop %v2154
        %v5187 = vmul.f32 %v2154, %v5186
        %vm5188 = vcmp.eq.f32.partialorder %v2154, inf
        %v5189 = vsel %vm5188, %v2154, %v5187
        %vm5190 = vcmp.eq.f32.partialorder %v2154, 0.0
        %v5191 = vand.u32 %v2154, 2147483648
        %v5192 = vsel %vm5190, %v5191, %v5189
        %v5193 = vrsqrt.pop %v2155
        %v5194 = vmul.f32 %v2155, %v5193
        %vm5195 = vcmp.eq.f32.partialorder %v2155, inf
        %v5196 = vsel %vm5195, %v2155, %v5194
        %vm5197 = vcmp.eq.f32.partialorder %v2155, 0.0
        %v5198 = vand.u32 %v2155, 2147483648
        %v5199 = vsel %vm5197, %v5198, %v5196
        %v5200 = vrsqrt.pop %v2156
        %v5201 = vmul.f32 %v2156, %v5200
        %vm5202 = vcmp.eq.f32.partialorder %v2156, inf
        %v5203 = vsel %vm5202, %v2156, %v5201
        %vm5204 = vcmp.eq.f32.partialorder %v2156, 0.0
        %v5205 = vand.u32 %v2156, 2147483648
        %v5206 = vsel %vm5204, %v5205, %v5203
        %v5207 = vrsqrt.pop %v2157
        %v5208 = vmul.f32 %v2157, %v5207
        %vm5209 = vcmp.eq.f32.partialorder %v2157, inf
        %v5210 = vsel %vm5209, %v2157, %v5208
        %vm5211 = vcmp.eq.f32.partialorder %v2157, 0.0
        %v5212 = vand.u32 %v2157, 2147483648
        %v5213 = vsel %vm5211, %v5212, %v5210
        %v5214 = vrsqrt.pop %v2158
        %v5215 = vmul.f32 %v2158, %v5214
        %vm5216 = vcmp.eq.f32.partialorder %v2158, inf
        %v5217 = vsel %vm5216, %v2158, %v5215
        %vm5218 = vcmp.eq.f32.partialorder %v2158, 0.0
        %v5219 = vand.u32 %v2158, 2147483648
        %v5220 = vsel %vm5218, %v5219, %v5217
        %v5221 = vrsqrt.pop %v2159
        %v5222 = vmul.f32 %v2159, %v5221
        %vm5223 = vcmp.eq.f32.partialorder %v2159, inf
        %v5224 = vsel %vm5223, %v2159, %v5222
        %vm5225 = vcmp.eq.f32.partialorder %v2159, 0.0
        %v5226 = vand.u32 %v2159, 2147483648
        %v5227 = vsel %vm5225, %v5226, %v5224
        %v5228 = vrsqrt.pop %v2160
        %v5229 = vmul.f32 %v2160, %v5228
        %vm5230 = vcmp.eq.f32.partialorder %v2160, inf
        %v5231 = vsel %vm5230, %v2160, %v5229
        %vm5232 = vcmp.eq.f32.partialorder %v2160, 0.0
        %v5233 = vand.u32 %v2160, 2147483648
        %v5234 = vsel %vm5232, %v5233, %v5231
        %v5235 = vrsqrt.pop %v2161
        %v5236 = vmul.f32 %v2161, %v5235
        %vm5237 = vcmp.eq.f32.partialorder %v2161, inf
        %v5238 = vsel %vm5237, %v2161, %v5236
        %vm5239 = vcmp.eq.f32.partialorder %v2161, 0.0
        %v5240 = vand.u32 %v2161, 2147483648
        %v5241 = vsel %vm5239, %v5240, %v5238
        %v5242 = vrsqrt.pop %v2162
        %v5243 = vmul.f32 %v2162, %v5242
        %vm5244 = vcmp.eq.f32.partialorder %v2162, inf
        %v5245 = vsel %vm5244, %v2162, %v5243
        %vm5246 = vcmp.eq.f32.partialorder %v2162, 0.0
        %v5247 = vand.u32 %v2162, 2147483648
        %v5248 = vsel %vm5246, %v5247, %v5245
        %v5249 = vrsqrt.pop %v2163
        %v5250 = vmul.f32 %v2163, %v5249
        %vm5251 = vcmp.eq.f32.partialorder %v2163, inf
        %v5252 = vsel %vm5251, %v2163, %v5250
        %vm5253 = vcmp.eq.f32.partialorder %v2163, 0.0
        %v5254 = vand.u32 %v2163, 2147483648
        %v5255 = vsel %vm5253, %v5254, %v5252
        %v5256 = vrsqrt.pop %v2164
        %v5257 = vmul.f32 %v2164, %v5256
        %vm5258 = vcmp.eq.f32.partialorder %v2164, inf
        %v5259 = vsel %vm5258, %v2164, %v5257
        %vm5260 = vcmp.eq.f32.partialorder %v2164, 0.0
        %v5261 = vand.u32 %v2164, 2147483648
        %v5262 = vsel %vm5260, %v5261, %v5259
        %v5263 = vrsqrt.pop %v2165
        %v5264 = vmul.f32 %v2165, %v5263
        %vm5265 = vcmp.eq.f32.partialorder %v2165, inf
        %v5266 = vsel %vm5265, %v2165, %v5264
        %vm5267 = vcmp.eq.f32.partialorder %v2165, 0.0
        %v5268 = vand.u32 %v2165, 2147483648
        %v5269 = vsel %vm5267, %v5268, %v5266
        %v5270 = vrsqrt.pop %v2166
        %v5271 = vmul.f32 %v2166, %v5270
        %vm5272 = vcmp.eq.f32.partialorder %v2166, inf
        %v5273 = vsel %vm5272, %v2166, %v5271
        %vm5274 = vcmp.eq.f32.partialorder %v2166, 0.0
        %v5275 = vand.u32 %v2166, 2147483648
        %v5276 = vsel %vm5274, %v5275, %v5273
        %v5277 = vrsqrt.pop %v2167
        %v5278 = vmul.f32 %v2167, %v5277
        %vm5279 = vcmp.eq.f32.partialorder %v2167, inf
        %v5280 = vsel %vm5279, %v2167, %v5278
        %vm5281 = vcmp.eq.f32.partialorder %v2167, 0.0
        %v5282 = vand.u32 %v2167, 2147483648
        %v5283 = vsel %vm5281, %v5282, %v5280
        %v5284 = vrsqrt.pop %v2168
        %v5285 = vmul.f32 %v2168, %v5284
        %vm5286 = vcmp.eq.f32.partialorder %v2168, inf
        %v5287 = vsel %vm5286, %v2168, %v5285
        %vm5288 = vcmp.eq.f32.partialorder %v2168, 0.0
        %v5289 = vand.u32 %v2168, 2147483648
        %v5290 = vsel %vm5288, %v5289, %v5287
        %v5291 = vrsqrt.pop %v2169
        %v5292 = vmul.f32 %v2169, %v5291
        %vm5293 = vcmp.eq.f32.partialorder %v2169, inf
        %v5294 = vsel %vm5293, %v2169, %v5292
        %vm5295 = vcmp.eq.f32.partialorder %v2169, 0.0
        %v5296 = vand.u32 %v2169, 2147483648
        %v5297 = vsel %vm5295, %v5296, %v5294
        %v5298 = vrsqrt.pop %v2170
        %v5299 = vmul.f32 %v2170, %v5298
        %vm5300 = vcmp.eq.f32.partialorder %v2170, inf
        %v5301 = vsel %vm5300, %v2170, %v5299
        %vm5302 = vcmp.eq.f32.partialorder %v2170, 0.0
        %v5303 = vand.u32 %v2170, 2147483648
        %v5304 = vsel %vm5302, %v5303, %v5301
        %v5305 = vrsqrt.pop %v2171
        %v5306 = vmul.f32 %v2171, %v5305
        %vm5307 = vcmp.eq.f32.partialorder %v2171, inf
        %v5308 = vsel %vm5307, %v2171, %v5306
        %vm5309 = vcmp.eq.f32.partialorder %v2171, 0.0
        %v5310 = vand.u32 %v2171, 2147483648
        %v5311 = vsel %vm5309, %v5310, %v5308
        %v5312 = vrsqrt.pop %v2172
        %v5313 = vmul.f32 %v2172, %v5312
        %vm5314 = vcmp.eq.f32.partialorder %v2172, inf
        %v5315 = vsel %vm5314, %v2172, %v5313
        %vm5316 = vcmp.eq.f32.partialorder %v2172, 0.0
        %v5317 = vand.u32 %v2172, 2147483648
        %v5318 = vsel %vm5316, %v5317, %v5315
        %v5319 = vrsqrt.pop %v2173
        %v5320 = vmul.f32 %v2173, %v5319
        %vm5321 = vcmp.eq.f32.partialorder %v2173, inf
        %v5322 = vsel %vm5321, %v2173, %v5320
        %vm5323 = vcmp.eq.f32.partialorder %v2173, 0.0
        %v5324 = vand.u32 %v2173, 2147483648
        %v5325 = vsel %vm5323, %v5324, %v5322
        %v5326 = vrsqrt.pop %v2174
        %v5327 = vmul.f32 %v2174, %v5326
        %vm5328 = vcmp.eq.f32.partialorder %v2174, inf
        %v5329 = vsel %vm5328, %v2174, %v5327
        %vm5330 = vcmp.eq.f32.partialorder %v2174, 0.0
        %v5331 = vand.u32 %v2174, 2147483648
        %v5332 = vsel %vm5330, %v5331, %v5329
        %v5333 = vrsqrt.pop %v2175
        %v5334 = vmul.f32 %v2175, %v5333
        %vm5335 = vcmp.eq.f32.partialorder %v2175, inf
        %v5336 = vsel %vm5335, %v2175, %v5334
        %vm5337 = vcmp.eq.f32.partialorder %v2175, 0.0
        %v5338 = vand.u32 %v2175, 2147483648
        %v5339 = vsel %vm5337, %v5338, %v5336
        %v5340 = vrsqrt.pop %v2176
        %v5341 = vmul.f32 %v2176, %v5340
        %vm5342 = vcmp.eq.f32.partialorder %v2176, inf
        %v5343 = vsel %vm5342, %v2176, %v5341
        %vm5344 = vcmp.eq.f32.partialorder %v2176, 0.0
        %v5345 = vand.u32 %v2176, 2147483648
        %v5346 = vsel %vm5344, %v5345, %v5343
        %v5347 = vrsqrt.pop %v2177
        %v5348 = vmul.f32 %v2177, %v5347
        %vm5349 = vcmp.eq.f32.partialorder %v2177, inf
        %v5350 = vsel %vm5349, %v2177, %v5348
        %vm5351 = vcmp.eq.f32.partialorder %v2177, 0.0
        %v5352 = vand.u32 %v2177, 2147483648
        %v5353 = vsel %vm5351, %v5352, %v5350
        %v5354 = vrsqrt.pop %v2178
        %v5355 = vmul.f32 %v2178, %v5354
        %vm5356 = vcmp.eq.f32.partialorder %v2178, inf
        %v5357 = vsel %vm5356, %v2178, %v5355
        %vm5358 = vcmp.eq.f32.partialorder %v2178, 0.0
        %v5359 = vand.u32 %v2178, 2147483648
        %v5360 = vsel %vm5358, %v5359, %v5357
        %v5361 = vrsqrt.pop %v2179
        %v5362 = vmul.f32 %v2179, %v5361
        %vm5363 = vcmp.eq.f32.partialorder %v2179, inf
        %v5364 = vsel %vm5363, %v2179, %v5362
        %vm5365 = vcmp.eq.f32.partialorder %v2179, 0.0
        %v5366 = vand.u32 %v2179, 2147483648
        %v5367 = vsel %vm5365, %v5366, %v5364
        %v5368 = vrsqrt.pop %v2180
        %v5369 = vmul.f32 %v2180, %v5368
        %vm5370 = vcmp.eq.f32.partialorder %v2180, inf
        %v5371 = vsel %vm5370, %v2180, %v5369
        %vm5372 = vcmp.eq.f32.partialorder %v2180, 0.0
        %v5373 = vand.u32 %v2180, 2147483648
        %v5374 = vsel %vm5372, %v5373, %v5371
        %v5375 = vrsqrt.pop %v2181
        %v5376 = vmul.f32 %v2181, %v5375
        %vm5377 = vcmp.eq.f32.partialorder %v2181, inf
        %v5378 = vsel %vm5377, %v2181, %v5376
        %vm5379 = vcmp.eq.f32.partialorder %v2181, 0.0
        %v5380 = vand.u32 %v2181, 2147483648
        %v5381 = vsel %vm5379, %v5380, %v5378
        %v5382 = vrsqrt.pop %v2182
        %v5383 = vmul.f32 %v2182, %v5382
        %vm5384 = vcmp.eq.f32.partialorder %v2182, inf
        %v5385 = vsel %vm5384, %v2182, %v5383
        %vm5386 = vcmp.eq.f32.partialorder %v2182, 0.0
        %v5387 = vand.u32 %v2182, 2147483648
        %v5388 = vsel %vm5386, %v5387, %v5385
        %v5389 = vrsqrt.pop %v2183
        %v5390 = vmul.f32 %v2183, %v5389
        %vm5391 = vcmp.eq.f32.partialorder %v2183, inf
        %v5392 = vsel %vm5391, %v2183, %v5390
        %vm5393 = vcmp.eq.f32.partialorder %v2183, 0.0
        %v5394 = vand.u32 %v2183, 2147483648
        %v5395 = vsel %vm5393, %v5394, %v5392
        %v5396 = vrsqrt.pop %v2184
        %v5397 = vmul.f32 %v2184, %v5396
        %vm5398 = vcmp.eq.f32.partialorder %v2184, inf
        %v5399 = vsel %vm5398, %v2184, %v5397
        %vm5400 = vcmp.eq.f32.partialorder %v2184, 0.0
        %v5401 = vand.u32 %v2184, 2147483648
        %v5402 = vsel %vm5400, %v5401, %v5399
        %v5403 = vrsqrt.pop %v2185
        %v5404 = vmul.f32 %v2185, %v5403
        %vm5405 = vcmp.eq.f32.partialorder %v2185, inf
        %v5406 = vsel %vm5405, %v2185, %v5404
        %vm5407 = vcmp.eq.f32.partialorder %v2185, 0.0
        %v5408 = vand.u32 %v2185, 2147483648
        %v5409 = vsel %vm5407, %v5408, %v5406
        %v5410 = vrsqrt.pop %v2186
        %v5411 = vmul.f32 %v2186, %v5410
        %vm5412 = vcmp.eq.f32.partialorder %v2186, inf
        %v5413 = vsel %vm5412, %v2186, %v5411
        %vm5414 = vcmp.eq.f32.partialorder %v2186, 0.0
        %v5415 = vand.u32 %v2186, 2147483648
        %v5416 = vsel %vm5414, %v5415, %v5413
        %v5417 = vrsqrt.pop %v2187
        %v5418 = vmul.f32 %v2187, %v5417
        %vm5419 = vcmp.eq.f32.partialorder %v2187, inf
        %v5420 = vsel %vm5419, %v2187, %v5418
        %vm5421 = vcmp.eq.f32.partialorder %v2187, 0.0
        %v5422 = vand.u32 %v2187, 2147483648
        %v5423 = vsel %vm5421, %v5422, %v5420
        %v5424 = vrsqrt.pop %v2188
        %v5425 = vmul.f32 %v2188, %v5424
        %vm5426 = vcmp.eq.f32.partialorder %v2188, inf
        %v5427 = vsel %vm5426, %v2188, %v5425
        %vm5428 = vcmp.eq.f32.partialorder %v2188, 0.0
        %v5429 = vand.u32 %v2188, 2147483648
        %v5430 = vsel %vm5428, %v5429, %v5427
        %v5431 = vrsqrt.pop %v2189
        %v5432 = vmul.f32 %v2189, %v5431
        %vm5433 = vcmp.eq.f32.partialorder %v2189, inf
        %v5434 = vsel %vm5433, %v2189, %v5432
        %vm5435 = vcmp.eq.f32.partialorder %v2189, 0.0
        %v5436 = vand.u32 %v2189, 2147483648
        %v5437 = vsel %vm5435, %v5436, %v5434
        %v5438 = vrsqrt.pop %v2190
        %v5439 = vmul.f32 %v2190, %v5438
        %vm5440 = vcmp.eq.f32.partialorder %v2190, inf
        %v5441 = vsel %vm5440, %v2190, %v5439
        %vm5442 = vcmp.eq.f32.partialorder %v2190, 0.0
        %v5443 = vand.u32 %v2190, 2147483648
        %v5444 = vsel %vm5442, %v5443, %v5441
        %v5445 = vrsqrt.pop %v2191
        %v5446 = vmul.f32 %v2191, %v5445
        %vm5447 = vcmp.eq.f32.partialorder %v2191, inf
        %v5448 = vsel %vm5447, %v2191, %v5446
        %vm5449 = vcmp.eq.f32.partialorder %v2191, 0.0
        %v5450 = vand.u32 %v2191, 2147483648
        %v5451 = vsel %vm5449, %v5450, %v5448
        %v5452 = vrsqrt.pop %v2192
        %v5453 = vmul.f32 %v2192, %v5452
        %vm5454 = vcmp.eq.f32.partialorder %v2192, inf
        %v5455 = vsel %vm5454, %v2192, %v5453
        %vm5456 = vcmp.eq.f32.partialorder %v2192, 0.0
        %v5457 = vand.u32 %v2192, 2147483648
        %v5458 = vsel %vm5456, %v5457, %v5455
        %v5459 = vrsqrt.pop %v2193
        %v5460 = vmul.f32 %v2193, %v5459
        %vm5461 = vcmp.eq.f32.partialorder %v2193, inf
        %v5462 = vsel %vm5461, %v2193, %v5460
        %vm5463 = vcmp.eq.f32.partialorder %v2193, 0.0
        %v5464 = vand.u32 %v2193, 2147483648
        %v5465 = vsel %vm5463, %v5464, %v5462
        %v5466 = vrsqrt.pop %v2194
        %v5467 = vmul.f32 %v2194, %v5466
        %vm5468 = vcmp.eq.f32.partialorder %v2194, inf
        %v5469 = vsel %vm5468, %v2194, %v5467
        %vm5470 = vcmp.eq.f32.partialorder %v2194, 0.0
        %v5471 = vand.u32 %v2194, 2147483648
        %v5472 = vsel %vm5470, %v5471, %v5469
        %v5473 = vrsqrt.pop %v2195
        %v5474 = vmul.f32 %v2195, %v5473
        %vm5475 = vcmp.eq.f32.partialorder %v2195, inf
        %v5476 = vsel %vm5475, %v2195, %v5474
        %vm5477 = vcmp.eq.f32.partialorder %v2195, 0.0
        %v5478 = vand.u32 %v2195, 2147483648
        %v5479 = vsel %vm5477, %v5478, %v5476
        %v5480 = vrsqrt.pop %v2196
        %v5481 = vmul.f32 %v2196, %v5480
        %vm5482 = vcmp.eq.f32.partialorder %v2196, inf
        %v5483 = vsel %vm5482, %v2196, %v5481
        %vm5484 = vcmp.eq.f32.partialorder %v2196, 0.0
        %v5485 = vand.u32 %v2196, 2147483648
        %v5486 = vsel %vm5484, %v5485, %v5483
        %v5487 = vrsqrt.pop %v2197
        %v5488 = vmul.f32 %v2197, %v5487
        %vm5489 = vcmp.eq.f32.partialorder %v2197, inf
        %v5490 = vsel %vm5489, %v2197, %v5488
        %vm5491 = vcmp.eq.f32.partialorder %v2197, 0.0
        %v5492 = vand.u32 %v2197, 2147483648
        %v5493 = vsel %vm5491, %v5492, %v5490
        %v5494 = vrsqrt.pop %v2198
        %v5495 = vmul.f32 %v2198, %v5494
        %vm5496 = vcmp.eq.f32.partialorder %v2198, inf
        %v5497 = vsel %vm5496, %v2198, %v5495
        %vm5498 = vcmp.eq.f32.partialorder %v2198, 0.0
        %v5499 = vand.u32 %v2198, 2147483648
        %v5500 = vsel %vm5498, %v5499, %v5497
        %v5501 = vrsqrt.pop %v2199
        %v5502 = vmul.f32 %v2199, %v5501
        %vm5503 = vcmp.eq.f32.partialorder %v2199, inf
        %v5504 = vsel %vm5503, %v2199, %v5502
        %vm5505 = vcmp.eq.f32.partialorder %v2199, 0.0
        %v5506 = vand.u32 %v2199, 2147483648
        %v5507 = vsel %vm5505, %v5506, %v5504
        %v5508 = vrsqrt.pop %v2200
        %v5509 = vmul.f32 %v2200, %v5508
        %vm5510 = vcmp.eq.f32.partialorder %v2200, inf
        %v5511 = vsel %vm5510, %v2200, %v5509
        %vm5512 = vcmp.eq.f32.partialorder %v2200, 0.0
        %v5513 = vand.u32 %v2200, 2147483648
        %v5514 = vsel %vm5512, %v5513, %v5511
        %v5515 = vrsqrt.pop %v2201
        %v5516 = vmul.f32 %v2201, %v5515
        %vm5517 = vcmp.eq.f32.partialorder %v2201, inf
        %v5518 = vsel %vm5517, %v2201, %v5516
        %vm5519 = vcmp.eq.f32.partialorder %v2201, 0.0
        %v5520 = vand.u32 %v2201, 2147483648
        %v5521 = vsel %vm5519, %v5520, %v5518
        %v5522 = vrsqrt.pop %v2202
        %v5523 = vmul.f32 %v2202, %v5522
        %vm5524 = vcmp.eq.f32.partialorder %v2202, inf
        %v5525 = vsel %vm5524, %v2202, %v5523
        %vm5526 = vcmp.eq.f32.partialorder %v2202, 0.0
        %v5527 = vand.u32 %v2202, 2147483648
        %v5528 = vsel %vm5526, %v5527, %v5525
        %v5529 = vrsqrt.pop %v2203
        %v5530 = vmul.f32 %v2203, %v5529
        %vm5531 = vcmp.eq.f32.partialorder %v2203, inf
        %v5532 = vsel %vm5531, %v2203, %v5530
        %vm5533 = vcmp.eq.f32.partialorder %v2203, 0.0
        %v5534 = vand.u32 %v2203, 2147483648
        %v5535 = vsel %vm5533, %v5534, %v5532
        %v5536 = vrsqrt.pop %v2204
        %v5537 = vmul.f32 %v2204, %v5536
        %vm5538 = vcmp.eq.f32.partialorder %v2204, inf
        %v5539 = vsel %vm5538, %v2204, %v5537
        %vm5540 = vcmp.eq.f32.partialorder %v2204, 0.0
        %v5541 = vand.u32 %v2204, 2147483648
        %v5542 = vsel %vm5540, %v5541, %v5539
        %v5543 = vrsqrt.pop %v2205
        %v5544 = vmul.f32 %v2205, %v5543
        %vm5545 = vcmp.eq.f32.partialorder %v2205, inf
        %v5546 = vsel %vm5545, %v2205, %v5544
        %vm5547 = vcmp.eq.f32.partialorder %v2205, 0.0
        %v5548 = vand.u32 %v2205, 2147483648
        %v5549 = vsel %vm5547, %v5548, %v5546
        %v5550 = vrsqrt.pop %v2206
        %v5551 = vmul.f32 %v2206, %v5550
        %vm5552 = vcmp.eq.f32.partialorder %v2206, inf
        %v5553 = vsel %vm5552, %v2206, %v5551
        %vm5554 = vcmp.eq.f32.partialorder %v2206, 0.0
        %v5555 = vand.u32 %v2206, 2147483648
        %v5556 = vsel %vm5554, %v5555, %v5553
        %v5557 = vrsqrt.pop %v2207
        %v5558 = vmul.f32 %v2207, %v5557
        %vm5559 = vcmp.eq.f32.partialorder %v2207, inf
        %v5560 = vsel %vm5559, %v2207, %v5558
        %vm5561 = vcmp.eq.f32.partialorder %v2207, 0.0
        %v5562 = vand.u32 %v2207, 2147483648
        %v5563 = vsel %vm5561, %v5562, %v5560
        %v5564 = vrsqrt.pop %v2208
        %v5565 = vmul.f32 %v2208, %v5564
        %vm5566 = vcmp.eq.f32.partialorder %v2208, inf
        %v5567 = vsel %vm5566, %v2208, %v5565
        %vm5568 = vcmp.eq.f32.partialorder %v2208, 0.0
        %v5569 = vand.u32 %v2208, 2147483648
        %v5570 = vsel %vm5568, %v5569, %v5567
        %v5571 = vrsqrt.pop %v2209
        %v5572 = vmul.f32 %v2209, %v5571
        %vm5573 = vcmp.eq.f32.partialorder %v2209, inf
        %v5574 = vsel %vm5573, %v2209, %v5572
        %vm5575 = vcmp.eq.f32.partialorder %v2209, 0.0
        %v5576 = vand.u32 %v2209, 2147483648
        %v5577 = vsel %vm5575, %v5576, %v5574
        %v5578 = vrsqrt.pop %v2210
        %v5579 = vmul.f32 %v2210, %v5578
        %vm5580 = vcmp.eq.f32.partialorder %v2210, inf
        %v5581 = vsel %vm5580, %v2210, %v5579
        %vm5582 = vcmp.eq.f32.partialorder %v2210, 0.0
        %v5583 = vand.u32 %v2210, 2147483648
        %v5584 = vsel %vm5582, %v5583, %v5581
        %v5585 = vrsqrt.pop %v2211
        %v5586 = vmul.f32 %v2211, %v5585
        %vm5587 = vcmp.eq.f32.partialorder %v2211, inf
        %v5588 = vsel %vm5587, %v2211, %v5586
        %vm5589 = vcmp.eq.f32.partialorder %v2211, 0.0
        %v5590 = vand.u32 %v2211, 2147483648
        %v5591 = vsel %vm5589, %v5590, %v5588
        %v5592 = vrsqrt.pop %v2212
        %v5593 = vmul.f32 %v2212, %v5592
        %vm5594 = vcmp.eq.f32.partialorder %v2212, inf
        %v5595 = vsel %vm5594, %v2212, %v5593
        %vm5596 = vcmp.eq.f32.partialorder %v2212, 0.0
        %v5597 = vand.u32 %v2212, 2147483648
        %v5598 = vsel %vm5596, %v5597, %v5595
        %v5599 = vrsqrt.pop %v2213
        %v5600 = vmul.f32 %v2213, %v5599
        %vm5601 = vcmp.eq.f32.partialorder %v2213, inf
        %v5602 = vsel %vm5601, %v2213, %v5600
        %vm5603 = vcmp.eq.f32.partialorder %v2213, 0.0
        %v5604 = vand.u32 %v2213, 2147483648
        %v5605 = vsel %vm5603, %v5604, %v5602
        %v5606 = vrsqrt.pop %v2214
        %v5607 = vmul.f32 %v2214, %v5606
        %vm5608 = vcmp.eq.f32.partialorder %v2214, inf
        %v5609 = vsel %vm5608, %v2214, %v5607
        %vm5610 = vcmp.eq.f32.partialorder %v2214, 0.0
        %v5611 = vand.u32 %v2214, 2147483648
        %v5612 = vsel %vm5610, %v5611, %v5609
        %v5613 = vrsqrt.pop %v2215
        %v5614 = vmul.f32 %v2215, %v5613
        %vm5615 = vcmp.eq.f32.partialorder %v2215, inf
        %v5616 = vsel %vm5615, %v2215, %v5614
        %vm5617 = vcmp.eq.f32.partialorder %v2215, 0.0
        %v5618 = vand.u32 %v2215, 2147483648
        %v5619 = vsel %vm5617, %v5618, %v5616
        %v5620 = vrsqrt.pop %v2216
        %v5621 = vmul.f32 %v2216, %v5620
        %vm5622 = vcmp.eq.f32.partialorder %v2216, inf
        %v5623 = vsel %vm5622, %v2216, %v5621
        %vm5624 = vcmp.eq.f32.partialorder %v2216, 0.0
        %v5625 = vand.u32 %v2216, 2147483648
        %v5626 = vsel %vm5624, %v5625, %v5623
        %v5627 = vrsqrt.pop %v2217
        %v5628 = vmul.f32 %v2217, %v5627
        %vm5629 = vcmp.eq.f32.partialorder %v2217, inf
        %v5630 = vsel %vm5629, %v2217, %v5628
        %vm5631 = vcmp.eq.f32.partialorder %v2217, 0.0
        %v5632 = vand.u32 %v2217, 2147483648
        %v5633 = vsel %vm5631, %v5632, %v5630
        %v5634 = vrsqrt.pop %v2218
        %v5635 = vmul.f32 %v2218, %v5634
        %vm5636 = vcmp.eq.f32.partialorder %v2218, inf
        %v5637 = vsel %vm5636, %v2218, %v5635
        %vm5638 = vcmp.eq.f32.partialorder %v2218, 0.0
        %v5639 = vand.u32 %v2218, 2147483648
        %v5640 = vsel %vm5638, %v5639, %v5637
        %v5641 = vrsqrt.pop %v2219
        %v5642 = vmul.f32 %v2219, %v5641
        %vm5643 = vcmp.eq.f32.partialorder %v2219, inf
        %v5644 = vsel %vm5643, %v2219, %v5642
        %vm5645 = vcmp.eq.f32.partialorder %v2219, 0.0
        %v5646 = vand.u32 %v2219, 2147483648
        %v5647 = vsel %vm5645, %v5646, %v5644
        %v5648 = vrsqrt.pop %v2220
        %v5649 = vmul.f32 %v2220, %v5648
        %vm5650 = vcmp.eq.f32.partialorder %v2220, inf
        %v5651 = vsel %vm5650, %v2220, %v5649
        %vm5652 = vcmp.eq.f32.partialorder %v2220, 0.0
        %v5653 = vand.u32 %v2220, 2147483648
        %v5654 = vsel %vm5652, %v5653, %v5651
        %v5655 = vrsqrt.pop %v2221
        %v5656 = vmul.f32 %v2221, %v5655
        %vm5657 = vcmp.eq.f32.partialorder %v2221, inf
        %v5658 = vsel %vm5657, %v2221, %v5656
        %vm5659 = vcmp.eq.f32.partialorder %v2221, 0.0
        %v5660 = vand.u32 %v2221, 2147483648
        %v5661 = vsel %vm5659, %v5660, %v5658
        %v5662 = vrsqrt.pop %v2222
        %v5663 = vmul.f32 %v2222, %v5662
        %vm5664 = vcmp.eq.f32.partialorder %v2222, inf
        %v5665 = vsel %vm5664, %v2222, %v5663
        %vm5666 = vcmp.eq.f32.partialorder %v2222, 0.0
        %v5667 = vand.u32 %v2222, 2147483648
        %v5668 = vsel %vm5666, %v5667, %v5665
        %v5669 = vrsqrt.pop %v2223
        %v5670 = vmul.f32 %v2223, %v5669
        %vm5671 = vcmp.eq.f32.partialorder %v2223, inf
        %v5672 = vsel %vm5671, %v2223, %v5670
        %vm5673 = vcmp.eq.f32.partialorder %v2223, 0.0
        %v5674 = vand.u32 %v2223, 2147483648
        %v5675 = vsel %vm5673, %v5674, %v5672
        %v5676 = vrsqrt.pop %v2224
        %v5677 = vmul.f32 %v2224, %v5676
        %vm5678 = vcmp.eq.f32.partialorder %v2224, inf
        %v5679 = vsel %vm5678, %v2224, %v5677
        %vm5680 = vcmp.eq.f32.partialorder %v2224, 0.0
        %v5681 = vand.u32 %v2224, 2147483648
        %v5682 = vsel %vm5680, %v5681, %v5679
        %v5683 = vrsqrt.pop %v2225
        %v5684 = vmul.f32 %v2225, %v5683
        %vm5685 = vcmp.eq.f32.partialorder %v2225, inf
        %v5686 = vsel %vm5685, %v2225, %v5684
        %vm5687 = vcmp.eq.f32.partialorder %v2225, 0.0
        %v5688 = vand.u32 %v2225, 2147483648
        %v5689 = vsel %vm5687, %v5688, %v5686
        %v5690 = vrsqrt.pop %v2226
        %v5691 = vmul.f32 %v2226, %v5690
        %vm5692 = vcmp.eq.f32.partialorder %v2226, inf
        %v5693 = vsel %vm5692, %v2226, %v5691
        %vm5694 = vcmp.eq.f32.partialorder %v2226, 0.0
        %v5695 = vand.u32 %v2226, 2147483648
        %v5696 = vsel %vm5694, %v5695, %v5693
        %v5697 = vrsqrt.pop %v2227
        %v5698 = vmul.f32 %v2227, %v5697
        %vm5699 = vcmp.eq.f32.partialorder %v2227, inf
        %v5700 = vsel %vm5699, %v2227, %v5698
        %vm5701 = vcmp.eq.f32.partialorder %v2227, 0.0
        %v5702 = vand.u32 %v2227, 2147483648
        %v5703 = vsel %vm5701, %v5702, %v5700
        %v5704 = vrsqrt.pop %v2228
        %v5705 = vmul.f32 %v2228, %v5704
        %vm5706 = vcmp.eq.f32.partialorder %v2228, inf
        %v5707 = vsel %vm5706, %v2228, %v5705
        %vm5708 = vcmp.eq.f32.partialorder %v2228, 0.0
        %v5709 = vand.u32 %v2228, 2147483648
        %v5710 = vsel %vm5708, %v5709, %v5707
        %v5711 = vrsqrt.pop %v2229
        %v5712 = vmul.f32 %v2229, %v5711
        %vm5713 = vcmp.eq.f32.partialorder %v2229, inf
        %v5714 = vsel %vm5713, %v2229, %v5712
        %vm5715 = vcmp.eq.f32.partialorder %v2229, 0.0
        %v5716 = vand.u32 %v2229, 2147483648
        %v5717 = vsel %vm5715, %v5716, %v5714
        %v5718 = vrsqrt.pop %v2230
        %v5719 = vmul.f32 %v2230, %v5718
        %vm5720 = vcmp.eq.f32.partialorder %v2230, inf
        %v5721 = vsel %vm5720, %v2230, %v5719
        %vm5722 = vcmp.eq.f32.partialorder %v2230, 0.0
        %v5723 = vand.u32 %v2230, 2147483648
        %v5724 = vsel %vm5722, %v5723, %v5721
        %v5725 = vrsqrt.pop %v2231
        %v5726 = vmul.f32 %v2231, %v5725
        %vm5727 = vcmp.eq.f32.partialorder %v2231, inf
        %v5728 = vsel %vm5727, %v2231, %v5726
        %vm5729 = vcmp.eq.f32.partialorder %v2231, 0.0
        %v5730 = vand.u32 %v2231, 2147483648
        %v5731 = vsel %vm5729, %v5730, %v5728
        %v5732 = vrsqrt.pop %v2232
        %v5733 = vmul.f32 %v2232, %v5732
        %vm5734 = vcmp.eq.f32.partialorder %v2232, inf
        %v5735 = vsel %vm5734, %v2232, %v5733
        %vm5736 = vcmp.eq.f32.partialorder %v2232, 0.0
        %v5737 = vand.u32 %v2232, 2147483648
        %v5738 = vsel %vm5736, %v5737, %v5735
        %v5739 = vrsqrt.pop %v2233
        %v5740 = vmul.f32 %v2233, %v5739
        %vm5741 = vcmp.eq.f32.partialorder %v2233, inf
        %v5742 = vsel %vm5741, %v2233, %v5740
        %vm5743 = vcmp.eq.f32.partialorder %v2233, 0.0
        %v5744 = vand.u32 %v2233, 2147483648
        %v5745 = vsel %vm5743, %v5744, %v5742
        %v5746 = vrsqrt.pop %v2234
        %v5747 = vmul.f32 %v2234, %v5746
        %vm5748 = vcmp.eq.f32.partialorder %v2234, inf
        %v5749 = vsel %vm5748, %v2234, %v5747
        %vm5750 = vcmp.eq.f32.partialorder %v2234, 0.0
        %v5751 = vand.u32 %v2234, 2147483648
        %v5752 = vsel %vm5750, %v5751, %v5749
        %v5753 = vrsqrt.pop %v2235
        %v5754 = vmul.f32 %v2235, %v5753
        %vm5755 = vcmp.eq.f32.partialorder %v2235, inf
        %v5756 = vsel %vm5755, %v2235, %v5754
        %vm5757 = vcmp.eq.f32.partialorder %v2235, 0.0
        %v5758 = vand.u32 %v2235, 2147483648
        %v5759 = vsel %vm5757, %v5758, %v5756
        %v5760 = vrsqrt.pop %v2236
        %v5761 = vmul.f32 %v2236, %v5760
        %vm5762 = vcmp.eq.f32.partialorder %v2236, inf
        %v5763 = vsel %vm5762, %v2236, %v5761
        %vm5764 = vcmp.eq.f32.partialorder %v2236, 0.0
        %v5765 = vand.u32 %v2236, 2147483648
        %v5766 = vsel %vm5764, %v5765, %v5763
        %v5767 = vrsqrt.pop %v2237
        %v5768 = vmul.f32 %v2237, %v5767
        %vm5769 = vcmp.eq.f32.partialorder %v2237, inf
        %v5770 = vsel %vm5769, %v2237, %v5768
        %vm5771 = vcmp.eq.f32.partialorder %v2237, 0.0
        %v5772 = vand.u32 %v2237, 2147483648
        %v5773 = vsel %vm5771, %v5772, %v5770
        %v5774 = vrsqrt.pop %v2238
        %v5775 = vmul.f32 %v2238, %v5774
        %vm5776 = vcmp.eq.f32.partialorder %v2238, inf
        %v5777 = vsel %vm5776, %v2238, %v5775
        %vm5778 = vcmp.eq.f32.partialorder %v2238, 0.0
        %v5779 = vand.u32 %v2238, 2147483648
        %v5780 = vsel %vm5778, %v5779, %v5777
        %v5781 = vrsqrt.pop %v2239
        %v5782 = vmul.f32 %v2239, %v5781
        %vm5783 = vcmp.eq.f32.partialorder %v2239, inf
        %v5784 = vsel %vm5783, %v2239, %v5782
        %vm5785 = vcmp.eq.f32.partialorder %v2239, 0.0
        %v5786 = vand.u32 %v2239, 2147483648
        %v5787 = vsel %vm5785, %v5786, %v5784
        %v5788 = vrsqrt.pop %v2240
        %v5789 = vmul.f32 %v2240, %v5788
        %vm5790 = vcmp.eq.f32.partialorder %v2240, inf
        %v5791 = vsel %vm5790, %v2240, %v5789
        %vm5792 = vcmp.eq.f32.partialorder %v2240, 0.0
        %v5793 = vand.u32 %v2240, 2147483648
        %v5794 = vsel %vm5792, %v5793, %v5791
        %v5795 = vrsqrt.pop %v2241
        %v5796 = vmul.f32 %v2241, %v5795
        %vm5797 = vcmp.eq.f32.partialorder %v2241, inf
        %v5798 = vsel %vm5797, %v2241, %v5796
        %vm5799 = vcmp.eq.f32.partialorder %v2241, 0.0
        %v5800 = vand.u32 %v2241, 2147483648
        %v5801 = vsel %vm5799, %v5800, %v5798
        %v5802 = vrsqrt.pop %v2242
        %v5803 = vmul.f32 %v2242, %v5802
        %vm5804 = vcmp.eq.f32.partialorder %v2242, inf
        %v5805 = vsel %vm5804, %v2242, %v5803
        %vm5806 = vcmp.eq.f32.partialorder %v2242, 0.0
        %v5807 = vand.u32 %v2242, 2147483648
        %v5808 = vsel %vm5806, %v5807, %v5805
        %v5809 = vrsqrt.pop %v2243
        %v5810 = vmul.f32 %v2243, %v5809
        %vm5811 = vcmp.eq.f32.partialorder %v2243, inf
        %v5812 = vsel %vm5811, %v2243, %v5810
        %vm5813 = vcmp.eq.f32.partialorder %v2243, 0.0
        %v5814 = vand.u32 %v2243, 2147483648
        %v5815 = vsel %vm5813, %v5814, %v5812
        %v5816 = vrsqrt.pop %v2244
        %v5817 = vmul.f32 %v2244, %v5816
        %vm5818 = vcmp.eq.f32.partialorder %v2244, inf
        %v5819 = vsel %vm5818, %v2244, %v5817
        %vm5820 = vcmp.eq.f32.partialorder %v2244, 0.0
        %v5821 = vand.u32 %v2244, 2147483648
        %v5822 = vsel %vm5820, %v5821, %v5819
        %v5823 = vrsqrt.pop %v2245
        %v5824 = vmul.f32 %v2245, %v5823
        %vm5825 = vcmp.eq.f32.partialorder %v2245, inf
        %v5826 = vsel %vm5825, %v2245, %v5824
        %vm5827 = vcmp.eq.f32.partialorder %v2245, 0.0
        %v5828 = vand.u32 %v2245, 2147483648
        %v5829 = vsel %vm5827, %v5828, %v5826
        %v5830 = vstv %s194
        %v5831 = vsub.f32 %v2252, %v5830
        %v5832 = vsub.f32 %v2259, %v5830
        %v5833 = vsub.f32 %v2266, %v5830
        %v5834 = vsub.f32 %v2273, %v5830
        %v5835 = vsub.f32 %v2280, %v5830
        %v5836 = vsub.f32 %v2287, %v5830
        %v5837 = vsub.f32 %v2294, %v5830
        %v5838 = vsub.f32 %v2301, %v5830
        %v5839 = vsub.f32 %v2308, %v5830
        %v5840 = vsub.f32 %v2315, %v5830
        %v5841 = vsub.f32 %v2322, %v5830
        %v5842 = vsub.f32 %v2329, %v5830
        %v5843 = vsub.f32 %v2336, %v5830
        %v5844 = vsub.f32 %v2343, %v5830
        %v5845 = vsub.f32 %v2350, %v5830
        %v5846 = vsub.f32 %v2357, %v5830
        %v5847 = vsub.f32 %v2364, %v5830
        %v5848 = vsub.f32 %v2371, %v5830
        %v5849 = vsub.f32 %v2378, %v5830
        %v5850 = vsub.f32 %v2385, %v5830
        %v5851 = vsub.f32 %v2392, %v5830
        %v5852 = vsub.f32 %v2399, %v5830
        %v5853 = vsub.f32 %v2406, %v5830
        %v5854 = vsub.f32 %v2413, %v5830
        %v5855 = vsub.f32 %v2420, %v5830
        %v5856 = vsub.f32 %v2427, %v5830
        %v5857 = vsub.f32 %v2434, %v5830
        %v5858 = vsub.f32 %v2441, %v5830
        %v5859 = vsub.f32 %v2448, %v5830
        %v5860 = vsub.f32 %v2455, %v5830
        %v5861 = vsub.f32 %v2462, %v5830
        %v5862 = vsub.f32 %v2469, %v5830
        %v5863 = vsub.f32 %v2476, %v5830
        %v5864 = vsub.f32 %v2483, %v5830
        %v5865 = vsub.f32 %v2490, %v5830
        %v5866 = vsub.f32 %v2497, %v5830
        %v5867 = vsub.f32 %v2504, %v5830
        %v5868 = vsub.f32 %v2511, %v5830
        %v5869 = vsub.f32 %v2518, %v5830
        %v5870 = vsub.f32 %v2525, %v5830
        %v5871 = vsub.f32 %v2532, %v5830
        %v5872 = vsub.f32 %v2539, %v5830
        %v5873 = vsub.f32 %v2546, %v5830
        %v5874 = vsub.f32 %v2553, %v5830
        %v5875 = vsub.f32 %v2560, %v5830
        %v5876 = vsub.f32 %v2567, %v5830
        %v5877 = vsub.f32 %v2574, %v5830
        %v5878 = vsub.f32 %v2581, %v5830
        %v5879 = vsub.f32 %v2588, %v5830
        %v5880 = vsub.f32 %v2595, %v5830
        %v5881 = vsub.f32 %v2602, %v5830
        %v5882 = vsub.f32 %v2609, %v5830
        %v5883 = vsub.f32 %v2616, %v5830
        %v5884 = vsub.f32 %v2623, %v5830
        %v5885 = vsub.f32 %v2630, %v5830
        %v5886 = vsub.f32 %v2637, %v5830
        %v5887 = vsub.f32 %v2644, %v5830
        %v5888 = vsub.f32 %v2651, %v5830
        %v5889 = vsub.f32 %v2658, %v5830
        %v5890 = vsub.f32 %v2665, %v5830
        %v5891 = vsub.f32 %v2672, %v5830
        %v5892 = vsub.f32 %v2679, %v5830
        %v5893 = vsub.f32 %v2686, %v5830
        %v5894 = vsub.f32 %v2693, %v5830
        %v5895 = vsub.f32 %v2700, %v5830
        %v5896 = vsub.f32 %v2707, %v5830
        %v5897 = vsub.f32 %v2714, %v5830
        %v5898 = vsub.f32 %v2721, %v5830
        %v5899 = vsub.f32 %v2728, %v5830
        %v5900 = vsub.f32 %v2735, %v5830
        %v5901 = vsub.f32 %v2742, %v5830
        %v5902 = vsub.f32 %v2749, %v5830
        %v5903 = vsub.f32 %v2756, %v5830
        %v5904 = vsub.f32 %v2763, %v5830
        %v5905 = vsub.f32 %v2770, %v5830
        %v5906 = vsub.f32 %v2777, %v5830
        %v5907 = vsub.f32 %v2784, %v5830
        %v5908 = vsub.f32 %v2791, %v5830
        %v5909 = vsub.f32 %v2798, %v5830
        %v5910 = vsub.f32 %v2805, %v5830
        %v5911 = vsub.f32 %v2812, %v5830
        %v5912 = vsub.f32 %v2819, %v5830
        %v5913 = vsub.f32 %v2826, %v5830
        %v5914 = vsub.f32 %v2833, %v5830
        %v5915 = vsub.f32 %v2840, %v5830
        %v5916 = vsub.f32 %v2847, %v5830
        %v5917 = vsub.f32 %v2854, %v5830
        %v5918 = vsub.f32 %v2861, %v5830
        %v5919 = vsub.f32 %v2868, %v5830
        %v5920 = vsub.f32 %v2875, %v5830
        %v5921 = vsub.f32 %v2882, %v5830
        %v5922 = vsub.f32 %v2889, %v5830
        %v5923 = vsub.f32 %v2896, %v5830
        %v5924 = vsub.f32 %v2903, %v5830
        %v5925 = vsub.f32 %v2910, %v5830
        %v5926 = vsub.f32 %v2917, %v5830
        %v5927 = vsub.f32 %v2924, %v5830
        %v5928 = vsub.f32 %v2931, %v5830
        %v5929 = vsub.f32 %v2938, %v5830
        %v5930 = vsub.f32 %v2945, %v5830
        %v5931 = vsub.f32 %v2952, %v5830
        %v5932 = vsub.f32 %v2959, %v5830
        %v5933 = vsub.f32 %v2966, %v5830
        %v5934 = vsub.f32 %v2973, %v5830
        %v5935 = vsub.f32 %v2980, %v5830
        %v5936 = vsub.f32 %v2987, %v5830
        %v5937 = vsub.f32 %v2994, %v5830
        %v5938 = vsub.f32 %v3001, %v5830
        %v5939 = vsub.f32 %v3008, %v5830
        %v5940 = vsub.f32 %v3015, %v5830
        %v5941 = vsub.f32 %v3022, %v5830
        %v5942 = vsub.f32 %v3029, %v5830
        %v5943 = vsub.f32 %v3036, %v5830
        %v5944 = vsub.f32 %v3043, %v5830
        %v5945 = vsub.f32 %v3050, %v5830
        %v5946 = vsub.f32 %v3057, %v5830
        %v5947 = vsub.f32 %v3064, %v5830
        %v5948 = vsub.f32 %v3071, %v5830
        %v5949 = vsub.f32 %v3078, %v5830
        %v5950 = vsub.f32 %v3085, %v5830
        %v5951 = vsub.f32 %v3092, %v5830
        %v5952 = vsub.f32 %v3099, %v5830
        %v5953 = vsub.f32 %v3106, %v5830
        %v5954 = vsub.f32 %v3113, %v5830
        %v5955 = vsub.f32 %v3120, %v5830
        %v5956 = vsub.f32 %v3127, %v5830
        %v5957 = vsub.f32 %v3134, %v5830
        %v5958 = vsub.f32 %v3141, %v5830
        %v5959 = vsub.f32 %v3148, %v5830
        %v5960 = vsub.f32 %v3155, %v5830
        %v5961 = vsub.f32 %v3162, %v5830
        %v5962 = vsub.f32 %v3169, %v5830
        %v5963 = vsub.f32 %v3176, %v5830
        %v5964 = vsub.f32 %v3183, %v5830
        %v5965 = vsub.f32 %v3190, %v5830
        %v5966 = vsub.f32 %v3197, %v5830
        %v5967 = vsub.f32 %v3204, %v5830
        %v5968 = vsub.f32 %v3211, %v5830
        %v5969 = vsub.f32 %v3218, %v5830
        %v5970 = vsub.f32 %v3225, %v5830
        %v5971 = vsub.f32 %v3232, %v5830
        %v5972 = vsub.f32 %v3239, %v5830
        %v5973 = vsub.f32 %v3246, %v5830
        %v5974 = vsub.f32 %v3253, %v5830
        %v5975 = vsub.f32 %v3260, %v5830
        %v5976 = vsub.f32 %v3267, %v5830
        %v5977 = vsub.f32 %v3274, %v5830
        %v5978 = vsub.f32 %v3281, %v5830
        %v5979 = vsub.f32 %v3288, %v5830
        %v5980 = vsub.f32 %v3295, %v5830
        %v5981 = vsub.f32 %v3302, %v5830
        %v5982 = vsub.f32 %v3309, %v5830
        %v5983 = vsub.f32 %v3316, %v5830
        %v5984 = vsub.f32 %v3323, %v5830
        %v5985 = vsub.f32 %v3330, %v5830
        %v5986 = vsub.f32 %v3337, %v5830
        %v5987 = vsub.f32 %v3344, %v5830
        %v5988 = vsub.f32 %v3351, %v5830
        %v5989 = vsub.f32 %v3358, %v5830
        %v5990 = vsub.f32 %v3365, %v5830
        %v5991 = vsub.f32 %v3372, %v5830
        %v5992 = vsub.f32 %v3379, %v5830
        %v5993 = vsub.f32 %v3386, %v5830
        %v5994 = vsub.f32 %v3393, %v5830
        %v5995 = vsub.f32 %v3400, %v5830
        %v5996 = vsub.f32 %v3407, %v5830
        %v5997 = vsub.f32 %v3414, %v5830
        %v5998 = vsub.f32 %v3421, %v5830
        %v5999 = vsub.f32 %v3428, %v5830
        %v6000 = vsub.f32 %v3435, %v5830
        %v6001 = vsub.f32 %v3442, %v5830
        %v6002 = vsub.f32 %v3449, %v5830
        %v6003 = vsub.f32 %v3456, %v5830
        %v6004 = vsub.f32 %v3463, %v5830
        %v6005 = vsub.f32 %v3470, %v5830
        %v6006 = vsub.f32 %v3477, %v5830
        %v6007 = vsub.f32 %v3484, %v5830
        %v6008 = vsub.f32 %v3491, %v5830
        %v6009 = vsub.f32 %v3498, %v5830
        %v6010 = vsub.f32 %v3505, %v5830
        %v6011 = vsub.f32 %v3512, %v5830
        %v6012 = vsub.f32 %v3519, %v5830
        %v6013 = vsub.f32 %v3526, %v5830
        %v6014 = vsub.f32 %v3533, %v5830
        %v6015 = vsub.f32 %v3540, %v5830
        %v6016 = vsub.f32 %v3547, %v5830
        %v6017 = vsub.f32 %v3554, %v5830
        %v6018 = vsub.f32 %v3561, %v5830
        %v6019 = vsub.f32 %v3568, %v5830
        %v6020 = vsub.f32 %v3575, %v5830
        %v6021 = vsub.f32 %v3582, %v5830
        %v6022 = vsub.f32 %v3589, %v5830
        %v6023 = vsub.f32 %v3596, %v5830
        %v6024 = vsub.f32 %v3603, %v5830
        %v6025 = vsub.f32 %v3610, %v5830
        %v6026 = vsub.f32 %v3617, %v5830
        %v6027 = vsub.f32 %v3624, %v5830
        %v6028 = vsub.f32 %v3631, %v5830
        %v6029 = vsub.f32 %v3638, %v5830
        %v6030 = vsub.f32 %v3645, %v5830
        %v6031 = vsub.f32 %v3652, %v5830
        %v6032 = vsub.f32 %v3659, %v5830
        %v6033 = vsub.f32 %v3666, %v5830
        %v6034 = vsub.f32 %v3673, %v5830
        %v6035 = vsub.f32 %v3680, %v5830
        %v6036 = vsub.f32 %v3687, %v5830
        %v6037 = vsub.f32 %v3694, %v5830
        %v6038 = vsub.f32 %v3701, %v5830
        %v6039 = vsub.f32 %v3708, %v5830
        %v6040 = vsub.f32 %v3715, %v5830
        %v6041 = vsub.f32 %v3722, %v5830
        %v6042 = vsub.f32 %v3729, %v5830
        %v6043 = vsub.f32 %v3736, %v5830
        %v6044 = vsub.f32 %v3743, %v5830
        %v6045 = vsub.f32 %v3750, %v5830
        %v6046 = vsub.f32 %v3757, %v5830
        %v6047 = vsub.f32 %v3764, %v5830
        %v6048 = vsub.f32 %v3771, %v5830
        %v6049 = vsub.f32 %v3778, %v5830
        %v6050 = vsub.f32 %v3785, %v5830
        %v6051 = vsub.f32 %v3792, %v5830
        %v6052 = vsub.f32 %v3799, %v5830
        %v6053 = vsub.f32 %v3806, %v5830
        %v6054 = vsub.f32 %v3813, %v5830
        %v6055 = vsub.f32 %v3820, %v5830
        %v6056 = vsub.f32 %v3827, %v5830
        %v6057 = vsub.f32 %v3834, %v5830
        %v6058 = vsub.f32 %v3841, %v5830
        %v6059 = vsub.f32 %v3848, %v5830
        %v6060 = vsub.f32 %v3855, %v5830
        %v6061 = vsub.f32 %v3862, %v5830
        %v6062 = vsub.f32 %v3869, %v5830
        %v6063 = vsub.f32 %v3876, %v5830
        %v6064 = vsub.f32 %v3883, %v5830
        %v6065 = vsub.f32 %v3890, %v5830
        %v6066 = vsub.f32 %v3897, %v5830
        %v6067 = vsub.f32 %v3904, %v5830
        %v6068 = vsub.f32 %v3911, %v5830
        %v6069 = vsub.f32 %v3918, %v5830
        %v6070 = vsub.f32 %v3925, %v5830
        %v6071 = vsub.f32 %v3932, %v5830
        %v6072 = vsub.f32 %v3939, %v5830
        %v6073 = vsub.f32 %v3946, %v5830
        %v6074 = vsub.f32 %v3953, %v5830
        %v6075 = vsub.f32 %v3960, %v5830
        %v6076 = vsub.f32 %v3967, %v5830
        %v6077 = vsub.f32 %v3974, %v5830
        %v6078 = vsub.f32 %v3981, %v5830
        %v6079 = vsub.f32 %v3988, %v5830
        %v6080 = vsub.f32 %v3995, %v5830
        %v6081 = vsub.f32 %v4002, %v5830
        %v6082 = vsub.f32 %v4009, %v5830
        %v6083 = vsub.f32 %v4016, %v5830
        %v6084 = vsub.f32 %v4023, %v5830
        %v6085 = vsub.f32 %v4030, %v5830
        %v6086 = vsub.f32 %v4037, %v5830
        %v6087 = vsub.f32 %v4044, %v5830
        %v6088 = vsub.f32 %v4051, %v5830
        %v6089 = vsub.f32 %v4058, %v5830
        %v6090 = vsub.f32 %v4065, %v5830
        %v6091 = vsub.f32 %v4072, %v5830
        %v6092 = vsub.f32 %v4079, %v5830
        %v6093 = vsub.f32 %v4086, %v5830
        %v6094 = vsub.f32 %v4093, %v5830
        %v6095 = vsub.f32 %v4100, %v5830
        %v6096 = vsub.f32 %v4107, %v5830
        %v6097 = vsub.f32 %v4114, %v5830
        %v6098 = vsub.f32 %v4121, %v5830
        %v6099 = vsub.f32 %v4128, %v5830
        %v6100 = vsub.f32 %v4135, %v5830
        %v6101 = vsub.f32 %v4142, %v5830
        %v6102 = vsub.f32 %v4149, %v5830
        %v6103 = vsub.f32 %v4156, %v5830
        %v6104 = vsub.f32 %v4163, %v5830
        %v6105 = vsub.f32 %v4170, %v5830
        %v6106 = vsub.f32 %v4177, %v5830
        %v6107 = vsub.f32 %v4184, %v5830
        %v6108 = vsub.f32 %v4191, %v5830
        %v6109 = vsub.f32 %v4198, %v5830
        %v6110 = vsub.f32 %v4205, %v5830
        %v6111 = vsub.f32 %v4212, %v5830
        %v6112 = vsub.f32 %v4219, %v5830
        %v6113 = vsub.f32 %v4226, %v5830
        %v6114 = vsub.f32 %v4233, %v5830
        %v6115 = vsub.f32 %v4240, %v5830
        %v6116 = vsub.f32 %v4247, %v5830
        %v6117 = vsub.f32 %v4254, %v5830
        %v6118 = vsub.f32 %v4261, %v5830
        %v6119 = vsub.f32 %v4268, %v5830
        %v6120 = vsub.f32 %v4275, %v5830
        %v6121 = vsub.f32 %v4282, %v5830
        %v6122 = vsub.f32 %v4289, %v5830
        %v6123 = vsub.f32 %v4296, %v5830
        %v6124 = vsub.f32 %v4303, %v5830
        %v6125 = vsub.f32 %v4310, %v5830
        %v6126 = vsub.f32 %v4317, %v5830
        %v6127 = vsub.f32 %v4324, %v5830
        %v6128 = vsub.f32 %v4331, %v5830
        %v6129 = vsub.f32 %v4338, %v5830
        %v6130 = vsub.f32 %v4345, %v5830
        %v6131 = vsub.f32 %v4352, %v5830
        %v6132 = vsub.f32 %v4359, %v5830
        %v6133 = vsub.f32 %v4366, %v5830
        %v6134 = vsub.f32 %v4373, %v5830
        %v6135 = vsub.f32 %v4380, %v5830
        %v6136 = vsub.f32 %v4387, %v5830
        %v6137 = vsub.f32 %v4394, %v5830
        %v6138 = vsub.f32 %v4401, %v5830
        %v6139 = vsub.f32 %v4408, %v5830
        %v6140 = vsub.f32 %v4415, %v5830
        %v6141 = vsub.f32 %v4422, %v5830
        %v6142 = vsub.f32 %v4429, %v5830
        %v6143 = vsub.f32 %v4436, %v5830
        %v6144 = vsub.f32 %v4443, %v5830
        %v6145 = vsub.f32 %v4450, %v5830
        %v6146 = vsub.f32 %v4457, %v5830
        %v6147 = vsub.f32 %v4464, %v5830
        %v6148 = vsub.f32 %v4471, %v5830
        %v6149 = vsub.f32 %v4478, %v5830
        %v6150 = vsub.f32 %v4485, %v5830
        %v6151 = vsub.f32 %v4492, %v5830
        %v6152 = vsub.f32 %v4499, %v5830
        %v6153 = vsub.f32 %v4506, %v5830
        %v6154 = vsub.f32 %v4513, %v5830
        %v6155 = vsub.f32 %v4520, %v5830
        %v6156 = vsub.f32 %v4527, %v5830
        %v6157 = vsub.f32 %v4534, %v5830
        %v6158 = vsub.f32 %v4541, %v5830
        %v6159 = vsub.f32 %v4548, %v5830
        %v6160 = vsub.f32 %v4555, %v5830
        %v6161 = vsub.f32 %v4562, %v5830
        %v6162 = vsub.f32 %v4569, %v5830
        %v6163 = vsub.f32 %v4576, %v5830
        %v6164 = vsub.f32 %v4583, %v5830
        %v6165 = vsub.f32 %v4590, %v5830
        %v6166 = vsub.f32 %v4597, %v5830
        %v6167 = vsub.f32 %v4604, %v5830
        %v6168 = vsub.f32 %v4611, %v5830
        %v6169 = vsub.f32 %v4618, %v5830
        %v6170 = vsub.f32 %v4625, %v5830
        %v6171 = vsub.f32 %v4632, %v5830
        %v6172 = vsub.f32 %v4639, %v5830
        %v6173 = vsub.f32 %v4646, %v5830
        %v6174 = vsub.f32 %v4653, %v5830
        %v6175 = vsub.f32 %v4660, %v5830
        %v6176 = vsub.f32 %v4667, %v5830
        %v6177 = vsub.f32 %v4674, %v5830
        %v6178 = vsub.f32 %v4681, %v5830
        %v6179 = vsub.f32 %v4688, %v5830
        %v6180 = vsub.f32 %v4695, %v5830
        %v6181 = vsub.f32 %v4702, %v5830
        %v6182 = vsub.f32 %v4709, %v5830
        %v6183 = vsub.f32 %v4716, %v5830
        %v6184 = vsub.f32 %v4723, %v5830
        %v6185 = vsub.f32 %v4730, %v5830
        %v6186 = vsub.f32 %v4737, %v5830
        %v6187 = vsub.f32 %v4744, %v5830
        %v6188 = vsub.f32 %v4751, %v5830
        %v6189 = vsub.f32 %v4758, %v5830
        %v6190 = vsub.f32 %v4765, %v5830
        %v6191 = vsub.f32 %v4772, %v5830
        %v6192 = vsub.f32 %v4779, %v5830
        %v6193 = vsub.f32 %v4786, %v5830
        %v6194 = vsub.f32 %v4793, %v5830
        %v6195 = vsub.f32 %v4800, %v5830
        %v6196 = vsub.f32 %v4807, %v5830
        %v6197 = vsub.f32 %v4814, %v5830
        %v6198 = vsub.f32 %v4821, %v5830
        %v6199 = vsub.f32 %v4828, %v5830
        %v6200 = vsub.f32 %v4835, %v5830
        %v6201 = vsub.f32 %v4842, %v5830
        %v6202 = vsub.f32 %v4849, %v5830
        %v6203 = vsub.f32 %v4856, %v5830
        %v6204 = vsub.f32 %v4863, %v5830
        %v6205 = vsub.f32 %v4870, %v5830
        %v6206 = vsub.f32 %v4877, %v5830
        %v6207 = vsub.f32 %v4884, %v5830
        %v6208 = vsub.f32 %v4891, %v5830
        %v6209 = vsub.f32 %v4898, %v5830
        %v6210 = vsub.f32 %v4905, %v5830
        %v6211 = vsub.f32 %v4912, %v5830
        %v6212 = vsub.f32 %v4919, %v5830
        %v6213 = vsub.f32 %v4926, %v5830
        %v6214 = vsub.f32 %v4933, %v5830
        %v6215 = vsub.f32 %v4940, %v5830
        %v6216 = vsub.f32 %v4947, %v5830
        %v6217 = vsub.f32 %v4954, %v5830
        %v6218 = vsub.f32 %v4961, %v5830
        %v6219 = vsub.f32 %v4968, %v5830
        %v6220 = vsub.f32 %v4975, %v5830
        %v6221 = vsub.f32 %v4982, %v5830
        %v6222 = vsub.f32 %v4989, %v5830
        %v6223 = vsub.f32 %v4996, %v5830
        %v6224 = vsub.f32 %v5003, %v5830
        %v6225 = vsub.f32 %v5010, %v5830
        %v6226 = vsub.f32 %v5017, %v5830
        %v6227 = vsub.f32 %v5024, %v5830
        %v6228 = vsub.f32 %v5031, %v5830
        %v6229 = vsub.f32 %v5038, %v5830
        %v6230 = vsub.f32 %v5045, %v5830
        %v6231 = vsub.f32 %v5052, %v5830
        %v6232 = vsub.f32 %v5059, %v5830
        %v6233 = vsub.f32 %v5066, %v5830
        %v6234 = vsub.f32 %v5073, %v5830
        %v6235 = vsub.f32 %v5080, %v5830
        %v6236 = vsub.f32 %v5087, %v5830
        %v6237 = vsub.f32 %v5094, %v5830
        %v6238 = vsub.f32 %v5101, %v5830
        %v6239 = vsub.f32 %v5108, %v5830
        %v6240 = vsub.f32 %v5115, %v5830
        %v6241 = vsub.f32 %v5122, %v5830
        %v6242 = vsub.f32 %v5129, %v5830
        %v6243 = vsub.f32 %v5136, %v5830
        %v6244 = vsub.f32 %v5143, %v5830
        %v6245 = vsub.f32 %v5150, %v5830
        %v6246 = vsub.f32 %v5157, %v5830
        %v6247 = vsub.f32 %v5164, %v5830
        %v6248 = vsub.f32 %v5171, %v5830
        %v6249 = vsub.f32 %v5178, %v5830
        %v6250 = vsub.f32 %v5185, %v5830
        %v6251 = vsub.f32 %v5192, %v5830
        %v6252 = vsub.f32 %v5199, %v5830
        %v6253 = vsub.f32 %v5206, %v5830
        %v6254 = vsub.f32 %v5213, %v5830
        %v6255 = vsub.f32 %v5220, %v5830
        %v6256 = vsub.f32 %v5227, %v5830
        %v6257 = vsub.f32 %v5234, %v5830
        %v6258 = vsub.f32 %v5241, %v5830
        %v6259 = vsub.f32 %v5248, %v5830
        %v6260 = vsub.f32 %v5255, %v5830
        %v6261 = vsub.f32 %v5262, %v5830
        %v6262 = vsub.f32 %v5269, %v5830
        %v6263 = vsub.f32 %v5276, %v5830
        %v6264 = vsub.f32 %v5283, %v5830
        %v6265 = vsub.f32 %v5290, %v5830
        %v6266 = vsub.f32 %v5297, %v5830
        %v6267 = vsub.f32 %v5304, %v5830
        %v6268 = vsub.f32 %v5311, %v5830
        %v6269 = vsub.f32 %v5318, %v5830
        %v6270 = vsub.f32 %v5325, %v5830
        %v6271 = vsub.f32 %v5332, %v5830
        %v6272 = vsub.f32 %v5339, %v5830
        %v6273 = vsub.f32 %v5346, %v5830
        %v6274 = vsub.f32 %v5353, %v5830
        %v6275 = vsub.f32 %v5360, %v5830
        %v6276 = vsub.f32 %v5367, %v5830
        %v6277 = vsub.f32 %v5374, %v5830
        %v6278 = vsub.f32 %v5381, %v5830
        %v6279 = vsub.f32 %v5388, %v5830
        %v6280 = vsub.f32 %v5395, %v5830
        %v6281 = vsub.f32 %v5402, %v5830
        %v6282 = vsub.f32 %v5409, %v5830
        %v6283 = vsub.f32 %v5416, %v5830
        %v6284 = vsub.f32 %v5423, %v5830
        %v6285 = vsub.f32 %v5430, %v5830
        %v6286 = vsub.f32 %v5437, %v5830
        %v6287 = vsub.f32 %v5444, %v5830
        %v6288 = vsub.f32 %v5451, %v5830
        %v6289 = vsub.f32 %v5458, %v5830
        %v6290 = vsub.f32 %v5465, %v5830
        %v6291 = vsub.f32 %v5472, %v5830
        %v6292 = vsub.f32 %v5479, %v5830
        %v6293 = vsub.f32 %v5486, %v5830
        %v6294 = vsub.f32 %v5493, %v5830
        %v6295 = vsub.f32 %v5500, %v5830
        %v6296 = vsub.f32 %v5507, %v5830
        %v6297 = vsub.f32 %v5514, %v5830
        %v6298 = vsub.f32 %v5521, %v5830
        %v6299 = vsub.f32 %v5528, %v5830
        %v6300 = vsub.f32 %v5535, %v5830
        %v6301 = vsub.f32 %v5542, %v5830
        %v6302 = vsub.f32 %v5549, %v5830
        %v6303 = vsub.f32 %v5556, %v5830
        %v6304 = vsub.f32 %v5563, %v5830
        %v6305 = vsub.f32 %v5570, %v5830
        %v6306 = vsub.f32 %v5577, %v5830
        %v6307 = vsub.f32 %v5584, %v5830
        %v6308 = vsub.f32 %v5591, %v5830
        %v6309 = vsub.f32 %v5598, %v5830
        %v6310 = vsub.f32 %v5605, %v5830
        %v6311 = vsub.f32 %v5612, %v5830
        %v6312 = vsub.f32 %v5619, %v5830
        %v6313 = vsub.f32 %v5626, %v5830
        %v6314 = vsub.f32 %v5633, %v5830
        %v6315 = vsub.f32 %v5640, %v5830
        %v6316 = vsub.f32 %v5647, %v5830
        %v6317 = vsub.f32 %v5654, %v5830
        %v6318 = vsub.f32 %v5661, %v5830
        %v6319 = vsub.f32 %v5668, %v5830
        %v6320 = vsub.f32 %v5675, %v5830
        %v6321 = vsub.f32 %v5682, %v5830
        %v6322 = vsub.f32 %v5689, %v5830
        %v6323 = vsub.f32 %v5696, %v5830
        %v6324 = vsub.f32 %v5703, %v5830
        %v6325 = vsub.f32 %v5710, %v5830
        %v6326 = vsub.f32 %v5717, %v5830
        %v6327 = vsub.f32 %v5724, %v5830
        %v6328 = vsub.f32 %v5731, %v5830
        %v6329 = vsub.f32 %v5738, %v5830
        %v6330 = vsub.f32 %v5745, %v5830
        %v6331 = vsub.f32 %v5752, %v5830
        %v6332 = vsub.f32 %v5759, %v5830
        %v6333 = vsub.f32 %v5766, %v5830
        %v6334 = vsub.f32 %v5773, %v5830
        %v6335 = vsub.f32 %v5780, %v5830
        %v6336 = vsub.f32 %v5787, %v5830
        %v6337 = vsub.f32 %v5794, %v5830
        %v6338 = vsub.f32 %v5801, %v5830
        %v6339 = vsub.f32 %v5808, %v5830
        %v6340 = vsub.f32 %v5815, %v5830
        %v6341 = vsub.f32 %v5822, %v5830
        %v6342 = vsub.f32 %v5829, %v5830
        %v6343 = vstv %s195
        %v6344 = vmul.f32 %v6343, %v5831
        %v6345 = vmul.f32 %v6343, %v5832
        %v6346 = vmul.f32 %v6343, %v5833
        %v6347 = vmul.f32 %v6343, %v5834
        %v6348 = vmul.f32 %v6343, %v5835
        %v6349 = vmul.f32 %v6343, %v5836
        %v6350 = vmul.f32 %v6343, %v5837
        %v6351 = vmul.f32 %v6343, %v5838
        %v6352 = vmul.f32 %v6343, %v5839
        %v6353 = vmul.f32 %v6343, %v5840
        %v6354 = vmul.f32 %v6343, %v5841
        %v6355 = vmul.f32 %v6343, %v5842
        %v6356 = vmul.f32 %v6343, %v5843
        %v6357 = vmul.f32 %v6343, %v5844
        %v6358 = vmul.f32 %v6343, %v5845
        %v6359 = vmul.f32 %v6343, %v5846
        %v6360 = vmul.f32 %v6343, %v5847
        %v6361 = vmul.f32 %v6343, %v5848
        %v6362 = vmul.f32 %v6343, %v5849
        %v6363 = vmul.f32 %v6343, %v5850
        %v6364 = vmul.f32 %v6343, %v5851
        %v6365 = vmul.f32 %v6343, %v5852
        %v6366 = vmul.f32 %v6343, %v5853
        %v6367 = vmul.f32 %v6343, %v5854
        %v6368 = vmul.f32 %v6343, %v5855
        %v6369 = vmul.f32 %v6343, %v5856
        %v6370 = vmul.f32 %v6343, %v5857
        %v6371 = vmul.f32 %v6343, %v5858
        %v6372 = vmul.f32 %v6343, %v5859
        %v6373 = vmul.f32 %v6343, %v5860
        %v6374 = vmul.f32 %v6343, %v5861
        %v6375 = vmul.f32 %v6343, %v5862
        %v6376 = vmul.f32 %v6343, %v5863
        %v6377 = vmul.f32 %v6343, %v5864
        %v6378 = vmul.f32 %v6343, %v5865
        %v6379 = vmul.f32 %v6343, %v5866
        %v6380 = vmul.f32 %v6343, %v5867
        %v6381 = vmul.f32 %v6343, %v5868
        %v6382 = vmul.f32 %v6343, %v5869
        %v6383 = vmul.f32 %v6343, %v5870
        %v6384 = vmul.f32 %v6343, %v5871
        %v6385 = vmul.f32 %v6343, %v5872
        %v6386 = vmul.f32 %v6343, %v5873
        %v6387 = vmul.f32 %v6343, %v5874
        %v6388 = vmul.f32 %v6343, %v5875
        %v6389 = vmul.f32 %v6343, %v5876
        %v6390 = vmul.f32 %v6343, %v5877
        %v6391 = vmul.f32 %v6343, %v5878
        %v6392 = vmul.f32 %v6343, %v5879
        %v6393 = vmul.f32 %v6343, %v5880
        %v6394 = vmul.f32 %v6343, %v5881
        %v6395 = vmul.f32 %v6343, %v5882
        %v6396 = vmul.f32 %v6343, %v5883
        %v6397 = vmul.f32 %v6343, %v5884
        %v6398 = vmul.f32 %v6343, %v5885
        %v6399 = vmul.f32 %v6343, %v5886
        %v6400 = vmul.f32 %v6343, %v5887
        %v6401 = vmul.f32 %v6343, %v5888
        %v6402 = vmul.f32 %v6343, %v5889
        %v6403 = vmul.f32 %v6343, %v5890
        %v6404 = vmul.f32 %v6343, %v5891
        %v6405 = vmul.f32 %v6343, %v5892
        %v6406 = vmul.f32 %v6343, %v5893
        %v6407 = vmul.f32 %v6343, %v5894
        %v6408 = vmul.f32 %v6343, %v5895
        %v6409 = vmul.f32 %v6343, %v5896
        %v6410 = vmul.f32 %v6343, %v5897
        %v6411 = vmul.f32 %v6343, %v5898
        %v6412 = vmul.f32 %v6343, %v5899
        %v6413 = vmul.f32 %v6343, %v5900
        %v6414 = vmul.f32 %v6343, %v5901
        %v6415 = vmul.f32 %v6343, %v5902
        %v6416 = vmul.f32 %v6343, %v5903
        %v6417 = vmul.f32 %v6343, %v5904
        %v6418 = vmul.f32 %v6343, %v5905
        %v6419 = vmul.f32 %v6343, %v5906
        %v6420 = vmul.f32 %v6343, %v5907
        %v6421 = vmul.f32 %v6343, %v5908
        %v6422 = vmul.f32 %v6343, %v5909
        %v6423 = vmul.f32 %v6343, %v5910
        %v6424 = vmul.f32 %v6343, %v5911
        %v6425 = vmul.f32 %v6343, %v5912
        %v6426 = vmul.f32 %v6343, %v5913
        %v6427 = vmul.f32 %v6343, %v5914
        %v6428 = vmul.f32 %v6343, %v5915
        %v6429 = vmul.f32 %v6343, %v5916
        %v6430 = vmul.f32 %v6343, %v5917
        %v6431 = vmul.f32 %v6343, %v5918
        %v6432 = vmul.f32 %v6343, %v5919
        %v6433 = vmul.f32 %v6343, %v5920
        %v6434 = vmul.f32 %v6343, %v5921
        %v6435 = vmul.f32 %v6343, %v5922
        %v6436 = vmul.f32 %v6343, %v5923
        %v6437 = vmul.f32 %v6343, %v5924
        %v6438 = vmul.f32 %v6343, %v5925
        %v6439 = vmul.f32 %v6343, %v5926
        %v6440 = vmul.f32 %v6343, %v5927
        %v6441 = vmul.f32 %v6343, %v5928
        %v6442 = vmul.f32 %v6343, %v5929
        %v6443 = vmul.f32 %v6343, %v5930
        %v6444 = vmul.f32 %v6343, %v5931
        %v6445 = vmul.f32 %v6343, %v5932
        %v6446 = vmul.f32 %v6343, %v5933
        %v6447 = vmul.f32 %v6343, %v5934
        %v6448 = vmul.f32 %v6343, %v5935
        %v6449 = vmul.f32 %v6343, %v5936
        %v6450 = vmul.f32 %v6343, %v5937
        %v6451 = vmul.f32 %v6343, %v5938
        %v6452 = vmul.f32 %v6343, %v5939
        %v6453 = vmul.f32 %v6343, %v5940
        %v6454 = vmul.f32 %v6343, %v5941
        %v6455 = vmul.f32 %v6343, %v5942
        %v6456 = vmul.f32 %v6343, %v5943
        %v6457 = vmul.f32 %v6343, %v5944
        %v6458 = vmul.f32 %v6343, %v5945
        %v6459 = vmul.f32 %v6343, %v5946
        %v6460 = vmul.f32 %v6343, %v5947
        %v6461 = vmul.f32 %v6343, %v5948
        %v6462 = vmul.f32 %v6343, %v5949
        %v6463 = vmul.f32 %v6343, %v5950
        %v6464 = vmul.f32 %v6343, %v5951
        %v6465 = vmul.f32 %v6343, %v5952
        %v6466 = vmul.f32 %v6343, %v5953
        %v6467 = vmul.f32 %v6343, %v5954
        %v6468 = vmul.f32 %v6343, %v5955
        %v6469 = vmul.f32 %v6343, %v5956
        %v6470 = vmul.f32 %v6343, %v5957
        %v6471 = vmul.f32 %v6343, %v5958
        %v6472 = vmul.f32 %v6343, %v5959
        %v6473 = vmul.f32 %v6343, %v5960
        %v6474 = vmul.f32 %v6343, %v5961
        %v6475 = vmul.f32 %v6343, %v5962
        %v6476 = vmul.f32 %v6343, %v5963
        %v6477 = vmul.f32 %v6343, %v5964
        %v6478 = vmul.f32 %v6343, %v5965
        %v6479 = vmul.f32 %v6343, %v5966
        %v6480 = vmul.f32 %v6343, %v5967
        %v6481 = vmul.f32 %v6343, %v5968
        %v6482 = vmul.f32 %v6343, %v5969
        %v6483 = vmul.f32 %v6343, %v5970
        %v6484 = vmul.f32 %v6343, %v5971
        %v6485 = vmul.f32 %v6343, %v5972
        %v6486 = vmul.f32 %v6343, %v5973
        %v6487 = vmul.f32 %v6343, %v5974
        %v6488 = vmul.f32 %v6343, %v5975
        %v6489 = vmul.f32 %v6343, %v5976
        %v6490 = vmul.f32 %v6343, %v5977
        %v6491 = vmul.f32 %v6343, %v5978
        %v6492 = vmul.f32 %v6343, %v5979
        %v6493 = vmul.f32 %v6343, %v5980
        %v6494 = vmul.f32 %v6343, %v5981
        %v6495 = vmul.f32 %v6343, %v5982
        %v6496 = vmul.f32 %v6343, %v5983
        %v6497 = vmul.f32 %v6343, %v5984
        %v6498 = vmul.f32 %v6343, %v5985
        %v6499 = vmul.f32 %v6343, %v5986
        %v6500 = vmul.f32 %v6343, %v5987
        %v6501 = vmul.f32 %v6343, %v5988
        %v6502 = vmul.f32 %v6343, %v5989
        %v6503 = vmul.f32 %v6343, %v5990
        %v6504 = vmul.f32 %v6343, %v5991
        %v6505 = vmul.f32 %v6343, %v5992
        %v6506 = vmul.f32 %v6343, %v5993
        %v6507 = vmul.f32 %v6343, %v5994
        %v6508 = vmul.f32 %v6343, %v5995
        %v6509 = vmul.f32 %v6343, %v5996
        %v6510 = vmul.f32 %v6343, %v5997
        %v6511 = vmul.f32 %v6343, %v5998
        %v6512 = vmul.f32 %v6343, %v5999
        %v6513 = vmul.f32 %v6343, %v6000
        %v6514 = vmul.f32 %v6343, %v6001
        %v6515 = vmul.f32 %v6343, %v6002
        %v6516 = vmul.f32 %v6343, %v6003
        %v6517 = vmul.f32 %v6343, %v6004
        %v6518 = vmul.f32 %v6343, %v6005
        %v6519 = vmul.f32 %v6343, %v6006
        %v6520 = vmul.f32 %v6343, %v6007
        %v6521 = vmul.f32 %v6343, %v6008
        %v6522 = vmul.f32 %v6343, %v6009
        %v6523 = vmul.f32 %v6343, %v6010
        %v6524 = vmul.f32 %v6343, %v6011
        %v6525 = vmul.f32 %v6343, %v6012
        %v6526 = vmul.f32 %v6343, %v6013
        %v6527 = vmul.f32 %v6343, %v6014
        %v6528 = vmul.f32 %v6343, %v6015
        %v6529 = vmul.f32 %v6343, %v6016
        %v6530 = vmul.f32 %v6343, %v6017
        %v6531 = vmul.f32 %v6343, %v6018
        %v6532 = vmul.f32 %v6343, %v6019
        %v6533 = vmul.f32 %v6343, %v6020
        %v6534 = vmul.f32 %v6343, %v6021
        %v6535 = vmul.f32 %v6343, %v6022
        %v6536 = vmul.f32 %v6343, %v6023
        %v6537 = vmul.f32 %v6343, %v6024
        %v6538 = vmul.f32 %v6343, %v6025
        %v6539 = vmul.f32 %v6343, %v6026
        %v6540 = vmul.f32 %v6343, %v6027
        %v6541 = vmul.f32 %v6343, %v6028
        %v6542 = vmul.f32 %v6343, %v6029
        %v6543 = vmul.f32 %v6343, %v6030
        %v6544 = vmul.f32 %v6343, %v6031
        %v6545 = vmul.f32 %v6343, %v6032
        %v6546 = vmul.f32 %v6343, %v6033
        %v6547 = vmul.f32 %v6343, %v6034
        %v6548 = vmul.f32 %v6343, %v6035
        %v6549 = vmul.f32 %v6343, %v6036
        %v6550 = vmul.f32 %v6343, %v6037
        %v6551 = vmul.f32 %v6343, %v6038
        %v6552 = vmul.f32 %v6343, %v6039
        %v6553 = vmul.f32 %v6343, %v6040
        %v6554 = vmul.f32 %v6343, %v6041
        %v6555 = vmul.f32 %v6343, %v6042
        %v6556 = vmul.f32 %v6343, %v6043
        %v6557 = vmul.f32 %v6343, %v6044
        %v6558 = vmul.f32 %v6343, %v6045
        %v6559 = vmul.f32 %v6343, %v6046
        %v6560 = vmul.f32 %v6343, %v6047
        %v6561 = vmul.f32 %v6343, %v6048
        %v6562 = vmul.f32 %v6343, %v6049
        %v6563 = vmul.f32 %v6343, %v6050
        %v6564 = vmul.f32 %v6343, %v6051
        %v6565 = vmul.f32 %v6343, %v6052
        %v6566 = vmul.f32 %v6343, %v6053
        %v6567 = vmul.f32 %v6343, %v6054
        %v6568 = vmul.f32 %v6343, %v6055
        %v6569 = vmul.f32 %v6343, %v6056
        %v6570 = vmul.f32 %v6343, %v6057
        %v6571 = vmul.f32 %v6343, %v6058
        %v6572 = vmul.f32 %v6343, %v6059
        %v6573 = vmul.f32 %v6343, %v6060
        %v6574 = vmul.f32 %v6343, %v6061
        %v6575 = vmul.f32 %v6343, %v6062
        %v6576 = vmul.f32 %v6343, %v6063
        %v6577 = vmul.f32 %v6343, %v6064
        %v6578 = vmul.f32 %v6343, %v6065
        %v6579 = vmul.f32 %v6343, %v6066
        %v6580 = vmul.f32 %v6343, %v6067
        %v6581 = vmul.f32 %v6343, %v6068
        %v6582 = vmul.f32 %v6343, %v6069
        %v6583 = vmul.f32 %v6343, %v6070
        %v6584 = vmul.f32 %v6343, %v6071
        %v6585 = vmul.f32 %v6343, %v6072
        %v6586 = vmul.f32 %v6343, %v6073
        %v6587 = vmul.f32 %v6343, %v6074
        %v6588 = vmul.f32 %v6343, %v6075
        %v6589 = vmul.f32 %v6343, %v6076
        %v6590 = vmul.f32 %v6343, %v6077
        %v6591 = vmul.f32 %v6343, %v6078
        %v6592 = vmul.f32 %v6343, %v6079
        %v6593 = vmul.f32 %v6343, %v6080
        %v6594 = vmul.f32 %v6343, %v6081
        %v6595 = vmul.f32 %v6343, %v6082
        %v6596 = vmul.f32 %v6343, %v6083
        %v6597 = vmul.f32 %v6343, %v6084
        %v6598 = vmul.f32 %v6343, %v6085
        %v6599 = vmul.f32 %v6343, %v6086
        %v6600 = vmul.f32 %v6343, %v6087
        %v6601 = vmul.f32 %v6343, %v6088
        %v6602 = vmul.f32 %v6343, %v6089
        %v6603 = vmul.f32 %v6343, %v6090
        %v6604 = vmul.f32 %v6343, %v6091
        %v6605 = vmul.f32 %v6343, %v6092
        %v6606 = vmul.f32 %v6343, %v6093
        %v6607 = vmul.f32 %v6343, %v6094
        %v6608 = vmul.f32 %v6343, %v6095
        %v6609 = vmul.f32 %v6343, %v6096
        %v6610 = vmul.f32 %v6343, %v6097
        %v6611 = vmul.f32 %v6343, %v6098
        %v6612 = vmul.f32 %v6343, %v6099
        %v6613 = vmul.f32 %v6343, %v6100
        %v6614 = vmul.f32 %v6343, %v6101
        %v6615 = vmul.f32 %v6343, %v6102
        %v6616 = vmul.f32 %v6343, %v6103
        %v6617 = vmul.f32 %v6343, %v6104
        %v6618 = vmul.f32 %v6343, %v6105
        %v6619 = vmul.f32 %v6343, %v6106
        %v6620 = vmul.f32 %v6343, %v6107
        %v6621 = vmul.f32 %v6343, %v6108
        %v6622 = vmul.f32 %v6343, %v6109
        %v6623 = vmul.f32 %v6343, %v6110
        %v6624 = vmul.f32 %v6343, %v6111
        %v6625 = vmul.f32 %v6343, %v6112
        %v6626 = vmul.f32 %v6343, %v6113
        %v6627 = vmul.f32 %v6343, %v6114
        %v6628 = vmul.f32 %v6343, %v6115
        %v6629 = vmul.f32 %v6343, %v6116
        %v6630 = vmul.f32 %v6343, %v6117
        %v6631 = vmul.f32 %v6343, %v6118
        %v6632 = vmul.f32 %v6343, %v6119
        %v6633 = vmul.f32 %v6343, %v6120
        %v6634 = vmul.f32 %v6343, %v6121
        %v6635 = vmul.f32 %v6343, %v6122
        %v6636 = vmul.f32 %v6343, %v6123
        %v6637 = vmul.f32 %v6343, %v6124
        %v6638 = vmul.f32 %v6343, %v6125
        %v6639 = vmul.f32 %v6343, %v6126
        %v6640 = vmul.f32 %v6343, %v6127
        %v6641 = vmul.f32 %v6343, %v6128
        %v6642 = vmul.f32 %v6343, %v6129
        %v6643 = vmul.f32 %v6343, %v6130
        %v6644 = vmul.f32 %v6343, %v6131
        %v6645 = vmul.f32 %v6343, %v6132
        %v6646 = vmul.f32 %v6343, %v6133
        %v6647 = vmul.f32 %v6343, %v6134
        %v6648 = vmul.f32 %v6343, %v6135
        %v6649 = vmul.f32 %v6343, %v6136
        %v6650 = vmul.f32 %v6343, %v6137
        %v6651 = vmul.f32 %v6343, %v6138
        %v6652 = vmul.f32 %v6343, %v6139
        %v6653 = vmul.f32 %v6343, %v6140
        %v6654 = vmul.f32 %v6343, %v6141
        %v6655 = vmul.f32 %v6343, %v6142
        %v6656 = vmul.f32 %v6343, %v6143
        %v6657 = vmul.f32 %v6343, %v6144
        %v6658 = vmul.f32 %v6343, %v6145
        %v6659 = vmul.f32 %v6343, %v6146
        %v6660 = vmul.f32 %v6343, %v6147
        %v6661 = vmul.f32 %v6343, %v6148
        %v6662 = vmul.f32 %v6343, %v6149
        %v6663 = vmul.f32 %v6343, %v6150
        %v6664 = vmul.f32 %v6343, %v6151
        %v6665 = vmul.f32 %v6343, %v6152
        %v6666 = vmul.f32 %v6343, %v6153
        %v6667 = vmul.f32 %v6343, %v6154
        %v6668 = vmul.f32 %v6343, %v6155
        %v6669 = vmul.f32 %v6343, %v6156
        %v6670 = vmul.f32 %v6343, %v6157
        %v6671 = vmul.f32 %v6343, %v6158
        %v6672 = vmul.f32 %v6343, %v6159
        %v6673 = vmul.f32 %v6343, %v6160
        %v6674 = vmul.f32 %v6343, %v6161
        %v6675 = vmul.f32 %v6343, %v6162
        %v6676 = vmul.f32 %v6343, %v6163
        %v6677 = vmul.f32 %v6343, %v6164
        %v6678 = vmul.f32 %v6343, %v6165
        %v6679 = vmul.f32 %v6343, %v6166
        %v6680 = vmul.f32 %v6343, %v6167
        %v6681 = vmul.f32 %v6343, %v6168
        %v6682 = vmul.f32 %v6343, %v6169
        %v6683 = vmul.f32 %v6343, %v6170
        %v6684 = vmul.f32 %v6343, %v6171
        %v6685 = vmul.f32 %v6343, %v6172
        %v6686 = vmul.f32 %v6343, %v6173
        %v6687 = vmul.f32 %v6343, %v6174
        %v6688 = vmul.f32 %v6343, %v6175
        %v6689 = vmul.f32 %v6343, %v6176
        %v6690 = vmul.f32 %v6343, %v6177
        %v6691 = vmul.f32 %v6343, %v6178
        %v6692 = vmul.f32 %v6343, %v6179
        %v6693 = vmul.f32 %v6343, %v6180
        %v6694 = vmul.f32 %v6343, %v6181
        %v6695 = vmul.f32 %v6343, %v6182
        %v6696 = vmul.f32 %v6343, %v6183
        %v6697 = vmul.f32 %v6343, %v6184
        %v6698 = vmul.f32 %v6343, %v6185
        %v6699 = vmul.f32 %v6343, %v6186
        %v6700 = vmul.f32 %v6343, %v6187
        %v6701 = vmul.f32 %v6343, %v6188
        %v6702 = vmul.f32 %v6343, %v6189
        %v6703 = vmul.f32 %v6343, %v6190
        %v6704 = vmul.f32 %v6343, %v6191
        %v6705 = vmul.f32 %v6343, %v6192
        %v6706 = vmul.f32 %v6343, %v6193
        %v6707 = vmul.f32 %v6343, %v6194
        %v6708 = vmul.f32 %v6343, %v6195
        %v6709 = vmul.f32 %v6343, %v6196
        %v6710 = vmul.f32 %v6343, %v6197
        %v6711 = vmul.f32 %v6343, %v6198
        %v6712 = vmul.f32 %v6343, %v6199
        %v6713 = vmul.f32 %v6343, %v6200
        %v6714 = vmul.f32 %v6343, %v6201
        %v6715 = vmul.f32 %v6343, %v6202
        %v6716 = vmul.f32 %v6343, %v6203
        %v6717 = vmul.f32 %v6343, %v6204
        %v6718 = vmul.f32 %v6343, %v6205
        %v6719 = vmul.f32 %v6343, %v6206
        %v6720 = vmul.f32 %v6343, %v6207
        %v6721 = vmul.f32 %v6343, %v6208
        %v6722 = vmul.f32 %v6343, %v6209
        %v6723 = vmul.f32 %v6343, %v6210
        %v6724 = vmul.f32 %v6343, %v6211
        %v6725 = vmul.f32 %v6343, %v6212
        %v6726 = vmul.f32 %v6343, %v6213
        %v6727 = vmul.f32 %v6343, %v6214
        %v6728 = vmul.f32 %v6343, %v6215
        %v6729 = vmul.f32 %v6343, %v6216
        %v6730 = vmul.f32 %v6343, %v6217
        %v6731 = vmul.f32 %v6343, %v6218
        %v6732 = vmul.f32 %v6343, %v6219
        %v6733 = vmul.f32 %v6343, %v6220
        %v6734 = vmul.f32 %v6343, %v6221
        %v6735 = vmul.f32 %v6343, %v6222
        %v6736 = vmul.f32 %v6343, %v6223
        %v6737 = vmul.f32 %v6343, %v6224
        %v6738 = vmul.f32 %v6343, %v6225
        %v6739 = vmul.f32 %v6343, %v6226
        %v6740 = vmul.f32 %v6343, %v6227
        %v6741 = vmul.f32 %v6343, %v6228
        %v6742 = vmul.f32 %v6343, %v6229
        %v6743 = vmul.f32 %v6343, %v6230
        %v6744 = vmul.f32 %v6343, %v6231
        %v6745 = vmul.f32 %v6343, %v6232
        %v6746 = vmul.f32 %v6343, %v6233
        %v6747 = vmul.f32 %v6343, %v6234
        %v6748 = vmul.f32 %v6343, %v6235
        %v6749 = vmul.f32 %v6343, %v6236
        %v6750 = vmul.f32 %v6343, %v6237
        %v6751 = vmul.f32 %v6343, %v6238
        %v6752 = vmul.f32 %v6343, %v6239
        %v6753 = vmul.f32 %v6343, %v6240
        %v6754 = vmul.f32 %v6343, %v6241
        %v6755 = vmul.f32 %v6343, %v6242
        %v6756 = vmul.f32 %v6343, %v6243
        %v6757 = vmul.f32 %v6343, %v6244
        %v6758 = vmul.f32 %v6343, %v6245
        %v6759 = vmul.f32 %v6343, %v6246
        %v6760 = vmul.f32 %v6343, %v6247
        %v6761 = vmul.f32 %v6343, %v6248
        %v6762 = vmul.f32 %v6343, %v6249
        %v6763 = vmul.f32 %v6343, %v6250
        %v6764 = vmul.f32 %v6343, %v6251
        %v6765 = vmul.f32 %v6343, %v6252
        %v6766 = vmul.f32 %v6343, %v6253
        %v6767 = vmul.f32 %v6343, %v6254
        %v6768 = vmul.f32 %v6343, %v6255
        %v6769 = vmul.f32 %v6343, %v6256
        %v6770 = vmul.f32 %v6343, %v6257
        %v6771 = vmul.f32 %v6343, %v6258
        %v6772 = vmul.f32 %v6343, %v6259
        %v6773 = vmul.f32 %v6343, %v6260
        %v6774 = vmul.f32 %v6343, %v6261
        %v6775 = vmul.f32 %v6343, %v6262
        %v6776 = vmul.f32 %v6343, %v6263
        %v6777 = vmul.f32 %v6343, %v6264
        %v6778 = vmul.f32 %v6343, %v6265
        %v6779 = vmul.f32 %v6343, %v6266
        %v6780 = vmul.f32 %v6343, %v6267
        %v6781 = vmul.f32 %v6343, %v6268
        %v6782 = vmul.f32 %v6343, %v6269
        %v6783 = vmul.f32 %v6343, %v6270
        %v6784 = vmul.f32 %v6343, %v6271
        %v6785 = vmul.f32 %v6343, %v6272
        %v6786 = vmul.f32 %v6343, %v6273
        %v6787 = vmul.f32 %v6343, %v6274
        %v6788 = vmul.f32 %v6343, %v6275
        %v6789 = vmul.f32 %v6343, %v6276
        %v6790 = vmul.f32 %v6343, %v6277
        %v6791 = vmul.f32 %v6343, %v6278
        %v6792 = vmul.f32 %v6343, %v6279
        %v6793 = vmul.f32 %v6343, %v6280
        %v6794 = vmul.f32 %v6343, %v6281
        %v6795 = vmul.f32 %v6343, %v6282
        %v6796 = vmul.f32 %v6343, %v6283
        %v6797 = vmul.f32 %v6343, %v6284
        %v6798 = vmul.f32 %v6343, %v6285
        %v6799 = vmul.f32 %v6343, %v6286
        %v6800 = vmul.f32 %v6343, %v6287
        %v6801 = vmul.f32 %v6343, %v6288
        %v6802 = vmul.f32 %v6343, %v6289
        %v6803 = vmul.f32 %v6343, %v6290
        %v6804 = vmul.f32 %v6343, %v6291
        %v6805 = vmul.f32 %v6343, %v6292
        %v6806 = vmul.f32 %v6343, %v6293
        %v6807 = vmul.f32 %v6343, %v6294
        %v6808 = vmul.f32 %v6343, %v6295
        %v6809 = vmul.f32 %v6343, %v6296
        %v6810 = vmul.f32 %v6343, %v6297
        %v6811 = vmul.f32 %v6343, %v6298
        %v6812 = vmul.f32 %v6343, %v6299
        %v6813 = vmul.f32 %v6343, %v6300
        %v6814 = vmul.f32 %v6343, %v6301
        %v6815 = vmul.f32 %v6343, %v6302
        %v6816 = vmul.f32 %v6343, %v6303
        %v6817 = vmul.f32 %v6343, %v6304
        %v6818 = vmul.f32 %v6343, %v6305
        %v6819 = vmul.f32 %v6343, %v6306
        %v6820 = vmul.f32 %v6343, %v6307
        %v6821 = vmul.f32 %v6343, %v6308
        %v6822 = vmul.f32 %v6343, %v6309
        %v6823 = vmul.f32 %v6343, %v6310
        %v6824 = vmul.f32 %v6343, %v6311
        %v6825 = vmul.f32 %v6343, %v6312
        %v6826 = vmul.f32 %v6343, %v6313
        %v6827 = vmul.f32 %v6343, %v6314
        %v6828 = vmul.f32 %v6343, %v6315
        %v6829 = vmul.f32 %v6343, %v6316
        %v6830 = vmul.f32 %v6343, %v6317
        %v6831 = vmul.f32 %v6343, %v6318
        %v6832 = vmul.f32 %v6343, %v6319
        %v6833 = vmul.f32 %v6343, %v6320
        %v6834 = vmul.f32 %v6343, %v6321
        %v6835 = vmul.f32 %v6343, %v6322
        %v6836 = vmul.f32 %v6343, %v6323
        %v6837 = vmul.f32 %v6343, %v6324
        %v6838 = vmul.f32 %v6343, %v6325
        %v6839 = vmul.f32 %v6343, %v6326
        %v6840 = vmul.f32 %v6343, %v6327
        %v6841 = vmul.f32 %v6343, %v6328
        %v6842 = vmul.f32 %v6343, %v6329
        %v6843 = vmul.f32 %v6343, %v6330
        %v6844 = vmul.f32 %v6343, %v6331
        %v6845 = vmul.f32 %v6343, %v6332
        %v6846 = vmul.f32 %v6343, %v6333
        %v6847 = vmul.f32 %v6343, %v6334
        %v6848 = vmul.f32 %v6343, %v6335
        %v6849 = vmul.f32 %v6343, %v6336
        %v6850 = vmul.f32 %v6343, %v6337
        %v6851 = vmul.f32 %v6343, %v6338
        %v6852 = vmul.f32 %v6343, %v6339
        %v6853 = vmul.f32 %v6343, %v6340
        %v6854 = vmul.f32 %v6343, %v6341
        %v6855 = vmul.f32 %v6343, %v6342
        %v6856 = vadd.f32 %v6344, %v196
        %v6857 = vadd.f32 %v6345, %v197
        %v6858 = vadd.f32 %v6346, %v198
        %v6859 = vadd.f32 %v6347, %v199
        %v6860 = vadd.f32 %v6348, %v200
        %v6861 = vadd.f32 %v6349, %v201
        %v6862 = vadd.f32 %v6350, %v202
        %v6863 = vadd.f32 %v6351, %v203
        %v6864 = vadd.f32 %v6352, %v204
        %v6865 = vadd.f32 %v6353, %v205
        %v6866 = vadd.f32 %v6354, %v206
        %v6867 = vadd.f32 %v6355, %v207
        %v6868 = vadd.f32 %v6356, %v208
        %v6869 = vadd.f32 %v6357, %v209
        %v6870 = vadd.f32 %v6358, %v210
        %v6871 = vadd.f32 %v6359, %v211
        %v6872 = vadd.f32 %v6360, %v212
        %v6873 = vadd.f32 %v6361, %v213
        %v6874 = vadd.f32 %v6362, %v214
        %v6875 = vadd.f32 %v6363, %v215
        %v6876 = vadd.f32 %v6364, %v216
        %v6877 = vadd.f32 %v6365, %v217
        %v6878 = vadd.f32 %v6366, %v218
        %v6879 = vadd.f32 %v6367, %v219
        %v6880 = vadd.f32 %v6368, %v220
        %v6881 = vadd.f32 %v6369, %v221
        %v6882 = vadd.f32 %v6370, %v222
        %v6883 = vadd.f32 %v6371, %v223
        %v6884 = vadd.f32 %v6372, %v224
        %v6885 = vadd.f32 %v6373, %v225
        %v6886 = vadd.f32 %v6374, %v226
        %v6887 = vadd.f32 %v6375, %v227
        %v6888 = vadd.f32 %v6376, %v228
        %v6889 = vadd.f32 %v6377, %v229
        %v6890 = vadd.f32 %v6378, %v230
        %v6891 = vadd.f32 %v6379, %v231
        %v6892 = vadd.f32 %v6380, %v232
        %v6893 = vadd.f32 %v6381, %v233
        %v6894 = vadd.f32 %v6382, %v234
        %v6895 = vadd.f32 %v6383, %v235
        %v6896 = vadd.f32 %v6384, %v236
        %v6897 = vadd.f32 %v6385, %v237
        %v6898 = vadd.f32 %v6386, %v238
        %v6899 = vadd.f32 %v6387, %v239
        %v6900 = vadd.f32 %v6388, %v240
        %v6901 = vadd.f32 %v6389, %v241
        %v6902 = vadd.f32 %v6390, %v242
        %v6903 = vadd.f32 %v6391, %v243
        %v6904 = vadd.f32 %v6392, %v244
        %v6905 = vadd.f32 %v6393, %v245
        %v6906 = vadd.f32 %v6394, %v246
        %v6907 = vadd.f32 %v6395, %v247
        %v6908 = vadd.f32 %v6396, %v248
        %v6909 = vadd.f32 %v6397, %v249
        %v6910 = vadd.f32 %v6398, %v250
        %v6911 = vadd.f32 %v6399, %v251
        %v6912 = vadd.f32 %v6400, %v252
        %v6913 = vadd.f32 %v6401, %v253
        %v6914 = vadd.f32 %v6402, %v254
        %v6915 = vadd.f32 %v6403, %v255
        %v6916 = vadd.f32 %v6404, %v256
        %v6917 = vadd.f32 %v6405, %v257
        %v6918 = vadd.f32 %v6406, %v258
        %v6919 = vadd.f32 %v6407, %v259
        %v6920 = vadd.f32 %v6408, %v260
        %v6921 = vadd.f32 %v6409, %v261
        %v6922 = vadd.f32 %v6410, %v262
        %v6923 = vadd.f32 %v6411, %v263
        %v6924 = vadd.f32 %v6412, %v264
        %v6925 = vadd.f32 %v6413, %v265
        %v6926 = vadd.f32 %v6414, %v266
        %v6927 = vadd.f32 %v6415, %v267
        %v6928 = vadd.f32 %v6416, %v268
        %v6929 = vadd.f32 %v6417, %v269
        %v6930 = vadd.f32 %v6418, %v270
        %v6931 = vadd.f32 %v6419, %v271
        %v6932 = vadd.f32 %v6420, %v272
        %v6933 = vadd.f32 %v6421, %v273
        %v6934 = vadd.f32 %v6422, %v274
        %v6935 = vadd.f32 %v6423, %v275
        %v6936 = vadd.f32 %v6424, %v276
        %v6937 = vadd.f32 %v6425, %v277
        %v6938 = vadd.f32 %v6426, %v278
        %v6939 = vadd.f32 %v6427, %v279
        %v6940 = vadd.f32 %v6428, %v280
        %v6941 = vadd.f32 %v6429, %v281
        %v6942 = vadd.f32 %v6430, %v282
        %v6943 = vadd.f32 %v6431, %v283
        %v6944 = vadd.f32 %v6432, %v284
        %v6945 = vadd.f32 %v6433, %v285
        %v6946 = vadd.f32 %v6434, %v286
        %v6947 = vadd.f32 %v6435, %v287
        %v6948 = vadd.f32 %v6436, %v288
        %v6949 = vadd.f32 %v6437, %v289
        %v6950 = vadd.f32 %v6438, %v290
        %v6951 = vadd.f32 %v6439, %v291
        %v6952 = vadd.f32 %v6440, %v292
        %v6953 = vadd.f32 %v6441, %v293
        %v6954 = vadd.f32 %v6442, %v294
        %v6955 = vadd.f32 %v6443, %v295
        %v6956 = vadd.f32 %v6444, %v296
        %v6957 = vadd.f32 %v6445, %v297
        %v6958 = vadd.f32 %v6446, %v298
        %v6959 = vadd.f32 %v6447, %v299
        %v6960 = vadd.f32 %v6448, %v300
        %v6961 = vadd.f32 %v6449, %v301
        %v6962 = vadd.f32 %v6450, %v302
        %v6963 = vadd.f32 %v6451, %v303
        %v6964 = vadd.f32 %v6452, %v304
        %v6965 = vadd.f32 %v6453, %v305
        %v6966 = vadd.f32 %v6454, %v306
        %v6967 = vadd.f32 %v6455, %v307
        %v6968 = vadd.f32 %v6456, %v308
        %v6969 = vadd.f32 %v6457, %v309
        %v6970 = vadd.f32 %v6458, %v310
        %v6971 = vadd.f32 %v6459, %v311
        %v6972 = vadd.f32 %v6460, %v312
        %v6973 = vadd.f32 %v6461, %v313
        %v6974 = vadd.f32 %v6462, %v314
        %v6975 = vadd.f32 %v6463, %v315
        %v6976 = vadd.f32 %v6464, %v316
        %v6977 = vadd.f32 %v6465, %v317
        %v6978 = vadd.f32 %v6466, %v318
        %v6979 = vadd.f32 %v6467, %v319
        %v6980 = vadd.f32 %v6468, %v320
        %v6981 = vadd.f32 %v6469, %v321
        %v6982 = vadd.f32 %v6470, %v322
        %v6983 = vadd.f32 %v6471, %v323
        %v6984 = vadd.f32 %v6472, %v324
        %v6985 = vadd.f32 %v6473, %v325
        %v6986 = vadd.f32 %v6474, %v326
        %v6987 = vadd.f32 %v6475, %v327
        %v6988 = vadd.f32 %v6476, %v328
        %v6989 = vadd.f32 %v6477, %v329
        %v6990 = vadd.f32 %v6478, %v330
        %v6991 = vadd.f32 %v6479, %v331
        %v6992 = vadd.f32 %v6480, %v332
        %v6993 = vadd.f32 %v6481, %v333
        %v6994 = vadd.f32 %v6482, %v334
        %v6995 = vadd.f32 %v6483, %v335
        %v6996 = vadd.f32 %v6484, %v336
        %v6997 = vadd.f32 %v6485, %v337
        %v6998 = vadd.f32 %v6486, %v338
        %v6999 = vadd.f32 %v6487, %v339
        %v7000 = vadd.f32 %v6488, %v340
        %v7001 = vadd.f32 %v6489, %v341
        %v7002 = vadd.f32 %v6490, %v342
        %v7003 = vadd.f32 %v6491, %v343
        %v7004 = vadd.f32 %v6492, %v344
        %v7005 = vadd.f32 %v6493, %v345
        %v7006 = vadd.f32 %v6494, %v346
        %v7007 = vadd.f32 %v6495, %v347
        %v7008 = vadd.f32 %v6496, %v348
        %v7009 = vadd.f32 %v6497, %v349
        %v7010 = vadd.f32 %v6498, %v350
        %v7011 = vadd.f32 %v6499, %v351
        %v7012 = vadd.f32 %v6500, %v352
        %v7013 = vadd.f32 %v6501, %v353
        %v7014 = vadd.f32 %v6502, %v354
        %v7015 = vadd.f32 %v6503, %v355
        %v7016 = vadd.f32 %v6504, %v356
        %v7017 = vadd.f32 %v6505, %v357
        %v7018 = vadd.f32 %v6506, %v358
        %v7019 = vadd.f32 %v6507, %v359
        %v7020 = vadd.f32 %v6508, %v360
        %v7021 = vadd.f32 %v6509, %v361
        %v7022 = vadd.f32 %v6510, %v362
        %v7023 = vadd.f32 %v6511, %v363
        %v7024 = vadd.f32 %v6512, %v364
        %v7025 = vadd.f32 %v6513, %v365
        %v7026 = vadd.f32 %v6514, %v366
        %v7027 = vadd.f32 %v6515, %v367
        %v7028 = vadd.f32 %v6516, %v368
        %v7029 = vadd.f32 %v6517, %v369
        %v7030 = vadd.f32 %v6518, %v370
        %v7031 = vadd.f32 %v6519, %v371
        %v7032 = vadd.f32 %v6520, %v372
        %v7033 = vadd.f32 %v6521, %v373
        %v7034 = vadd.f32 %v6522, %v374
        %v7035 = vadd.f32 %v6523, %v375
        %v7036 = vadd.f32 %v6524, %v376
        %v7037 = vadd.f32 %v6525, %v377
        %v7038 = vadd.f32 %v6526, %v378
        %v7039 = vadd.f32 %v6527, %v379
        %v7040 = vadd.f32 %v6528, %v380
        %v7041 = vadd.f32 %v6529, %v381
        %v7042 = vadd.f32 %v6530, %v382
        %v7043 = vadd.f32 %v6531, %v383
        %v7044 = vadd.f32 %v6532, %v384
        %v7045 = vadd.f32 %v6533, %v385
        %v7046 = vadd.f32 %v6534, %v386
        %v7047 = vadd.f32 %v6535, %v387
        %v7048 = vadd.f32 %v6536, %v388
        %v7049 = vadd.f32 %v6537, %v389
        %v7050 = vadd.f32 %v6538, %v390
        %v7051 = vadd.f32 %v6539, %v391
        %v7052 = vadd.f32 %v6540, %v392
        %v7053 = vadd.f32 %v6541, %v393
        %v7054 = vadd.f32 %v6542, %v394
        %v7055 = vadd.f32 %v6543, %v395
        %v7056 = vadd.f32 %v6544, %v396
        %v7057 = vadd.f32 %v6545, %v397
        %v7058 = vadd.f32 %v6546, %v398
        %v7059 = vadd.f32 %v6547, %v399
        %v7060 = vadd.f32 %v6548, %v400
        %v7061 = vadd.f32 %v6549, %v401
        %v7062 = vadd.f32 %v6550, %v402
        %v7063 = vadd.f32 %v6551, %v403
        %v7064 = vadd.f32 %v6552, %v404
        %v7065 = vadd.f32 %v6553, %v405
        %v7066 = vadd.f32 %v6554, %v406
        %v7067 = vadd.f32 %v6555, %v407
        %v7068 = vadd.f32 %v6556, %v408
        %v7069 = vadd.f32 %v6557, %v409
        %v7070 = vadd.f32 %v6558, %v410
        %v7071 = vadd.f32 %v6559, %v411
        %v7072 = vadd.f32 %v6560, %v412
        %v7073 = vadd.f32 %v6561, %v413
        %v7074 = vadd.f32 %v6562, %v414
        %v7075 = vadd.f32 %v6563, %v415
        %v7076 = vadd.f32 %v6564, %v416
        %v7077 = vadd.f32 %v6565, %v417
        %v7078 = vadd.f32 %v6566, %v418
        %v7079 = vadd.f32 %v6567, %v419
        %v7080 = vadd.f32 %v6568, %v420
        %v7081 = vadd.f32 %v6569, %v421
        %v7082 = vadd.f32 %v6570, %v422
        %v7083 = vadd.f32 %v6571, %v423
        %v7084 = vadd.f32 %v6572, %v424
        %v7085 = vadd.f32 %v6573, %v425
        %v7086 = vadd.f32 %v6574, %v426
        %v7087 = vadd.f32 %v6575, %v427
        %v7088 = vadd.f32 %v6576, %v428
        %v7089 = vadd.f32 %v6577, %v429
        %v7090 = vadd.f32 %v6578, %v430
        %v7091 = vadd.f32 %v6579, %v431
        %v7092 = vadd.f32 %v6580, %v432
        %v7093 = vadd.f32 %v6581, %v433
        %v7094 = vadd.f32 %v6582, %v434
        %v7095 = vadd.f32 %v6583, %v435
        %v7096 = vadd.f32 %v6584, %v436
        %v7097 = vadd.f32 %v6585, %v437
        %v7098 = vadd.f32 %v6586, %v438
        %v7099 = vadd.f32 %v6587, %v439
        %v7100 = vadd.f32 %v6588, %v440
        %v7101 = vadd.f32 %v6589, %v441
        %v7102 = vadd.f32 %v6590, %v442
        %v7103 = vadd.f32 %v6591, %v443
        %v7104 = vadd.f32 %v6592, %v444
        %v7105 = vadd.f32 %v6593, %v445
        %v7106 = vadd.f32 %v6594, %v446
        %v7107 = vadd.f32 %v6595, %v447
        %v7108 = vadd.f32 %v6596, %v448
        %v7109 = vadd.f32 %v6597, %v449
        %v7110 = vadd.f32 %v6598, %v450
        %v7111 = vadd.f32 %v6599, %v451
        %v7112 = vadd.f32 %v6600, %v452
        %v7113 = vadd.f32 %v6601, %v453
        %v7114 = vadd.f32 %v6602, %v454
        %v7115 = vadd.f32 %v6603, %v455
        %v7116 = vadd.f32 %v6604, %v456
        %v7117 = vadd.f32 %v6605, %v457
        %v7118 = vadd.f32 %v6606, %v458
        %v7119 = vadd.f32 %v6607, %v459
        %v7120 = vadd.f32 %v6608, %v460
        %v7121 = vadd.f32 %v6609, %v461
        %v7122 = vadd.f32 %v6610, %v462
        %v7123 = vadd.f32 %v6611, %v463
        %v7124 = vadd.f32 %v6612, %v464
        %v7125 = vadd.f32 %v6613, %v465
        %v7126 = vadd.f32 %v6614, %v466
        %v7127 = vadd.f32 %v6615, %v467
        %v7128 = vadd.f32 %v6616, %v468
        %v7129 = vadd.f32 %v6617, %v469
        %v7130 = vadd.f32 %v6618, %v470
        %v7131 = vadd.f32 %v6619, %v471
        %v7132 = vadd.f32 %v6620, %v472
        %v7133 = vadd.f32 %v6621, %v473
        %v7134 = vadd.f32 %v6622, %v474
        %v7135 = vadd.f32 %v6623, %v475
        %v7136 = vadd.f32 %v6624, %v476
        %v7137 = vadd.f32 %v6625, %v477
        %v7138 = vadd.f32 %v6626, %v478
        %v7139 = vadd.f32 %v6627, %v479
        %v7140 = vadd.f32 %v6628, %v480
        %v7141 = vadd.f32 %v6629, %v481
        %v7142 = vadd.f32 %v6630, %v482
        %v7143 = vadd.f32 %v6631, %v483
        %v7144 = vadd.f32 %v6632, %v484
        %v7145 = vadd.f32 %v6633, %v485
        %v7146 = vadd.f32 %v6634, %v486
        %v7147 = vadd.f32 %v6635, %v487
        %v7148 = vadd.f32 %v6636, %v488
        %v7149 = vadd.f32 %v6637, %v489
        %v7150 = vadd.f32 %v6638, %v490
        %v7151 = vadd.f32 %v6639, %v491
        %v7152 = vadd.f32 %v6640, %v492
        %v7153 = vadd.f32 %v6641, %v493
        %v7154 = vadd.f32 %v6642, %v494
        %v7155 = vadd.f32 %v6643, %v495
        %v7156 = vadd.f32 %v6644, %v496
        %v7157 = vadd.f32 %v6645, %v497
        %v7158 = vadd.f32 %v6646, %v498
        %v7159 = vadd.f32 %v6647, %v499
        %v7160 = vadd.f32 %v6648, %v500
        %v7161 = vadd.f32 %v6649, %v501
        %v7162 = vadd.f32 %v6650, %v502
        %v7163 = vadd.f32 %v6651, %v503
        %v7164 = vadd.f32 %v6652, %v504
        %v7165 = vadd.f32 %v6653, %v505
        %v7166 = vadd.f32 %v6654, %v506
        %v7167 = vadd.f32 %v6655, %v507
        %v7168 = vadd.f32 %v6656, %v508
        %v7169 = vadd.f32 %v6657, %v509
        %v7170 = vadd.f32 %v6658, %v510
        %v7171 = vadd.f32 %v6659, %v511
        %v7172 = vadd.f32 %v6660, %v512
        %v7173 = vadd.f32 %v6661, %v513
        %v7174 = vadd.f32 %v6662, %v514
        %v7175 = vadd.f32 %v6663, %v515
        %v7176 = vadd.f32 %v6664, %v516
        %v7177 = vadd.f32 %v6665, %v517
        %v7178 = vadd.f32 %v6666, %v518
        %v7179 = vadd.f32 %v6667, %v519
        %v7180 = vadd.f32 %v6668, %v520
        %v7181 = vadd.f32 %v6669, %v521
        %v7182 = vadd.f32 %v6670, %v522
        %v7183 = vadd.f32 %v6671, %v523
        %v7184 = vadd.f32 %v6672, %v524
        %v7185 = vadd.f32 %v6673, %v525
        %v7186 = vadd.f32 %v6674, %v526
        %v7187 = vadd.f32 %v6675, %v527
        %v7188 = vadd.f32 %v6676, %v528
        %v7189 = vadd.f32 %v6677, %v529
        %v7190 = vadd.f32 %v6678, %v530
        %v7191 = vadd.f32 %v6679, %v531
        %v7192 = vadd.f32 %v6680, %v532
        %v7193 = vadd.f32 %v6681, %v533
        %v7194 = vadd.f32 %v6682, %v534
        %v7195 = vadd.f32 %v6683, %v535
        %v7196 = vadd.f32 %v6684, %v536
        %v7197 = vadd.f32 %v6685, %v537
        %v7198 = vadd.f32 %v6686, %v538
        %v7199 = vadd.f32 %v6687, %v539
        %v7200 = vadd.f32 %v6688, %v540
        %v7201 = vadd.f32 %v6689, %v541
        %v7202 = vadd.f32 %v6690, %v542
        %v7203 = vadd.f32 %v6691, %v543
        %v7204 = vadd.f32 %v6692, %v544
        %v7205 = vadd.f32 %v6693, %v545
        %v7206 = vadd.f32 %v6694, %v546
        %v7207 = vadd.f32 %v6695, %v547
        %v7208 = vadd.f32 %v6696, %v548
        %v7209 = vadd.f32 %v6697, %v549
        %v7210 = vadd.f32 %v6698, %v550
        %v7211 = vadd.f32 %v6699, %v551
        %v7212 = vadd.f32 %v6700, %v552
        %v7213 = vadd.f32 %v6701, %v553
        %v7214 = vadd.f32 %v6702, %v554
        %v7215 = vadd.f32 %v6703, %v555
        %v7216 = vadd.f32 %v6704, %v556
        %v7217 = vadd.f32 %v6705, %v557
        %v7218 = vadd.f32 %v6706, %v558
        %v7219 = vadd.f32 %v6707, %v559
        %v7220 = vadd.f32 %v6708, %v560
        %v7221 = vadd.f32 %v6709, %v561
        %v7222 = vadd.f32 %v6710, %v562
        %v7223 = vadd.f32 %v6711, %v563
        %v7224 = vadd.f32 %v6712, %v564
        %v7225 = vadd.f32 %v6713, %v565
        %v7226 = vadd.f32 %v6714, %v566
        %v7227 = vadd.f32 %v6715, %v567
        %v7228 = vadd.f32 %v6716, %v568
        %v7229 = vadd.f32 %v6717, %v569
        %v7230 = vadd.f32 %v6718, %v570
        %v7231 = vadd.f32 %v6719, %v571
        %v7232 = vadd.f32 %v6720, %v572
        %v7233 = vadd.f32 %v6721, %v573
        %v7234 = vadd.f32 %v6722, %v574
        %v7235 = vadd.f32 %v6723, %v575
        %v7236 = vadd.f32 %v6724, %v576
        %v7237 = vadd.f32 %v6725, %v577
        %v7238 = vadd.f32 %v6726, %v578
        %v7239 = vadd.f32 %v6727, %v579
        %v7240 = vadd.f32 %v6728, %v580
        %v7241 = vadd.f32 %v6729, %v581
        %v7242 = vadd.f32 %v6730, %v582
        %v7243 = vadd.f32 %v6731, %v583
        %v7244 = vadd.f32 %v6732, %v584
        %v7245 = vadd.f32 %v6733, %v585
        %v7246 = vadd.f32 %v6734, %v586
        %v7247 = vadd.f32 %v6735, %v587
        %v7248 = vadd.f32 %v6736, %v588
        %v7249 = vadd.f32 %v6737, %v589
        %v7250 = vadd.f32 %v6738, %v590
        %v7251 = vadd.f32 %v6739, %v591
        %v7252 = vadd.f32 %v6740, %v592
        %v7253 = vadd.f32 %v6741, %v593
        %v7254 = vadd.f32 %v6742, %v594
        %v7255 = vadd.f32 %v6743, %v595
        %v7256 = vadd.f32 %v6744, %v596
        %v7257 = vadd.f32 %v6745, %v597
        %v7258 = vadd.f32 %v6746, %v598
        %v7259 = vadd.f32 %v6747, %v599
        %v7260 = vadd.f32 %v6748, %v600
        %v7261 = vadd.f32 %v6749, %v601
        %v7262 = vadd.f32 %v6750, %v602
        %v7263 = vadd.f32 %v6751, %v603
        %v7264 = vadd.f32 %v6752, %v604
        %v7265 = vadd.f32 %v6753, %v605
        %v7266 = vadd.f32 %v6754, %v606
        %v7267 = vadd.f32 %v6755, %v607
        %v7268 = vadd.f32 %v6756, %v608
        %v7269 = vadd.f32 %v6757, %v609
        %v7270 = vadd.f32 %v6758, %v610
        %v7271 = vadd.f32 %v6759, %v611
        %v7272 = vadd.f32 %v6760, %v612
        %v7273 = vadd.f32 %v6761, %v613
        %v7274 = vadd.f32 %v6762, %v614
        %v7275 = vadd.f32 %v6763, %v615
        %v7276 = vadd.f32 %v6764, %v616
        %v7277 = vadd.f32 %v6765, %v617
        %v7278 = vadd.f32 %v6766, %v618
        %v7279 = vadd.f32 %v6767, %v619
        %v7280 = vadd.f32 %v6768, %v620
        %v7281 = vadd.f32 %v6769, %v621
        %v7282 = vadd.f32 %v6770, %v622
        %v7283 = vadd.f32 %v6771, %v623
        %v7284 = vadd.f32 %v6772, %v624
        %v7285 = vadd.f32 %v6773, %v625
        %v7286 = vadd.f32 %v6774, %v626
        %v7287 = vadd.f32 %v6775, %v627
        %v7288 = vadd.f32 %v6776, %v628
        %v7289 = vadd.f32 %v6777, %v629
        %v7290 = vadd.f32 %v6778, %v630
        %v7291 = vadd.f32 %v6779, %v631
        %v7292 = vadd.f32 %v6780, %v632
        %v7293 = vadd.f32 %v6781, %v633
        %v7294 = vadd.f32 %v6782, %v634
        %v7295 = vadd.f32 %v6783, %v635
        %v7296 = vadd.f32 %v6784, %v636
        %v7297 = vadd.f32 %v6785, %v637
        %v7298 = vadd.f32 %v6786, %v638
        %v7299 = vadd.f32 %v6787, %v639
        %v7300 = vadd.f32 %v6788, %v640
        %v7301 = vadd.f32 %v6789, %v641
        %v7302 = vadd.f32 %v6790, %v642
        %v7303 = vadd.f32 %v6791, %v643
        %v7304 = vadd.f32 %v6792, %v644
        %v7305 = vadd.f32 %v6793, %v645
        %v7306 = vadd.f32 %v6794, %v646
        %v7307 = vadd.f32 %v6795, %v647
        %v7308 = vadd.f32 %v6796, %v648
        %v7309 = vadd.f32 %v6797, %v649
        %v7310 = vadd.f32 %v6798, %v650
        %v7311 = vadd.f32 %v6799, %v651
        %v7312 = vadd.f32 %v6800, %v652
        %v7313 = vadd.f32 %v6801, %v653
        %v7314 = vadd.f32 %v6802, %v654
        %v7315 = vadd.f32 %v6803, %v655
        %v7316 = vadd.f32 %v6804, %v656
        %v7317 = vadd.f32 %v6805, %v657
        %v7318 = vadd.f32 %v6806, %v658
        %v7319 = vadd.f32 %v6807, %v659
        %v7320 = vadd.f32 %v6808, %v660
        %v7321 = vadd.f32 %v6809, %v661
        %v7322 = vadd.f32 %v6810, %v662
        %v7323 = vadd.f32 %v6811, %v663
        %v7324 = vadd.f32 %v6812, %v664
        %v7325 = vadd.f32 %v6813, %v665
        %v7326 = vadd.f32 %v6814, %v666
        %v7327 = vadd.f32 %v6815, %v667
        %v7328 = vadd.f32 %v6816, %v668
        %v7329 = vadd.f32 %v6817, %v669
        %v7330 = vadd.f32 %v6818, %v670
        %v7331 = vadd.f32 %v6819, %v671
        %v7332 = vadd.f32 %v6820, %v672
        %v7333 = vadd.f32 %v6821, %v673
        %v7334 = vadd.f32 %v6822, %v674
        %v7335 = vadd.f32 %v6823, %v675
        %v7336 = vadd.f32 %v6824, %v676
        %v7337 = vadd.f32 %v6825, %v677
        %v7338 = vadd.f32 %v6826, %v678
        %v7339 = vadd.f32 %v6827, %v679
        %v7340 = vadd.f32 %v6828, %v680
        %v7341 = vadd.f32 %v6829, %v681
        %v7342 = vadd.f32 %v6830, %v682
        %v7343 = vadd.f32 %v6831, %v683
        %v7344 = vadd.f32 %v6832, %v684
        %v7345 = vadd.f32 %v6833, %v685
        %v7346 = vadd.f32 %v6834, %v686
        %v7347 = vadd.f32 %v6835, %v687
        %v7348 = vadd.f32 %v6836, %v688
        %v7349 = vadd.f32 %v6837, %v689
        %v7350 = vadd.f32 %v6838, %v690
        %v7351 = vadd.f32 %v6839, %v691
        %v7352 = vadd.f32 %v6840, %v692
        %v7353 = vadd.f32 %v6841, %v693
        %v7354 = vadd.f32 %v6842, %v694
        %v7355 = vadd.f32 %v6843, %v695
        %v7356 = vadd.f32 %v6844, %v696
        %v7357 = vadd.f32 %v6845, %v697
        %v7358 = vadd.f32 %v6846, %v698
        %v7359 = vadd.f32 %v6847, %v699
        %v7360 = vadd.f32 %v6848, %v700
        %v7361 = vadd.f32 %v6849, %v701
        %v7362 = vadd.f32 %v6850, %v702
        %v7363 = vadd.f32 %v6851, %v703
        %v7364 = vadd.f32 %v6852, %v704
        %v7365 = vadd.f32 %v6853, %v705
        %v7366 = vadd.f32 %v6854, %v706
        %v7367 = vadd.f32 %v6855, %v707
        %7368 = vst [vmem:[%s191] sm:$0xff] %v6856
        %7369 = vst [vmem:[%s191 + $0x8] sm:$0xff] %v6857
        %7370 = vst [vmem:[%s191 + $0x10] sm:$0xff] %v6858
        %7371 = vst [vmem:[%s191 + $0x18] sm:$0xff] %v6859
        %7372 = vst [vmem:[%s191 + $0x20] sm:$0xff] %v6860
        %7373 = vst [vmem:[%s191 + $0x28] sm:$0xff] %v6861
        %7374 = vst [vmem:[%s191 + $0x30] sm:$0xff] %v6862
        %7375 = vst [vmem:[%s191 + $0x38] sm:$0xff] %v6863
        %7376 = vst [vmem:[%s191 + $0x40] sm:$0xff] %v6864
        %7377 = vst [vmem:[%s191 + $0x48] sm:$0xff] %v6865
        %7378 = vst [vmem:[%s191 + $0x50] sm:$0xff] %v6866
        %7379 = vst [vmem:[%s191 + $0x58] sm:$0xff] %v6867
        %7380 = vst [vmem:[%s191 + $0x60] sm:$0xff] %v6868
        %7381 = vst [vmem:[%s191 + $0x68] sm:$0xff] %v6869
        %7382 = vst [vmem:[%s191 + $0x70] sm:$0xff] %v6870
        %7383 = vst [vmem:[%s191 + $0x78] sm:$0xff] %v6871
        %7384 = vst [vmem:[%s191 + $0x80] sm:$0xff] %v6872
        %7385 = vst [vmem:[%s191 + $0x88] sm:$0xff] %v6873
        %7386 = vst [vmem:[%s191 + $0x90] sm:$0xff] %v6874
        %7387 = vst [vmem:[%s191 + $0x98] sm:$0xff] %v6875
        %7388 = vst [vmem:[%s191 + $0xa0] sm:$0xff] %v6876
        %7389 = vst [vmem:[%s191 + $0xa8] sm:$0xff] %v6877
        %7390 = vst [vmem:[%s191 + $0xb0] sm:$0xff] %v6878
        %7391 = vst [vmem:[%s191 + $0xb8] sm:$0xff] %v6879
        %7392 = vst [vmem:[%s191 + $0xc0] sm:$0xff] %v6880
        %7393 = vst [vmem:[%s191 + $0xc8] sm:$0xff] %v6881
        %7394 = vst [vmem:[%s191 + $0xd0] sm:$0xff] %v6882
        %7395 = vst [vmem:[%s191 + $0xd8] sm:$0xff] %v6883
        %7396 = vst [vmem:[%s191 + $0xe0] sm:$0xff] %v6884
        %7397 = vst [vmem:[%s191 + $0xe8] sm:$0xff] %v6885
        %7398 = vst [vmem:[%s191 + $0xf0] sm:$0xff] %v6886
        %7399 = vst [vmem:[%s191 + $0xf8] sm:$0xff] %v6887
        %7400 = vst [vmem:[%s191 + $0x100] sm:$0xff] %v6888
        %7401 = vst [vmem:[%s191 + $0x108] sm:$0xff] %v6889
        %7402 = vst [vmem:[%s191 + $0x110] sm:$0xff] %v6890
        %7403 = vst [vmem:[%s191 + $0x118] sm:$0xff] %v6891
        %7404 = vst [vmem:[%s191 + $0x120] sm:$0xff] %v6892
        %7405 = vst [vmem:[%s191 + $0x128] sm:$0xff] %v6893
        %7406 = vst [vmem:[%s191 + $0x130] sm:$0xff] %v6894
        %7407 = vst [vmem:[%s191 + $0x138] sm:$0xff] %v6895
        %7408 = vst [vmem:[%s191 + $0x140] sm:$0xff] %v6896
        %7409 = vst [vmem:[%s191 + $0x148] sm:$0xff] %v6897
        %7410 = vst [vmem:[%s191 + $0x150] sm:$0xff] %v6898
        %7411 = vst [vmem:[%s191 + $0x158] sm:$0xff] %v6899
        %7412 = vst [vmem:[%s191 + $0x160] sm:$0xff] %v6900
        %7413 = vst [vmem:[%s191 + $0x168] sm:$0xff] %v6901
        %7414 = vst [vmem:[%s191 + $0x170] sm:$0xff] %v6902
        %7415 = vst [vmem:[%s191 + $0x178] sm:$0xff] %v6903
        %7416 = vst [vmem:[%s191 + $0x180] sm:$0xff] %v6904
        %7417 = vst [vmem:[%s191 + $0x188] sm:$0xff] %v6905
        %7418 = vst [vmem:[%s191 + $0x190] sm:$0xff] %v6906
        %7419 = vst [vmem:[%s191 + $0x198] sm:$0xff] %v6907
        %7420 = vst [vmem:[%s191 + $0x1a0] sm:$0xff] %v6908
        %7421 = vst [vmem:[%s191 + $0x1a8] sm:$0xff] %v6909
        %7422 = vst [vmem:[%s191 + $0x1b0] sm:$0xff] %v6910
        %7423 = vst [vmem:[%s191 + $0x1b8] sm:$0xff] %v6911
        %7424 = vst [vmem:[%s191 + $0x1c0] sm:$0xff] %v6912
        %7425 = vst [vmem:[%s191 + $0x1c8] sm:$0xff] %v6913
        %7426 = vst [vmem:[%s191 + $0x1d0] sm:$0xff] %v6914
        %7427 = vst [vmem:[%s191 + $0x1d8] sm:$0xff] %v6915
        %7428 = vst [vmem:[%s191 + $0x1e0] sm:$0xff] %v6916
        %7429 = vst [vmem:[%s191 + $0x1e8] sm:$0xff] %v6917
        %7430 = vst [vmem:[%s191 + $0x1f0] sm:$0xff] %v6918
        %7431 = vst [vmem:[%s191 + $0x1f8] sm:$0xff] %v6919
        %7432 = vst [vmem:[%s191 + $0x200] sm:$0xff] %v6920
        %7433 = vst [vmem:[%s191 + $0x208] sm:$0xff] %v6921
        %7434 = vst [vmem:[%s191 + $0x210] sm:$0xff] %v6922
        %7435 = vst [vmem:[%s191 + $0x218] sm:$0xff] %v6923
        %7436 = vst [vmem:[%s191 + $0x220] sm:$0xff] %v6924
        %7437 = vst [vmem:[%s191 + $0x228] sm:$0xff] %v6925
        %7438 = vst [vmem:[%s191 + $0x230] sm:$0xff] %v6926
        %7439 = vst [vmem:[%s191 + $0x238] sm:$0xff] %v6927
        %7440 = vst [vmem:[%s191 + $0x240] sm:$0xff] %v6928
        %7441 = vst [vmem:[%s191 + $0x248] sm:$0xff] %v6929
        %7442 = vst [vmem:[%s191 + $0x250] sm:$0xff] %v6930
        %7443 = vst [vmem:[%s191 + $0x258] sm:$0xff] %v6931
        %7444 = vst [vmem:[%s191 + $0x260] sm:$0xff] %v6932
        %7445 = vst [vmem:[%s191 + $0x268] sm:$0xff] %v6933
        %7446 = vst [vmem:[%s191 + $0x270] sm:$0xff] %v6934
        %7447 = vst [vmem:[%s191 + $0x278] sm:$0xff] %v6935
        %7448 = vst [vmem:[%s191 + $0x280] sm:$0xff] %v6936
        %7449 = vst [vmem:[%s191 + $0x288] sm:$0xff] %v6937
        %7450 = vst [vmem:[%s191 + $0x290] sm:$0xff] %v6938
        %7451 = vst [vmem:[%s191 + $0x298] sm:$0xff] %v6939
        %7452 = vst [vmem:[%s191 + $0x2a0] sm:$0xff] %v6940
        %7453 = vst [vmem:[%s191 + $0x2a8] sm:$0xff] %v6941
        %7454 = vst [vmem:[%s191 + $0x2b0] sm:$0xff] %v6942
        %7455 = vst [vmem:[%s191 + $0x2b8] sm:$0xff] %v6943
        %7456 = vst [vmem:[%s191 + $0x2c0] sm:$0xff] %v6944
        %7457 = vst [vmem:[%s191 + $0x2c8] sm:$0xff] %v6945
        %7458 = vst [vmem:[%s191 + $0x2d0] sm:$0xff] %v6946
        %7459 = vst [vmem:[%s191 + $0x2d8] sm:$0xff] %v6947
        %7460 = vst [vmem:[%s191 + $0x2e0] sm:$0xff] %v6948
        %7461 = vst [vmem:[%s191 + $0x2e8] sm:$0xff] %v6949
        %7462 = vst [vmem:[%s191 + $0x2f0] sm:$0xff] %v6950
        %7463 = vst [vmem:[%s191 + $0x2f8] sm:$0xff] %v6951
        %7464 = vst [vmem:[%s191 + $0x300] sm:$0xff] %v6952
        %7465 = vst [vmem:[%s191 + $0x308] sm:$0xff] %v6953
        %7466 = vst [vmem:[%s191 + $0x310] sm:$0xff] %v6954
        %7467 = vst [vmem:[%s191 + $0x318] sm:$0xff] %v6955
        %7468 = vst [vmem:[%s191 + $0x320] sm:$0xff] %v6956
        %7469 = vst [vmem:[%s191 + $0x328] sm:$0xff] %v6957
        %7470 = vst [vmem:[%s191 + $0x330] sm:$0xff] %v6958
        %7471 = vst [vmem:[%s191 + $0x338] sm:$0xff] %v6959
        %7472 = vst [vmem:[%s191 + $0x340] sm:$0xff] %v6960
        %7473 = vst [vmem:[%s191 + $0x348] sm:$0xff] %v6961
        %7474 = vst [vmem:[%s191 + $0x350] sm:$0xff] %v6962
        %7475 = vst [vmem:[%s191 + $0x358] sm:$0xff] %v6963
        %7476 = vst [vmem:[%s191 + $0x360] sm:$0xff] %v6964
        %7477 = vst [vmem:[%s191 + $0x368] sm:$0xff] %v6965
        %7478 = vst [vmem:[%s191 + $0x370] sm:$0xff] %v6966
        %7479 = vst [vmem:[%s191 + $0x378] sm:$0xff] %v6967
        %7480 = vst [vmem:[%s191 + $0x380] sm:$0xff] %v6968
        %7481 = vst [vmem:[%s191 + $0x388] sm:$0xff] %v6969
        %7482 = vst [vmem:[%s191 + $0x390] sm:$0xff] %v6970
        %7483 = vst [vmem:[%s191 + $0x398] sm:$0xff] %v6971
        %7484 = vst [vmem:[%s191 + $0x3a0] sm:$0xff] %v6972
        %7485 = vst [vmem:[%s191 + $0x3a8] sm:$0xff] %v6973
        %7486 = vst [vmem:[%s191 + $0x3b0] sm:$0xff] %v6974
        %7487 = vst [vmem:[%s191 + $0x3b8] sm:$0xff] %v6975
        %7488 = vst [vmem:[%s191 + $0x3c0] sm:$0xff] %v6976
        %7489 = vst [vmem:[%s191 + $0x3c8] sm:$0xff] %v6977
        %7490 = vst [vmem:[%s191 + $0x3d0] sm:$0xff] %v6978
        %7491 = vst [vmem:[%s191 + $0x3d8] sm:$0xff] %v6979
        %7492 = vst [vmem:[%s191 + $0x3e0] sm:$0xff] %v6980
        %7493 = vst [vmem:[%s191 + $0x3e8] sm:$0xff] %v6981
        %7494 = vst [vmem:[%s191 + $0x3f0] sm:$0xff] %v6982
        %7495 = vst [vmem:[%s191 + $0x3f8] sm:$0xff] %v6983
        %7496 = vst [vmem:[%s191 + $0x400] sm:$0xff] %v6984
        %7497 = vst [vmem:[%s191 + $0x408] sm:$0xff] %v6985
        %7498 = vst [vmem:[%s191 + $0x410] sm:$0xff] %v6986
        %7499 = vst [vmem:[%s191 + $0x418] sm:$0xff] %v6987
        %7500 = vst [vmem:[%s191 + $0x420] sm:$0xff] %v6988
        %7501 = vst [vmem:[%s191 + $0x428] sm:$0xff] %v6989
        %7502 = vst [vmem:[%s191 + $0x430] sm:$0xff] %v6990
        %7503 = vst [vmem:[%s191 + $0x438] sm:$0xff] %v6991
        %7504 = vst [vmem:[%s191 + $0x440] sm:$0xff] %v6992
        %7505 = vst [vmem:[%s191 + $0x448] sm:$0xff] %v6993
        %7506 = vst [vmem:[%s191 + $0x450] sm:$0xff] %v6994
        %7507 = vst [vmem:[%s191 + $0x458] sm:$0xff] %v6995
        %7508 = vst [vmem:[%s191 + $0x460] sm:$0xff] %v6996
        %7509 = vst [vmem:[%s191 + $0x468] sm:$0xff] %v6997
        %7510 = vst [vmem:[%s191 + $0x470] sm:$0xff] %v6998
        %7511 = vst [vmem:[%s191 + $0x478] sm:$0xff] %v6999
        %7512 = vst [vmem:[%s191 + $0x480] sm:$0xff] %v7000
        %7513 = vst [vmem:[%s191 + $0x488] sm:$0xff] %v7001
        %7514 = vst [vmem:[%s191 + $0x490] sm:$0xff] %v7002
        %7515 = vst [vmem:[%s191 + $0x498] sm:$0xff] %v7003
        %7516 = vst [vmem:[%s191 + $0x4a0] sm:$0xff] %v7004
        %7517 = vst [vmem:[%s191 + $0x4a8] sm:$0xff] %v7005
        %7518 = vst [vmem:[%s191 + $0x4b0] sm:$0xff] %v7006
        %7519 = vst [vmem:[%s191 + $0x4b8] sm:$0xff] %v7007
        %7520 = vst [vmem:[%s191 + $0x4c0] sm:$0xff] %v7008
        %7521 = vst [vmem:[%s191 + $0x4c8] sm:$0xff] %v7009
        %7522 = vst [vmem:[%s191 + $0x4d0] sm:$0xff] %v7010
        %7523 = vst [vmem:[%s191 + $0x4d8] sm:$0xff] %v7011
        %7524 = vst [vmem:[%s191 + $0x4e0] sm:$0xff] %v7012
        %7525 = vst [vmem:[%s191 + $0x4e8] sm:$0xff] %v7013
        %7526 = vst [vmem:[%s191 + $0x4f0] sm:$0xff] %v7014
        %7527 = vst [vmem:[%s191 + $0x4f8] sm:$0xff] %v7015
        %7528 = vst [vmem:[%s191 + $0x500] sm:$0xff] %v7016
        %7529 = vst [vmem:[%s191 + $0x508] sm:$0xff] %v7017
        %7530 = vst [vmem:[%s191 + $0x510] sm:$0xff] %v7018
        %7531 = vst [vmem:[%s191 + $0x518] sm:$0xff] %v7019
        %7532 = vst [vmem:[%s191 + $0x520] sm:$0xff] %v7020
        %7533 = vst [vmem:[%s191 + $0x528] sm:$0xff] %v7021
        %7534 = vst [vmem:[%s191 + $0x530] sm:$0xff] %v7022
        %7535 = vst [vmem:[%s191 + $0x538] sm:$0xff] %v7023
        %7536 = vst [vmem:[%s191 + $0x540] sm:$0xff] %v7024
        %7537 = vst [vmem:[%s191 + $0x548] sm:$0xff] %v7025
        %7538 = vst [vmem:[%s191 + $0x550] sm:$0xff] %v7026
        %7539 = vst [vmem:[%s191 + $0x558] sm:$0xff] %v7027
        %7540 = vst [vmem:[%s191 + $0x560] sm:$0xff] %v7028
        %7541 = vst [vmem:[%s191 + $0x568] sm:$0xff] %v7029
        %7542 = vst [vmem:[%s191 + $0x570] sm:$0xff] %v7030
        %7543 = vst [vmem:[%s191 + $0x578] sm:$0xff] %v7031
        %7544 = vst [vmem:[%s191 + $0x580] sm:$0xff] %v7032
        %7545 = vst [vmem:[%s191 + $0x588] sm:$0xff] %v7033
        %7546 = vst [vmem:[%s191 + $0x590] sm:$0xff] %v7034
        %7547 = vst [vmem:[%s191 + $0x598] sm:$0xff] %v7035
        %7548 = vst [vmem:[%s191 + $0x5a0] sm:$0xff] %v7036
        %7549 = vst [vmem:[%s191 + $0x5a8] sm:$0xff] %v7037
        %7550 = vst [vmem:[%s191 + $0x5b0] sm:$0xff] %v7038
        %7551 = vst [vmem:[%s191 + $0x5b8] sm:$0xff] %v7039
        %7552 = vst [vmem:[%s191 + $0x5c0] sm:$0xff] %v7040
        %7553 = vst [vmem:[%s191 + $0x5c8] sm:$0xff] %v7041
        %7554 = vst [vmem:[%s191 + $0x5d0] sm:$0xff] %v7042
        %7555 = vst [vmem:[%s191 + $0x5d8] sm:$0xff] %v7043
        %7556 = vst [vmem:[%s191 + $0x5e0] sm:$0xff] %v7044
        %7557 = vst [vmem:[%s191 + $0x5e8] sm:$0xff] %v7045
        %7558 = vst [vmem:[%s191 + $0x5f0] sm:$0xff] %v7046
        %7559 = vst [vmem:[%s191 + $0x5f8] sm:$0xff] %v7047
        %7560 = vst [vmem:[%s191 + $0x600] sm:$0xff] %v7048
        %7561 = vst [vmem:[%s191 + $0x608] sm:$0xff] %v7049
        %7562 = vst [vmem:[%s191 + $0x610] sm:$0xff] %v7050
        %7563 = vst [vmem:[%s191 + $0x618] sm:$0xff] %v7051
        %7564 = vst [vmem:[%s191 + $0x620] sm:$0xff] %v7052
        %7565 = vst [vmem:[%s191 + $0x628] sm:$0xff] %v7053
        %7566 = vst [vmem:[%s191 + $0x630] sm:$0xff] %v7054
        %7567 = vst [vmem:[%s191 + $0x638] sm:$0xff] %v7055
        %7568 = vst [vmem:[%s191 + $0x640] sm:$0xff] %v7056
        %7569 = vst [vmem:[%s191 + $0x648] sm:$0xff] %v7057
        %7570 = vst [vmem:[%s191 + $0x650] sm:$0xff] %v7058
        %7571 = vst [vmem:[%s191 + $0x658] sm:$0xff] %v7059
        %7572 = vst [vmem:[%s191 + $0x660] sm:$0xff] %v7060
        %7573 = vst [vmem:[%s191 + $0x668] sm:$0xff] %v7061
        %7574 = vst [vmem:[%s191 + $0x670] sm:$0xff] %v7062
        %7575 = vst [vmem:[%s191 + $0x678] sm:$0xff] %v7063
        %7576 = vst [vmem:[%s191 + $0x680] sm:$0xff] %v7064
        %7577 = vst [vmem:[%s191 + $0x688] sm:$0xff] %v7065
        %7578 = vst [vmem:[%s191 + $0x690] sm:$0xff] %v7066
        %7579 = vst [vmem:[%s191 + $0x698] sm:$0xff] %v7067
        %7580 = vst [vmem:[%s191 + $0x6a0] sm:$0xff] %v7068
        %7581 = vst [vmem:[%s191 + $0x6a8] sm:$0xff] %v7069
        %7582 = vst [vmem:[%s191 + $0x6b0] sm:$0xff] %v7070
        %7583 = vst [vmem:[%s191 + $0x6b8] sm:$0xff] %v7071
        %7584 = vst [vmem:[%s191 + $0x6c0] sm:$0xff] %v7072
        %7585 = vst [vmem:[%s191 + $0x6c8] sm:$0xff] %v7073
        %7586 = vst [vmem:[%s191 + $0x6d0] sm:$0xff] %v7074
        %7587 = vst [vmem:[%s191 + $0x6d8] sm:$0xff] %v7075
        %7588 = vst [vmem:[%s191 + $0x6e0] sm:$0xff] %v7076
        %7589 = vst [vmem:[%s191 + $0x6e8] sm:$0xff] %v7077
        %7590 = vst [vmem:[%s191 + $0x6f0] sm:$0xff] %v7078
        %7591 = vst [vmem:[%s191 + $0x6f8] sm:$0xff] %v7079
        %7592 = vst [vmem:[%s191 + $0x700] sm:$0xff] %v7080
        %7593 = vst [vmem:[%s191 + $0x708] sm:$0xff] %v7081
        %7594 = vst [vmem:[%s191 + $0x710] sm:$0xff] %v7082
        %7595 = vst [vmem:[%s191 + $0x718] sm:$0xff] %v7083
        %7596 = vst [vmem:[%s191 + $0x720] sm:$0xff] %v7084
        %7597 = vst [vmem:[%s191 + $0x728] sm:$0xff] %v7085
        %7598 = vst [vmem:[%s191 + $0x730] sm:$0xff] %v7086
        %7599 = vst [vmem:[%s191 + $0x738] sm:$0xff] %v7087
        %7600 = vst [vmem:[%s191 + $0x740] sm:$0xff] %v7088
        %7601 = vst [vmem:[%s191 + $0x748] sm:$0xff] %v7089
        %7602 = vst [vmem:[%s191 + $0x750] sm:$0xff] %v7090
        %7603 = vst [vmem:[%s191 + $0x758] sm:$0xff] %v7091
        %7604 = vst [vmem:[%s191 + $0x760] sm:$0xff] %v7092
        %7605 = vst [vmem:[%s191 + $0x768] sm:$0xff] %v7093
        %7606 = vst [vmem:[%s191 + $0x770] sm:$0xff] %v7094
        %7607 = vst [vmem:[%s191 + $0x778] sm:$0xff] %v7095
        %7608 = vst [vmem:[%s191 + $0x780] sm:$0xff] %v7096
        %7609 = vst [vmem:[%s191 + $0x788] sm:$0xff] %v7097
        %7610 = vst [vmem:[%s191 + $0x790] sm:$0xff] %v7098
        %7611 = vst [vmem:[%s191 + $0x798] sm:$0xff] %v7099
        %7612 = vst [vmem:[%s191 + $0x7a0] sm:$0xff] %v7100
        %7613 = vst [vmem:[%s191 + $0x7a8] sm:$0xff] %v7101
        %7614 = vst [vmem:[%s191 + $0x7b0] sm:$0xff] %v7102
        %7615 = vst [vmem:[%s191 + $0x7b8] sm:$0xff] %v7103
        %7616 = vst [vmem:[%s191 + $0x7c0] sm:$0xff] %v7104
        %7617 = vst [vmem:[%s191 + $0x7c8] sm:$0xff] %v7105
        %7618 = vst [vmem:[%s191 + $0x7d0] sm:$0xff] %v7106
        %7619 = vst [vmem:[%s191 + $0x7d8] sm:$0xff] %v7107
        %7620 = vst [vmem:[%s191 + $0x7e0] sm:$0xff] %v7108
        %7621 = vst [vmem:[%s191 + $0x7e8] sm:$0xff] %v7109
        %7622 = vst [vmem:[%s191 + $0x7f0] sm:$0xff] %v7110
        %7623 = vst [vmem:[%s191 + $0x7f8] sm:$0xff] %v7111
        %7624 = vst [vmem:[%s191 + $0x800] sm:$0xff] %v7112
        %7625 = vst [vmem:[%s191 + $0x808] sm:$0xff] %v7113
        %7626 = vst [vmem:[%s191 + $0x810] sm:$0xff] %v7114
        %7627 = vst [vmem:[%s191 + $0x818] sm:$0xff] %v7115
        %7628 = vst [vmem:[%s191 + $0x820] sm:$0xff] %v7116
        %7629 = vst [vmem:[%s191 + $0x828] sm:$0xff] %v7117
        %7630 = vst [vmem:[%s191 + $0x830] sm:$0xff] %v7118
        %7631 = vst [vmem:[%s191 + $0x838] sm:$0xff] %v7119
        %7632 = vst [vmem:[%s191 + $0x840] sm:$0xff] %v7120
        %7633 = vst [vmem:[%s191 + $0x848] sm:$0xff] %v7121
        %7634 = vst [vmem:[%s191 + $0x850] sm:$0xff] %v7122
        %7635 = vst [vmem:[%s191 + $0x858] sm:$0xff] %v7123
        %7636 = vst [vmem:[%s191 + $0x860] sm:$0xff] %v7124
        %7637 = vst [vmem:[%s191 + $0x868] sm:$0xff] %v7125
        %7638 = vst [vmem:[%s191 + $0x870] sm:$0xff] %v7126
        %7639 = vst [vmem:[%s191 + $0x878] sm:$0xff] %v7127
        %7640 = vst [vmem:[%s191 + $0x880] sm:$0xff] %v7128
        %7641 = vst [vmem:[%s191 + $0x888] sm:$0xff] %v7129
        %7642 = vst [vmem:[%s191 + $0x890] sm:$0xff] %v7130
        %7643 = vst [vmem:[%s191 + $0x898] sm:$0xff] %v7131
        %7644 = vst [vmem:[%s191 + $0x8a0] sm:$0xff] %v7132
        %7645 = vst [vmem:[%s191 + $0x8a8] sm:$0xff] %v7133
        %7646 = vst [vmem:[%s191 + $0x8b0] sm:$0xff] %v7134
        %7647 = vst [vmem:[%s191 + $0x8b8] sm:$0xff] %v7135
        %7648 = vst [vmem:[%s191 + $0x8c0] sm:$0xff] %v7136
        %7649 = vst [vmem:[%s191 + $0x8c8] sm:$0xff] %v7137
        %7650 = vst [vmem:[%s191 + $0x8d0] sm:$0xff] %v7138
        %7651 = vst [vmem:[%s191 + $0x8d8] sm:$0xff] %v7139
        %7652 = vst [vmem:[%s191 + $0x8e0] sm:$0xff] %v7140
        %7653 = vst [vmem:[%s191 + $0x8e8] sm:$0xff] %v7141
        %7654 = vst [vmem:[%s191 + $0x8f0] sm:$0xff] %v7142
        %7655 = vst [vmem:[%s191 + $0x8f8] sm:$0xff] %v7143
        %7656 = vst [vmem:[%s191 + $0x900] sm:$0xff] %v7144
        %7657 = vst [vmem:[%s191 + $0x908] sm:$0xff] %v7145
        %7658 = vst [vmem:[%s191 + $0x910] sm:$0xff] %v7146
        %7659 = vst [vmem:[%s191 + $0x918] sm:$0xff] %v7147
        %7660 = vst [vmem:[%s191 + $0x920] sm:$0xff] %v7148
        %7661 = vst [vmem:[%s191 + $0x928] sm:$0xff] %v7149
        %7662 = vst [vmem:[%s191 + $0x930] sm:$0xff] %v7150
        %7663 = vst [vmem:[%s191 + $0x938] sm:$0xff] %v7151
        %7664 = vst [vmem:[%s191 + $0x940] sm:$0xff] %v7152
        %7665 = vst [vmem:[%s191 + $0x948] sm:$0xff] %v7153
        %7666 = vst [vmem:[%s191 + $0x950] sm:$0xff] %v7154
        %7667 = vst [vmem:[%s191 + $0x958] sm:$0xff] %v7155
        %7668 = vst [vmem:[%s191 + $0x960] sm:$0xff] %v7156
        %7669 = vst [vmem:[%s191 + $0x968] sm:$0xff] %v7157
        %7670 = vst [vmem:[%s191 + $0x970] sm:$0xff] %v7158
        %7671 = vst [vmem:[%s191 + $0x978] sm:$0xff] %v7159
        %7672 = vst [vmem:[%s191 + $0x980] sm:$0xff] %v7160
        %7673 = vst [vmem:[%s191 + $0x988] sm:$0xff] %v7161
        %7674 = vst [vmem:[%s191 + $0x990] sm:$0xff] %v7162
        %7675 = vst [vmem:[%s191 + $0x998] sm:$0xff] %v7163
        %7676 = vst [vmem:[%s191 + $0x9a0] sm:$0xff] %v7164
        %7677 = vst [vmem:[%s191 + $0x9a8] sm:$0xff] %v7165
        %7678 = vst [vmem:[%s191 + $0x9b0] sm:$0xff] %v7166
        %7679 = vst [vmem:[%s191 + $0x9b8] sm:$0xff] %v7167
        %7680 = vst [vmem:[%s191 + $0x9c0] sm:$0xff] %v7168
        %7681 = vst [vmem:[%s191 + $0x9c8] sm:$0xff] %v7169
        %7682 = vst [vmem:[%s191 + $0x9d0] sm:$0xff] %v7170
        %7683 = vst [vmem:[%s191 + $0x9d8] sm:$0xff] %v7171
        %7684 = vst [vmem:[%s191 + $0x9e0] sm:$0xff] %v7172
        %7685 = vst [vmem:[%s191 + $0x9e8] sm:$0xff] %v7173
        %7686 = vst [vmem:[%s191 + $0x9f0] sm:$0xff] %v7174
        %7687 = vst [vmem:[%s191 + $0x9f8] sm:$0xff] %v7175
        %7688 = vst [vmem:[%s191 + $0xa00] sm:$0xff] %v7176
        %7689 = vst [vmem:[%s191 + $0xa08] sm:$0xff] %v7177
        %7690 = vst [vmem:[%s191 + $0xa10] sm:$0xff] %v7178
        %7691 = vst [vmem:[%s191 + $0xa18] sm:$0xff] %v7179
        %7692 = vst [vmem:[%s191 + $0xa20] sm:$0xff] %v7180
        %7693 = vst [vmem:[%s191 + $0xa28] sm:$0xff] %v7181
        %7694 = vst [vmem:[%s191 + $0xa30] sm:$0xff] %v7182
        %7695 = vst [vmem:[%s191 + $0xa38] sm:$0xff] %v7183
        %7696 = vst [vmem:[%s191 + $0xa40] sm:$0xff] %v7184
        %7697 = vst [vmem:[%s191 + $0xa48] sm:$0xff] %v7185
        %7698 = vst [vmem:[%s191 + $0xa50] sm:$0xff] %v7186
        %7699 = vst [vmem:[%s191 + $0xa58] sm:$0xff] %v7187
        %7700 = vst [vmem:[%s191 + $0xa60] sm:$0xff] %v7188
        %7701 = vst [vmem:[%s191 + $0xa68] sm:$0xff] %v7189
        %7702 = vst [vmem:[%s191 + $0xa70] sm:$0xff] %v7190
        %7703 = vst [vmem:[%s191 + $0xa78] sm:$0xff] %v7191
        %7704 = vst [vmem:[%s191 + $0xa80] sm:$0xff] %v7192
        %7705 = vst [vmem:[%s191 + $0xa88] sm:$0xff] %v7193
        %7706 = vst [vmem:[%s191 + $0xa90] sm:$0xff] %v7194
        %7707 = vst [vmem:[%s191 + $0xa98] sm:$0xff] %v7195
        %7708 = vst [vmem:[%s191 + $0xaa0] sm:$0xff] %v7196
        %7709 = vst [vmem:[%s191 + $0xaa8] sm:$0xff] %v7197
        %7710 = vst [vmem:[%s191 + $0xab0] sm:$0xff] %v7198
        %7711 = vst [vmem:[%s191 + $0xab8] sm:$0xff] %v7199
        %7712 = vst [vmem:[%s191 + $0xac0] sm:$0xff] %v7200
        %7713 = vst [vmem:[%s191 + $0xac8] sm:$0xff] %v7201
        %7714 = vst [vmem:[%s191 + $0xad0] sm:$0xff] %v7202
        %7715 = vst [vmem:[%s191 + $0xad8] sm:$0xff] %v7203
        %7716 = vst [vmem:[%s191 + $0xae0] sm:$0xff] %v7204
        %7717 = vst [vmem:[%s191 + $0xae8] sm:$0xff] %v7205
        %7718 = vst [vmem:[%s191 + $0xaf0] sm:$0xff] %v7206
        %7719 = vst [vmem:[%s191 + $0xaf8] sm:$0xff] %v7207
        %7720 = vst [vmem:[%s191 + $0xb00] sm:$0xff] %v7208
        %7721 = vst [vmem:[%s191 + $0xb08] sm:$0xff] %v7209
        %7722 = vst [vmem:[%s191 + $0xb10] sm:$0xff] %v7210
        %7723 = vst [vmem:[%s191 + $0xb18] sm:$0xff] %v7211
        %7724 = vst [vmem:[%s191 + $0xb20] sm:$0xff] %v7212
        %7725 = vst [vmem:[%s191 + $0xb28] sm:$0xff] %v7213
        %7726 = vst [vmem:[%s191 + $0xb30] sm:$0xff] %v7214
        %7727 = vst [vmem:[%s191 + $0xb38] sm:$0xff] %v7215
        %7728 = vst [vmem:[%s191 + $0xb40] sm:$0xff] %v7216
        %7729 = vst [vmem:[%s191 + $0xb48] sm:$0xff] %v7217
        %7730 = vst [vmem:[%s191 + $0xb50] sm:$0xff] %v7218
        %7731 = vst [vmem:[%s191 + $0xb58] sm:$0xff] %v7219
        %7732 = vst [vmem:[%s191 + $0xb60] sm:$0xff] %v7220
        %7733 = vst [vmem:[%s191 + $0xb68] sm:$0xff] %v7221
        %7734 = vst [vmem:[%s191 + $0xb70] sm:$0xff] %v7222
        %7735 = vst [vmem:[%s191 + $0xb78] sm:$0xff] %v7223
        %7736 = vst [vmem:[%s191 + $0xb80] sm:$0xff] %v7224
        %7737 = vst [vmem:[%s191 + $0xb88] sm:$0xff] %v7225
        %7738 = vst [vmem:[%s191 + $0xb90] sm:$0xff] %v7226
        %7739 = vst [vmem:[%s191 + $0xb98] sm:$0xff] %v7227
        %7740 = vst [vmem:[%s191 + $0xba0] sm:$0xff] %v7228
        %7741 = vst [vmem:[%s191 + $0xba8] sm:$0xff] %v7229
        %7742 = vst [vmem:[%s191 + $0xbb0] sm:$0xff] %v7230
        %7743 = vst [vmem:[%s191 + $0xbb8] sm:$0xff] %v7231
        %7744 = vst [vmem:[%s191 + $0xbc0] sm:$0xff] %v7232
        %7745 = vst [vmem:[%s191 + $0xbc8] sm:$0xff] %v7233
        %7746 = vst [vmem:[%s191 + $0xbd0] sm:$0xff] %v7234
        %7747 = vst [vmem:[%s191 + $0xbd8] sm:$0xff] %v7235
        %7748 = vst [vmem:[%s191 + $0xbe0] sm:$0xff] %v7236
        %7749 = vst [vmem:[%s191 + $0xbe8] sm:$0xff] %v7237
        %7750 = vst [vmem:[%s191 + $0xbf0] sm:$0xff] %v7238
        %7751 = vst [vmem:[%s191 + $0xbf8] sm:$0xff] %v7239
        %7752 = vst [vmem:[%s191 + $0xc00] sm:$0xff] %v7240
        %7753 = vst [vmem:[%s191 + $0xc08] sm:$0xff] %v7241
        %7754 = vst [vmem:[%s191 + $0xc10] sm:$0xff] %v7242
        %7755 = vst [vmem:[%s191 + $0xc18] sm:$0xff] %v7243
        %7756 = vst [vmem:[%s191 + $0xc20] sm:$0xff] %v7244
        %7757 = vst [vmem:[%s191 + $0xc28] sm:$0xff] %v7245
        %7758 = vst [vmem:[%s191 + $0xc30] sm:$0xff] %v7246
        %7759 = vst [vmem:[%s191 + $0xc38] sm:$0xff] %v7247
        %7760 = vst [vmem:[%s191 + $0xc40] sm:$0xff] %v7248
        %7761 = vst [vmem:[%s191 + $0xc48] sm:$0xff] %v7249
        %7762 = vst [vmem:[%s191 + $0xc50] sm:$0xff] %v7250
        %7763 = vst [vmem:[%s191 + $0xc58] sm:$0xff] %v7251
        %7764 = vst [vmem:[%s191 + $0xc60] sm:$0xff] %v7252
        %7765 = vst [vmem:[%s191 + $0xc68] sm:$0xff] %v7253
        %7766 = vst [vmem:[%s191 + $0xc70] sm:$0xff] %v7254
        %7767 = vst [vmem:[%s191 + $0xc78] sm:$0xff] %v7255
        %7768 = vst [vmem:[%s191 + $0xc80] sm:$0xff] %v7256
        %7769 = vst [vmem:[%s191 + $0xc88] sm:$0xff] %v7257
        %7770 = vst [vmem:[%s191 + $0xc90] sm:$0xff] %v7258
        %7771 = vst [vmem:[%s191 + $0xc98] sm:$0xff] %v7259
        %7772 = vst [vmem:[%s191 + $0xca0] sm:$0xff] %v7260
        %7773 = vst [vmem:[%s191 + $0xca8] sm:$0xff] %v7261
        %7774 = vst [vmem:[%s191 + $0xcb0] sm:$0xff] %v7262
        %7775 = vst [vmem:[%s191 + $0xcb8] sm:$0xff] %v7263
        %7776 = vst [vmem:[%s191 + $0xcc0] sm:$0xff] %v7264
        %7777 = vst [vmem:[%s191 + $0xcc8] sm:$0xff] %v7265
        %7778 = vst [vmem:[%s191 + $0xcd0] sm:$0xff] %v7266
        %7779 = vst [vmem:[%s191 + $0xcd8] sm:$0xff] %v7267
        %7780 = vst [vmem:[%s191 + $0xce0] sm:$0xff] %v7268
        %7781 = vst [vmem:[%s191 + $0xce8] sm:$0xff] %v7269
        %7782 = vst [vmem:[%s191 + $0xcf0] sm:$0xff] %v7270
        %7783 = vst [vmem:[%s191 + $0xcf8] sm:$0xff] %v7271
        %7784 = vst [vmem:[%s191 + $0xd00] sm:$0xff] %v7272
        %7785 = vst [vmem:[%s191 + $0xd08] sm:$0xff] %v7273
        %7786 = vst [vmem:[%s191 + $0xd10] sm:$0xff] %v7274
        %7787 = vst [vmem:[%s191 + $0xd18] sm:$0xff] %v7275
        %7788 = vst [vmem:[%s191 + $0xd20] sm:$0xff] %v7276
        %7789 = vst [vmem:[%s191 + $0xd28] sm:$0xff] %v7277
        %7790 = vst [vmem:[%s191 + $0xd30] sm:$0xff] %v7278
        %7791 = vst [vmem:[%s191 + $0xd38] sm:$0xff] %v7279
        %7792 = vst [vmem:[%s191 + $0xd40] sm:$0xff] %v7280
        %7793 = vst [vmem:[%s191 + $0xd48] sm:$0xff] %v7281
        %7794 = vst [vmem:[%s191 + $0xd50] sm:$0xff] %v7282
        %7795 = vst [vmem:[%s191 + $0xd58] sm:$0xff] %v7283
        %7796 = vst [vmem:[%s191 + $0xd60] sm:$0xff] %v7284
        %7797 = vst [vmem:[%s191 + $0xd68] sm:$0xff] %v7285
        %7798 = vst [vmem:[%s191 + $0xd70] sm:$0xff] %v7286
        %7799 = vst [vmem:[%s191 + $0xd78] sm:$0xff] %v7287
        %7800 = vst [vmem:[%s191 + $0xd80] sm:$0xff] %v7288
        %7801 = vst [vmem:[%s191 + $0xd88] sm:$0xff] %v7289
        %7802 = vst [vmem:[%s191 + $0xd90] sm:$0xff] %v7290
        %7803 = vst [vmem:[%s191 + $0xd98] sm:$0xff] %v7291
        %7804 = vst [vmem:[%s191 + $0xda0] sm:$0xff] %v7292
        %7805 = vst [vmem:[%s191 + $0xda8] sm:$0xff] %v7293
        %7806 = vst [vmem:[%s191 + $0xdb0] sm:$0xff] %v7294
        %7807 = vst [vmem:[%s191 + $0xdb8] sm:$0xff] %v7295
        %7808 = vst [vmem:[%s191 + $0xdc0] sm:$0xff] %v7296
        %7809 = vst [vmem:[%s191 + $0xdc8] sm:$0xff] %v7297
        %7810 = vst [vmem:[%s191 + $0xdd0] sm:$0xff] %v7298
        %7811 = vst [vmem:[%s191 + $0xdd8] sm:$0xff] %v7299
        %7812 = vst [vmem:[%s191 + $0xde0] sm:$0xff] %v7300
        %7813 = vst [vmem:[%s191 + $0xde8] sm:$0xff] %v7301
        %7814 = vst [vmem:[%s191 + $0xdf0] sm:$0xff] %v7302
        %7815 = vst [vmem:[%s191 + $0xdf8] sm:$0xff] %v7303
        %7816 = vst [vmem:[%s191 + $0xe00] sm:$0xff] %v7304
        %7817 = vst [vmem:[%s191 + $0xe08] sm:$0xff] %v7305
        %7818 = vst [vmem:[%s191 + $0xe10] sm:$0xff] %v7306
        %7819 = vst [vmem:[%s191 + $0xe18] sm:$0xff] %v7307
        %7820 = vst [vmem:[%s191 + $0xe20] sm:$0xff] %v7308
        %7821 = vst [vmem:[%s191 + $0xe28] sm:$0xff] %v7309
        %7822 = vst [vmem:[%s191 + $0xe30] sm:$0xff] %v7310
        %7823 = vst [vmem:[%s191 + $0xe38] sm:$0xff] %v7311
        %7824 = vst [vmem:[%s191 + $0xe40] sm:$0xff] %v7312
        %7825 = vst [vmem:[%s191 + $0xe48] sm:$0xff] %v7313
        %7826 = vst [vmem:[%s191 + $0xe50] sm:$0xff] %v7314
        %7827 = vst [vmem:[%s191 + $0xe58] sm:$0xff] %v7315
        %7828 = vst [vmem:[%s191 + $0xe60] sm:$0xff] %v7316
        %7829 = vst [vmem:[%s191 + $0xe68] sm:$0xff] %v7317
        %7830 = vst [vmem:[%s191 + $0xe70] sm:$0xff] %v7318
        %7831 = vst [vmem:[%s191 + $0xe78] sm:$0xff] %v7319
        %7832 = vst [vmem:[%s191 + $0xe80] sm:$0xff] %v7320
        %7833 = vst [vmem:[%s191 + $0xe88] sm:$0xff] %v7321
        %7834 = vst [vmem:[%s191 + $0xe90] sm:$0xff] %v7322
        %7835 = vst [vmem:[%s191 + $0xe98] sm:$0xff] %v7323
        %7836 = vst [vmem:[%s191 + $0xea0] sm:$0xff] %v7324
        %7837 = vst [vmem:[%s191 + $0xea8] sm:$0xff] %v7325
        %7838 = vst [vmem:[%s191 + $0xeb0] sm:$0xff] %v7326
        %7839 = vst [vmem:[%s191 + $0xeb8] sm:$0xff] %v7327
        %7840 = vst [vmem:[%s191 + $0xec0] sm:$0xff] %v7328
        %7841 = vst [vmem:[%s191 + $0xec8] sm:$0xff] %v7329
        %7842 = vst [vmem:[%s191 + $0xed0] sm:$0xff] %v7330
        %7843 = vst [vmem:[%s191 + $0xed8] sm:$0xff] %v7331
        %7844 = vst [vmem:[%s191 + $0xee0] sm:$0xff] %v7332
        %7845 = vst [vmem:[%s191 + $0xee8] sm:$0xff] %v7333
        %7846 = vst [vmem:[%s191 + $0xef0] sm:$0xff] %v7334
        %7847 = vst [vmem:[%s191 + $0xef8] sm:$0xff] %v7335
        %7848 = vst [vmem:[%s191 + $0xf00] sm:$0xff] %v7336
        %7849 = vst [vmem:[%s191 + $0xf08] sm:$0xff] %v7337
        %7850 = vst [vmem:[%s191 + $0xf10] sm:$0xff] %v7338
        %7851 = vst [vmem:[%s191 + $0xf18] sm:$0xff] %v7339
        %7852 = vst [vmem:[%s191 + $0xf20] sm:$0xff] %v7340
        %7853 = vst [vmem:[%s191 + $0xf28] sm:$0xff] %v7341
        %7854 = vst [vmem:[%s191 + $0xf30] sm:$0xff] %v7342
        %7855 = vst [vmem:[%s191 + $0xf38] sm:$0xff] %v7343
        %7856 = vst [vmem:[%s191 + $0xf40] sm:$0xff] %v7344
        %7857 = vst [vmem:[%s191 + $0xf48] sm:$0xff] %v7345
        %7858 = vst [vmem:[%s191 + $0xf50] sm:$0xff] %v7346
        %7859 = vst [vmem:[%s191 + $0xf58] sm:$0xff] %v7347
        %7860 = vst [vmem:[%s191 + $0xf60] sm:$0xff] %v7348
        %7861 = vst [vmem:[%s191 + $0xf68] sm:$0xff] %v7349
        %7862 = vst [vmem:[%s191 + $0xf70] sm:$0xff] %v7350
        %7863 = vst [vmem:[%s191 + $0xf78] sm:$0xff] %v7351
        %7864 = vst [vmem:[%s191 + $0xf80] sm:$0xff] %v7352
        %7865 = vst [vmem:[%s191 + $0xf88] sm:$0xff] %v7353
        %7866 = vst [vmem:[%s191 + $0xf90] sm:$0xff] %v7354
        %7867 = vst [vmem:[%s191 + $0xf98] sm:$0xff] %v7355
        %7868 = vst [vmem:[%s191 + $0xfa0] sm:$0xff] %v7356
        %7869 = vst [vmem:[%s191 + $0xfa8] sm:$0xff] %v7357
        %7870 = vst [vmem:[%s191 + $0xfb0] sm:$0xff] %v7358
        %7871 = vst [vmem:[%s191 + $0xfb8] sm:$0xff] %v7359
        %7872 = vst [vmem:[%s191 + $0xfc0] sm:$0xff] %v7360
        %7873 = vst [vmem:[%s191 + $0xfc8] sm:$0xff] %v7361
        %7874 = vst [vmem:[%s191 + $0xfd0] sm:$0xff] %v7362
        %7875 = vst [vmem:[%s191 + $0xfd8] sm:$0xff] %v7363
        %7876 = vst [vmem:[%s191 + $0xfe0] sm:$0xff] %v7364
        %7877 = vst [vmem:[%s191 + $0xfe8] sm:$0xff] %v7365
        %7878 = vst [vmem:[%s191 + $0xff0] sm:$0xff] %v7366
        %7879 = vst [vmem:[%s191 + $0xff8] sm:$0xff] %v7367
        %s7880 = sand.u32 %s98, 1
        %s7881 = scalar_lea.sflag [#allocation6], %s7880
        %s7882 = sand.u32 %s98, 1
        %s7883 = smul.addr %s7882, 4096
        %s7884 = scalar_lea.vmem [#allocation7], %s7883
        // Predicated region
        $region37: #{tpu_custom_call.1} parent=31 // pred_check
          %p7885 = pneg %p108
        $region38: #{tpu_custom_call.1} parent=31 // pred_check_branch
          %7887 = sbr.rel (%p7885) target = $region40
        $region39: #{tpu_custom_call.1} parent=31 // pred_region
          %s7888 = smul.u32 16, %s22
          %s7890 = ssub.s32 65536, 65536
          %7891 = vsyncadd %s7881, %s7890
          %s7892 = smul.addr %s7888, 32
          %s7893 = smul.addr %s7892, 128
          %s7894 = scalar_lea.hbm %s3, %s7893
          %s7895 = sshll.u32 %s7884, 4
          %s7896 = int_to_ptr.vmem [resolvable:$true] %s7895
          %7901 = dma.vmem_to_hbm [thread:$0]  %s7896, 65536, %s7894, %s7881, 4096, 4096, 256
        $region40: #{tpu_custom_call.1} parent=31 // pred_fallthru
          _
      $region32: #{tpu_custom_call.1} parent=5 // pred_fallthru
        _
      %p7902 = scmp.le.s32.totalorder 2, %s17
      // Predicated region
      $region41: #{tpu_custom_call.1} parent=5 // pred_check
        %p7903 = pneg %p7902
      $region42: #{tpu_custom_call.1} parent=5 // pred_check_branch
        %7905 = sbr.rel (%p7903) target = $region44
      $region43: #{tpu_custom_call.1} parent=5 // pred_region
        %s7906 = ssub.s32 %s17, 2
        // Predicated region
        $region45: #{tpu_custom_call.1} parent=43 // pred_check
          %p7907 = pneg %p114
        $region46: #{tpu_custom_call.1} parent=43 // pred_check_branch
          %7909 = sbr.rel (%p7907) target = $region48
        $region47: #{tpu_custom_call.1} parent=43 // pred_region
          %s7910 = sand.u32 %s99, 1
          %s7911 = scalar_lea.sflag [#allocation6], %s7910
          %s7912 = sand.u32 %s99, 1
          %s7913 = smul.addr %s7912, 4096
          %s7914 = scalar_lea.vmem [#allocation7], %s7913
          %7915 = dma.done %s7911, 65536
        $region48: #{tpu_custom_call.1} parent=43 // pred_fallthru
          _
      $region44: #{tpu_custom_call.1} parent=5 // pred_fallthru
        _
    $region6: #{tpu_custom_call.1} parent=1 // loop_footer
      %s21 = sadd.s32 1, %s17
    $region7: #{tpu_custom_call.1} parent=1 // loop_footer_branch
      %16 = sbr.rel target = $region3
    $region8: #{tpu_custom_call.1} parent=1 // loop_exit
      _
    %7916 = vsyncpa [#allocation5], 1
    %s7917 = scalar_lea.sflag [#allocation5], 1
    %7918 = vsyncpa %s7917, 1
    %7919 = vsyncpa [#allocation6], 1
    %s7920 = scalar_lea.sflag [#allocation6], 1
    %7921 = vsyncpa %s7920, 1

</llo_original>
